<compile_context>
chip_gen: v5e
topology: v5e:2x2
jax: 0.10.0
libtpu: 0.0.40
codegen_flags: <defaults>
</compile_context>

<pallas_src>
import jax
import jax.numpy as jnp
from jax.experimental import pallas as pl
from jax.experimental.pallas import tpu as pltpu

LANES = 128  # TPU lane width; all matmul N / K dims are padded to multiples of this


def _round_up(x, m):
    return ((x + m - 1) // m) * m


def _conv_tiling(m, max_tile=1024):
    """Pick (tile_m, padded_m) so the grid length is EVEN (>= 2, engages both
    v7x TensorCores) and tile_m is a multiple of 16 sublanes (bf16 packing)."""
    n_tiles = -(-m // max_tile)
    n_tiles = max(2, n_tiles + (n_tiles & 1))       # even, at least 2
    tile_m = _round_up(-(-m // n_tiles), 16)
    return tile_m, tile_m * n_tiles


# ---------------------------------------------------------------------------
# Pallas kernels
# ---------------------------------------------------------------------------
def _conv_relu_pool_kernel(p_ref, w_ref, b_ref, o_ref):
    """Fused conv-as-matmul + bias + ReLU + 2x2 max-pool (used for conv1).

    p_ref: (4, TM, Kp) bf16 -- im2col patch rows; axis 0 = the four conv-output
           positions of each 2x2 pooling window, axis 1 = pooled output row.
    w_ref: (Kp, 128) bf16   -- (kh*kw*C zero-padded) x (OC zero-padded to 128).
    b_ref: (1, 128)  f32
    o_ref: (TM, 128) bf16   -- pooled, ReLU'd activations, lane-dense.
    """
    tm = o_ref.shape[0]
    kp = p_ref.shape[-1]
    # One stacked MXU dot over all four taps instead of 4 short push/drain runs.
    y = jnp.dot(p_ref[...].reshape(4 * tm, kp), w_ref[...],
                preferred_element_type=jnp.float32)
    y = y.reshape(4, tm, LANES)
    y = jnp.maximum(jnp.maximum(y[0], y[1]), jnp.maximum(y[2], y[3]))
    y = jnp.maximum(y + b_ref[...], 0.0)
    o_ref[...] = y.astype(o_ref.dtype)


def _conv2_mlp_kernel(p_ref, wc_ref, bc_ref, w1_ref, b1_ref,
                      w2_ref, b2_ref, w3_ref, b3_ref, o_ref):
    """conv2 + bias + ReLU + 2x2 max-pool + fc1 + ReLU + fc2 + ReLU + fc3.

    p_ref : (4, 25, TB, Kp2) bf16 -- conv2 im2col patches, axis1 = pooled
            spatial position (ho*5+wo), axis2 = batch row within this tile.
    wc_ref: (Kp2, 128) bf16, bc_ref: (1, 128) f32      -- conv2 weight / bias
    w1_ref: (25, 128, 128) bf16 -- fc1 weight, position-major blocks with the
            torch.flatten(NCHW) permutation + channel padding folded in.
    w2_ref/w3_ref: (128, 128) bf16, b*_ref: (1, 128) f32
    o_ref : (TB, 128) f32 -- fc3 logits (lanes >= 10 are zero padding).
    """
    tb = o_ref.shape[0]
    npos = p_ref.shape[1]                      # 25 pooled spatial positions
    kp = p_ref.shape[-1]

    # conv2 as one stacked matmul over (tap, position, batch) rows.
    y = jnp.dot(p_ref[...].reshape(4 * npos * tb, kp), wc_ref[...],
                preferred_element_type=jnp.float32)
    y = y.reshape(4, npos, tb, LANES)
    y = jnp.maximum(jnp.maximum(y[0], y[1]), jnp.maximum(y[2], y[3]))
    y = jnp.maximum(y + bc_ref[...], 0.0).astype(jnp.bfloat16)   # (25, TB, 128)

    # fc1: contract over (position, channel) as 25 small accumulated MXU dots.
    h = jnp.zeros((tb, LANES), jnp.float32)
    for p in range(npos):
        h = h + jnp.dot(y[p], w1_ref[p], preferred_element_type=jnp.float32)
    h = jnp.maximum(h + b1_ref[...], 0.0)

    h = jnp.dot(h.astype(jnp.bfloat16), w2_ref[...],
                preferred_element_type=jnp.float32)
    h = jnp.maximum(h + b2_ref[...], 0.0)
    h = jnp.dot(h.astype(jnp.bfloat16), w3_ref[...],
                preferred_element_type=jnp.float32)
    o_ref[...] = h + b3_ref[...]


# ---------------------------------------------------------------------------
# pallas_call wrappers
# ---------------------------------------------------------------------------
def conv_relu_pool(patches4, w_pad, b_pad, *, tile_m):
    _, mp, kp = patches4.shape
    return pl.pallas_call(
        _conv_relu_pool_kernel,
        out_shape=jax.ShapeDtypeStruct((mp, LANES), jnp.bfloat16),
        grid_spec=pltpu.PrefetchScalarGridSpec(
            num_scalar_prefetch=0,
            grid=(mp // tile_m,),            # always even -> both v7x TCs busy
            in_specs=[
                pl.BlockSpec((4, tile_m, kp), lambda i: (0, i, 0)),
                pl.BlockSpec((kp, LANES), lambda i: (0, 0)),
                pl.BlockSpec((1, LANES), lambda i: (0, 0)),
            ],
            out_specs=pl.BlockSpec((tile_m, LANES), lambda i: (i, 0)),
        ),
        compiler_params=pltpu.CompilerParams(
            dimension_semantics=("parallel",),
            vmem_limit_bytes=32 * 1024 * 1024,   # fits every generation incl. v7x
        ),
    )(patches4, w_pad, b_pad)


def conv2_mlp(patches4, prep, *, tile_b):
    _, npos, bp, kp = patches4.shape
    return pl.pallas_call(
        _conv2_mlp_kernel,
        out_shape=jax.ShapeDtypeStruct((bp, LANES), jnp.float32),
        grid_spec=pltpu.PrefetchScalarGridSpec(
            num_scalar_prefetch=0,
            grid=(bp // tile_b,),
            in_specs=[
                pl.BlockSpec((4, npos, tile_b, kp), lambda i: (0, 0, i, 0)),
                pl.BlockSpec((kp, LANES), lambda i: (0, 0)),
                pl.BlockSpec((1, LANES), lambda i: (0, 0)),
                pl.BlockSpec((npos, LANES, LANES), lambda i: (0, 0, 0)),
                pl.BlockSpec((1, LANES), lambda i: (0, 0)),
                pl.BlockSpec((LANES, LANES), lambda i: (0, 0)),
                pl.BlockSpec((1, LANES), lambda i: (0, 0)),
                pl.BlockSpec((LANES, LANES), lambda i: (0, 0)),
                pl.BlockSpec((1, LANES), lambda i: (0, 0)),
            ],
            out_specs=pl.BlockSpec((tile_b, LANES), lambda i: (i, 0)),
        ),
        compiler_params=pltpu.CompilerParams(
            dimension_semantics=("parallel",),
            vmem_limit_bytes=32 * 1024 * 1024,
        ),
    )(patches4, prep["conv2_w"], prep["conv2_b"],
      prep["fc1_w"], prep["fc1_b"],
      prep["fc2_w"], prep["fc2_b"],
      prep["fc3_w"], prep["fc3_b"])


# ---------------------------------------------------------------------------
# XLA glue: pooling-grouped im2col patches (bf16, tiny at these shapes)
# ---------------------------------------------------------------------------
def _pooled_patches(x_nhwc, k, *, batch_major=True):
    B, H, W, C = x_nhwc.shape
    OH, OW = H - k + 1, W - k + 1
    Ho, Wo = OH // 2, OW // 2
    taps = [x_nhwc[:, i:i + OH, j:j + OW, :] for i in range(k) for j in range(k)]
    p = jnp.concatenate(taps, axis=-1)                      # (B, OH, OW, k*k*C)
    K = k * k * C                                           # feature order (kh,kw,c)
    p = p.reshape(B, Ho, 2, Wo, 2, K)
    if batch_major:
        # (4, B*Ho*Wo, K): rows ordered (b, ho, wo) -- conv1 path.
        p = jnp.transpose(p, (2, 4, 0, 1, 3, 5)).reshape(4, B * Ho * Wo, K)
    else:
        # (4, Ho*Wo, B, K): position-major -- fused conv2+MLP path.
        p = jnp.transpose(p, (2, 4, 1, 3, 0, 5)).reshape(4, Ho * Wo, B, K)
    return p, (Ho, Wo)


def _conv1_layer(x_nhwc, w_pad, b_pad):
    B = x_nhwc.shape[0]
    p, (Ho, Wo) = _pooled_patches(x_nhwc, 5)                # bf16 already
    K = p.shape[-1]
    Kp = w_pad.shape[0]
    M = B * Ho * Wo
    tile_m, Mp = _conv_tiling(M)
    p = jnp.pad(p, ((0, 0), (0, Mp - M), (0, Kp - K)))      # stays bf16
    y = conv_relu_pool(p, w_pad, b_pad, tile_m=tile_m)      # (Mp, 128) bf16
    return y[:M], (Ho, Wo)


# ---------------------------------------------------------------------------
# Parameters: PyTorch-style init + one-time TPU-friendly preprocessing
# ---------------------------------------------------------------------------
def init_params(key):
    ks = jax.random.split(key, 10)

    def u(k, shape, fan_in):
        bound = 1.0 / jnp.sqrt(jnp.float32(fan_in))
        return jax.random.uniform(k, shape, jnp.float32, -bound, bound)

    return {
        "conv1_w": u(ks[0], (6, 3, 5, 5), 3 * 25),
        "conv1_b": u(ks[1], (6,), 3 * 25),
        "conv2_w": u(ks[2], (16, 6, 5, 5), 6 * 25),
        "conv2_b": u(ks[3], (16,), 6 * 25),
        "fc1_w": u(ks[4], (120, 16 * 5 * 5), 16 * 5 * 5),
        "fc1_b": u(ks[5], (120,), 16 * 5 * 5),
        "fc2_w": u(ks[6], (84, 120), 120),
        "fc2_b": u(ks[7], (84,), 120),
        "fc3_w": u(ks[8], (10, 84), 84),
        "fc3_b": u(ks[9], (10,), 84),
    }


def prepare_params(params):
    """One-time weight prep: transpose, zero-pad K/N to 128 lanes, bf16 cast,
    and fold the torch.flatten(NCHW) permutation + channel padding of the conv2
    output into fc1's weight, kept as (25, 128, 128) position-major blocks."""

    def conv_w(w_oihw):
        oc, ic, kh, kw = w_oihw.shape
        wm = jnp.transpose(w_oihw, (2, 3, 1, 0)).reshape(kh * kw * ic, oc)  # (kh,kw,c) rows
        kp = _round_up(kh * kw * ic, LANES)
        wm = jnp.pad(wm, ((0, kp - kh * kw * ic), (0, LANES - oc)))
        return wm.astype(jnp.bfloat16)

    def bias(b):
        return jnp.pad(b, (0, LANES - b.shape[0])).reshape(1, LANES).astype(jnp.float32)

    # fc1 feature index f = c*25 + h*5 + w (torch flatten of NCHW).  The fused
    # kernel consumes the conv2 pooled slab as (position, batch, c128), so
    # store fc1 as 25 position-major (c128, out128) blocks.
    w1 = params["fc1_w"].T.reshape(16, 5, 5, 120)            # [c, h, w, out]
    w1 = jnp.transpose(w1, (1, 2, 0, 3))                     # [h, w, c, out]
    w1 = jnp.pad(w1, ((0, 0), (0, 0), (0, LANES - 16), (0, LANES - 120)))
    w1 = w1.reshape(25, LANES, LANES).astype(jnp.bfloat16)

    def fc_w(w):                                             # (out,in) -> (in_p, 128)
        o, i = w.shape
        return jnp.pad(w.T, ((0, _round_up(i, LANES) - i),
                             (0, LANES - o))).astype(jnp.bfloat16)

    return {
        "conv1_w": conv_w(params["conv1_w"]), "conv1_b": bias(params["conv1_b"]),
        "conv2_w": conv_w(params["conv2_w"]), "conv2_b": bias(params["conv2_b"]),
        "fc1_w": w1, "fc1_b": bias(params["fc1_b"]),
        "fc2_w": fc_w(params["fc2_w"]), "fc2_b": bias(params["fc2_b"]),
        "fc3_w": fc_w(params["fc3_w"]), "fc3_b": bias(params["fc3_b"]),
    }


# ---------------------------------------------------------------------------
# Forward pass (matches PyTorch Net.forward semantics)
# ---------------------------------------------------------------------------
@jax.jit
def net_forward(prep, x_nchw):
    # NCHW -> NHWC, cast to bf16 up front so ALL im2col glue moves half the bytes.
    x = jnp.transpose(x_nchw.astype(jnp.bfloat16), (0, 2, 3, 1))   # (B,32,32,3)
    B = x.shape[0]

    # conv1 -> ReLU -> maxpool(2,2)   (one gridded Pallas kernel, bf16 out)
    y1, (h1, w1) = _conv1_layer(x, prep["conv1_w"], prep["conv1_b"])
    a1 = y1.reshape(B, h1, w1, LANES)[..., :6]                     # (B,14,14,6) bf16

    # conv2 -> ReLU -> maxpool -> fc1 -> ReLU -> fc2 -> ReLU -> fc3
    # all fused into ONE Pallas kernel gridded over batch tiles.
    Bp = _round_up(B, 16)                                          # bf16 sublane pack
    tile_b = min(Bp, 64)                                           # VMEM-safe everywhere
    Bp = _round_up(Bp, tile_b)
    p2, _ = _pooled_patches(a1, 5, batch_major=False)              # (4,25,B,150) bf16
    Kp2 = prep["conv2_w"].shape[0]
    # Padded batch rows only feed padded output rows (sliced off below).
    p2 = jnp.pad(p2, ((0, 0), (0, 0), (0, Bp - B), (0, Kp2 - p2.shape[-1])))
    out = conv2_mlp(p2, prep, tile_b=tile_b)                       # (Bp, 128) f32
    return out[:B, :10]


if __name__ == "__main__":
    key = jax.random.PRNGKey(0)
    pkey, xkey = jax.random.split(key)
    params = init_params(pkey)
    prep = prepare_params(params)     # one-time weight preprocessing
    x = jax.random.normal(xkey, (2, 3, 32, 32), dtype=jnp.float32)  # NCHW input
    out = net_forward(prep, x)
    out = jax.block_until_ready(out)
    assert out.shape == (2, 10), out.shape
    assert bool(jnp.all(jnp.isfinite(out)))
    print("KERNEL_OK")
</pallas_src>

<mosaic_0001>
module attributes {stable_mosaic.version = 11 : i64} {
  func.func @_conv_relu_pool_kernel(%arg0: i32, %arg1: memref<4x208x128xbf16, #tpu.memory_space<vmem>>, %arg2: memref<128x128xbf16, #tpu.memory_space<vmem>>, %arg3: memref<1x128xf32, #tpu.memory_space<vmem>>, %arg4: memref<208x128xbf16, #tpu.memory_space<vmem>>) attributes {dimension_semantics = [#tpu.dimension_semantics<parallel>], iteration_bounds = array<i64: 2>, scalar_prefetch = 0 : i64, scratch_operands = 0 : i64, tpu.core_type = #tpu.core_type<tc>, window_params = [{transform_indices = @transform_0, window_bounds = array<i64: 4, 208, 128>}, {pipeline_mode = #tpu.pipeline_mode<synchronous>, transform_indices = @transform_1, window_bounds = array<i64: 128, 128>}, {pipeline_mode = #tpu.pipeline_mode<synchronous>, transform_indices = @transform_2, window_bounds = array<i64: 1, 128>}, {transform_indices = @transform_3, window_bounds = array<i64: 208, 128>}]} {
    %c0 = arith.constant 0 : index
    %c0_0 = arith.constant 0 : index
    %c0_1 = arith.constant 0 : index
    %0 = vector.load %arg1[%c0, %c0_0, %c0_1] : memref<4x208x128xbf16, #tpu.memory_space<vmem>>, vector<4x208x128xbf16>
    %1 = vector.shape_cast %0 : vector<4x208x128xbf16> to vector<832x128xbf16>
    %c0_2 = arith.constant 0 : index
    %c0_3 = arith.constant 0 : index
    %2 = vector.load %arg2[%c0_2, %c0_3] : memref<128x128xbf16, #tpu.memory_space<vmem>>, vector<128x128xbf16>
    %cst = arith.constant dense<0.000000e+00> : vector<832x128xf32>
    %3 = tpu.matmul %1, %2, %cst {dimension_numbers = #tpu.dot_dimension_numbers<[1], [0], [0], [1], [0, 0, 1, 1], [], []>} : vector<832x128xbf16>, vector<128x128xbf16>, vector<832x128xf32> -> vector<832x128xf32>
    %4 = vector.shape_cast %3 : vector<832x128xf32> to vector<4x208x128xf32>
    %5 = vector.extract_strided_slice %4 {offsets = [0, 0, 0], sizes = [1, 208, 128], strides = [1, 1, 1]} : vector<4x208x128xf32> to vector<1x208x128xf32>
    %6 = vector.shape_cast %5 : vector<1x208x128xf32> to vector<208x128xf32>
    %7 = vector.extract_strided_slice %4 {offsets = [1, 0, 0], sizes = [1, 208, 128], strides = [1, 1, 1]} : vector<4x208x128xf32> to vector<1x208x128xf32>
    %8 = vector.shape_cast %7 : vector<1x208x128xf32> to vector<208x128xf32>
    %9 = arith.maximumf %6, %8 : vector<208x128xf32>
    %10 = vector.extract_strided_slice %4 {offsets = [2, 0, 0], sizes = [1, 208, 128], strides = [1, 1, 1]} : vector<4x208x128xf32> to vector<1x208x128xf32>
    %11 = vector.shape_cast %10 : vector<1x208x128xf32> to vector<208x128xf32>
    %12 = vector.extract_strided_slice %4 {offsets = [3, 0, 0], sizes = [1, 208, 128], strides = [1, 1, 1]} : vector<4x208x128xf32> to vector<1x208x128xf32>
    %13 = vector.shape_cast %12 : vector<1x208x128xf32> to vector<208x128xf32>
    %14 = arith.maximumf %11, %13 : vector<208x128xf32>
    %15 = arith.maximumf %9, %14 : vector<208x128xf32>
    %c0_4 = arith.constant 0 : index
    %c0_5 = arith.constant 0 : index
    %16 = vector.load %arg3[%c0_4, %c0_5] : memref<1x128xf32, #tpu.memory_space<vmem>>, vector<1x128xf32>
    %17 = vector.broadcast %16 : vector<1x128xf32> to vector<208x128xf32>
    %18 = arith.addf %15, %17 : vector<208x128xf32>
    %cst_6 = arith.constant 0.000000e+00 : f32
    %19 = vector.broadcast %cst_6 : f32 to vector<208x128xf32>
    %20 = arith.maximumf %18, %19 : vector<208x128xf32>
    %21 = arith.truncf %20 : vector<208x128xf32> to vector<208x128xbf16>
    %c0_7 = arith.constant 0 : index
    %c0_8 = arith.constant 0 : index
    %22 = vector.load %arg4[%c0_7, %c0_8] : memref<208x128xbf16, #tpu.memory_space<vmem>>, vector<208x128xbf16>
    tpu.vector_store %arg4[%c0_7, %c0_8], %21 {strides = array<i32>} : memref<208x128xbf16, #tpu.memory_space<vmem>>, vector<208x128xbf16>,
    return
  }
  func.func @transform_0(%arg0: i32) -> (i32, i32, i32) {
    %c0_i32 = arith.constant 0 : i32
    %c0_i32_0 = arith.constant 0 : i32
    %c0_i32_1 = arith.constant 0 : i32
    return %c0_i32, %arg0, %c0_i32_0 : i32, i32, i32
  }
  func.func @transform_1(%arg0: i32) -> (i32, i32) {
    %c0_i32 = arith.constant 0 : i32
    %c0_i32_0 = arith.constant 0 : i32
    %c0_i32_1 = arith.constant 0 : i32
    return %c0_i32, %c0_i32_0 : i32, i32
  }
  func.func @transform_2(%arg0: i32) -> (i32, i32) {
    %c0_i32 = arith.constant 0 : i32
    %c0_i32_0 = arith.constant 0 : i32
    %c0_i32_1 = arith.constant 0 : i32
    return %c0_i32, %c0_i32_0 : i32, i32
  }
  func.func @transform_3(%arg0: i32) -> (i32, i32) {
    %c0_i32 = arith.constant 0 : i32
    %c0_i32_0 = arith.constant 0 : i32
    return %arg0, %c0_i32 : i32, i32
  }
}

module attributes {stable_mosaic.version = 11 : i64} {
  func.func @_conv2_mlp_kernel(%arg0: i32, %arg1: memref<4x25x16x256xbf16, #tpu.memory_space<vmem>>, %arg2: memref<256x128xbf16, #tpu.memory_space<vmem>>, %arg3: memref<1x128xf32, #tpu.memory_space<vmem>>, %arg4: memref<25x128x128xbf16, #tpu.memory_space<vmem>>, %arg5: memref<1x128xf32, #tpu.memory_space<vmem>>, %arg6: memref<128x128xbf16, #tpu.memory_space<vmem>>, %arg7: memref<1x128xf32, #tpu.memory_space<vmem>>, %arg8: memref<128x128xbf16, #tpu.memory_space<vmem>>, %arg9: memref<1x128xf32, #tpu.memory_space<vmem>>, %arg10: memref<16x128xf32, #tpu.memory_space<vmem>>) attributes {dimension_semantics = [#tpu.dimension_semantics<parallel>], iteration_bounds = array<i64: 1>, scalar_prefetch = 0 : i64, scratch_operands = 0 : i64, tpu.core_type = #tpu.core_type<tc>, window_params = [{transform_indices = @transform_0, window_bounds = array<i64: 4, 25, 16, 256>}, {pipeline_mode = #tpu.pipeline_mode<synchronous>, transform_indices = @transform_1, window_bounds = array<i64: 256, 128>}, {pipeline_mode = #tpu.pipeline_mode<synchronous>, transform_indices = @transform_2, window_bounds = array<i64: 1, 128>}, {pipeline_mode = #tpu.pipeline_mode<synchronous>, transform_indices = @transform_3, window_bounds = array<i64: 25, 128, 128>}, {pipeline_mode = #tpu.pipeline_mode<synchronous>, transform_indices = @transform_4, window_bounds = array<i64: 1, 128>}, {pipeline_mode = #tpu.pipeline_mode<synchronous>, transform_indices = @transform_5, window_bounds = array<i64: 128, 128>}, {pipeline_mode = #tpu.pipeline_mode<synchronous>, transform_indices = @transform_6, window_bounds = array<i64: 1, 128>}, {pipeline_mode = #tpu.pipeline_mode<synchronous>, transform_indices = @transform_7, window_bounds = array<i64: 128, 128>}, {pipeline_mode = #tpu.pipeline_mode<synchronous>, transform_indices = @transform_8, window_bounds = array<i64: 1, 128>}, {transform_indices = @transform_9, window_bounds = array<i64: 16, 128>}]} {
    %c0 = arith.constant 0 : index
    %c0_0 = arith.constant 0 : index
    %c0_1 = arith.constant 0 : index
    %c0_2 = arith.constant 0 : index
    %0 = vector.load %arg1[%c0, %c0_0, %c0_1, %c0_2] : memref<4x25x16x256xbf16, #tpu.memory_space<vmem>>, vector<4x25x16x256xbf16>
    %1 = vector.shape_cast %0 : vector<4x25x16x256xbf16> to vector<1600x256xbf16>
    %c0_3 = arith.constant 0 : index
    %c0_4 = arith.constant 0 : index
    %2 = vector.load %arg2[%c0_3, %c0_4] : memref<256x128xbf16, #tpu.memory_space<vmem>>, vector<256x128xbf16>
    %cst = arith.constant dense<0.000000e+00> : vector<1600x128xf32>
    %3 = tpu.matmul %1, %2, %cst {dimension_numbers = #tpu.dot_dimension_numbers<[1], [0], [0], [1], [0, 0, 1, 1], [], []>} : vector<1600x256xbf16>, vector<256x128xbf16>, vector<1600x128xf32> -> vector<1600x128xf32>
    %4 = vector.shape_cast %3 : vector<1600x128xf32> to vector<4x25x16x128xf32>
    %5 = vector.extract_strided_slice %4 {offsets = [0, 0, 0, 0], sizes = [1, 25, 16, 128], strides = [1, 1, 1, 1]} : vector<4x25x16x128xf32> to vector<1x25x16x128xf32>
    %6 = vector.shape_cast %5 : vector<1x25x16x128xf32> to vector<25x16x128xf32>
    %7 = vector.extract_strided_slice %4 {offsets = [1, 0, 0, 0], sizes = [1, 25, 16, 128], strides = [1, 1, 1, 1]} : vector<4x25x16x128xf32> to vector<1x25x16x128xf32>
    %8 = vector.shape_cast %7 : vector<1x25x16x128xf32> to vector<25x16x128xf32>
    %9 = arith.maximumf %6, %8 : vector<25x16x128xf32>
    %10 = vector.extract_strided_slice %4 {offsets = [2, 0, 0, 0], sizes = [1, 25, 16, 128], strides = [1, 1, 1, 1]} : vector<4x25x16x128xf32> to vector<1x25x16x128xf32>
    %11 = vector.shape_cast %10 : vector<1x25x16x128xf32> to vector<25x16x128xf32>
    %12 = vector.extract_strided_slice %4 {offsets = [3, 0, 0, 0], sizes = [1, 25, 16, 128], strides = [1, 1, 1, 1]} : vector<4x25x16x128xf32> to vector<1x25x16x128xf32>
    %13 = vector.shape_cast %12 : vector<1x25x16x128xf32> to vector<25x16x128xf32>
    %14 = arith.maximumf %11, %13 : vector<25x16x128xf32>
    %15 = arith.maximumf %9, %14 : vector<25x16x128xf32>
    %c0_5 = arith.constant 0 : index
    %c0_6 = arith.constant 0 : index
    %16 = vector.load %arg3[%c0_5, %c0_6] : memref<1x128xf32, #tpu.memory_space<vmem>>, vector<1x128xf32>
    %17 = vector.shape_cast %16 : vector<1x128xf32> to vector<1x1x128xf32>
    %18 = vector.broadcast %17 : vector<1x1x128xf32> to vector<25x16x128xf32>
    %19 = arith.addf %15, %18 : vector<25x16x128xf32>
    %cst_7 = arith.constant 0.000000e+00 : f32
    %20 = vector.broadcast %cst_7 : f32 to vector<25x16x128xf32>
    %21 = arith.maximumf %19, %20 : vector<25x16x128xf32>
    %22 = arith.truncf %21 : vector<25x16x128xf32> to vector<25x16x128xbf16>
    %cst_8 = arith.constant 0.000000e+00 : f32
    %23 = vector.broadcast %cst_8 : f32 to vector<16x128xf32>
    %24 = vector.extract_strided_slice %22 {offsets = [0, 0, 0], sizes = [1, 16, 128], strides = [1, 1, 1]} : vector<25x16x128xbf16> to vector<1x16x128xbf16>
    %25 = vector.shape_cast %24 : vector<1x16x128xbf16> to vector<16x128xbf16>
    %c0_9 = arith.constant 0 : index
    %c0_10 = arith.constant 0 : index
    %c0_11 = arith.constant 0 : index
    %26 = vector.load %arg4[%c0_9, %c0_10, %c0_11] : memref<25x128x128xbf16, #tpu.memory_space<vmem>>, vector<1x128x128xbf16>
    %27 = vector.shape_cast %26 : vector<1x128x128xbf16> to vector<128x128xbf16>
    %cst_12 = arith.constant dense<0.000000e+00> : vector<16x128xf32>
    %28 = tpu.matmul %25, %27, %cst_12 {dimension_numbers = #tpu.dot_dimension_numbers<[1], [0], [0], [1], [0, 0, 1, 1], [], []>} : vector<16x128xbf16>, vector<128x128xbf16>, vector<16x128xf32> -> vector<16x128xf32>
    %29 = arith.addf %23, %28 : vector<16x128xf32>
    %30 = vector.extract_strided_slice %22 {offsets = [1, 0, 0], sizes = [1, 16, 128], strides = [1, 1, 1]} : vector<25x16x128xbf16> to vector<1x16x128xbf16>
    %31 = vector.shape_cast %30 : vector<1x16x128xbf16> to vector<16x128xbf16>
    %c1 = arith.constant 1 : index
    %c0_13 = arith.constant 0 : index
    %c0_14 = arith.constant 0 : index
    %32 = vector.load %arg4[%c1, %c0_13, %c0_14] : memref<25x128x128xbf16, #tpu.memory_space<vmem>>, vector<1x128x128xbf16>
    %33 = vector.shape_cast %32 : vector<1x128x128xbf16> to vector<128x128xbf16>
    %cst_15 = arith.constant dense<0.000000e+00> : vector<16x128xf32>
    %34 = tpu.matmul %31, %33, %cst_15 {dimension_numbers = #tpu.dot_dimension_numbers<[1], [0], [0], [1], [0, 0, 1, 1], [], []>} : vector<16x128xbf16>, vector<128x128xbf16>, vector<16x128xf32> -> vector<16x128xf32>
    %35 = arith.addf %29, %34 : vector<16x128xf32>
    %36 = vector.extract_strided_slice %22 {offsets = [2, 0, 0], sizes = [1, 16, 128], strides = [1, 1, 1]} : vector<25x16x128xbf16> to vector<1x16x128xbf16>
    %37 = vector.shape_cast %36 : vector<1x16x128xbf16> to vector<16x128xbf16>
    %c2 = arith.constant 2 : index
    %c0_16 = arith.constant 0 : index
    %c0_17 = arith.constant 0 : index
    %38 = vector.load %arg4[%c2, %c0_16, %c0_17] : memref<25x128x128xbf16, #tpu.memory_space<vmem>>, vector<1x128x128xbf16>
    %39 = vector.shape_cast %38 : vector<1x128x128xbf16> to vector<128x128xbf16>
    %cst_18 = arith.constant dense<0.000000e+00> : vector<16x128xf32>
    %40 = tpu.matmul %37, %39, %cst_18 {dimension_numbers = #tpu.dot_dimension_numbers<[1], [0], [0], [1], [0, 0, 1, 1], [], []>} : vector<16x128xbf16>, vector<128x128xbf16>, vector<16x128xf32> -> vector<16x128xf32>
    %41 = arith.addf %35, %40 : vector<16x128xf32>
    %42 = vector.extract_strided_slice %22 {offsets = [3, 0, 0], sizes = [1, 16, 128], strides = [1, 1, 1]} : vector<25x16x128xbf16> to vector<1x16x128xbf16>
    %43 = vector.shape_cast %42 : vector<1x16x128xbf16> to vector<16x128xbf16>
    %c3 = arith.constant 3 : index
    %c0_19 = arith.constant 0 : index
    %c0_20 = arith.constant 0 : index
    %44 = vector.load %arg4[%c3, %c0_19, %c0_20] : memref<25x128x128xbf16, #tpu.memory_space<vmem>>, vector<1x128x128xbf16>
    %45 = vector.shape_cast %44 : vector<1x128x128xbf16> to vector<128x128xbf16>
    %cst_21 = arith.constant dense<0.000000e+00> : vector<16x128xf32>
    %46 = tpu.matmul %43, %45, %cst_21 {dimension_numbers = #tpu.dot_dimension_numbers<[1], [0], [0], [1], [0, 0, 1, 1], [], []>} : vector<16x128xbf16>, vector<128x128xbf16>, vector<16x128xf32> -> vector<16x128xf32>
    %47 = arith.addf %41, %46 : vector<16x128xf32>
    %48 = vector.extract_strided_slice %22 {offsets = [4, 0, 0], sizes = [1, 16, 128], strides = [1, 1, 1]} : vector<25x16x128xbf16> to vector<1x16x128xbf16>
    %49 = vector.shape_cast %48 : vector<1x16x128xbf16> to vector<16x128xbf16>
    %c4 = arith.constant 4 : index
    %c0_22 = arith.constant 0 : index
    %c0_23 = arith.constant 0 : index
    %50 = vector.load %arg4[%c4, %c0_22, %c0_23] : memref<25x128x128xbf16, #tpu.memory_space<vmem>>, vector<1x128x128xbf16>
    %51 = vector.shape_cast %50 : vector<1x128x128xbf16> to vector<128x128xbf16>
    %cst_24 = arith.constant dense<0.000000e+00> : vector<16x128xf32>
    %52 = tpu.matmul %49, %51, %cst_24 {dimension_numbers = #tpu.dot_dimension_numbers<[1], [0], [0], [1], [0, 0, 1, 1], [], []>} : vector<16x128xbf16>, vector<128x128xbf16>, vector<16x128xf32> -> vector<16x128xf32>
    %53 = arith.addf %47, %52 : vector<16x128xf32>
    %54 = vector.extract_strided_slice %22 {offsets = [5, 0, 0], sizes = [1, 16, 128], strides = [1, 1, 1]} : vector<25x16x128xbf16> to vector<1x16x128xbf16>
    %55 = vector.shape_cast %54 : vector<1x16x128xbf16> to vector<16x128xbf16>
    %c5 = arith.constant 5 : index
    %c0_25 = arith.constant 0 : index
    %c0_26 = arith.constant 0 : index
    %56 = vector.load %arg4[%c5, %c0_25, %c0_26] : memref<25x128x128xbf16, #tpu.memory_space<vmem>>, vector<1x128x128xbf16>
    %57 = vector.shape_cast %56 : vector<1x128x128xbf16> to vector<128x128xbf16>
    %cst_27 = arith.constant dense<0.000000e+00> : vector<16x128xf32>
    %58 = tpu.matmul %55, %57, %cst_27 {dimension_numbers = #tpu.dot_dimension_numbers<[1], [0], [0], [1], [0, 0, 1, 1], [], []>} : vector<16x128xbf16>, vector<128x128xbf16>, vector<16x128xf32> -> vector<16x128xf32>
    %59 = arith.addf %53, %58 : vector<16x128xf32>
    %60 = vector.extract_strided_slice %22 {offsets = [6, 0, 0], sizes = [1, 16, 128], strides = [1, 1, 1]} : vector<25x16x128xbf16> to vector<1x16x128xbf16>
    %61 = vector.shape_cast %60 : vector<1x16x128xbf16> to vector<16x128xbf16>
    %c6 = arith.constant 6 : index
    %c0_28 = arith.constant 0 : index
    %c0_29 = arith.constant 0 : index
    %62 = vector.load %arg4[%c6, %c0_28, %c0_29] : memref<25x128x128xbf16, #tpu.memory_space<vmem>>, vector<1x128x128xbf16>
    %63 = vector.shape_cast %62 : vector<1x128x128xbf16> to vector<128x128xbf16>
    %cst_30 = arith.constant dense<0.000000e+00> : vector<16x128xf32>
    %64 = tpu.matmul %61, %63, %cst_30 {dimension_numbers = #tpu.dot_dimension_numbers<[1], [0], [0], [1], [0, 0, 1, 1], [], []>} : vector<16x128xbf16>, vector<128x128xbf16>, vector<16x128xf32> -> vector<16x128xf32>
    %65 = arith.addf %59, %64 : vector<16x128xf32>
    %66 = vector.extract_strided_slice %22 {offsets = [7, 0, 0], sizes = [1, 16, 128], strides = [1, 1, 1]} : vector<25x16x128xbf16> to vector<1x16x128xbf16>
    %67 = vector.shape_cast %66 : vector<1x16x128xbf16> to vector<16x128xbf16>
    %c7 = arith.constant 7 : index
    %c0_31 = arith.constant 0 : index
    %c0_32 = arith.constant 0 : index
    %68 = vector.load %arg4[%c7, %c0_31, %c0_32] : memref<25x128x128xbf16, #tpu.memory_space<vmem>>, vector<1x128x128xbf16>
    %69 = vector.shape_cast %68 : vector<1x128x128xbf16> to vector<128x128xbf16>
    %cst_33 = arith.constant dense<0.000000e+00> : vector<16x128xf32>
    %70 = tpu.matmul %67, %69, %cst_33 {dimension_numbers = #tpu.dot_dimension_numbers<[1], [0], [0], [1], [0, 0, 1, 1], [], []>} : vector<16x128xbf16>, vector<128x128xbf16>, vector<16x128xf32> -> vector<16x128xf32>
    %71 = arith.addf %65, %70 : vector<16x128xf32>
    %72 = vector.extract_strided_slice %22 {offsets = [8, 0, 0], sizes = [1, 16, 128], strides = [1, 1, 1]} : vector<25x16x128xbf16> to vector<1x16x128xbf16>
    %73 = vector.shape_cast %72 : vector<1x16x128xbf16> to vector<16x128xbf16>
    %c8 = arith.constant 8 : index
    %c0_34 = arith.constant 0 : index
    %c0_35 = arith.constant 0 : index
    %74 = vector.load %arg4[%c8, %c0_34, %c0_35] : memref<25x128x128xbf16, #tpu.memory_space<vmem>>, vector<1x128x128xbf16>
    %75 = vector.shape_cast %74 : vector<1x128x128xbf16> to vector<128x128xbf16>
    %cst_36 = arith.constant dense<0.000000e+00> : vector<16x128xf32>
    %76 = tpu.matmul %73, %75, %cst_36 {dimension_numbers = #tpu.dot_dimension_numbers<[1], [0], [0], [1], [0, 0, 1, 1], [], []>} : vector<16x128xbf16>, vector<128x128xbf16>, vector<16x128xf32> -> vector<16x128xf32>
    %77 = arith.addf %71, %76 : vector<16x128xf32>
    %78 = vector.extract_strided_slice %22 {offsets = [9, 0, 0], sizes = [1, 16, 128], strides = [1, 1, 1]} : vector<25x16x128xbf16> to vector<1x16x128xbf16>
    %79 = vector.shape_cast %78 : vector<1x16x128xbf16> to vector<16x128xbf16>
    %c9 = arith.constant 9 : index
    %c0_37 = arith.constant 0 : index
    %c0_38 = arith.constant 0 : index
    %80 = vector.load %arg4[%c9, %c0_37, %c0_38] : memref<25x128x128xbf16, #tpu.memory_space<vmem>>, vector<1x128x128xbf16>
    %81 = vector.shape_cast %80 : vector<1x128x128xbf16> to vector<128x128xbf16>
    %cst_39 = arith.constant dense<0.000000e+00> : vector<16x128xf32>
    %82 = tpu.matmul %79, %81, %cst_39 {dimension_numbers = #tpu.dot_dimension_numbers<[1], [0], [0], [1], [0, 0, 1, 1], [], []>} : vector<16x128xbf16>, vector<128x128xbf16>, vector<16x128xf32> -> vector<16x128xf32>
    %83 = arith.addf %77, %82 : vector<16x128xf32>
    %84 = vector.extract_strided_slice %22 {offsets = [10, 0, 0], sizes = [1, 16, 128], strides = [1, 1, 1]} : vector<25x16x128xbf16> to vector<1x16x128xbf16>
    %85 = vector.shape_cast %84 : vector<1x16x128xbf16> to vector<16x128xbf16>
    %c10 = arith.constant 10 : index
    %c0_40 = arith.constant 0 : index
    %c0_41 = arith.constant 0 : index
    %86 = vector.load %arg4[%c10, %c0_40, %c0_41] : memref<25x128x128xbf16, #tpu.memory_space<vmem>>, vector<1x128x128xbf16>
    %87 = vector.shape_cast %86 : vector<1x128x128xbf16> to vector<128x128xbf16>
    %cst_42 = arith.constant dense<0.000000e+00> : vector<16x128xf32>
    %88 = tpu.matmul %85, %87, %cst_42 {dimension_numbers = #tpu.dot_dimension_numbers<[1], [0], [0], [1], [0, 0, 1, 1], [], []>} : vector<16x128xbf16>, vector<128x128xbf16>, vector<16x128xf32> -> vector<16x128xf32>
    %89 = arith.addf %83, %88 : vector<16x128xf32>
    %90 = vector.extract_strided_slice %22 {offsets = [11, 0, 0], sizes = [1, 16, 128], strides = [1, 1, 1]} : vector<25x16x128xbf16> to vector<1x16x128xbf16>
    %91 = vector.shape_cast %90 : vector<1x16x128xbf16> to vector<16x128xbf16>
    %c11 = arith.constant 11 : index
    %c0_43 = arith.constant 0 : index
    %c0_44 = arith.constant 0 : index
    %92 = vector.load %arg4[%c11, %c0_43, %c0_44] : memref<25x128x128xbf16, #tpu.memory_space<vmem>>, vector<1x128x128xbf16>
    %93 = vector.shape_cast %92 : vector<1x128x128xbf16> to vector<128x128xbf16>
    %cst_45 = arith.constant dense<0.000000e+00> : vector<16x128xf32>
    %94 = tpu.matmul %91, %93, %cst_45 {dimension_numbers = #tpu.dot_dimension_numbers<[1], [0], [0], [1], [0, 0, 1, 1], [], []>} : vector<16x128xbf16>, vector<128x128xbf16>, vector<16x128xf32> -> vector<16x128xf32>
    %95 = arith.addf %89, %94 : vector<16x128xf32>
    %96 = vector.extract_strided_slice %22 {offsets = [12, 0, 0], sizes = [1, 16, 128], strides = [1, 1, 1]} : vector<25x16x128xbf16> to vector<1x16x128xbf16>
    %97 = vector.shape_cast %96 : vector<1x16x128xbf16> to vector<16x128xbf16>
    %c12 = arith.constant 12 : index
    %c0_46 = arith.constant 0 : index
    %c0_47 = arith.constant 0 : index
    %98 = vector.load %arg4[%c12, %c0_46, %c0_47] : memref<25x128x128xbf16, #tpu.memory_space<vmem>>, vector<1x128x128xbf16>
    %99 = vector.shape_cast %98 : vector<1x128x128xbf16> to vector<128x128xbf16>
    %cst_48 = arith.constant dense<0.000000e+00> : vector<16x128xf32>
    %100 = tpu.matmul %97, %99, %cst_48 {dimension_numbers = #tpu.dot_dimension_numbers<[1], [0], [0], [1], [0, 0, 1, 1], [], []>} : vector<16x128xbf16>, vector<128x128xbf16>, vector<16x128xf32> -> vector<16x128xf32>
    %101 = arith.addf %95, %100 : vector<16x128xf32>
    %102 = vector.extract_strided_slice %22 {offsets = [13, 0, 0], sizes = [1, 16, 128], strides = [1, 1, 1]} : vector<25x16x128xbf16> to vector<1x16x128xbf16>
    %103 = vector.shape_cast %102 : vector<1x16x128xbf16> to vector<16x128xbf16>
    %c13 = arith.constant 13 : index
    %c0_49 = arith.constant 0 : index
    %c0_50 = arith.constant 0 : index
    %104 = vector.load %arg4[%c13, %c0_49, %c0_50] : memref<25x128x128xbf16, #tpu.memory_space<vmem>>, vector<1x128x128xbf16>
    %105 = vector.shape_cast %104 : vector<1x128x128xbf16> to vector<128x128xbf16>
    %cst_51 = arith.constant dense<0.000000e+00> : vector<16x128xf32>
    %106 = tpu.matmul %103, %105, %cst_51 {dimension_numbers = #tpu.dot_dimension_numbers<[1], [0], [0], [1], [0, 0, 1, 1], [], []>} : vector<16x128xbf16>, vector<128x128xbf16>, vector<16x128xf32> -> vector<16x128xf32>
    %107 = arith.addf %101, %106 : vector<16x128xf32>
    %108 = vector.extract_strided_slice %22 {offsets = [14, 0, 0], sizes = [1, 16, 128], strides = [1, 1, 1]} : vector<25x16x128xbf16> to vector<1x16x128xbf16>
    %109 = vector.shape_cast %108 : vector<1x16x128xbf16> to vector<16x128xbf16>
    %c14 = arith.constant 14 : index
    %c0_52 = arith.constant 0 : index
    %c0_53 = arith.constant 0 : index
    %110 = vector.load %arg4[%c14, %c0_52, %c0_53] : memref<25x128x128xbf16, #tpu.memory_space<vmem>>, vector<1x128x128xbf16>
    %111 = vector.shape_cast %110 : vector<1x128x128xbf16> to vector<128x128xbf16>
    %cst_54 = arith.constant dense<0.000000e+00> : vector<16x128xf32>
    %112 = tpu.matmul %109, %111, %cst_54 {dimension_numbers = #tpu.dot_dimension_numbers<[1], [0], [0], [1], [0, 0, 1, 1], [], []>} : vector<16x128xbf16>, vector<128x128xbf16>, vector<16x128xf32> -> vector<16x128xf32>
    %113 = arith.addf %107, %112 : vector<16x128xf32>
    %114 = vector.extract_strided_slice %22 {offsets = [15, 0, 0], sizes = [1, 16, 128], strides = [1, 1, 1]} : vector<25x16x128xbf16> to vector<1x16x128xbf16>
    %115 = vector.shape_cast %114 : vector<1x16x128xbf16> to vector<16x128xbf16>
    %c15 = arith.constant 15 : index
    %c0_55 = arith.constant 0 : index
    %c0_56 = arith.constant 0 : index
    %116 = vector.load %arg4[%c15, %c0_55, %c0_56] : memref<25x128x128xbf16, #tpu.memory_space<vmem>>, vector<1x128x128xbf16>
    %117 = vector.shape_cast %116 : vector<1x128x128xbf16> to vector<128x128xbf16>
    %cst_57 = arith.constant dense<0.000000e+00> : vector<16x128xf32>
    %118 = tpu.matmul %115, %117, %cst_57 {dimension_numbers = #tpu.dot_dimension_numbers<[1], [0], [0], [1], [0, 0, 1, 1], [], []>} : vector<16x128xbf16>, vector<128x128xbf16>, vector<16x128xf32> -> vector<16x128xf32>
    %119 = arith.addf %113, %118 : vector<16x128xf32>
    %120 = vector.extract_strided_slice %22 {offsets = [16, 0, 0], sizes = [1, 16, 128], strides = [1, 1, 1]} : vector<25x16x128xbf16> to vector<1x16x128xbf16>
    %121 = vector.shape_cast %120 : vector<1x16x128xbf16> to vector<16x128xbf16>
    %c16 = arith.constant 16 : index
    %c0_58 = arith.constant 0 : index
    %c0_59 = arith.constant 0 : index
    %122 = vector.load %arg4[%c16, %c0_58, %c0_59] : memref<25x128x128xbf16, #tpu.memory_space<vmem>>, vector<1x128x128xbf16>
    %123 = vector.shape_cast %122 : vector<1x128x128xbf16> to vector<128x128xbf16>
    %cst_60 = arith.constant dense<0.000000e+00> : vector<16x128xf32>
    %124 = tpu.matmul %121, %123, %cst_60 {dimension_numbers = #tpu.dot_dimension_numbers<[1], [0], [0], [1], [0, 0, 1, 1], [], []>} : vector<16x128xbf16>, vector<128x128xbf16>, vector<16x128xf32> -> vector<16x128xf32>
    %125 = arith.addf %119, %124 : vector<16x128xf32>
    %126 = vector.extract_strided_slice %22 {offsets = [17, 0, 0], sizes = [1, 16, 128], strides = [1, 1, 1]} : vector<25x16x128xbf16> to vector<1x16x128xbf16>
    %127 = vector.shape_cast %126 : vector<1x16x128xbf16> to vector<16x128xbf16>
    %c17 = arith.constant 17 : index
    %c0_61 = arith.constant 0 : index
    %c0_62 = arith.constant 0 : index
    %128 = vector.load %arg4[%c17, %c0_61, %c0_62] : memref<25x128x128xbf16, #tpu.memory_space<vmem>>, vector<1x128x128xbf16>
    %129 = vector.shape_cast %128 : vector<1x128x128xbf16> to vector<128x128xbf16>
    %cst_63 = arith.constant dense<0.000000e+00> : vector<16x128xf32>
    %130 = tpu.matmul %127, %129, %cst_63 {dimension_numbers = #tpu.dot_dimension_numbers<[1], [0], [0], [1], [0, 0, 1, 1], [], []>} : vector<16x128xbf16>, vector<128x128xbf16>, vector<16x128xf32> -> vector<16x128xf32>
    %131 = arith.addf %125, %130 : vector<16x128xf32>
    %132 = vector.extract_strided_slice %22 {offsets = [18, 0, 0], sizes = [1, 16, 128], strides = [1, 1, 1]} : vector<25x16x128xbf16> to vector<1x16x128xbf16>
    %133 = vector.shape_cast %132 : vector<1x16x128xbf16> to vector<16x128xbf16>
    %c18 = arith.constant 18 : index
    %c0_64 = arith.constant 0 : index
    %c0_65 = arith.constant 0 : index
    %134 = vector.load %arg4[%c18, %c0_64, %c0_65] : memref<25x128x128xbf16, #tpu.memory_space<vmem>>, vector<1x128x128xbf16>
    %135 = vector.shape_cast %134 : vector<1x128x128xbf16> to vector<128x128xbf16>
    %cst_66 = arith.constant dense<0.000000e+00> : vector<16x128xf32>
    %136 = tpu.matmul %133, %135, %cst_66 {dimension_numbers = #tpu.dot_dimension_numbers<[1], [0], [0], [1], [0, 0, 1, 1], [], []>} : vector<16x128xbf16>, vector<128x128xbf16>, vector<16x128xf32> -> vector<16x128xf32>
    %137 = arith.addf %131, %136 : vector<16x128xf32>
    %138 = vector.extract_strided_slice %22 {offsets = [19, 0, 0], sizes = [1, 16, 128], strides = [1, 1, 1]} : vector<25x16x128xbf16> to vector<1x16x128xbf16>
    %139 = vector.shape_cast %138 : vector<1x16x128xbf16> to vector<16x128xbf16>
    %c19 = arith.constant 19 : index
    %c0_67 = arith.constant 0 : index
    %c0_68 = arith.constant 0 : index
    %140 = vector.load %arg4[%c19, %c0_67, %c0_68] : memref<25x128x128xbf16, #tpu.memory_space<vmem>>, vector<1x128x128xbf16>
    %141 = vector.shape_cast %140 : vector<1x128x128xbf16> to vector<128x128xbf16>
    %cst_69 = arith.constant dense<0.000000e+00> : vector<16x128xf32>
    %142 = tpu.matmul %139, %141, %cst_69 {dimension_numbers = #tpu.dot_dimension_numbers<[1], [0], [0], [1], [0, 0, 1, 1], [], []>} : vector<16x128xbf16>, vector<128x128xbf16>, vector<16x128xf32> -> vector<16x128xf32>
    %143 = arith.addf %137, %142 : vector<16x128xf32>
    %144 = vector.extract_strided_slice %22 {offsets = [20, 0, 0], sizes = [1, 16, 128], strides = [1, 1, 1]} : vector<25x16x128xbf16> to vector<1x16x128xbf16>
    %145 = vector.shape_cast %144 : vector<1x16x128xbf16> to vector<16x128xbf16>
    %c20 = arith.constant 20 : index
    %c0_70 = arith.constant 0 : index
    %c0_71 = arith.constant 0 : index
    %146 = vector.load %arg4[%c20, %c0_70, %c0_71] : memref<25x128x128xbf16, #tpu.memory_space<vmem>>, vector<1x128x128xbf16>
    %147 = vector.shape_cast %146 : vector<1x128x128xbf16> to vector<128x128xbf16>
    %cst_72 = arith.constant dense<0.000000e+00> : vector<16x128xf32>
    %148 = tpu.matmul %145, %147, %cst_72 {dimension_numbers = #tpu.dot_dimension_numbers<[1], [0], [0], [1], [0, 0, 1, 1], [], []>} : vector<16x128xbf16>, vector<128x128xbf16>, vector<16x128xf32> -> vector<16x128xf32>
    %149 = arith.addf %143, %148 : vector<16x128xf32>
    %150 = vector.extract_strided_slice %22 {offsets = [21, 0, 0], sizes = [1, 16, 128], strides = [1, 1, 1]} : vector<25x16x128xbf16> to vector<1x16x128xbf16>
    %151 = vector.shape_cast %150 : vector<1x16x128xbf16> to vector<16x128xbf16>
    %c21 = arith.constant 21 : index
    %c0_73 = arith.constant 0 : index
    %c0_74 = arith.constant 0 : index
    %152 = vector.load %arg4[%c21, %c0_73, %c0_74] : memref<25x128x128xbf16, #tpu.memory_space<vmem>>, vector<1x128x128xbf16>
    %153 = vector.shape_cast %152 : vector<1x128x128xbf16> to vector<128x128xbf16>
    %cst_75 = arith.constant dense<0.000000e+00> : vector<16x128xf32>
    %154 = tpu.matmul %151, %153, %cst_75 {dimension_numbers = #tpu.dot_dimension_numbers<[1], [0], [0], [1], [0, 0, 1, 1], [], []>} : vector<16x128xbf16>, vector<128x128xbf16>, vector<16x128xf32> -> vector<16x128xf32>
    %155 = arith.addf %149, %154 : vector<16x128xf32>
    %156 = vector.extract_strided_slice %22 {offsets = [22, 0, 0], sizes = [1, 16, 128], strides = [1, 1, 1]} : vector<25x16x128xbf16> to vector<1x16x128xbf16>
    %157 = vector.shape_cast %156 : vector<1x16x128xbf16> to vector<16x128xbf16>
    %c22 = arith.constant 22 : index
    %c0_76 = arith.constant 0 : index
    %c0_77 = arith.constant 0 : index
    %158 = vector.load %arg4[%c22, %c0_76, %c0_77] : memref<25x128x128xbf16, #tpu.memory_space<vmem>>, vector<1x128x128xbf16>
    %159 = vector.shape_cast %158 : vector<1x128x128xbf16> to vector<128x128xbf16>
    %cst_78 = arith.constant dense<0.000000e+00> : vector<16x128xf32>
    %160 = tpu.matmul %157, %159, %cst_78 {dimension_numbers = #tpu.dot_dimension_numbers<[1], [0], [0], [1], [0, 0, 1, 1], [], []>} : vector<16x128xbf16>, vector<128x128xbf16>, vector<16x128xf32> -> vector<16x128xf32>
    %161 = arith.addf %155, %160 : vector<16x128xf32>
    %162 = vector.extract_strided_slice %22 {offsets = [23, 0, 0], sizes = [1, 16, 128], strides = [1, 1, 1]} : vector<25x16x128xbf16> to vector<1x16x128xbf16>
    %163 = vector.shape_cast %162 : vector<1x16x128xbf16> to vector<16x128xbf16>
    %c23 = arith.constant 23 : index
    %c0_79 = arith.constant 0 : index
    %c0_80 = arith.constant 0 : index
    %164 = vector.load %arg4[%c23, %c0_79, %c0_80] : memref<25x128x128xbf16, #tpu.memory_space<vmem>>, vector<1x128x128xbf16>
    %165 = vector.shape_cast %164 : vector<1x128x128xbf16> to vector<128x128xbf16>
    %cst_81 = arith.constant dense<0.000000e+00> : vector<16x128xf32>
    %166 = tpu.matmul %163, %165, %cst_81 {dimension_numbers = #tpu.dot_dimension_numbers<[1], [0], [0], [1], [0, 0, 1, 1], [], []>} : vector<16x128xbf16>, vector<128x128xbf16>, vector<16x128xf32> -> vector<16x128xf32>
    %167 = arith.addf %161, %166 : vector<16x128xf32>
    %168 = vector.extract_strided_slice %22 {offsets = [24, 0, 0], sizes = [1, 16, 128], strides = [1, 1, 1]} : vector<25x16x128xbf16> to vector<1x16x128xbf16>
    %169 = vector.shape_cast %168 : vector<1x16x128xbf16> to vector<16x128xbf16>
    %c24 = arith.constant 24 : index
    %c0_82 = arith.constant 0 : index
    %c0_83 = arith.constant 0 : index
    %170 = vector.load %arg4[%c24, %c0_82, %c0_83] : memref<25x128x128xbf16, #tpu.memory_space<vmem>>, vector<1x128x128xbf16>
    %171 = vector.shape_cast %170 : vector<1x128x128xbf16> to vector<128x128xbf16>
    %cst_84 = arith.constant dense<0.000000e+00> : vector<16x128xf32>
    %172 = tpu.matmul %169, %171, %cst_84 {dimension_numbers = #tpu.dot_dimension_numbers<[1], [0], [0], [1], [0, 0, 1, 1], [], []>} : vector<16x128xbf16>, vector<128x128xbf16>, vector<16x128xf32> -> vector<16x128xf32>
    %173 = arith.addf %167, %172 : vector<16x128xf32>
    %c0_85 = arith.constant 0 : index
    %c0_86 = arith.constant 0 : index
    %174 = vector.load %arg5[%c0_85, %c0_86] : memref<1x128xf32, #tpu.memory_space<vmem>>, vector<1x128xf32>
    %175 = vector.broadcast %174 : vector<1x128xf32> to vector<16x128xf32>
    %176 = arith.addf %173, %175 : vector<16x128xf32>
    %cst_87 = arith.constant 0.000000e+00 : f32
    %177 = vector.broadcast %cst_87 : f32 to vector<16x128xf32>
    %178 = arith.maximumf %176, %177 : vector<16x128xf32>
    %179 = arith.truncf %178 : vector<16x128xf32> to vector<16x128xbf16>
    %c0_88 = arith.constant 0 : index
    %c0_89 = arith.constant 0 : index
    %180 = vector.load %arg6[%c0_88, %c0_89] : memref<128x128xbf16, #tpu.memory_space<vmem>>, vector<128x128xbf16>
    %cst_90 = arith.constant dense<0.000000e+00> : vector<16x128xf32>
    %181 = tpu.matmul %179, %180, %cst_90 {dimension_numbers = #tpu.dot_dimension_numbers<[1], [0], [0], [1], [0, 0, 1, 1], [], []>} : vector<16x128xbf16>, vector<128x128xbf16>, vector<16x128xf32> -> vector<16x128xf32>
    %c0_91 = arith.constant 0 : index
    %c0_92 = arith.constant 0 : index
    %182 = vector.load %arg7[%c0_91, %c0_92] : memref<1x128xf32, #tpu.memory_space<vmem>>, vector<1x128xf32>
    %183 = vector.broadcast %182 : vector<1x128xf32> to vector<16x128xf32>
    %184 = arith.addf %181, %183 : vector<16x128xf32>
    %cst_93 = arith.constant 0.000000e+00 : f32
    %185 = vector.broadcast %cst_93 : f32 to vector<16x128xf32>
    %186 = arith.maximumf %184, %185 : vector<16x128xf32>
    %187 = arith.truncf %186 : vector<16x128xf32> to vector<16x128xbf16>
    %c0_94 = arith.constant 0 : index
    %c0_95 = arith.constant 0 : index
    %188 = vector.load %arg8[%c0_94, %c0_95] : memref<128x128xbf16, #tpu.memory_space<vmem>>, vector<128x128xbf16>
    %cst_96 = arith.constant dense<0.000000e+00> : vector<16x128xf32>
    %189 = tpu.matmul %187, %188, %cst_96 {dimension_numbers = #tpu.dot_dimension_numbers<[1], [0], [0], [1], [0, 0, 1, 1], [], []>} : vector<16x128xbf16>, vector<128x128xbf16>, vector<16x128xf32> -> vector<16x128xf32>
    %c0_97 = arith.constant 0 : index
    %c0_98 = arith.constant 0 : index
    %190 = vector.load %arg9[%c0_97, %c0_98] : memref<1x128xf32, #tpu.memory_space<vmem>>, vector<1x128xf32>
    %191 = vector.broadcast %190 : vector<1x128xf32> to vector<16x128xf32>
    %192 = arith.addf %189, %191 : vector<16x128xf32>
    %c0_99 = arith.constant 0 : index
    %c0_100 = arith.constant 0 : index
    %193 = vector.load %arg10[%c0_99, %c0_100] : memref<16x128xf32, #tpu.memory_space<vmem>>, vector<16x128xf32>
    tpu.vector_store %arg10[%c0_99, %c0_100], %192 {strides = array<i32>} : memref<16x128xf32, #tpu.memory_space<vmem>>, vector<16x128xf32>,
    return
  }
  func.func @transform_0(%arg0: i32) -> (i32, i32, i32, i32) {
    %c0_i32 = arith.constant 0 : i32
    %c0_i32_0 = arith.constant 0 : i32
    %c0_i32_1 = arith.constant 0 : i32
    %c0_i32_2 = arith.constant 0 : i32
    return %c0_i32, %c0_i32_0, %arg0, %c0_i32_1 : i32, i32, i32, i32
  }
  func.func @transform_1(%arg0: i32) -> (i32, i32) {
    %c0_i32 = arith.constant 0 : i32
    %c0_i32_0 = arith.constant 0 : i32
    %c0_i32_1 = arith.constant 0 : i32
    return %c0_i32, %c0_i32_0 : i32, i32
  }
  func.func @transform_2(%arg0: i32) -> (i32, i32) {
    %c0_i32 = arith.constant 0 : i32
    %c0_i32_0 = arith.constant 0 : i32
    %c0_i32_1 = arith.constant 0 : i32
    return %c0_i32, %c0_i32_0 : i32, i32
  }
  func.func @transform_3(%arg0: i32) -> (i32, i32, i32) {
    %c0_i32 = arith.constant 0 : i32
    %c0_i32_0 = arith.constant 0 : i32
    %c0_i32_1 = arith.constant 0 : i32
    %c0_i32_2 = arith.constant 0 : i32
    return %c0_i32, %c0_i32_0, %c0_i32_1 : i32, i32, i32
  }
  func.func @transform_4(%arg0: i32) -> (i32, i32) {
    %c0_i32 = arith.constant 0 : i32
    %c0_i32_0 = arith.constant 0 : i32
    %c0_i32_1 = arith.constant 0 : i32
    return %c0_i32, %c0_i32_0 : i32, i32
  }
  func.func @transform_5(%arg0: i32) -> (i32, i32) {
    %c0_i32 = arith.constant 0 : i32
    %c0_i32_0 = arith.constant 0 : i32
    %c0_i32_1 = arith.constant 0 : i32
    return %c0_i32, %c0_i32_0 : i32, i32
  }
  func.func @transform_6(%arg0: i32) -> (i32, i32) {
    %c0_i32 = arith.constant 0 : i32
    %c0_i32_0 = arith.constant 0 : i32
    %c0_i32_1 = arith.constant 0 : i32
    return %c0_i32, %c0_i32_0 : i32, i32
  }
  func.func @transform_7(%arg0: i32) -> (i32, i32) {
    %c0_i32 = arith.constant 0 : i32
    %c0_i32_0 = arith.constant 0 : i32
    %c0_i32_1 = arith.constant 0 : i32
    return %c0_i32, %c0_i32_0 : i32, i32
  }
  func.func @transform_8(%arg0: i32) -> (i32, i32) {
    %c0_i32 = arith.constant 0 : i32
    %c0_i32_0 = arith.constant 0 : i32
    %c0_i32_1 = arith.constant 0 : i32
    return %c0_i32, %c0_i32_0 : i32, i32
  }
  func.func @transform_9(%arg0: i32) -> (i32, i32) {
    %c0_i32 = arith.constant 0 : i32
    %c0_i32_0 = arith.constant 0 : i32
    return %arg0, %c0_i32 : i32, i32
  }
}

</mosaic_0001>

<llo_original>
// kernel: net_forward.2
$region0: #{net_forward.2}
  #allocation0 [shape = 'u32[]', space=smem, size = 0x4, offset = 0x4, fixed_abs, tag = 'smem constant byte address 0x4 - core index']
  #allocation1 [shape = 'u32[72,128]{1,0:T(1,128)}', space=vmem, size = 0x9000, scoped, tag = 'internal scratch']
  %s0 = inlined_call_operand.vmem [shape: bf16[4,416,128], index: 0, kind: input, shape index: {}]
  %s1 = inlined_call_operand.vmem [shape: bf16[128,128], index: 1, kind: input, shape index: {}]
  %s2 = inlined_call_operand.vmem [shape: f32[1,128], index: 2, kind: input, shape index: {}]
  %s3 = inlined_call_operand.vmem [shape: bf16[416,128], index: 3, kind: output, shape index: {}]
  %s4 = sld [smem:[#allocation0]]
  $region86: #{net_forward.2} parent=0
    _
  %s6 = ssub.s32 1, %s4
  %s7 = scalar_select 0, %s6, %s4
  $region1: #{net_forward.2} parent=0
    #allocation2 [shape = 'u8[425984]{0}', space=vmem, size = 0x68000, scoped, tag = 'input window, operand 0']
    loop: start=0, step=1, limit=4
    $region2: #{net_forward.2} parent=1 // loop_pre_header
      _
    $region3: #{net_forward.2} parent=1 // loop_header
      %s9 = sphi 0, %s13
      %p10 = scmp.ge.s32.totalorder %s9, 4
      %s19 = sphi 0, %s21
      %s22 = sphi 0, %s19
      %s23 = sphi 0, %s22
      %s39 = sphi 0, %s23
      %s43 = sphi 0, %s43
      %s45 = sphi 0, %s43
      %s46 = sphi 0, %s45
      %s60 = sphi 0, %s46
      %s64 = sphi 0, %s64
      %s66 = sphi 0, %s64
      %s67 = sphi 0, %s66
      %s81 = sphi 0, %s67
      %s87 = sphi 0, %s89
      %s90 = sphi 0, %s87
      %s91 = sphi 0, %s90
      %s107 = sphi 0, %s91
    $region4: #{net_forward.2} parent=1 // loop_header_branch
      %12 = sbr.rel (%p10) target = $region8
    $region5: #{net_forward.2} parent=1 // loop_body
      %s14 = ssub.s32 %s9, 1
      %s15 = ssub.s32 %s9, 2
      %s16 = sadd.s32 %s9, 1
      %s17 = ssub.s32 %s9, %s16
      %p18 = scmp.eq.s32.totalorder %s17, 0
      %s20 = sadd.s32 %s19, 1
      %s21 = scalar_select %p18, %s19, %s20
      %p24 = pneg %p18
      %p25 = scmp.eq.s32.totalorder %s9, 1
      %p26 = por %p24, %p25
      %p27 = scmp.ne.s32.totalorder %s19, %s22
      %p28 = scmp.eq.s32.totalorder %s9, 0
      %p29 = por %p27, %p28
      %p30 = scmp.ne.s32.totalorder %s19, %s22
      %p31 = scmp.eq.s32.totalorder %s14, 1
      %p32 = por %p30, %p31
      %p33 = scmp.ne.s32.totalorder %s22, %s23
      %p34 = scmp.eq.s32.totalorder %s14, 0
      %p35 = por %p33, %p34
      %p36 = scmp.ne.s32.totalorder %s22, %s23
      %p37 = scmp.eq.s32.totalorder %s15, 1
      %p38 = por %p36, %p37
      %p40 = scmp.ne.s32.totalorder %s23, %s39
      %p41 = scmp.eq.s32.totalorder %s15, 0
      %p42 = por %p40, %p41
      %s44 = sadd.s32 %s43, 1
      %p47 = scmp.eq.s32.totalorder %s9, 1
      %p48 = scmp.ne.s32.totalorder %s43, %s45
      %p49 = scmp.eq.s32.totalorder %s9, 0
      %p50 = por %p48, %p49
      %p51 = scmp.ne.s32.totalorder %s43, %s45
      %p52 = scmp.eq.s32.totalorder %s14, 1
      %p53 = por %p51, %p52
      %p54 = scmp.ne.s32.totalorder %s45, %s46
      %p55 = scmp.eq.s32.totalorder %s14, 0
      %p56 = por %p54, %p55
      %p57 = scmp.ne.s32.totalorder %s45, %s46
      %p58 = scmp.eq.s32.totalorder %s15, 1
      %p59 = por %p57, %p58
      %p61 = scmp.ne.s32.totalorder %s46, %s60
      %p62 = scmp.eq.s32.totalorder %s15, 0
      %p63 = por %p61, %p62
      %s65 = sadd.s32 %s64, 1
      %p68 = scmp.eq.s32.totalorder %s9, 1
      %p69 = scmp.ne.s32.totalorder %s64, %s66
      %p70 = scmp.eq.s32.totalorder %s9, 0
      %p71 = por %p69, %p70
      %p72 = scmp.ne.s32.totalorder %s64, %s66
      %p73 = scmp.eq.s32.totalorder %s14, 1
      %p74 = por %p72, %p73
      %p75 = scmp.ne.s32.totalorder %s66, %s67
      %p76 = scmp.eq.s32.totalorder %s14, 0
      %p77 = por %p75, %p76
      %p78 = scmp.ne.s32.totalorder %s66, %s67
      %p79 = scmp.eq.s32.totalorder %s15, 1
      %p80 = por %p78, %p79
      %p82 = scmp.ne.s32.totalorder %s67, %s81
      %p83 = scmp.eq.s32.totalorder %s15, 0
      %p84 = por %p82, %p83
      %s85 = ssub.s32 %s9, %s16
      %p86 = scmp.eq.s32.totalorder %s85, 0
      %s88 = sadd.s32 %s87, 1
      %s89 = scalar_select %p86, %s87, %s88
      %p92 = pneg %p86
      %p93 = scmp.eq.s32.totalorder %s9, 1
      %p94 = por %p92, %p93
      %p95 = scmp.ne.s32.totalorder %s87, %s90
      %p96 = scmp.eq.s32.totalorder %s9, 0
      %p97 = por %p95, %p96
      %p98 = scmp.ne.s32.totalorder %s87, %s90
      %p99 = scmp.eq.s32.totalorder %s14, 1
      %p100 = por %p98, %p99
      %p101 = scmp.ne.s32.totalorder %s90, %s91
      %p102 = scmp.eq.s32.totalorder %s14, 0
      %p103 = por %p101, %p102
      %p104 = scmp.ne.s32.totalorder %s90, %s91
      %p105 = scmp.eq.s32.totalorder %s15, 1
      %p106 = por %p104, %p105
      %p108 = scmp.ne.s32.totalorder %s91, %s107
      %p109 = scmp.eq.s32.totalorder %s15, 0
      %p110 = por %p108, %p109
      %p111 = scmp.le.s32.totalorder 1, %s9
      %p112 = scmp.lt.s32.totalorder %s9, 3
      %p113 = pnand %p111, %p112
      %p114 = pneg %p113
      // Predicated region
      $region9: #{net_forward.2} parent=5 // pred_check
        _
      $region10: #{net_forward.2} parent=5 // pred_check_branch
        %116 = sbr.rel (%p113) target = $region12
      $region11: #{net_forward.2} parent=5 // pred_region
        %s117 = ssub.s32 %s9, 1
        // Predicated region
        $region13: #{net_forward.2} parent=11 // pred_check
          %p118 = pneg %p56
        $region14: #{net_forward.2} parent=11 // pred_check_branch
          %120 = sbr.rel (%p118) target = $region16
        $region15: #{net_forward.2} parent=11 // pred_region
          _
        $region16: #{net_forward.2} parent=11 // pred_fallthru
          _
        // Predicated region
        $region17: #{net_forward.2} parent=11 // pred_check
          %p121 = pneg %p77
        $region18: #{net_forward.2} parent=11 // pred_check_branch
          %123 = sbr.rel (%p121) target = $region20
        $region19: #{net_forward.2} parent=11 // pred_region
          _
        $region20: #{net_forward.2} parent=11 // pred_fallthru
          _
      $region12: #{net_forward.2} parent=5 // pred_fallthru
        _
      %p124 = scmp.lt.s32.totalorder %s9, 2
      // Predicated region
      $region21: #{net_forward.2} parent=5 // pred_check
        %p125 = pneg %p124
      $region22: #{net_forward.2} parent=5 // pred_check_branch
        %127 = sbr.rel (%p125) target = $region24
      $region23: #{net_forward.2} parent=5 // pred_region
        // Predicated region
        $region25: #{net_forward.2} parent=23 // pred_check
          %p128 = pneg %p29
        $region26: #{net_forward.2} parent=23 // pred_check_branch
          %130 = sbr.rel (%p128) target = $region28
        $region27: #{net_forward.2} parent=23 // pred_region
          %s131 = sand.u32 %s19, 1
          %s132 = sand.u32 %s19, 1
          %s133 = smul.addr %s132, 416
          %s134 = scalar_lea.vmem [#allocation2], %s133
          %s135 = smul.u32 26, %s9
          %s136 = smul.addr %s135, 4
          %s137 = scalar_lea.vmem %s0, %s136
          // Predicated region
          $region29: #{net_forward.2} parent=27 // pred_check
            _
          $region30: #{net_forward.2} parent=27 // pred_check_branch
            %139 = sbr.rel (0) target = $region32
          $region31: #{net_forward.2} parent=27 // pred_region
            // Predicated region
            $region33: #{net_forward.2} parent=31 // pred_check
              _
            $region34: #{net_forward.2} parent=31 // pred_check_branch
              %141 = sbr.rel target = $region36
            $region35: #{net_forward.2} parent=31 // pred_region
              // Predicated region
              $region48: #{net_forward.2} parent=35 // pred_check
                _
              $region49: #{net_forward.2} parent=35 // pred_check_branch
                %363 = sbr.rel (0) target = $region51
              $region50: #{net_forward.2} parent=35 // pred_region
                loop: start=0, step=1, limit=1
                $region52: #{net_forward.2} parent=50 // loop_pre_header
                  _
                $region53: #{net_forward.2} parent=50 // loop_header
                  %s365 = sphi 0, %s369
                  %p366 = scmp.ge.s32.totalorder %s365, 1
                  %s370 = sphi %s137, %s137
                  %s371 = sphi %s134, %s134
                $region54: #{net_forward.2} parent=50 // loop_header_branch
                  %368 = sbr.rel (%p366) target = $region58
                $region55: #{net_forward.2} parent=50 // loop_body
                  _
                $region56: #{net_forward.2} parent=50 // loop_footer
                  %s369 = sadd.s32 1, %s365
                $region57: #{net_forward.2} parent=50 // loop_footer_branch
                  %364 = sbr.rel target = $region53
                $region58: #{net_forward.2} parent=50 // loop_exit
                  _
                %s373 = ssub.s32 16, 1
                loop: start=0, step=1, limit=1
                $region59: #{net_forward.2} parent=50 // loop_pre_header
                  _
                $region60: #{net_forward.2} parent=50 // loop_header
                  %s375 = sphi 0, %s379
                  %p376 = scmp.ge.s32.totalorder %s375, 1
                  %s380 = sphi %s137, %s137
                  %s381 = sphi %s134, %s134
                $region61: #{net_forward.2} parent=50 // loop_header_branch
                  %378 = sbr.rel (%p376) target = $region65
                $region62: #{net_forward.2} parent=50 // loop_body
                  %v382 = vld [vmem:[%s380] sm:%s373]
                  %383 = vst [vmem:[%s381] sm:%s373] %v382
                  %v384 = vld [vmem:[%s380 + $0x4] sm:%s373]
                  %385 = vst [vmem:[%s381 + $0x4] sm:%s373] %v384
                  %v386 = vld [vmem:[%s380 + $0x8] sm:%s373]
                  %387 = vst [vmem:[%s381 + $0x8] sm:%s373] %v386
                  %v388 = vld [vmem:[%s380 + $0xc] sm:%s373]
                  %389 = vst [vmem:[%s381 + $0xc] sm:%s373] %v388
                  %v390 = vld [vmem:[%s380 + $0x10] sm:%s373]
                  %391 = vst [vmem:[%s381 + $0x10] sm:%s373] %v390
                  %v392 = vld [vmem:[%s380 + $0x14] sm:%s373]
                  %393 = vst [vmem:[%s381 + $0x14] sm:%s373] %v392
                  %v394 = vld [vmem:[%s380 + $0x18] sm:%s373]
                  %395 = vst [vmem:[%s381 + $0x18] sm:%s373] %v394
                  %v396 = vld [vmem:[%s380 + $0x1c] sm:%s373]
                  %397 = vst [vmem:[%s381 + $0x1c] sm:%s373] %v396
                  %v398 = vld [vmem:[%s380 + $0x20] sm:%s373]
                  %399 = vst [vmem:[%s381 + $0x20] sm:%s373] %v398
                  %v400 = vld [vmem:[%s380 + $0x24] sm:%s373]
                  %401 = vst [vmem:[%s381 + $0x24] sm:%s373] %v400
                  %v402 = vld [vmem:[%s380 + $0x28] sm:%s373]
                  %403 = vst [vmem:[%s381 + $0x28] sm:%s373] %v402
                  %v404 = vld [vmem:[%s380 + $0x2c] sm:%s373]
                  %405 = vst [vmem:[%s381 + $0x2c] sm:%s373] %v404
                  %v406 = vld [vmem:[%s380 + $0x30] sm:%s373]
                  %407 = vst [vmem:[%s381 + $0x30] sm:%s373] %v406
                  %v408 = vld [vmem:[%s380 + $0x34] sm:%s373]
                  %409 = vst [vmem:[%s381 + $0x34] sm:%s373] %v408
                  %v410 = vld [vmem:[%s380 + $0x38] sm:%s373]
                  %411 = vst [vmem:[%s381 + $0x38] sm:%s373] %v410
                  %v412 = vld [vmem:[%s380 + $0x3c] sm:%s373]
                  %413 = vst [vmem:[%s381 + $0x3c] sm:%s373] %v412
                  %v414 = vld [vmem:[%s380 + $0x40] sm:%s373]
                  %415 = vst [vmem:[%s381 + $0x40] sm:%s373] %v414
                  %v416 = vld [vmem:[%s380 + $0x44] sm:%s373]
                  %417 = vst [vmem:[%s381 + $0x44] sm:%s373] %v416
                  %v418 = vld [vmem:[%s380 + $0x48] sm:%s373]
                  %419 = vst [vmem:[%s381 + $0x48] sm:%s373] %v418
                  %v420 = vld [vmem:[%s380 + $0x4c] sm:%s373]
                  %421 = vst [vmem:[%s381 + $0x4c] sm:%s373] %v420
                  %v422 = vld [vmem:[%s380 + $0x50] sm:%s373]
                  %423 = vst [vmem:[%s381 + $0x50] sm:%s373] %v422
                  %v424 = vld [vmem:[%s380 + $0x54] sm:%s373]
                  %425 = vst [vmem:[%s381 + $0x54] sm:%s373] %v424
                  %v426 = vld [vmem:[%s380 + $0x58] sm:%s373]
                  %427 = vst [vmem:[%s381 + $0x58] sm:%s373] %v426
                  %v428 = vld [vmem:[%s380 + $0x5c] sm:%s373]
                  %429 = vst [vmem:[%s381 + $0x5c] sm:%s373] %v428
                  %v430 = vld [vmem:[%s380 + $0x60] sm:%s373]
                  %431 = vst [vmem:[%s381 + $0x60] sm:%s373] %v430
                  %v432 = vld [vmem:[%s380 + $0x64] sm:%s373]
                  %433 = vst [vmem:[%s381 + $0x64] sm:%s373] %v432
                  %v434 = vld [vmem:[%s380 + $0xd0] sm:%s373]
                  %435 = vst [vmem:[%s381 + $0x68] sm:%s373] %v434
                  %v436 = vld [vmem:[%s380 + $0xd4] sm:%s373]
                  %437 = vst [vmem:[%s381 + $0x6c] sm:%s373] %v436
                  %v438 = vld [vmem:[%s380 + $0xd8] sm:%s373]
                  %439 = vst [vmem:[%s381 + $0x70] sm:%s373] %v438
                  %v440 = vld [vmem:[%s380 + $0xdc] sm:%s373]
                  %441 = vst [vmem:[%s381 + $0x74] sm:%s373] %v440
                  %v442 = vld [vmem:[%s380 + $0xe0] sm:%s373]
                  %443 = vst [vmem:[%s381 + $0x78] sm:%s373] %v442
                  %v444 = vld [vmem:[%s380 + $0xe4] sm:%s373]
                  %445 = vst [vmem:[%s381 + $0x7c] sm:%s373] %v444
                  %v446 = vld [vmem:[%s380 + $0xe8] sm:%s373]
                  %447 = vst [vmem:[%s381 + $0x80] sm:%s373] %v446
                  %v448 = vld [vmem:[%s380 + $0xec] sm:%s373]
                  %449 = vst [vmem:[%s381 + $0x84] sm:%s373] %v448
                  %v450 = vld [vmem:[%s380 + $0xf0] sm:%s373]
                  %451 = vst [vmem:[%s381 + $0x88] sm:%s373] %v450
                  %v452 = vld [vmem:[%s380 + $0xf4] sm:%s373]
                  %453 = vst [vmem:[%s381 + $0x8c] sm:%s373] %v452
                  %v454 = vld [vmem:[%s380 + $0xf8] sm:%s373]
                  %455 = vst [vmem:[%s381 + $0x90] sm:%s373] %v454
                  %v456 = vld [vmem:[%s380 + $0xfc] sm:%s373]
                  %457 = vst [vmem:[%s381 + $0x94] sm:%s373] %v456
                  %v458 = vld [vmem:[%s380 + $0x100] sm:%s373]
                  %459 = vst [vmem:[%s381 + $0x98] sm:%s373] %v458
                  %v460 = vld [vmem:[%s380 + $0x104] sm:%s373]
                  %461 = vst [vmem:[%s381 + $0x9c] sm:%s373] %v460
                  %v462 = vld [vmem:[%s380 + $0x108] sm:%s373]
                  %463 = vst [vmem:[%s381 + $0xa0] sm:%s373] %v462
                  %v464 = vld [vmem:[%s380 + $0x10c] sm:%s373]
                  %465 = vst [vmem:[%s381 + $0xa4] sm:%s373] %v464
                  %v466 = vld [vmem:[%s380 + $0x110] sm:%s373]
                  %467 = vst [vmem:[%s381 + $0xa8] sm:%s373] %v466
                  %v468 = vld [vmem:[%s380 + $0x114] sm:%s373]
                  %469 = vst [vmem:[%s381 + $0xac] sm:%s373] %v468
                  %v470 = vld [vmem:[%s380 + $0x118] sm:%s373]
                  %471 = vst [vmem:[%s381 + $0xb0] sm:%s373] %v470
                  %v472 = vld [vmem:[%s380 + $0x11c] sm:%s373]
                  %473 = vst [vmem:[%s381 + $0xb4] sm:%s373] %v472
                  %v474 = vld [vmem:[%s380 + $0x120] sm:%s373]
                  %475 = vst [vmem:[%s381 + $0xb8] sm:%s373] %v474
                  %v476 = vld [vmem:[%s380 + $0x124] sm:%s373]
                  %477 = vst [vmem:[%s381 + $0xbc] sm:%s373] %v476
                  %v478 = vld [vmem:[%s380 + $0x128] sm:%s373]
                  %479 = vst [vmem:[%s381 + $0xc0] sm:%s373] %v478
                  %v480 = vld [vmem:[%s380 + $0x12c] sm:%s373]
                  %481 = vst [vmem:[%s381 + $0xc4] sm:%s373] %v480
                  %v482 = vld [vmem:[%s380 + $0x130] sm:%s373]
                  %483 = vst [vmem:[%s381 + $0xc8] sm:%s373] %v482
                  %v484 = vld [vmem:[%s380 + $0x134] sm:%s373]
                  %485 = vst [vmem:[%s381 + $0xcc] sm:%s373] %v484
                  %v486 = vld [vmem:[%s380 + $0x1a0] sm:%s373]
                  %487 = vst [vmem:[%s381 + $0xd0] sm:%s373] %v486
                  %v488 = vld [vmem:[%s380 + $0x1a4] sm:%s373]
                  %489 = vst [vmem:[%s381 + $0xd4] sm:%s373] %v488
                  %v490 = vld [vmem:[%s380 + $0x1a8] sm:%s373]
                  %491 = vst [vmem:[%s381 + $0xd8] sm:%s373] %v490
                  %v492 = vld [vmem:[%s380 + $0x1ac] sm:%s373]
                  %493 = vst [vmem:[%s381 + $0xdc] sm:%s373] %v492
                  %v494 = vld [vmem:[%s380 + $0x1b0] sm:%s373]
                  %495 = vst [vmem:[%s381 + $0xe0] sm:%s373] %v494
                  %v496 = vld [vmem:[%s380 + $0x1b4] sm:%s373]
                  %497 = vst [vmem:[%s381 + $0xe4] sm:%s373] %v496
                  %v498 = vld [vmem:[%s380 + $0x1b8] sm:%s373]
                  %499 = vst [vmem:[%s381 + $0xe8] sm:%s373] %v498
                  %v500 = vld [vmem:[%s380 + $0x1bc] sm:%s373]
                  %501 = vst [vmem:[%s381 + $0xec] sm:%s373] %v500
                  %v502 = vld [vmem:[%s380 + $0x1c0] sm:%s373]
                  %503 = vst [vmem:[%s381 + $0xf0] sm:%s373] %v502
                  %v504 = vld [vmem:[%s380 + $0x1c4] sm:%s373]
                  %505 = vst [vmem:[%s381 + $0xf4] sm:%s373] %v504
                  %v506 = vld [vmem:[%s380 + $0x1c8] sm:%s373]
                  %507 = vst [vmem:[%s381 + $0xf8] sm:%s373] %v506
                  %v508 = vld [vmem:[%s380 + $0x1cc] sm:%s373]
                  %509 = vst [vmem:[%s381 + $0xfc] sm:%s373] %v508
                  %v510 = vld [vmem:[%s380 + $0x1d0] sm:%s373]
                  %511 = vst [vmem:[%s381 + $0x100] sm:%s373] %v510
                  %v512 = vld [vmem:[%s380 + $0x1d4] sm:%s373]
                  %513 = vst [vmem:[%s381 + $0x104] sm:%s373] %v512
                  %v514 = vld [vmem:[%s380 + $0x1d8] sm:%s373]
                  %515 = vst [vmem:[%s381 + $0x108] sm:%s373] %v514
                  %v516 = vld [vmem:[%s380 + $0x1dc] sm:%s373]
                  %517 = vst [vmem:[%s381 + $0x10c] sm:%s373] %v516
                  %v518 = vld [vmem:[%s380 + $0x1e0] sm:%s373]
                  %519 = vst [vmem:[%s381 + $0x110] sm:%s373] %v518
                  %v520 = vld [vmem:[%s380 + $0x1e4] sm:%s373]
                  %521 = vst [vmem:[%s381 + $0x114] sm:%s373] %v520
                  %v522 = vld [vmem:[%s380 + $0x1e8] sm:%s373]
                  %523 = vst [vmem:[%s381 + $0x118] sm:%s373] %v522
                  %v524 = vld [vmem:[%s380 + $0x1ec] sm:%s373]
                  %525 = vst [vmem:[%s381 + $0x11c] sm:%s373] %v524
                  %v526 = vld [vmem:[%s380 + $0x1f0] sm:%s373]
                  %527 = vst [vmem:[%s381 + $0x120] sm:%s373] %v526
                  %v528 = vld [vmem:[%s380 + $0x1f4] sm:%s373]
                  %529 = vst [vmem:[%s381 + $0x124] sm:%s373] %v528
                  %v530 = vld [vmem:[%s380 + $0x1f8] sm:%s373]
                  %531 = vst [vmem:[%s381 + $0x128] sm:%s373] %v530
                  %v532 = vld [vmem:[%s380 + $0x1fc] sm:%s373]
                  %533 = vst [vmem:[%s381 + $0x12c] sm:%s373] %v532
                  %v534 = vld [vmem:[%s380 + $0x200] sm:%s373]
                  %535 = vst [vmem:[%s381 + $0x130] sm:%s373] %v534
                  %v536 = vld [vmem:[%s380 + $0x204] sm:%s373]
                  %537 = vst [vmem:[%s381 + $0x134] sm:%s373] %v536
                  %v538 = vld [vmem:[%s380 + $0x270] sm:%s373]
                  %539 = vst [vmem:[%s381 + $0x138] sm:%s373] %v538
                  %v540 = vld [vmem:[%s380 + $0x274] sm:%s373]
                  %541 = vst [vmem:[%s381 + $0x13c] sm:%s373] %v540
                  %v542 = vld [vmem:[%s380 + $0x278] sm:%s373]
                  %543 = vst [vmem:[%s381 + $0x140] sm:%s373] %v542
                  %v544 = vld [vmem:[%s380 + $0x27c] sm:%s373]
                  %545 = vst [vmem:[%s381 + $0x144] sm:%s373] %v544
                  %v546 = vld [vmem:[%s380 + $0x280] sm:%s373]
                  %547 = vst [vmem:[%s381 + $0x148] sm:%s373] %v546
                  %v548 = vld [vmem:[%s380 + $0x284] sm:%s373]
                  %549 = vst [vmem:[%s381 + $0x14c] sm:%s373] %v548
                  %v550 = vld [vmem:[%s380 + $0x288] sm:%s373]
                  %551 = vst [vmem:[%s381 + $0x150] sm:%s373] %v550
                  %v552 = vld [vmem:[%s380 + $0x28c] sm:%s373]
                  %553 = vst [vmem:[%s381 + $0x154] sm:%s373] %v552
                  %v554 = vld [vmem:[%s380 + $0x290] sm:%s373]
                  %555 = vst [vmem:[%s381 + $0x158] sm:%s373] %v554
                  %v556 = vld [vmem:[%s380 + $0x294] sm:%s373]
                  %557 = vst [vmem:[%s381 + $0x15c] sm:%s373] %v556
                  %v558 = vld [vmem:[%s380 + $0x298] sm:%s373]
                  %559 = vst [vmem:[%s381 + $0x160] sm:%s373] %v558
                  %v560 = vld [vmem:[%s380 + $0x29c] sm:%s373]
                  %561 = vst [vmem:[%s381 + $0x164] sm:%s373] %v560
                  %v562 = vld [vmem:[%s380 + $0x2a0] sm:%s373]
                  %563 = vst [vmem:[%s381 + $0x168] sm:%s373] %v562
                  %v564 = vld [vmem:[%s380 + $0x2a4] sm:%s373]
                  %565 = vst [vmem:[%s381 + $0x16c] sm:%s373] %v564
                  %v566 = vld [vmem:[%s380 + $0x2a8] sm:%s373]
                  %567 = vst [vmem:[%s381 + $0x170] sm:%s373] %v566
                  %v568 = vld [vmem:[%s380 + $0x2ac] sm:%s373]
                  %569 = vst [vmem:[%s381 + $0x174] sm:%s373] %v568
                  %v570 = vld [vmem:[%s380 + $0x2b0] sm:%s373]
                  %571 = vst [vmem:[%s381 + $0x178] sm:%s373] %v570
                  %v572 = vld [vmem:[%s380 + $0x2b4] sm:%s373]
                  %573 = vst [vmem:[%s381 + $0x17c] sm:%s373] %v572
                  %v574 = vld [vmem:[%s380 + $0x2b8] sm:%s373]
                  %575 = vst [vmem:[%s381 + $0x180] sm:%s373] %v574
                  %v576 = vld [vmem:[%s380 + $0x2bc] sm:%s373]
                  %577 = vst [vmem:[%s381 + $0x184] sm:%s373] %v576
                  %v578 = vld [vmem:[%s380 + $0x2c0] sm:%s373]
                  %579 = vst [vmem:[%s381 + $0x188] sm:%s373] %v578
                  %v580 = vld [vmem:[%s380 + $0x2c4] sm:%s373]
                  %581 = vst [vmem:[%s381 + $0x18c] sm:%s373] %v580
                  %v582 = vld [vmem:[%s380 + $0x2c8] sm:%s373]
                  %583 = vst [vmem:[%s381 + $0x190] sm:%s373] %v582
                  %v584 = vld [vmem:[%s380 + $0x2cc] sm:%s373]
                  %585 = vst [vmem:[%s381 + $0x194] sm:%s373] %v584
                  %v586 = vld [vmem:[%s380 + $0x2d0] sm:%s373]
                  %587 = vst [vmem:[%s381 + $0x198] sm:%s373] %v586
                  %v588 = vld [vmem:[%s380 + $0x2d4] sm:%s373]
                  %589 = vst [vmem:[%s381 + $0x19c] sm:%s373] %v588
                $region63: #{net_forward.2} parent=50 // loop_footer
                  %s379 = sadd.s32 1, %s375
                $region64: #{net_forward.2} parent=50 // loop_footer_branch
                  %374 = sbr.rel target = $region60
                $region65: #{net_forward.2} parent=50 // loop_exit
                  _
              $region51: #{net_forward.2} parent=35 // pred_fallthru
                _
            $region36: #{net_forward.2} parent=31 // pred_fallthru
              _
            // Predicated region
            $region37: #{net_forward.2} parent=31 // pred_check
              _
            $region38: #{net_forward.2} parent=31 // pred_check_branch
              %143 = sbr.rel (0) target = $region40
            $region39: #{net_forward.2} parent=31 // pred_region
              %s145 = ssub.s32 16, 1
              loop: start=0, step=1, limit=1
              $region41: #{net_forward.2} parent=39 // loop_pre_header
                _
              $region42: #{net_forward.2} parent=39 // loop_header
                %s147 = sphi 0, %s151
                %p148 = scmp.ge.s32.totalorder %s147, 1
                %s152 = sphi %s137, %s137
                %s153 = sphi %s134, %s134
              $region43: #{net_forward.2} parent=39 // loop_header_branch
                %150 = sbr.rel (%p148) target = $region47
              $region44: #{net_forward.2} parent=39 // loop_body
                %v154 = vld [vmem:[%s152] sm:%s145]
                %155 = vst [vmem:[%s153] sm:%s145] %v154
                %v156 = vld [vmem:[%s152 + $0x4] sm:%s145]
                %157 = vst [vmem:[%s153 + $0x4] sm:%s145] %v156
                %v158 = vld [vmem:[%s152 + $0x8] sm:%s145]
                %159 = vst [vmem:[%s153 + $0x8] sm:%s145] %v158
                %v160 = vld [vmem:[%s152 + $0xc] sm:%s145]
                %161 = vst [vmem:[%s153 + $0xc] sm:%s145] %v160
                %v162 = vld [vmem:[%s152 + $0x10] sm:%s145]
                %163 = vst [vmem:[%s153 + $0x10] sm:%s145] %v162
                %v164 = vld [vmem:[%s152 + $0x14] sm:%s145]
                %165 = vst [vmem:[%s153 + $0x14] sm:%s145] %v164
                %v166 = vld [vmem:[%s152 + $0x18] sm:%s145]
                %167 = vst [vmem:[%s153 + $0x18] sm:%s145] %v166
                %v168 = vld [vmem:[%s152 + $0x1c] sm:%s145]
                %169 = vst [vmem:[%s153 + $0x1c] sm:%s145] %v168
                %v170 = vld [vmem:[%s152 + $0x20] sm:%s145]
                %171 = vst [vmem:[%s153 + $0x20] sm:%s145] %v170
                %v172 = vld [vmem:[%s152 + $0x24] sm:%s145]
                %173 = vst [vmem:[%s153 + $0x24] sm:%s145] %v172
                %v174 = vld [vmem:[%s152 + $0x28] sm:%s145]
                %175 = vst [vmem:[%s153 + $0x28] sm:%s145] %v174
                %v176 = vld [vmem:[%s152 + $0x2c] sm:%s145]
                %177 = vst [vmem:[%s153 + $0x2c] sm:%s145] %v176
                %v178 = vld [vmem:[%s152 + $0x30] sm:%s145]
                %179 = vst [vmem:[%s153 + $0x30] sm:%s145] %v178
                %v180 = vld [vmem:[%s152 + $0x34] sm:%s145]
                %181 = vst [vmem:[%s153 + $0x34] sm:%s145] %v180
                %v182 = vld [vmem:[%s152 + $0x38] sm:%s145]
                %183 = vst [vmem:[%s153 + $0x38] sm:%s145] %v182
                %v184 = vld [vmem:[%s152 + $0x3c] sm:%s145]
                %185 = vst [vmem:[%s153 + $0x3c] sm:%s145] %v184
                %v186 = vld [vmem:[%s152 + $0x40] sm:%s145]
                %187 = vst [vmem:[%s153 + $0x40] sm:%s145] %v186
                %v188 = vld [vmem:[%s152 + $0x44] sm:%s145]
                %189 = vst [vmem:[%s153 + $0x44] sm:%s145] %v188
                %v190 = vld [vmem:[%s152 + $0x48] sm:%s145]
                %191 = vst [vmem:[%s153 + $0x48] sm:%s145] %v190
                %v192 = vld [vmem:[%s152 + $0x4c] sm:%s145]
                %193 = vst [vmem:[%s153 + $0x4c] sm:%s145] %v192
                %v194 = vld [vmem:[%s152 + $0x50] sm:%s145]
                %195 = vst [vmem:[%s153 + $0x50] sm:%s145] %v194
                %v196 = vld [vmem:[%s152 + $0x54] sm:%s145]
                %197 = vst [vmem:[%s153 + $0x54] sm:%s145] %v196
                %v198 = vld [vmem:[%s152 + $0x58] sm:%s145]
                %199 = vst [vmem:[%s153 + $0x58] sm:%s145] %v198
                %v200 = vld [vmem:[%s152 + $0x5c] sm:%s145]
                %201 = vst [vmem:[%s153 + $0x5c] sm:%s145] %v200
                %v202 = vld [vmem:[%s152 + $0x60] sm:%s145]
                %203 = vst [vmem:[%s153 + $0x60] sm:%s145] %v202
                %v204 = vld [vmem:[%s152 + $0x64] sm:%s145]
                %205 = vst [vmem:[%s153 + $0x64] sm:%s145] %v204
                %v206 = vld [vmem:[%s152 + $0xd0] sm:%s145]
                %207 = vst [vmem:[%s153 + $0x68] sm:%s145] %v206
                %v208 = vld [vmem:[%s152 + $0xd4] sm:%s145]
                %209 = vst [vmem:[%s153 + $0x6c] sm:%s145] %v208
                %v210 = vld [vmem:[%s152 + $0xd8] sm:%s145]
                %211 = vst [vmem:[%s153 + $0x70] sm:%s145] %v210
                %v212 = vld [vmem:[%s152 + $0xdc] sm:%s145]
                %213 = vst [vmem:[%s153 + $0x74] sm:%s145] %v212
                %v214 = vld [vmem:[%s152 + $0xe0] sm:%s145]
                %215 = vst [vmem:[%s153 + $0x78] sm:%s145] %v214
                %v216 = vld [vmem:[%s152 + $0xe4] sm:%s145]
                %217 = vst [vmem:[%s153 + $0x7c] sm:%s145] %v216
                %v218 = vld [vmem:[%s152 + $0xe8] sm:%s145]
                %219 = vst [vmem:[%s153 + $0x80] sm:%s145] %v218
                %v220 = vld [vmem:[%s152 + $0xec] sm:%s145]
                %221 = vst [vmem:[%s153 + $0x84] sm:%s145] %v220
                %v222 = vld [vmem:[%s152 + $0xf0] sm:%s145]
                %223 = vst [vmem:[%s153 + $0x88] sm:%s145] %v222
                %v224 = vld [vmem:[%s152 + $0xf4] sm:%s145]
                %225 = vst [vmem:[%s153 + $0x8c] sm:%s145] %v224
                %v226 = vld [vmem:[%s152 + $0xf8] sm:%s145]
                %227 = vst [vmem:[%s153 + $0x90] sm:%s145] %v226
                %v228 = vld [vmem:[%s152 + $0xfc] sm:%s145]
                %229 = vst [vmem:[%s153 + $0x94] sm:%s145] %v228
                %v230 = vld [vmem:[%s152 + $0x100] sm:%s145]
                %231 = vst [vmem:[%s153 + $0x98] sm:%s145] %v230
                %v232 = vld [vmem:[%s152 + $0x104] sm:%s145]
                %233 = vst [vmem:[%s153 + $0x9c] sm:%s145] %v232
                %v234 = vld [vmem:[%s152 + $0x108] sm:%s145]
                %235 = vst [vmem:[%s153 + $0xa0] sm:%s145] %v234
                %v236 = vld [vmem:[%s152 + $0x10c] sm:%s145]
                %237 = vst [vmem:[%s153 + $0xa4] sm:%s145] %v236
                %v238 = vld [vmem:[%s152 + $0x110] sm:%s145]
                %239 = vst [vmem:[%s153 + $0xa8] sm:%s145] %v238
                %v240 = vld [vmem:[%s152 + $0x114] sm:%s145]
                %241 = vst [vmem:[%s153 + $0xac] sm:%s145] %v240
                %v242 = vld [vmem:[%s152 + $0x118] sm:%s145]
                %243 = vst [vmem:[%s153 + $0xb0] sm:%s145] %v242
                %v244 = vld [vmem:[%s152 + $0x11c] sm:%s145]
                %245 = vst [vmem:[%s153 + $0xb4] sm:%s145] %v244
                %v246 = vld [vmem:[%s152 + $0x120] sm:%s145]
                %247 = vst [vmem:[%s153 + $0xb8] sm:%s145] %v246
                %v248 = vld [vmem:[%s152 + $0x124] sm:%s145]
                %249 = vst [vmem:[%s153 + $0xbc] sm:%s145] %v248
                %v250 = vld [vmem:[%s152 + $0x128] sm:%s145]
                %251 = vst [vmem:[%s153 + $0xc0] sm:%s145] %v250
                %v252 = vld [vmem:[%s152 + $0x12c] sm:%s145]
                %253 = vst [vmem:[%s153 + $0xc4] sm:%s145] %v252
                %v254 = vld [vmem:[%s152 + $0x130] sm:%s145]
                %255 = vst [vmem:[%s153 + $0xc8] sm:%s145] %v254
                %v256 = vld [vmem:[%s152 + $0x134] sm:%s145]
                %257 = vst [vmem:[%s153 + $0xcc] sm:%s145] %v256
                %v258 = vld [vmem:[%s152 + $0x1a0] sm:%s145]
                %259 = vst [vmem:[%s153 + $0xd0] sm:%s145] %v258
                %v260 = vld [vmem:[%s152 + $0x1a4] sm:%s145]
                %261 = vst [vmem:[%s153 + $0xd4] sm:%s145] %v260
                %v262 = vld [vmem:[%s152 + $0x1a8] sm:%s145]
                %263 = vst [vmem:[%s153 + $0xd8] sm:%s145] %v262
                %v264 = vld [vmem:[%s152 + $0x1ac] sm:%s145]
                %265 = vst [vmem:[%s153 + $0xdc] sm:%s145] %v264
                %v266 = vld [vmem:[%s152 + $0x1b0] sm:%s145]
                %267 = vst [vmem:[%s153 + $0xe0] sm:%s145] %v266
                %v268 = vld [vmem:[%s152 + $0x1b4] sm:%s145]
                %269 = vst [vmem:[%s153 + $0xe4] sm:%s145] %v268
                %v270 = vld [vmem:[%s152 + $0x1b8] sm:%s145]
                %271 = vst [vmem:[%s153 + $0xe8] sm:%s145] %v270
                %v272 = vld [vmem:[%s152 + $0x1bc] sm:%s145]
                %273 = vst [vmem:[%s153 + $0xec] sm:%s145] %v272
                %v274 = vld [vmem:[%s152 + $0x1c0] sm:%s145]
                %275 = vst [vmem:[%s153 + $0xf0] sm:%s145] %v274
                %v276 = vld [vmem:[%s152 + $0x1c4] sm:%s145]
                %277 = vst [vmem:[%s153 + $0xf4] sm:%s145] %v276
                %v278 = vld [vmem:[%s152 + $0x1c8] sm:%s145]
                %279 = vst [vmem:[%s153 + $0xf8] sm:%s145] %v278
                %v280 = vld [vmem:[%s152 + $0x1cc] sm:%s145]
                %281 = vst [vmem:[%s153 + $0xfc] sm:%s145] %v280
                %v282 = vld [vmem:[%s152 + $0x1d0] sm:%s145]
                %283 = vst [vmem:[%s153 + $0x100] sm:%s145] %v282
                %v284 = vld [vmem:[%s152 + $0x1d4] sm:%s145]
                %285 = vst [vmem:[%s153 + $0x104] sm:%s145] %v284
                %v286 = vld [vmem:[%s152 + $0x1d8] sm:%s145]
                %287 = vst [vmem:[%s153 + $0x108] sm:%s145] %v286
                %v288 = vld [vmem:[%s152 + $0x1dc] sm:%s145]
                %289 = vst [vmem:[%s153 + $0x10c] sm:%s145] %v288
                %v290 = vld [vmem:[%s152 + $0x1e0] sm:%s145]
                %291 = vst [vmem:[%s153 + $0x110] sm:%s145] %v290
                %v292 = vld [vmem:[%s152 + $0x1e4] sm:%s145]
                %293 = vst [vmem:[%s153 + $0x114] sm:%s145] %v292
                %v294 = vld [vmem:[%s152 + $0x1e8] sm:%s145]
                %295 = vst [vmem:[%s153 + $0x118] sm:%s145] %v294
                %v296 = vld [vmem:[%s152 + $0x1ec] sm:%s145]
                %297 = vst [vmem:[%s153 + $0x11c] sm:%s145] %v296
                %v298 = vld [vmem:[%s152 + $0x1f0] sm:%s145]
                %299 = vst [vmem:[%s153 + $0x120] sm:%s145] %v298
                %v300 = vld [vmem:[%s152 + $0x1f4] sm:%s145]
                %301 = vst [vmem:[%s153 + $0x124] sm:%s145] %v300
                %v302 = vld [vmem:[%s152 + $0x1f8] sm:%s145]
                %303 = vst [vmem:[%s153 + $0x128] sm:%s145] %v302
                %v304 = vld [vmem:[%s152 + $0x1fc] sm:%s145]
                %305 = vst [vmem:[%s153 + $0x12c] sm:%s145] %v304
                %v306 = vld [vmem:[%s152 + $0x200] sm:%s145]
                %307 = vst [vmem:[%s153 + $0x130] sm:%s145] %v306
                %v308 = vld [vmem:[%s152 + $0x204] sm:%s145]
                %309 = vst [vmem:[%s153 + $0x134] sm:%s145] %v308
                %v310 = vld [vmem:[%s152 + $0x270] sm:%s145]
                %311 = vst [vmem:[%s153 + $0x138] sm:%s145] %v310
                %v312 = vld [vmem:[%s152 + $0x274] sm:%s145]
                %313 = vst [vmem:[%s153 + $0x13c] sm:%s145] %v312
                %v314 = vld [vmem:[%s152 + $0x278] sm:%s145]
                %315 = vst [vmem:[%s153 + $0x140] sm:%s145] %v314
                %v316 = vld [vmem:[%s152 + $0x27c] sm:%s145]
                %317 = vst [vmem:[%s153 + $0x144] sm:%s145] %v316
                %v318 = vld [vmem:[%s152 + $0x280] sm:%s145]
                %319 = vst [vmem:[%s153 + $0x148] sm:%s145] %v318
                %v320 = vld [vmem:[%s152 + $0x284] sm:%s145]
                %321 = vst [vmem:[%s153 + $0x14c] sm:%s145] %v320
                %v322 = vld [vmem:[%s152 + $0x288] sm:%s145]
                %323 = vst [vmem:[%s153 + $0x150] sm:%s145] %v322
                %v324 = vld [vmem:[%s152 + $0x28c] sm:%s145]
                %325 = vst [vmem:[%s153 + $0x154] sm:%s145] %v324
                %v326 = vld [vmem:[%s152 + $0x290] sm:%s145]
                %327 = vst [vmem:[%s153 + $0x158] sm:%s145] %v326
                %v328 = vld [vmem:[%s152 + $0x294] sm:%s145]
                %329 = vst [vmem:[%s153 + $0x15c] sm:%s145] %v328
                %v330 = vld [vmem:[%s152 + $0x298] sm:%s145]
                %331 = vst [vmem:[%s153 + $0x160] sm:%s145] %v330
                %v332 = vld [vmem:[%s152 + $0x29c] sm:%s145]
                %333 = vst [vmem:[%s153 + $0x164] sm:%s145] %v332
                %v334 = vld [vmem:[%s152 + $0x2a0] sm:%s145]
                %335 = vst [vmem:[%s153 + $0x168] sm:%s145] %v334
                %v336 = vld [vmem:[%s152 + $0x2a4] sm:%s145]
                %337 = vst [vmem:[%s153 + $0x16c] sm:%s145] %v336
                %v338 = vld [vmem:[%s152 + $0x2a8] sm:%s145]
                %339 = vst [vmem:[%s153 + $0x170] sm:%s145] %v338
                %v340 = vld [vmem:[%s152 + $0x2ac] sm:%s145]
                %341 = vst [vmem:[%s153 + $0x174] sm:%s145] %v340
                %v342 = vld [vmem:[%s152 + $0x2b0] sm:%s145]
                %343 = vst [vmem:[%s153 + $0x178] sm:%s145] %v342
                %v344 = vld [vmem:[%s152 + $0x2b4] sm:%s145]
                %345 = vst [vmem:[%s153 + $0x17c] sm:%s145] %v344
                %v346 = vld [vmem:[%s152 + $0x2b8] sm:%s145]
                %347 = vst [vmem:[%s153 + $0x180] sm:%s145] %v346
                %v348 = vld [vmem:[%s152 + $0x2bc] sm:%s145]
                %349 = vst [vmem:[%s153 + $0x184] sm:%s145] %v348
                %v350 = vld [vmem:[%s152 + $0x2c0] sm:%s145]
                %351 = vst [vmem:[%s153 + $0x188] sm:%s145] %v350
                %v352 = vld [vmem:[%s152 + $0x2c4] sm:%s145]
                %353 = vst [vmem:[%s153 + $0x18c] sm:%s145] %v352
                %v354 = vld [vmem:[%s152 + $0x2c8] sm:%s145]
                %355 = vst [vmem:[%s153 + $0x190] sm:%s145] %v354
                %v356 = vld [vmem:[%s152 + $0x2cc] sm:%s145]
                %357 = vst [vmem:[%s153 + $0x194] sm:%s145] %v356
                %v358 = vld [vmem:[%s152 + $0x2d0] sm:%s145]
                %359 = vst [vmem:[%s153 + $0x198] sm:%s145] %v358
                %v360 = vld [vmem:[%s152 + $0x2d4] sm:%s145]
                %361 = vst [vmem:[%s153 + $0x19c] sm:%s145] %v360
              $region45: #{net_forward.2} parent=39 // loop_footer
                %s151 = sadd.s32 1, %s147
              $region46: #{net_forward.2} parent=39 // loop_footer_branch
                %146 = sbr.rel target = $region42
              $region47: #{net_forward.2} parent=39 // loop_exit
                _
            $region40: #{net_forward.2} parent=31 // pred_fallthru
              _
          $region32: #{net_forward.2} parent=27 // pred_fallthru
            _
          %590 = vnop
        $region28: #{net_forward.2} parent=23 // pred_fallthru
          _
      $region24: #{net_forward.2} parent=5 // pred_fallthru
        _
      %p591 = scmp.le.s32.totalorder 1, %s9
      %p592 = scmp.lt.s32.totalorder %s9, 3
      %p593 = pnand %p591, %p592
      %p594 = pneg %p593
      // Predicated region
      $region66: #{net_forward.2} parent=5 // pred_check
        _
      $region67: #{net_forward.2} parent=5 // pred_check_branch
        %596 = sbr.rel (%p593) target = $region69
      $region68: #{net_forward.2} parent=5 // pred_region
        %s597 = ssub.s32 %s9, 1
        %s598 = sand.u32 %s22, 1
        %s599 = sand.u32 %s22, 1
        %s600 = smul.addr %s599, 416
        %s601 = scalar_lea.vmem [#allocation2], %s600
        // Predicated region
        $region70: #{net_forward.2} parent=68 // pred_check
          %p602 = pneg %p35
        $region71: #{net_forward.2} parent=68 // pred_check_branch
          %604 = sbr.rel (%p602) target = $region73
        $region72: #{net_forward.2} parent=68 // pred_region
          _
        $region73: #{net_forward.2} parent=68 // pred_fallthru
          _
        %s605 = sand.u32 %s22, 1
        %s606 = sand.u32 %s22, 1
        %s607 = smul.addr %s606, 416
        %s608 = scalar_lea.vmem [#allocation2], %s607
        %p609 = pneg %p35
        %p610 = pneg %p32
        %p611 = pneg %p56
        %p612 = pneg %p53
        %p613 = pneg %p77
        %p614 = pneg %p74
        %p615 = pneg %p103
        %p616 = pneg %p100
        %s617 = smul.u32 26, %s14
        %p618 = scmp.lt.s32.totalorder %s617, 51
        %s619 = scalar_select %p618, %s617, 51
        %s620 = smul.addr %s619, 4
        %s621 = scalar_lea.vmem %s3, %s620
        %s622 = smul.u32 26, %s14
        %s623 = smul.u32 26, %s14
        %p624 = scmp.lt.s32.totalorder %s623, 51
        %s625 = scalar_select %p624, %s623, 51
        %s626 = smul.addr %s625, 4
        %s627 = scalar_lea.vmem %s3, %s626
        %s628 = smul.u32 26, %s14
        %v629 = vld [vmem:[%s601] sm:$0xf]
        %v630 = vld [vmem:[%s601 + $0x4] sm:$0xf]
        %v631 = vld [vmem:[%s601 + $0x8] sm:$0xf]
        %v632 = vld [vmem:[%s601 + $0xc] sm:$0xf]
        %v633 = vld [vmem:[%s601 + $0x10] sm:$0xf]
        %v634 = vld [vmem:[%s601 + $0x14] sm:$0xf]
        %v635 = vld [vmem:[%s601 + $0x18] sm:$0xf]
        %v636 = vld [vmem:[%s601 + $0x1c] sm:$0xf]
        %v637 = vld [vmem:[%s601 + $0x20] sm:$0xf]
        %v638 = vld [vmem:[%s601 + $0x24] sm:$0xf]
        %v639 = vld [vmem:[%s601 + $0x28] sm:$0xf]
        %v640 = vld [vmem:[%s601 + $0x2c] sm:$0xf]
        %v641 = vld [vmem:[%s601 + $0x30] sm:$0xf]
        %v642 = vld [vmem:[%s601 + $0x34] sm:$0xf]
        %v643 = vld [vmem:[%s601 + $0x38] sm:$0xf]
        %v644 = vld [vmem:[%s601 + $0x3c] sm:$0xf]
        %v645 = vld [vmem:[%s601 + $0x40] sm:$0xf]
        %v646 = vld [vmem:[%s601 + $0x44] sm:$0xf]
        %v647 = vld [vmem:[%s601 + $0x48] sm:$0xf]
        %v648 = vld [vmem:[%s601 + $0x4c] sm:$0xf]
        %v649 = vld [vmem:[%s601 + $0x50] sm:$0xf]
        %v650 = vld [vmem:[%s601 + $0x54] sm:$0xf]
        %v651 = vld [vmem:[%s601 + $0x58] sm:$0xf]
        %v652 = vld [vmem:[%s601 + $0x5c] sm:$0xf]
        %v653 = vld [vmem:[%s601 + $0x60] sm:$0xf]
        %v654 = vld [vmem:[%s601 + $0x64] sm:$0xf]
        %v655 = vld [vmem:[%s601 + $0x68] sm:$0xf]
        %v656 = vld [vmem:[%s601 + $0x6c] sm:$0xf]
        %v657 = vld [vmem:[%s601 + $0x70] sm:$0xf]
        %v658 = vld [vmem:[%s601 + $0x74] sm:$0xf]
        %v659 = vld [vmem:[%s601 + $0x78] sm:$0xf]
        %v660 = vld [vmem:[%s601 + $0x7c] sm:$0xf]
        %v661 = vld [vmem:[%s601 + $0x80] sm:$0xf]
        %v662 = vld [vmem:[%s601 + $0x84] sm:$0xf]
        %v663 = vld [vmem:[%s601 + $0x88] sm:$0xf]
        %v664 = vld [vmem:[%s601 + $0x8c] sm:$0xf]
        %v665 = vld [vmem:[%s601 + $0x90] sm:$0xf]
        %v666 = vld [vmem:[%s601 + $0x94] sm:$0xf]
        %v667 = vld [vmem:[%s601 + $0x98] sm:$0xf]
        %v668 = vld [vmem:[%s601 + $0x9c] sm:$0xf]
        %v669 = vld [vmem:[%s601 + $0xa0] sm:$0xf]
        %v670 = vld [vmem:[%s601 + $0xa4] sm:$0xf]
        %v671 = vld [vmem:[%s601 + $0xa8] sm:$0xf]
        %v672 = vld [vmem:[%s601 + $0xac] sm:$0xf]
        %v673 = vld [vmem:[%s601 + $0xb0] sm:$0xf]
        %v674 = vld [vmem:[%s601 + $0xb4] sm:$0xf]
        %v675 = vld [vmem:[%s601 + $0xb8] sm:$0xf]
        %v676 = vld [vmem:[%s601 + $0xbc] sm:$0xf]
        %v677 = vld [vmem:[%s601 + $0xc0] sm:$0xf]
        %v678 = vld [vmem:[%s601 + $0xc4] sm:$0xf]
        %v679 = vld [vmem:[%s601 + $0xc8] sm:$0xf]
        %v680 = vld [vmem:[%s601 + $0xcc] sm:$0xf]
        %v681 = vld [vmem:[%s601 + $0xd0] sm:$0xf]
        %v682 = vld [vmem:[%s601 + $0xd4] sm:$0xf]
        %v683 = vld [vmem:[%s601 + $0xd8] sm:$0xf]
        %v684 = vld [vmem:[%s601 + $0xdc] sm:$0xf]
        %v685 = vld [vmem:[%s601 + $0xe0] sm:$0xf]
        %v686 = vld [vmem:[%s601 + $0xe4] sm:$0xf]
        %v687 = vld [vmem:[%s601 + $0xe8] sm:$0xf]
        %v688 = vld [vmem:[%s601 + $0xec] sm:$0xf]
        %v689 = vld [vmem:[%s601 + $0xf0] sm:$0xf]
        %v690 = vld [vmem:[%s601 + $0xf4] sm:$0xf]
        %v691 = vld [vmem:[%s601 + $0xf8] sm:$0xf]
        %v692 = vld [vmem:[%s601 + $0xfc] sm:$0xf]
        %v693 = vld [vmem:[%s601 + $0x100] sm:$0xf]
        %v694 = vld [vmem:[%s601 + $0x104] sm:$0xf]
        %v695 = vld [vmem:[%s601 + $0x108] sm:$0xf]
        %v696 = vld [vmem:[%s601 + $0x10c] sm:$0xf]
        %v697 = vld [vmem:[%s601 + $0x110] sm:$0xf]
        %v698 = vld [vmem:[%s601 + $0x114] sm:$0xf]
        %v699 = vld [vmem:[%s601 + $0x118] sm:$0xf]
        %v700 = vld [vmem:[%s601 + $0x11c] sm:$0xf]
        %v701 = vld [vmem:[%s601 + $0x120] sm:$0xf]
        %v702 = vld [vmem:[%s601 + $0x124] sm:$0xf]
        %v703 = vld [vmem:[%s601 + $0x128] sm:$0xf]
        %v704 = vld [vmem:[%s601 + $0x12c] sm:$0xf]
        %v705 = vld [vmem:[%s601 + $0x130] sm:$0xf]
        %v706 = vld [vmem:[%s601 + $0x134] sm:$0xf]
        %v707 = vld [vmem:[%s601 + $0x138] sm:$0xf]
        %v708 = vld [vmem:[%s601 + $0x13c] sm:$0xf]
        %v709 = vld [vmem:[%s601 + $0x140] sm:$0xf]
        %v710 = vld [vmem:[%s601 + $0x144] sm:$0xf]
        %v711 = vld [vmem:[%s601 + $0x148] sm:$0xf]
        %v712 = vld [vmem:[%s601 + $0x14c] sm:$0xf]
        %v713 = vld [vmem:[%s601 + $0x150] sm:$0xf]
        %v714 = vld [vmem:[%s601 + $0x154] sm:$0xf]
        %v715 = vld [vmem:[%s601 + $0x158] sm:$0xf]
        %v716 = vld [vmem:[%s601 + $0x15c] sm:$0xf]
        %v717 = vld [vmem:[%s601 + $0x160] sm:$0xf]
        %v718 = vld [vmem:[%s601 + $0x164] sm:$0xf]
        %v719 = vld [vmem:[%s601 + $0x168] sm:$0xf]
        %v720 = vld [vmem:[%s601 + $0x16c] sm:$0xf]
        %v721 = vld [vmem:[%s601 + $0x170] sm:$0xf]
        %v722 = vld [vmem:[%s601 + $0x174] sm:$0xf]
        %v723 = vld [vmem:[%s601 + $0x178] sm:$0xf]
        %v724 = vld [vmem:[%s601 + $0x17c] sm:$0xf]
        %v725 = vld [vmem:[%s601 + $0x180] sm:$0xf]
        %v726 = vld [vmem:[%s601 + $0x184] sm:$0xf]
        %v727 = vld [vmem:[%s601 + $0x188] sm:$0xf]
        %v728 = vld [vmem:[%s601 + $0x18c] sm:$0xf]
        %v729 = vld [vmem:[%s601 + $0x190] sm:$0xf]
        %v730 = vld [vmem:[%s601 + $0x194] sm:$0xf]
        %v731 = vld [vmem:[%s601 + $0x198] sm:$0xf]
        %v732 = vld [vmem:[%s601 + $0x19c] sm:$0xf]
        %v733 = vld [vmem:[%s1] sm:$0xf]
        %v734 = vld [vmem:[%s1 + $0x4] sm:$0xf]
        %v735 = vld [vmem:[%s1 + $0x8] sm:$0xf]
        %v736 = vld [vmem:[%s1 + $0xc] sm:$0xf]
        %v737 = vld [vmem:[%s1 + $0x10] sm:$0xf]
        %v738 = vld [vmem:[%s1 + $0x14] sm:$0xf]
        %v739 = vld [vmem:[%s1 + $0x18] sm:$0xf]
        %v740 = vld [vmem:[%s1 + $0x1c] sm:$0xf]
        %v741 = vld [vmem:[%s1 + $0x20] sm:$0xf]
        %v742 = vld [vmem:[%s1 + $0x24] sm:$0xf]
        %v743 = vld [vmem:[%s1 + $0x28] sm:$0xf]
        %v744 = vld [vmem:[%s1 + $0x2c] sm:$0xf]
        %v745 = vld [vmem:[%s1 + $0x30] sm:$0xf]
        %v746 = vld [vmem:[%s1 + $0x34] sm:$0xf]
        %v747 = vld [vmem:[%s1 + $0x38] sm:$0xf]
        %v748 = vld [vmem:[%s1 + $0x3c] sm:$0xf]
        %v853 = vunpack.c.l.b16 %v629
        %v854 = vunpack.c.l.b16 %v630
        %v855 = vunpack.c.l.b16 %v631
        %v856 = vunpack.c.l.b16 %v632
        %v857 = vunpack.c.l.b16 %v633
        %v858 = vunpack.c.l.b16 %v634
        %v859 = vunpack.c.l.b16 %v635
        %v860 = vunpack.c.l.b16 %v636
        %v861 = vunpack.c.l.b16 %v637
        %v862 = vunpack.c.l.b16 %v638
        %v863 = vunpack.c.l.b16 %v639
        %v864 = vunpack.c.l.b16 %v640
        %v865 = vunpack.c.l.b16 %v641
        %v866 = vunpack.c.l.b16 %v642
        %v867 = vunpack.c.l.b16 %v643
        %v868 = vunpack.c.l.b16 %v644
        %v869 = vunpack.c.l.b16 %v645
        %v870 = vunpack.c.l.b16 %v646
        %v871 = vunpack.c.l.b16 %v647
        %v872 = vunpack.c.l.b16 %v648
        %v873 = vunpack.c.l.b16 %v649
        %v874 = vunpack.c.l.b16 %v650
        %v875 = vunpack.c.l.b16 %v651
        %v876 = vunpack.c.l.b16 %v652
        %v877 = vunpack.c.l.b16 %v653
        %v878 = vunpack.c.l.b16 %v654
        %v879 = vunpack.c.l.b16 %v655
        %v880 = vunpack.c.l.b16 %v656
        %v881 = vunpack.c.l.b16 %v657
        %v882 = vunpack.c.l.b16 %v658
        %v883 = vunpack.c.l.b16 %v659
        %v884 = vunpack.c.l.b16 %v660
        %v885 = vunpack.c.l.b16 %v661
        %v886 = vunpack.c.l.b16 %v662
        %v887 = vunpack.c.l.b16 %v663
        %v888 = vunpack.c.l.b16 %v664
        %v889 = vunpack.c.l.b16 %v665
        %v890 = vunpack.c.l.b16 %v666
        %v891 = vunpack.c.l.b16 %v667
        %v892 = vunpack.c.l.b16 %v668
        %v893 = vunpack.c.l.b16 %v669
        %v894 = vunpack.c.l.b16 %v670
        %v895 = vunpack.c.l.b16 %v671
        %v896 = vunpack.c.l.b16 %v672
        %v897 = vunpack.c.l.b16 %v673
        %v898 = vunpack.c.l.b16 %v674
        %v899 = vunpack.c.l.b16 %v675
        %v900 = vunpack.c.l.b16 %v676
        %v901 = vunpack.c.l.b16 %v677
        %v902 = vunpack.c.l.b16 %v678
        %v903 = vunpack.c.l.b16 %v679
        %v904 = vunpack.c.l.b16 %v680
        %v905 = vunpack.c.l.b16 %v681
        %v906 = vunpack.c.l.b16 %v682
        %v907 = vunpack.c.l.b16 %v683
        %v908 = vunpack.c.l.b16 %v684
        %v909 = vunpack.c.l.b16 %v685
        %v910 = vunpack.c.l.b16 %v686
        %v911 = vunpack.c.l.b16 %v687
        %v912 = vunpack.c.l.b16 %v688
        %v913 = vunpack.c.l.b16 %v689
        %v914 = vunpack.c.l.b16 %v690
        %v915 = vunpack.c.l.b16 %v691
        %v916 = vunpack.c.l.b16 %v692
        %v917 = vunpack.c.l.b16 %v693
        %v918 = vunpack.c.l.b16 %v694
        %v919 = vunpack.c.l.b16 %v695
        %v920 = vunpack.c.l.b16 %v696
        %v921 = vunpack.c.l.b16 %v697
        %v922 = vunpack.c.l.b16 %v698
        %v923 = vunpack.c.l.b16 %v699
        %v924 = vunpack.c.l.b16 %v700
        %v925 = vunpack.c.l.b16 %v701
        %v926 = vunpack.c.l.b16 %v702
        %v927 = vunpack.c.l.b16 %v703
        %v928 = vunpack.c.l.b16 %v704
        %v929 = vunpack.c.l.b16 %v705
        %v930 = vunpack.c.l.b16 %v706
        %v931 = vunpack.c.l.b16 %v707
        %v932 = vunpack.c.l.b16 %v708
        %v933 = vunpack.c.l.b16 %v709
        %v934 = vunpack.c.l.b16 %v710
        %v935 = vunpack.c.l.b16 %v711
        %v936 = vunpack.c.l.b16 %v712
        %v937 = vunpack.c.l.b16 %v713
        %v938 = vunpack.c.l.b16 %v714
        %v939 = vunpack.c.l.b16 %v715
        %v940 = vunpack.c.l.b16 %v716
        %v941 = vunpack.c.l.b16 %v717
        %v942 = vunpack.c.l.b16 %v718
        %v943 = vunpack.c.l.b16 %v719
        %v944 = vunpack.c.l.b16 %v720
        %v945 = vunpack.c.l.b16 %v721
        %v946 = vunpack.c.l.b16 %v722
        %v947 = vunpack.c.l.b16 %v723
        %v948 = vunpack.c.l.b16 %v724
        %v949 = vunpack.c.l.b16 %v725
        %v950 = vunpack.c.l.b16 %v726
        %v951 = vunpack.c.l.b16 %v727
        %v952 = vunpack.c.l.b16 %v728
        %v953 = vunpack.c.l.b16 %v729
        %v954 = vunpack.c.l.b16 %v730
        %v955 = vunpack.c.l.b16 %v731
        %v956 = vunpack.c.l.b16 %v732
        %v957 = vpack.c.b16 %v854, %v853
        %v958 = vpack.c.b16 %v856, %v855
        %v959 = vpack.c.b16 %v858, %v857
        %v960 = vpack.c.b16 %v860, %v859
        %v961 = vpack.c.b16 %v862, %v861
        %v962 = vpack.c.b16 %v864, %v863
        %v963 = vpack.c.b16 %v866, %v865
        %v964 = vpack.c.b16 %v868, %v867
        %v965 = vpack.c.b16 %v870, %v869
        %v966 = vpack.c.b16 %v872, %v871
        %v967 = vpack.c.b16 %v874, %v873
        %v968 = vpack.c.b16 %v876, %v875
        %v969 = vpack.c.b16 %v878, %v877
        %v970 = vpack.c.b16 %v880, %v879
        %v971 = vpack.c.b16 %v882, %v881
        %v972 = vpack.c.b16 %v884, %v883
        %v973 = vpack.c.b16 %v886, %v885
        %v974 = vpack.c.b16 %v888, %v887
        %v975 = vpack.c.b16 %v890, %v889
        %v976 = vpack.c.b16 %v892, %v891
        %v977 = vpack.c.b16 %v894, %v893
        %v978 = vpack.c.b16 %v896, %v895
        %v979 = vpack.c.b16 %v898, %v897
        %v980 = vpack.c.b16 %v900, %v899
        %v981 = vpack.c.b16 %v902, %v901
        %v982 = vpack.c.b16 %v904, %v903
        %v983 = vpack.c.b16 %v906, %v905
        %v984 = vpack.c.b16 %v908, %v907
        %v985 = vpack.c.b16 %v910, %v909
        %v986 = vpack.c.b16 %v912, %v911
        %v987 = vpack.c.b16 %v914, %v913
        %v988 = vpack.c.b16 %v916, %v915
        %v989 = vpack.c.b16 %v918, %v917
        %v990 = vpack.c.b16 %v920, %v919
        %v991 = vpack.c.b16 %v922, %v921
        %v992 = vpack.c.b16 %v924, %v923
        %v993 = vpack.c.b16 %v926, %v925
        %v994 = vpack.c.b16 %v928, %v927
        %v995 = vpack.c.b16 %v930, %v929
        %v996 = vpack.c.b16 %v932, %v931
        %v997 = vpack.c.b16 %v934, %v933
        %v998 = vpack.c.b16 %v936, %v935
        %v999 = vpack.c.b16 %v938, %v937
        %v1000 = vpack.c.b16 %v940, %v939
        %v1001 = vpack.c.b16 %v942, %v941
        %v1002 = vpack.c.b16 %v944, %v943
        %v1003 = vpack.c.b16 %v946, %v945
        %v1004 = vpack.c.b16 %v948, %v947
        %v1005 = vpack.c.b16 %v950, %v949
        %v1006 = vpack.c.b16 %v952, %v951
        %v1007 = vpack.c.b16 %v954, %v953
        %v1008 = vpack.c.b16 %v956, %v955
        %v1077 = vunpack.c.l.b16 %v733
        %v1078 = vunpack.c.l.b16 %v734
        %v1079 = vunpack.c.l.b16 %v735
        %v1080 = vunpack.c.l.b16 %v736
        %v1081 = vunpack.c.l.b16 %v737
        %v1082 = vunpack.c.l.b16 %v738
        %v1083 = vunpack.c.l.b16 %v739
        %v1084 = vunpack.c.l.b16 %v740
        %v1085 = vunpack.c.l.b16 %v741
        %v1086 = vunpack.c.l.b16 %v742
        %v1087 = vunpack.c.l.b16 %v743
        %v1088 = vunpack.c.l.b16 %v744
        %v1089 = vunpack.c.l.b16 %v745
        %v1090 = vunpack.c.l.b16 %v746
        %v1091 = vunpack.c.l.b16 %v747
        %v1092 = vunpack.c.l.b16 %v748
        %v1093 = vpack.c.b16 %v1078, %v1077
        %v1094 = vpack.c.b16 %v1080, %v1079
        %v1095 = vpack.c.b16 %v1082, %v1081
        %v1096 = vpack.c.b16 %v1084, %v1083
        %v1097 = vpack.c.b16 %v1086, %v1085
        %v1098 = vpack.c.b16 %v1088, %v1087
        %v1099 = vpack.c.b16 %v1090, %v1089
        %v1100 = vpack.c.b16 %v1092, %v1091
        %1109 = vmatpush.bf16.msra.mxu0 %v1100
        %1110 = vmatpush.bf16.msra.mxu0 %v1099
        %1111 = vmatpush.bf16.msra.mxu0 %v1098
        %1112 = vmatpush.bf16.msra.mxu0 %v1097
        %1113 = vmatpush.bf16.msra.mxu0 %v1096
        %1114 = vmatpush.bf16.msra.mxu0 %v1095
        %1115 = vmatpush.bf16.msra.mxu0 %v1094
        %1116 = vmatpush.bf16.msra.mxu0 %v1093
        %1117 = vmatmul.bf16.gmra.mxu0 %v957
        %v1118 = vpop.f32.mrf.mxu0
        %v1119 = vadd.f32 0.0, %v1118
        %v1120 = vpop.f32.mrf.mxu0
        %v1121 = vadd.f32 0.0, %v1120
        %1122 = vmatmul.bf16.gmra.mxu0 %v958
        %v1123 = vpop.f32.mrf.mxu0
        %v1124 = vadd.f32 0.0, %v1123
        %v1125 = vpop.f32.mrf.mxu0
        %v1126 = vadd.f32 0.0, %v1125
        %1127 = vmatmul.bf16.gmra.mxu0 %v959
        %v1128 = vpop.f32.mrf.mxu0
        %v1129 = vadd.f32 0.0, %v1128
        %v1130 = vpop.f32.mrf.mxu0
        %v1131 = vadd.f32 0.0, %v1130
        %1132 = vmatmul.bf16.gmra.mxu0 %v960
        %v1133 = vpop.f32.mrf.mxu0
        %v1134 = vadd.f32 0.0, %v1133
        %v1135 = vpop.f32.mrf.mxu0
        %v1136 = vadd.f32 0.0, %v1135
        %1137 = vmatmul.bf16.gmra.mxu0 %v961
        %v1138 = vpop.f32.mrf.mxu0
        %v1139 = vadd.f32 0.0, %v1138
        %v1140 = vpop.f32.mrf.mxu0
        %v1141 = vadd.f32 0.0, %v1140
        %1142 = vmatmul.bf16.gmra.mxu0 %v962
        %v1143 = vpop.f32.mrf.mxu0
        %v1144 = vadd.f32 0.0, %v1143
        %v1145 = vpop.f32.mrf.mxu0
        %v1146 = vadd.f32 0.0, %v1145
        %1147 = vmatmul.bf16.gmra.mxu0 %v963
        %v1148 = vpop.f32.mrf.mxu0
        %v1149 = vadd.f32 0.0, %v1148
        %v1150 = vpop.f32.mrf.mxu0
        %v1151 = vadd.f32 0.0, %v1150
        %1152 = vmatmul.bf16.gmra.mxu0 %v964
        %v1153 = vpop.f32.mrf.mxu0
        %v1154 = vadd.f32 0.0, %v1153
        %v1155 = vpop.f32.mrf.mxu0
        %v1156 = vadd.f32 0.0, %v1155
        %1157 = vmatmul.bf16.gmra.mxu0 %v965
        %v1158 = vpop.f32.mrf.mxu0
        %v1159 = vadd.f32 0.0, %v1158
        %v1160 = vpop.f32.mrf.mxu0
        %v1161 = vadd.f32 0.0, %v1160
        %1162 = vmatmul.bf16.gmra.mxu0 %v966
        %v1163 = vpop.f32.mrf.mxu0
        %v1164 = vadd.f32 0.0, %v1163
        %v1165 = vpop.f32.mrf.mxu0
        %v1166 = vadd.f32 0.0, %v1165
        %1167 = vmatmul.bf16.gmra.mxu0 %v967
        %v1168 = vpop.f32.mrf.mxu0
        %v1169 = vadd.f32 0.0, %v1168
        %v1170 = vpop.f32.mrf.mxu0
        %v1171 = vadd.f32 0.0, %v1170
        %1172 = vmatmul.bf16.gmra.mxu0 %v968
        %v1173 = vpop.f32.mrf.mxu0
        %v1174 = vadd.f32 0.0, %v1173
        %v1175 = vpop.f32.mrf.mxu0
        %v1176 = vadd.f32 0.0, %v1175
        %1177 = vmatmul.bf16.gmra.mxu0 %v969
        %v1178 = vpop.f32.mrf.mxu0
        %v1179 = vadd.f32 0.0, %v1178
        %v1180 = vpop.f32.mrf.mxu0
        %v1181 = vadd.f32 0.0, %v1180
        %1182 = vmatmul.bf16.gmra.mxu0 %v970
        %v1183 = vpop.f32.mrf.mxu0
        %v1184 = vadd.f32 0.0, %v1183
        %v1185 = vpop.f32.mrf.mxu0
        %v1186 = vadd.f32 0.0, %v1185
        %1187 = vmatmul.bf16.gmra.mxu0 %v971
        %v1188 = vpop.f32.mrf.mxu0
        %v1189 = vadd.f32 0.0, %v1188
        %v1190 = vpop.f32.mrf.mxu0
        %v1191 = vadd.f32 0.0, %v1190
        %1192 = vmatmul.bf16.gmra.mxu0 %v972
        %v1193 = vpop.f32.mrf.mxu0
        %v1194 = vadd.f32 0.0, %v1193
        %v1195 = vpop.f32.mrf.mxu0
        %v1196 = vadd.f32 0.0, %v1195
        %1197 = vmatmul.bf16.gmra.mxu0 %v973
        %v1198 = vpop.f32.mrf.mxu0
        %v1199 = vadd.f32 0.0, %v1198
        %v1200 = vpop.f32.mrf.mxu0
        %v1201 = vadd.f32 0.0, %v1200
        %1202 = vmatmul.bf16.gmra.mxu0 %v974
        %v1203 = vpop.f32.mrf.mxu0
        %v1204 = vadd.f32 0.0, %v1203
        %v1205 = vpop.f32.mrf.mxu0
        %v1206 = vadd.f32 0.0, %v1205
        %1207 = vmatmul.bf16.gmra.mxu0 %v975
        %v1208 = vpop.f32.mrf.mxu0
        %v1209 = vadd.f32 0.0, %v1208
        %v1210 = vpop.f32.mrf.mxu0
        %v1211 = vadd.f32 0.0, %v1210
        %1212 = vmatmul.bf16.gmra.mxu0 %v976
        %v1213 = vpop.f32.mrf.mxu0
        %v1214 = vadd.f32 0.0, %v1213
        %v1215 = vpop.f32.mrf.mxu0
        %v1216 = vadd.f32 0.0, %v1215
        %1217 = vmatmul.bf16.gmra.mxu0 %v977
        %v1218 = vpop.f32.mrf.mxu0
        %v1219 = vadd.f32 0.0, %v1218
        %v1220 = vpop.f32.mrf.mxu0
        %v1221 = vadd.f32 0.0, %v1220
        %1222 = vmatmul.bf16.gmra.mxu0 %v978
        %v1223 = vpop.f32.mrf.mxu0
        %v1224 = vadd.f32 0.0, %v1223
        %v1225 = vpop.f32.mrf.mxu0
        %v1226 = vadd.f32 0.0, %v1225
        %1227 = vmatmul.bf16.gmra.mxu0 %v979
        %v1228 = vpop.f32.mrf.mxu0
        %v1229 = vadd.f32 0.0, %v1228
        %v1230 = vpop.f32.mrf.mxu0
        %v1231 = vadd.f32 0.0, %v1230
        %1232 = vmatmul.bf16.gmra.mxu0 %v980
        %v1233 = vpop.f32.mrf.mxu0
        %v1234 = vadd.f32 0.0, %v1233
        %v1235 = vpop.f32.mrf.mxu0
        %v1236 = vadd.f32 0.0, %v1235
        %1237 = vmatmul.bf16.gmra.mxu0 %v981
        %v1238 = vpop.f32.mrf.mxu0
        %v1239 = vadd.f32 0.0, %v1238
        %v1240 = vpop.f32.mrf.mxu0
        %v1241 = vadd.f32 0.0, %v1240
        %1242 = vmatmul.bf16.gmra.mxu0 %v982
        %v1243 = vpop.f32.mrf.mxu0
        %v1244 = vadd.f32 0.0, %v1243
        %v1245 = vpop.f32.mrf.mxu0
        %v1246 = vadd.f32 0.0, %v1245
        %1247 = vmatmul.bf16.gmra.mxu0 %v983
        %v1248 = vpop.f32.mrf.mxu0
        %v1249 = vadd.f32 0.0, %v1248
        %v1250 = vpop.f32.mrf.mxu0
        %v1251 = vadd.f32 0.0, %v1250
        %1252 = vmatmul.bf16.gmra.mxu0 %v984
        %v1253 = vpop.f32.mrf.mxu0
        %v1254 = vadd.f32 0.0, %v1253
        %v1255 = vpop.f32.mrf.mxu0
        %v1256 = vadd.f32 0.0, %v1255
        %1257 = vmatmul.bf16.gmra.mxu0 %v985
        %v1258 = vpop.f32.mrf.mxu0
        %v1259 = vadd.f32 0.0, %v1258
        %v1260 = vpop.f32.mrf.mxu0
        %v1261 = vadd.f32 0.0, %v1260
        %1262 = vmatmul.bf16.gmra.mxu0 %v986
        %v1263 = vpop.f32.mrf.mxu0
        %v1264 = vadd.f32 0.0, %v1263
        %v1265 = vpop.f32.mrf.mxu0
        %v1266 = vadd.f32 0.0, %v1265
        %1267 = vmatmul.bf16.gmra.mxu0 %v987
        %v1268 = vpop.f32.mrf.mxu0
        %v1269 = vadd.f32 0.0, %v1268
        %v1270 = vpop.f32.mrf.mxu0
        %v1271 = vadd.f32 0.0, %v1270
        %1272 = vmatmul.bf16.gmra.mxu0 %v988
        %v1273 = vpop.f32.mrf.mxu0
        %v1274 = vadd.f32 0.0, %v1273
        %v1275 = vpop.f32.mrf.mxu0
        %v1276 = vadd.f32 0.0, %v1275
        %1277 = vmatmul.bf16.gmra.mxu0 %v989
        %v1278 = vpop.f32.mrf.mxu0
        %v1279 = vadd.f32 0.0, %v1278
        %v1280 = vpop.f32.mrf.mxu0
        %v1281 = vadd.f32 0.0, %v1280
        %1282 = vmatmul.bf16.gmra.mxu0 %v990
        %v1283 = vpop.f32.mrf.mxu0
        %v1284 = vadd.f32 0.0, %v1283
        %v1285 = vpop.f32.mrf.mxu0
        %v1286 = vadd.f32 0.0, %v1285
        %1287 = vmatmul.bf16.gmra.mxu0 %v991
        %v1288 = vpop.f32.mrf.mxu0
        %v1289 = vadd.f32 0.0, %v1288
        %v1290 = vpop.f32.mrf.mxu0
        %v1291 = vadd.f32 0.0, %v1290
        %1292 = vmatmul.bf16.gmra.mxu0 %v992
        %v1293 = vpop.f32.mrf.mxu0
        %v1294 = vadd.f32 0.0, %v1293
        %v1295 = vpop.f32.mrf.mxu0
        %v1296 = vadd.f32 0.0, %v1295
        %1297 = vmatmul.bf16.gmra.mxu0 %v993
        %v1298 = vpop.f32.mrf.mxu0
        %v1299 = vadd.f32 0.0, %v1298
        %v1300 = vpop.f32.mrf.mxu0
        %v1301 = vadd.f32 0.0, %v1300
        %1302 = vmatmul.bf16.gmra.mxu0 %v994
        %v1303 = vpop.f32.mrf.mxu0
        %v1304 = vadd.f32 0.0, %v1303
        %v1305 = vpop.f32.mrf.mxu0
        %v1306 = vadd.f32 0.0, %v1305
        %1307 = vmatmul.bf16.gmra.mxu0 %v995
        %v1308 = vpop.f32.mrf.mxu0
        %v1309 = vadd.f32 0.0, %v1308
        %v1310 = vpop.f32.mrf.mxu0
        %v1311 = vadd.f32 0.0, %v1310
        %1312 = vmatmul.bf16.gmra.mxu0 %v996
        %v1313 = vpop.f32.mrf.mxu0
        %v1314 = vadd.f32 0.0, %v1313
        %v1315 = vpop.f32.mrf.mxu0
        %v1316 = vadd.f32 0.0, %v1315
        %1317 = vmatmul.bf16.gmra.mxu0 %v997
        %v1318 = vpop.f32.mrf.mxu0
        %v1319 = vadd.f32 0.0, %v1318
        %v1320 = vpop.f32.mrf.mxu0
        %v1321 = vadd.f32 0.0, %v1320
        %1322 = vmatmul.bf16.gmra.mxu0 %v998
        %v1323 = vpop.f32.mrf.mxu0
        %v1324 = vadd.f32 0.0, %v1323
        %v1325 = vpop.f32.mrf.mxu0
        %v1326 = vadd.f32 0.0, %v1325
        %1327 = vmatmul.bf16.gmra.mxu0 %v999
        %v1328 = vpop.f32.mrf.mxu0
        %v1329 = vadd.f32 0.0, %v1328
        %v1330 = vpop.f32.mrf.mxu0
        %v1331 = vadd.f32 0.0, %v1330
        %1332 = vmatmul.bf16.gmra.mxu0 %v1000
        %v1333 = vpop.f32.mrf.mxu0
        %v1334 = vadd.f32 0.0, %v1333
        %v1335 = vpop.f32.mrf.mxu0
        %v1336 = vadd.f32 0.0, %v1335
        %1337 = vmatmul.bf16.gmra.mxu0 %v1001
        %v1338 = vpop.f32.mrf.mxu0
        %v1339 = vadd.f32 0.0, %v1338
        %v1340 = vpop.f32.mrf.mxu0
        %v1341 = vadd.f32 0.0, %v1340
        %1342 = vmatmul.bf16.gmra.mxu0 %v1002
        %v1343 = vpop.f32.mrf.mxu0
        %v1344 = vadd.f32 0.0, %v1343
        %v1345 = vpop.f32.mrf.mxu0
        %v1346 = vadd.f32 0.0, %v1345
        %1347 = vmatmul.bf16.gmra.mxu0 %v1003
        %v1348 = vpop.f32.mrf.mxu0
        %v1349 = vadd.f32 0.0, %v1348
        %v1350 = vpop.f32.mrf.mxu0
        %v1351 = vadd.f32 0.0, %v1350
        %1352 = vmatmul.bf16.gmra.mxu0 %v1004
        %v1353 = vpop.f32.mrf.mxu0
        %v1354 = vadd.f32 0.0, %v1353
        %v1355 = vpop.f32.mrf.mxu0
        %v1356 = vadd.f32 0.0, %v1355
        %1357 = vmatmul.bf16.gmra.mxu0 %v1005
        %v1358 = vpop.f32.mrf.mxu0
        %v1359 = vadd.f32 0.0, %v1358
        %v1360 = vpop.f32.mrf.mxu0
        %v1361 = vadd.f32 0.0, %v1360
        %1362 = vmatmul.bf16.gmra.mxu0 %v1006
        %v1363 = vpop.f32.mrf.mxu0
        %v1364 = vadd.f32 0.0, %v1363
        %v1365 = vpop.f32.mrf.mxu0
        %v1366 = vadd.f32 0.0, %v1365
        %1367 = vmatmul.bf16.gmra.mxu0 %v1007
        %v1368 = vpop.f32.mrf.mxu0
        %v1369 = vadd.f32 0.0, %v1368
        %v1370 = vpop.f32.mrf.mxu0
        %v1371 = vadd.f32 0.0, %v1370
        %1372 = vmatmul.bf16.gmra.mxu0 %v1008
        %v1373 = vpop.f32.mrf.mxu0
        %v1374 = vadd.f32 0.0, %v1373
        %v1375 = vpop.f32.mrf.mxu0
        %v1376 = vadd.f32 0.0, %v1375
        %1377 = vdwg.mxu0
        %v1378 = vmax.f32 %v1119, %v1184
        %v1379 = vmax.f32 %v1121, %v1186
        %v1380 = vmax.f32 %v1124, %v1189
        %v1381 = vmax.f32 %v1126, %v1191
        %v1382 = vmax.f32 %v1129, %v1194
        %v1383 = vmax.f32 %v1131, %v1196
        %v1384 = vmax.f32 %v1134, %v1199
        %v1385 = vmax.f32 %v1136, %v1201
        %v1386 = vmax.f32 %v1139, %v1204
        %v1387 = vmax.f32 %v1141, %v1206
        %v1388 = vmax.f32 %v1144, %v1209
        %v1389 = vmax.f32 %v1146, %v1211
        %v1390 = vmax.f32 %v1149, %v1214
        %v1391 = vmax.f32 %v1151, %v1216
        %v1392 = vmax.f32 %v1154, %v1219
        %v1393 = vmax.f32 %v1156, %v1221
        %v1394 = vmax.f32 %v1159, %v1224
        %v1395 = vmax.f32 %v1161, %v1226
        %v1396 = vmax.f32 %v1164, %v1229
        %v1397 = vmax.f32 %v1166, %v1231
        %v1398 = vmax.f32 %v1169, %v1234
        %v1399 = vmax.f32 %v1171, %v1236
        %v1400 = vmax.f32 %v1174, %v1239
        %v1401 = vmax.f32 %v1176, %v1241
        %v1402 = vmax.f32 %v1179, %v1244
        %v1403 = vmax.f32 %v1181, %v1246
        %v1404 = vmax.f32 %v1249, %v1314
        %v1405 = vmax.f32 %v1251, %v1316
        %v1406 = vmax.f32 %v1254, %v1319
        %v1407 = vmax.f32 %v1256, %v1321
        %v1408 = vmax.f32 %v1259, %v1324
        %v1409 = vmax.f32 %v1261, %v1326
        %v1410 = vmax.f32 %v1264, %v1329
        %v1411 = vmax.f32 %v1266, %v1331
        %v1412 = vmax.f32 %v1269, %v1334
        %v1413 = vmax.f32 %v1271, %v1336
        %v1414 = vmax.f32 %v1274, %v1339
        %v1415 = vmax.f32 %v1276, %v1341
        %v1416 = vmax.f32 %v1279, %v1344
        %v1417 = vmax.f32 %v1281, %v1346
        %v1418 = vmax.f32 %v1284, %v1349
        %v1419 = vmax.f32 %v1286, %v1351
        %v1420 = vmax.f32 %v1289, %v1354
        %v1421 = vmax.f32 %v1291, %v1356
        %v1422 = vmax.f32 %v1294, %v1359
        %v1423 = vmax.f32 %v1296, %v1361
        %v1424 = vmax.f32 %v1299, %v1364
        %v1425 = vmax.f32 %v1301, %v1366
        %v1426 = vmax.f32 %v1304, %v1369
        %v1427 = vmax.f32 %v1306, %v1371
        %v1428 = vmax.f32 %v1309, %v1374
        %v1429 = vmax.f32 %v1311, %v1376
        %v1430 = vmax.f32 %v1378, %v1404
        %v1431 = vmax.f32 %v1379, %v1405
        %v1432 = vmax.f32 %v1380, %v1406
        %v1433 = vmax.f32 %v1381, %v1407
        %v1434 = vmax.f32 %v1382, %v1408
        %v1435 = vmax.f32 %v1383, %v1409
        %v1436 = vmax.f32 %v1384, %v1410
        %v1437 = vmax.f32 %v1385, %v1411
        %v1438 = vmax.f32 %v1386, %v1412
        %v1439 = vmax.f32 %v1387, %v1413
        %v1440 = vmax.f32 %v1388, %v1414
        %v1441 = vmax.f32 %v1389, %v1415
        %v1442 = vmax.f32 %v1390, %v1416
        %v1443 = vmax.f32 %v1391, %v1417
        %v1444 = vmax.f32 %v1392, %v1418
        %v1445 = vmax.f32 %v1393, %v1419
        %v1446 = vmax.f32 %v1394, %v1420
        %v1447 = vmax.f32 %v1395, %v1421
        %v1448 = vmax.f32 %v1396, %v1422
        %v1449 = vmax.f32 %v1397, %v1423
        %v1450 = vmax.f32 %v1398, %v1424
        %v1451 = vmax.f32 %v1399, %v1425
        %v1452 = vmax.f32 %v1400, %v1426
        %v1453 = vmax.f32 %v1401, %v1427
        %v1454 = vmax.f32 %v1402, %v1428
        %v1455 = vmax.f32 %v1403, %v1429
        %v1456 = vld [vmem:[%s2] sm:$0x1]
        %v1458 = vperm.slane %v1456, 0
        %v1460 = vadd.f32 %v1430, %v1458
        %v1461 = vadd.f32 %v1431, %v1458
        %v1462 = vadd.f32 %v1432, %v1458
        %v1463 = vadd.f32 %v1433, %v1458
        %v1464 = vadd.f32 %v1434, %v1458
        %v1465 = vadd.f32 %v1435, %v1458
        %v1466 = vadd.f32 %v1436, %v1458
        %v1467 = vadd.f32 %v1437, %v1458
        %v1468 = vadd.f32 %v1438, %v1458
        %v1469 = vadd.f32 %v1439, %v1458
        %v1470 = vadd.f32 %v1440, %v1458
        %v1471 = vadd.f32 %v1441, %v1458
        %v1472 = vadd.f32 %v1442, %v1458
        %v1473 = vadd.f32 %v1443, %v1458
        %v1474 = vadd.f32 %v1444, %v1458
        %v1475 = vadd.f32 %v1445, %v1458
        %v1476 = vadd.f32 %v1446, %v1458
        %v1477 = vadd.f32 %v1447, %v1458
        %v1478 = vadd.f32 %v1448, %v1458
        %v1479 = vadd.f32 %v1449, %v1458
        %v1480 = vadd.f32 %v1450, %v1458
        %v1481 = vadd.f32 %v1451, %v1458
        %v1482 = vadd.f32 %v1452, %v1458
        %v1483 = vadd.f32 %v1453, %v1458
        %v1484 = vadd.f32 %v1454, %v1458
        %v1485 = vadd.f32 %v1455, %v1458
        %v1486 = vmax.f32 %v1460, 0.0
        %v1487 = vmax.f32 %v1461, 0.0
        %v1488 = vmax.f32 %v1462, 0.0
        %v1489 = vmax.f32 %v1463, 0.0
        %v1490 = vmax.f32 %v1464, 0.0
        %v1491 = vmax.f32 %v1465, 0.0
        %v1492 = vmax.f32 %v1466, 0.0
        %v1493 = vmax.f32 %v1467, 0.0
        %v1494 = vmax.f32 %v1468, 0.0
        %v1495 = vmax.f32 %v1469, 0.0
        %v1496 = vmax.f32 %v1470, 0.0
        %v1497 = vmax.f32 %v1471, 0.0
        %v1498 = vmax.f32 %v1472, 0.0
        %v1499 = vmax.f32 %v1473, 0.0
        %v1500 = vmax.f32 %v1474, 0.0
        %v1501 = vmax.f32 %v1475, 0.0
        %v1502 = vmax.f32 %v1476, 0.0
        %v1503 = vmax.f32 %v1477, 0.0
        %v1504 = vmax.f32 %v1478, 0.0
        %v1505 = vmax.f32 %v1479, 0.0
        %v1506 = vmax.f32 %v1480, 0.0
        %v1507 = vmax.f32 %v1481, 0.0
        %v1508 = vmax.f32 %v1482, 0.0
        %v1509 = vmax.f32 %v1483, 0.0
        %v1510 = vmax.f32 %v1484, 0.0
        %v1511 = vmax.f32 %v1485, 0.0
        %v1512 = vpack.c.bf16 %v1486, %v1486
        %v1513 = vpack.c.bf16 %v1487, %v1487
        %v1514 = vpack.c.bf16 %v1488, %v1488
        %v1515 = vpack.c.bf16 %v1489, %v1489
        %v1516 = vpack.c.bf16 %v1490, %v1490
        %v1517 = vpack.c.bf16 %v1491, %v1491
        %v1518 = vpack.c.bf16 %v1492, %v1492
        %v1519 = vpack.c.bf16 %v1493, %v1493
        %v1520 = vpack.c.bf16 %v1494, %v1494
        %v1521 = vpack.c.bf16 %v1495, %v1495
        %v1522 = vpack.c.bf16 %v1496, %v1496
        %v1523 = vpack.c.bf16 %v1497, %v1497
        %v1524 = vpack.c.bf16 %v1498, %v1498
        %v1525 = vpack.c.bf16 %v1499, %v1499
        %v1526 = vpack.c.bf16 %v1500, %v1500
        %v1527 = vpack.c.bf16 %v1501, %v1501
        %v1528 = vpack.c.bf16 %v1502, %v1502
        %v1529 = vpack.c.bf16 %v1503, %v1503
        %v1530 = vpack.c.bf16 %v1504, %v1504
        %v1531 = vpack.c.bf16 %v1505, %v1505
        %v1532 = vpack.c.bf16 %v1506, %v1506
        %v1533 = vpack.c.bf16 %v1507, %v1507
        %v1534 = vpack.c.bf16 %v1508, %v1508
        %v1535 = vpack.c.bf16 %v1509, %v1509
        %v1536 = vpack.c.bf16 %v1510, %v1510
        %v1537 = vpack.c.bf16 %v1511, %v1511
        %1538 = vst [vmem:[%s627] sm:$0xf] %v1512
        %1539 = vst [vmem:[%s627 + $0x4] sm:$0xf] %v1513
        %1540 = vst [vmem:[%s627 + $0x8] sm:$0xf] %v1514
        %1541 = vst [vmem:[%s627 + $0xc] sm:$0xf] %v1515
        %1542 = vst [vmem:[%s627 + $0x10] sm:$0xf] %v1516
        %1543 = vst [vmem:[%s627 + $0x14] sm:$0xf] %v1517
        %1544 = vst [vmem:[%s627 + $0x18] sm:$0xf] %v1518
        %1545 = vst [vmem:[%s627 + $0x1c] sm:$0xf] %v1519
        %1546 = vst [vmem:[%s627 + $0x20] sm:$0xf] %v1520
        %1547 = vst [vmem:[%s627 + $0x24] sm:$0xf] %v1521
        %1548 = vst [vmem:[%s627 + $0x28] sm:$0xf] %v1522
        %1549 = vst [vmem:[%s627 + $0x2c] sm:$0xf] %v1523
        %1550 = vst [vmem:[%s627 + $0x30] sm:$0xf] %v1524
        %1551 = vst [vmem:[%s627 + $0x34] sm:$0xf] %v1525
        %1552 = vst [vmem:[%s627 + $0x38] sm:$0xf] %v1526
        %1553 = vst [vmem:[%s627 + $0x3c] sm:$0xf] %v1527
        %1554 = vst [vmem:[%s627 + $0x40] sm:$0xf] %v1528
        %1555 = vst [vmem:[%s627 + $0x44] sm:$0xf] %v1529
        %1556 = vst [vmem:[%s627 + $0x48] sm:$0xf] %v1530
        %1557 = vst [vmem:[%s627 + $0x4c] sm:$0xf] %v1531
        %1558 = vst [vmem:[%s627 + $0x50] sm:$0xf] %v1532
        %1559 = vst [vmem:[%s627 + $0x54] sm:$0xf] %v1533
        %1560 = vst [vmem:[%s627 + $0x58] sm:$0xf] %v1534
        %1561 = vst [vmem:[%s627 + $0x5c] sm:$0xf] %v1535
        %1562 = vst [vmem:[%s627 + $0x60] sm:$0xf] %v1536
        %1563 = vst [vmem:[%s627 + $0x64] sm:$0xf] %v1537
        %s1564 = smul.u32 26, %s14
        %p1565 = scmp.lt.s32.totalorder %s1564, 51
        %s1566 = scalar_select %p1565, %s1564, 51
        %s1567 = smul.addr %s1566, 4
        %s1568 = scalar_lea.vmem %s3, %s1567
        // Predicated region
        $region74: #{net_forward.2} parent=68 // pred_check
          %p1569 = pneg %p100
        $region75: #{net_forward.2} parent=68 // pred_check_branch
          %1571 = sbr.rel (%p1569) target = $region77
        $region76: #{net_forward.2} parent=68 // pred_region
          %s1572 = smul.u32 26, %s14
        $region77: #{net_forward.2} parent=68 // pred_fallthru
          _
      $region69: #{net_forward.2} parent=5 // pred_fallthru
        _
      %p1573 = scmp.le.s32.totalorder 2, %s9
      // Predicated region
      $region78: #{net_forward.2} parent=5 // pred_check
        %p1574 = pneg %p1573
      $region79: #{net_forward.2} parent=5 // pred_check_branch
        %1576 = sbr.rel (%p1574) target = $region81
      $region80: #{net_forward.2} parent=5 // pred_region
        %s1577 = ssub.s32 %s9, 2
        // Predicated region
        $region82: #{net_forward.2} parent=80 // pred_check
          %p1578 = pneg %p106
        $region83: #{net_forward.2} parent=80 // pred_check_branch
          %1580 = sbr.rel (%p1578) target = $region85
        $region84: #{net_forward.2} parent=80 // pred_region
          %s1581 = smul.u32 26, %s15
          %p1582 = scmp.lt.s32.totalorder %s1581, 51
          %s1583 = scalar_select %p1582, %s1581, 51
          %s1584 = smul.addr %s1583, 4
          %s1585 = scalar_lea.vmem %s3, %s1584
        $region85: #{net_forward.2} parent=80 // pred_fallthru
          _
      $region81: #{net_forward.2} parent=5 // pred_fallthru
        _
    $region6: #{net_forward.2} parent=1 // loop_footer
      %s13 = sadd.s32 1, %s9
    $region7: #{net_forward.2} parent=1 // loop_footer_branch
      %8 = sbr.rel target = $region3
    $region8: #{net_forward.2} parent=1 // loop_exit
      _

// kernel: net_forward.3
$region0: #{net_forward.3}
  #allocation0 [shape = 'u32[]', space=smem, size = 0x4, offset = 0x4, fixed_abs, tag = 'smem constant byte address 0x4 - core index']
  #allocation1 [shape = 'u32[72,128]{1,0:T(1,128)}', space=vmem, size = 0x9000, scoped, tag = 'internal scratch']
  %s0 = inlined_call_operand.vmem [shape: bf16[4,25,16,256], index: 0, kind: input, shape index: {}]
  %s1 = inlined_call_operand.vmem [shape: bf16[256,128], index: 1, kind: input, shape index: {}]
  %s2 = inlined_call_operand.vmem [shape: f32[1,128], index: 2, kind: input, shape index: {}]
  %s3 = inlined_call_operand.vmem [shape: bf16[25,128,128], index: 3, kind: input, shape index: {}]
  %s4 = inlined_call_operand.vmem [shape: f32[1,128], index: 4, kind: input, shape index: {}]
  %s5 = inlined_call_operand.vmem [shape: bf16[128,128], index: 5, kind: input, shape index: {}]
  %s6 = inlined_call_operand.vmem [shape: f32[1,128], index: 6, kind: input, shape index: {}]
  %s7 = inlined_call_operand.vmem [shape: bf16[128,128], index: 7, kind: input, shape index: {}]
  %s8 = inlined_call_operand.vmem [shape: f32[1,128], index: 8, kind: input, shape index: {}]
  %s9 = inlined_call_operand.vmem [shape: f32[16,128], index: 9, kind: output, shape index: {}]
  %s10 = sld [smem:[#allocation0]]
  $region46: #{net_forward.3} parent=0
    _
  %s12 = ssub.s32 1, %s10
  %s13 = scalar_select 0, %s12, %s10
  // Predicated region
  $region2: #{net_forward.3} parent=0 // pred_check
    _
  $region3: #{net_forward.3} parent=0 // pred_check_branch
    %15 = sbr.rel (0) target = $region5
  $region4: #{net_forward.3} parent=0 // pred_region
    _
  $region5: #{net_forward.3} parent=0 // pred_fallthru
    _
  // Predicated region
  $region6: #{net_forward.3} parent=0 // pred_check
    _
  $region7: #{net_forward.3} parent=0 // pred_check_branch
    %17 = sbr.rel (0) target = $region9
  $region8: #{net_forward.3} parent=0 // pred_region
    _
  $region9: #{net_forward.3} parent=0 // pred_fallthru
    _
  // Predicated region
  $region10: #{net_forward.3} parent=0 // pred_check
    _
  $region11: #{net_forward.3} parent=0 // pred_check_branch
    %19 = sbr.rel (0) target = $region13
  $region12: #{net_forward.3} parent=0 // pred_region
    _
  $region13: #{net_forward.3} parent=0 // pred_fallthru
    _
  // Predicated region
  $region14: #{net_forward.3} parent=0 // pred_check
    _
  $region15: #{net_forward.3} parent=0 // pred_check_branch
    %21 = sbr.rel (0) target = $region17
  $region16: #{net_forward.3} parent=0 // pred_region
    _
  $region17: #{net_forward.3} parent=0 // pred_fallthru
    _
  // Predicated region
  $region18: #{net_forward.3} parent=0 // pred_check
    _
  $region19: #{net_forward.3} parent=0 // pred_check_branch
    %23 = sbr.rel (0) target = $region21
  $region20: #{net_forward.3} parent=0 // pred_region
    _
  $region21: #{net_forward.3} parent=0 // pred_fallthru
    _
  // Predicated region
  $region22: #{net_forward.3} parent=0 // pred_check
    _
  $region23: #{net_forward.3} parent=0 // pred_check_branch
    %25 = sbr.rel (0) target = $region25
  $region24: #{net_forward.3} parent=0 // pred_region
    _
  $region25: #{net_forward.3} parent=0 // pred_fallthru
    _
  // Predicated region
  $region26: #{net_forward.3} parent=0 // pred_check
    _
  $region27: #{net_forward.3} parent=0 // pred_check_branch
    %27 = sbr.rel (0) target = $region29
  $region28: #{net_forward.3} parent=0 // pred_region
    _
  $region29: #{net_forward.3} parent=0 // pred_fallthru
    _
  // Predicated region
  $region30: #{net_forward.3} parent=0 // pred_check
    _
  $region31: #{net_forward.3} parent=0 // pred_check_branch
    %29 = sbr.rel (0) target = $region33
  $region32: #{net_forward.3} parent=0 // pred_region
    _
  $region33: #{net_forward.3} parent=0 // pred_fallthru
    _
  // Predicated region
  $region34: #{net_forward.3} parent=0 // pred_check
    _
  $region35: #{net_forward.3} parent=0 // pred_check_branch
    %31 = sbr.rel (0) target = $region37
  $region36: #{net_forward.3} parent=0 // pred_region
    _
  $region37: #{net_forward.3} parent=0 // pred_fallthru
    _
  %v32 = vld [vmem:[%s0] sm:$0xff]
  %v33 = vld [vmem:[%s0 + $0x8] sm:$0xff]
  %v34 = vld [vmem:[%s0 + $0x10] sm:$0xff]
  %v35 = vld [vmem:[%s0 + $0x18] sm:$0xff]
  %v36 = vld [vmem:[%s0 + $0x20] sm:$0xff]
  %v37 = vld [vmem:[%s0 + $0x28] sm:$0xff]
  %v38 = vld [vmem:[%s0 + $0x30] sm:$0xff]
  %v39 = vld [vmem:[%s0 + $0x38] sm:$0xff]
  %v40 = vld [vmem:[%s0 + $0x40] sm:$0xff]
  %v41 = vld [vmem:[%s0 + $0x48] sm:$0xff]
  %v42 = vld [vmem:[%s0 + $0x50] sm:$0xff]
  %v43 = vld [vmem:[%s0 + $0x58] sm:$0xff]
  %v44 = vld [vmem:[%s0 + $0x60] sm:$0xff]
  %v45 = vld [vmem:[%s0 + $0x68] sm:$0xff]
  %v46 = vld [vmem:[%s0 + $0x70] sm:$0xff]
  %v47 = vld [vmem:[%s0 + $0x78] sm:$0xff]
  %v48 = vld [vmem:[%s0 + $0x80] sm:$0xff]
  %v49 = vld [vmem:[%s0 + $0x88] sm:$0xff]
  %v50 = vld [vmem:[%s0 + $0x90] sm:$0xff]
  %v51 = vld [vmem:[%s0 + $0x98] sm:$0xff]
  %v52 = vld [vmem:[%s0 + $0xa0] sm:$0xff]
  %v53 = vld [vmem:[%s0 + $0xa8] sm:$0xff]
  %v54 = vld [vmem:[%s0 + $0xb0] sm:$0xff]
  %v55 = vld [vmem:[%s0 + $0xb8] sm:$0xff]
  %v56 = vld [vmem:[%s0 + $0xc0] sm:$0xff]
  %v57 = vld [vmem:[%s0 + $0xc8] sm:$0xff]
  %v58 = vld [vmem:[%s0 + $0xd0] sm:$0xff]
  %v59 = vld [vmem:[%s0 + $0xd8] sm:$0xff]
  %v60 = vld [vmem:[%s0 + $0xe0] sm:$0xff]
  %v61 = vld [vmem:[%s0 + $0xe8] sm:$0xff]
  %v62 = vld [vmem:[%s0 + $0xf0] sm:$0xff]
  %v63 = vld [vmem:[%s0 + $0xf8] sm:$0xff]
  %v64 = vld [vmem:[%s0 + $0x100] sm:$0xff]
  %v65 = vld [vmem:[%s0 + $0x108] sm:$0xff]
  %v66 = vld [vmem:[%s0 + $0x110] sm:$0xff]
  %v67 = vld [vmem:[%s0 + $0x118] sm:$0xff]
  %v68 = vld [vmem:[%s0 + $0x120] sm:$0xff]
  %v69 = vld [vmem:[%s0 + $0x128] sm:$0xff]
  %v70 = vld [vmem:[%s0 + $0x130] sm:$0xff]
  %v71 = vld [vmem:[%s0 + $0x138] sm:$0xff]
  %v72 = vld [vmem:[%s0 + $0x140] sm:$0xff]
  %v73 = vld [vmem:[%s0 + $0x148] sm:$0xff]
  %v74 = vld [vmem:[%s0 + $0x150] sm:$0xff]
  %v75 = vld [vmem:[%s0 + $0x158] sm:$0xff]
  %v76 = vld [vmem:[%s0 + $0x160] sm:$0xff]
  %v77 = vld [vmem:[%s0 + $0x168] sm:$0xff]
  %v78 = vld [vmem:[%s0 + $0x170] sm:$0xff]
  %v79 = vld [vmem:[%s0 + $0x178] sm:$0xff]
  %v80 = vld [vmem:[%s0 + $0x180] sm:$0xff]
  %v81 = vld [vmem:[%s0 + $0x188] sm:$0xff]
  %v82 = vld [vmem:[%s0 + $0x190] sm:$0xff]
  %v83 = vld [vmem:[%s0 + $0x198] sm:$0xff]
  %v84 = vld [vmem:[%s0 + $0x1a0] sm:$0xff]
  %v85 = vld [vmem:[%s0 + $0x1a8] sm:$0xff]
  %v86 = vld [vmem:[%s0 + $0x1b0] sm:$0xff]
  %v87 = vld [vmem:[%s0 + $0x1b8] sm:$0xff]
  %v88 = vld [vmem:[%s0 + $0x1c0] sm:$0xff]
  %v89 = vld [vmem:[%s0 + $0x1c8] sm:$0xff]
  %v90 = vld [vmem:[%s0 + $0x1d0] sm:$0xff]
  %v91 = vld [vmem:[%s0 + $0x1d8] sm:$0xff]
  %v92 = vld [vmem:[%s0 + $0x1e0] sm:$0xff]
  %v93 = vld [vmem:[%s0 + $0x1e8] sm:$0xff]
  %v94 = vld [vmem:[%s0 + $0x1f0] sm:$0xff]
  %v95 = vld [vmem:[%s0 + $0x1f8] sm:$0xff]
  %v96 = vld [vmem:[%s0 + $0x200] sm:$0xff]
  %v97 = vld [vmem:[%s0 + $0x208] sm:$0xff]
  %v98 = vld [vmem:[%s0 + $0x210] sm:$0xff]
  %v99 = vld [vmem:[%s0 + $0x218] sm:$0xff]
  %v100 = vld [vmem:[%s0 + $0x220] sm:$0xff]
  %v101 = vld [vmem:[%s0 + $0x228] sm:$0xff]
  %v102 = vld [vmem:[%s0 + $0x230] sm:$0xff]
  %v103 = vld [vmem:[%s0 + $0x238] sm:$0xff]
  %v104 = vld [vmem:[%s0 + $0x240] sm:$0xff]
  %v105 = vld [vmem:[%s0 + $0x248] sm:$0xff]
  %v106 = vld [vmem:[%s0 + $0x250] sm:$0xff]
  %v107 = vld [vmem:[%s0 + $0x258] sm:$0xff]
  %v108 = vld [vmem:[%s0 + $0x260] sm:$0xff]
  %v109 = vld [vmem:[%s0 + $0x268] sm:$0xff]
  %v110 = vld [vmem:[%s0 + $0x270] sm:$0xff]
  %v111 = vld [vmem:[%s0 + $0x278] sm:$0xff]
  %v112 = vld [vmem:[%s0 + $0x280] sm:$0xff]
  %v113 = vld [vmem:[%s0 + $0x288] sm:$0xff]
  %v114 = vld [vmem:[%s0 + $0x290] sm:$0xff]
  %v115 = vld [vmem:[%s0 + $0x298] sm:$0xff]
  %v116 = vld [vmem:[%s0 + $0x2a0] sm:$0xff]
  %v117 = vld [vmem:[%s0 + $0x2a8] sm:$0xff]
  %v118 = vld [vmem:[%s0 + $0x2b0] sm:$0xff]
  %v119 = vld [vmem:[%s0 + $0x2b8] sm:$0xff]
  %v120 = vld [vmem:[%s0 + $0x2c0] sm:$0xff]
  %v121 = vld [vmem:[%s0 + $0x2c8] sm:$0xff]
  %v122 = vld [vmem:[%s0 + $0x2d0] sm:$0xff]
  %v123 = vld [vmem:[%s0 + $0x2d8] sm:$0xff]
  %v124 = vld [vmem:[%s0 + $0x2e0] sm:$0xff]
  %v125 = vld [vmem:[%s0 + $0x2e8] sm:$0xff]
  %v126 = vld [vmem:[%s0 + $0x2f0] sm:$0xff]
  %v127 = vld [vmem:[%s0 + $0x2f8] sm:$0xff]
  %v128 = vld [vmem:[%s0 + $0x300] sm:$0xff]
  %v129 = vld [vmem:[%s0 + $0x308] sm:$0xff]
  %v130 = vld [vmem:[%s0 + $0x310] sm:$0xff]
  %v131 = vld [vmem:[%s0 + $0x318] sm:$0xff]
  %v132 = vld [vmem:[%s0 + $0x320] sm:$0xff]
  %v133 = vld [vmem:[%s0 + $0x328] sm:$0xff]
  %v134 = vld [vmem:[%s0 + $0x330] sm:$0xff]
  %v135 = vld [vmem:[%s0 + $0x338] sm:$0xff]
  %v136 = vld [vmem:[%s0 + $0x340] sm:$0xff]
  %v137 = vld [vmem:[%s0 + $0x348] sm:$0xff]
  %v138 = vld [vmem:[%s0 + $0x350] sm:$0xff]
  %v139 = vld [vmem:[%s0 + $0x358] sm:$0xff]
  %v140 = vld [vmem:[%s0 + $0x360] sm:$0xff]
  %v141 = vld [vmem:[%s0 + $0x368] sm:$0xff]
  %v142 = vld [vmem:[%s0 + $0x370] sm:$0xff]
  %v143 = vld [vmem:[%s0 + $0x378] sm:$0xff]
  %v144 = vld [vmem:[%s0 + $0x380] sm:$0xff]
  %v145 = vld [vmem:[%s0 + $0x388] sm:$0xff]
  %v146 = vld [vmem:[%s0 + $0x390] sm:$0xff]
  %v147 = vld [vmem:[%s0 + $0x398] sm:$0xff]
  %v148 = vld [vmem:[%s0 + $0x3a0] sm:$0xff]
  %v149 = vld [vmem:[%s0 + $0x3a8] sm:$0xff]
  %v150 = vld [vmem:[%s0 + $0x3b0] sm:$0xff]
  %v151 = vld [vmem:[%s0 + $0x3b8] sm:$0xff]
  %v152 = vld [vmem:[%s0 + $0x3c0] sm:$0xff]
  %v153 = vld [vmem:[%s0 + $0x3c8] sm:$0xff]
  %v154 = vld [vmem:[%s0 + $0x3d0] sm:$0xff]
  %v155 = vld [vmem:[%s0 + $0x3d8] sm:$0xff]
  %v156 = vld [vmem:[%s0 + $0x3e0] sm:$0xff]
  %v157 = vld [vmem:[%s0 + $0x3e8] sm:$0xff]
  %v158 = vld [vmem:[%s0 + $0x3f0] sm:$0xff]
  %v159 = vld [vmem:[%s0 + $0x3f8] sm:$0xff]
  %v160 = vld [vmem:[%s0 + $0x400] sm:$0xff]
  %v161 = vld [vmem:[%s0 + $0x408] sm:$0xff]
  %v162 = vld [vmem:[%s0 + $0x410] sm:$0xff]
  %v163 = vld [vmem:[%s0 + $0x418] sm:$0xff]
  %v164 = vld [vmem:[%s0 + $0x420] sm:$0xff]
  %v165 = vld [vmem:[%s0 + $0x428] sm:$0xff]
  %v166 = vld [vmem:[%s0 + $0x430] sm:$0xff]
  %v167 = vld [vmem:[%s0 + $0x438] sm:$0xff]
  %v168 = vld [vmem:[%s0 + $0x440] sm:$0xff]
  %v169 = vld [vmem:[%s0 + $0x448] sm:$0xff]
  %v170 = vld [vmem:[%s0 + $0x450] sm:$0xff]
  %v171 = vld [vmem:[%s0 + $0x458] sm:$0xff]
  %v172 = vld [vmem:[%s0 + $0x460] sm:$0xff]
  %v173 = vld [vmem:[%s0 + $0x468] sm:$0xff]
  %v174 = vld [vmem:[%s0 + $0x470] sm:$0xff]
  %v175 = vld [vmem:[%s0 + $0x478] sm:$0xff]
  %v176 = vld [vmem:[%s0 + $0x480] sm:$0xff]
  %v177 = vld [vmem:[%s0 + $0x488] sm:$0xff]
  %v178 = vld [vmem:[%s0 + $0x490] sm:$0xff]
  %v179 = vld [vmem:[%s0 + $0x498] sm:$0xff]
  %v180 = vld [vmem:[%s0 + $0x4a0] sm:$0xff]
  %v181 = vld [vmem:[%s0 + $0x4a8] sm:$0xff]
  %v182 = vld [vmem:[%s0 + $0x4b0] sm:$0xff]
  %v183 = vld [vmem:[%s0 + $0x4b8] sm:$0xff]
  %v184 = vld [vmem:[%s0 + $0x4c0] sm:$0xff]
  %v185 = vld [vmem:[%s0 + $0x4c8] sm:$0xff]
  %v186 = vld [vmem:[%s0 + $0x4d0] sm:$0xff]
  %v187 = vld [vmem:[%s0 + $0x4d8] sm:$0xff]
  %v188 = vld [vmem:[%s0 + $0x4e0] sm:$0xff]
  %v189 = vld [vmem:[%s0 + $0x4e8] sm:$0xff]
  %v190 = vld [vmem:[%s0 + $0x4f0] sm:$0xff]
  %v191 = vld [vmem:[%s0 + $0x4f8] sm:$0xff]
  %v192 = vld [vmem:[%s0 + $0x500] sm:$0xff]
  %v193 = vld [vmem:[%s0 + $0x508] sm:$0xff]
  %v194 = vld [vmem:[%s0 + $0x510] sm:$0xff]
  %v195 = vld [vmem:[%s0 + $0x518] sm:$0xff]
  %v196 = vld [vmem:[%s0 + $0x520] sm:$0xff]
  %v197 = vld [vmem:[%s0 + $0x528] sm:$0xff]
  %v198 = vld [vmem:[%s0 + $0x530] sm:$0xff]
  %v199 = vld [vmem:[%s0 + $0x538] sm:$0xff]
  %v200 = vld [vmem:[%s0 + $0x540] sm:$0xff]
  %v201 = vld [vmem:[%s0 + $0x548] sm:$0xff]
  %v202 = vld [vmem:[%s0 + $0x550] sm:$0xff]
  %v203 = vld [vmem:[%s0 + $0x558] sm:$0xff]
  %v204 = vld [vmem:[%s0 + $0x560] sm:$0xff]
  %v205 = vld [vmem:[%s0 + $0x568] sm:$0xff]
  %v206 = vld [vmem:[%s0 + $0x570] sm:$0xff]
  %v207 = vld [vmem:[%s0 + $0x578] sm:$0xff]
  %v208 = vld [vmem:[%s0 + $0x580] sm:$0xff]
  %v209 = vld [vmem:[%s0 + $0x588] sm:$0xff]
  %v210 = vld [vmem:[%s0 + $0x590] sm:$0xff]
  %v211 = vld [vmem:[%s0 + $0x598] sm:$0xff]
  %v212 = vld [vmem:[%s0 + $0x5a0] sm:$0xff]
  %v213 = vld [vmem:[%s0 + $0x5a8] sm:$0xff]
  %v214 = vld [vmem:[%s0 + $0x5b0] sm:$0xff]
  %v215 = vld [vmem:[%s0 + $0x5b8] sm:$0xff]
  %v216 = vld [vmem:[%s0 + $0x5c0] sm:$0xff]
  %v217 = vld [vmem:[%s0 + $0x5c8] sm:$0xff]
  %v218 = vld [vmem:[%s0 + $0x5d0] sm:$0xff]
  %v219 = vld [vmem:[%s0 + $0x5d8] sm:$0xff]
  %v220 = vld [vmem:[%s0 + $0x5e0] sm:$0xff]
  %v221 = vld [vmem:[%s0 + $0x5e8] sm:$0xff]
  %v222 = vld [vmem:[%s0 + $0x5f0] sm:$0xff]
  %v223 = vld [vmem:[%s0 + $0x5f8] sm:$0xff]
  %v224 = vld [vmem:[%s0 + $0x600] sm:$0xff]
  %v225 = vld [vmem:[%s0 + $0x608] sm:$0xff]
  %v226 = vld [vmem:[%s0 + $0x610] sm:$0xff]
  %v227 = vld [vmem:[%s0 + $0x618] sm:$0xff]
  %v228 = vld [vmem:[%s0 + $0x620] sm:$0xff]
  %v229 = vld [vmem:[%s0 + $0x628] sm:$0xff]
  %v230 = vld [vmem:[%s0 + $0x630] sm:$0xff]
  %v231 = vld [vmem:[%s0 + $0x638] sm:$0xff]
  %v232 = vld [vmem:[%s1] sm:$0xf]
  %v233 = vld [vmem:[%s1 + $0x4] sm:$0xf]
  %v234 = vld [vmem:[%s1 + $0x8] sm:$0xf]
  %v235 = vld [vmem:[%s1 + $0xc] sm:$0xf]
  %v236 = vld [vmem:[%s1 + $0x10] sm:$0xf]
  %v237 = vld [vmem:[%s1 + $0x14] sm:$0xf]
  %v238 = vld [vmem:[%s1 + $0x18] sm:$0xf]
  %v239 = vld [vmem:[%s1 + $0x1c] sm:$0xf]
  %v240 = vld [vmem:[%s1 + $0x20] sm:$0xf]
  %v241 = vld [vmem:[%s1 + $0x24] sm:$0xf]
  %v242 = vld [vmem:[%s1 + $0x28] sm:$0xf]
  %v243 = vld [vmem:[%s1 + $0x2c] sm:$0xf]
  %v244 = vld [vmem:[%s1 + $0x30] sm:$0xf]
  %v245 = vld [vmem:[%s1 + $0x34] sm:$0xf]
  %v246 = vld [vmem:[%s1 + $0x38] sm:$0xf]
  %v247 = vld [vmem:[%s1 + $0x3c] sm:$0xf]
  %v248 = vld [vmem:[%s1 + $0x40] sm:$0xf]
  %v249 = vld [vmem:[%s1 + $0x44] sm:$0xf]
  %v250 = vld [vmem:[%s1 + $0x48] sm:$0xf]
  %v251 = vld [vmem:[%s1 + $0x4c] sm:$0xf]
  %v252 = vld [vmem:[%s1 + $0x50] sm:$0xf]
  %v253 = vld [vmem:[%s1 + $0x54] sm:$0xf]
  %v254 = vld [vmem:[%s1 + $0x58] sm:$0xf]
  %v255 = vld [vmem:[%s1 + $0x5c] sm:$0xf]
  %v256 = vld [vmem:[%s1 + $0x60] sm:$0xf]
  %v257 = vld [vmem:[%s1 + $0x64] sm:$0xf]
  %v258 = vld [vmem:[%s1 + $0x68] sm:$0xf]
  %v259 = vld [vmem:[%s1 + $0x6c] sm:$0xf]
  %v260 = vld [vmem:[%s1 + $0x70] sm:$0xf]
  %v261 = vld [vmem:[%s1 + $0x74] sm:$0xf]
  %v262 = vld [vmem:[%s1 + $0x78] sm:$0xf]
  %v263 = vld [vmem:[%s1 + $0x7c] sm:$0xf]
  %v464 = vunpack.c.l.b16 %v32
  %v465 = vunpack.c.h.b16 %v32
  %v466 = vunpack.c.l.b16 %v33
  %v467 = vunpack.c.h.b16 %v33
  %v468 = vunpack.c.l.b16 %v34
  %v469 = vunpack.c.h.b16 %v34
  %v470 = vunpack.c.l.b16 %v35
  %v471 = vunpack.c.h.b16 %v35
  %v472 = vunpack.c.l.b16 %v36
  %v473 = vunpack.c.h.b16 %v36
  %v474 = vunpack.c.l.b16 %v37
  %v475 = vunpack.c.h.b16 %v37
  %v476 = vunpack.c.l.b16 %v38
  %v477 = vunpack.c.h.b16 %v38
  %v478 = vunpack.c.l.b16 %v39
  %v479 = vunpack.c.h.b16 %v39
  %v480 = vunpack.c.l.b16 %v40
  %v481 = vunpack.c.h.b16 %v40
  %v482 = vunpack.c.l.b16 %v41
  %v483 = vunpack.c.h.b16 %v41
  %v484 = vunpack.c.l.b16 %v42
  %v485 = vunpack.c.h.b16 %v42
  %v486 = vunpack.c.l.b16 %v43
  %v487 = vunpack.c.h.b16 %v43
  %v488 = vunpack.c.l.b16 %v44
  %v489 = vunpack.c.h.b16 %v44
  %v490 = vunpack.c.l.b16 %v45
  %v491 = vunpack.c.h.b16 %v45
  %v492 = vunpack.c.l.b16 %v46
  %v493 = vunpack.c.h.b16 %v46
  %v494 = vunpack.c.l.b16 %v47
  %v495 = vunpack.c.h.b16 %v47
  %v496 = vunpack.c.l.b16 %v48
  %v497 = vunpack.c.h.b16 %v48
  %v498 = vunpack.c.l.b16 %v49
  %v499 = vunpack.c.h.b16 %v49
  %v500 = vunpack.c.l.b16 %v50
  %v501 = vunpack.c.h.b16 %v50
  %v502 = vunpack.c.l.b16 %v51
  %v503 = vunpack.c.h.b16 %v51
  %v504 = vunpack.c.l.b16 %v52
  %v505 = vunpack.c.h.b16 %v52
  %v506 = vunpack.c.l.b16 %v53
  %v507 = vunpack.c.h.b16 %v53
  %v508 = vunpack.c.l.b16 %v54
  %v509 = vunpack.c.h.b16 %v54
  %v510 = vunpack.c.l.b16 %v55
  %v511 = vunpack.c.h.b16 %v55
  %v512 = vunpack.c.l.b16 %v56
  %v513 = vunpack.c.h.b16 %v56
  %v514 = vunpack.c.l.b16 %v57
  %v515 = vunpack.c.h.b16 %v57
  %v516 = vunpack.c.l.b16 %v58
  %v517 = vunpack.c.h.b16 %v58
  %v518 = vunpack.c.l.b16 %v59
  %v519 = vunpack.c.h.b16 %v59
  %v520 = vunpack.c.l.b16 %v60
  %v521 = vunpack.c.h.b16 %v60
  %v522 = vunpack.c.l.b16 %v61
  %v523 = vunpack.c.h.b16 %v61
  %v524 = vunpack.c.l.b16 %v62
  %v525 = vunpack.c.h.b16 %v62
  %v526 = vunpack.c.l.b16 %v63
  %v527 = vunpack.c.h.b16 %v63
  %v528 = vunpack.c.l.b16 %v64
  %v529 = vunpack.c.h.b16 %v64
  %v530 = vunpack.c.l.b16 %v65
  %v531 = vunpack.c.h.b16 %v65
  %v532 = vunpack.c.l.b16 %v66
  %v533 = vunpack.c.h.b16 %v66
  %v534 = vunpack.c.l.b16 %v67
  %v535 = vunpack.c.h.b16 %v67
  %v536 = vunpack.c.l.b16 %v68
  %v537 = vunpack.c.h.b16 %v68
  %v538 = vunpack.c.l.b16 %v69
  %v539 = vunpack.c.h.b16 %v69
  %v540 = vunpack.c.l.b16 %v70
  %v541 = vunpack.c.h.b16 %v70
  %v542 = vunpack.c.l.b16 %v71
  %v543 = vunpack.c.h.b16 %v71
  %v544 = vunpack.c.l.b16 %v72
  %v545 = vunpack.c.h.b16 %v72
  %v546 = vunpack.c.l.b16 %v73
  %v547 = vunpack.c.h.b16 %v73
  %v548 = vunpack.c.l.b16 %v74
  %v549 = vunpack.c.h.b16 %v74
  %v550 = vunpack.c.l.b16 %v75
  %v551 = vunpack.c.h.b16 %v75
  %v552 = vunpack.c.l.b16 %v76
  %v553 = vunpack.c.h.b16 %v76
  %v554 = vunpack.c.l.b16 %v77
  %v555 = vunpack.c.h.b16 %v77
  %v556 = vunpack.c.l.b16 %v78
  %v557 = vunpack.c.h.b16 %v78
  %v558 = vunpack.c.l.b16 %v79
  %v559 = vunpack.c.h.b16 %v79
  %v560 = vunpack.c.l.b16 %v80
  %v561 = vunpack.c.h.b16 %v80
  %v562 = vunpack.c.l.b16 %v81
  %v563 = vunpack.c.h.b16 %v81
  %v564 = vunpack.c.l.b16 %v82
  %v565 = vunpack.c.h.b16 %v82
  %v566 = vunpack.c.l.b16 %v83
  %v567 = vunpack.c.h.b16 %v83
  %v568 = vunpack.c.l.b16 %v84
  %v569 = vunpack.c.h.b16 %v84
  %v570 = vunpack.c.l.b16 %v85
  %v571 = vunpack.c.h.b16 %v85
  %v572 = vunpack.c.l.b16 %v86
  %v573 = vunpack.c.h.b16 %v86
  %v574 = vunpack.c.l.b16 %v87
  %v575 = vunpack.c.h.b16 %v87
  %v576 = vunpack.c.l.b16 %v88
  %v577 = vunpack.c.h.b16 %v88
  %v578 = vunpack.c.l.b16 %v89
  %v579 = vunpack.c.h.b16 %v89
  %v580 = vunpack.c.l.b16 %v90
  %v581 = vunpack.c.h.b16 %v90
  %v582 = vunpack.c.l.b16 %v91
  %v583 = vunpack.c.h.b16 %v91
  %v584 = vunpack.c.l.b16 %v92
  %v585 = vunpack.c.h.b16 %v92
  %v586 = vunpack.c.l.b16 %v93
  %v587 = vunpack.c.h.b16 %v93
  %v588 = vunpack.c.l.b16 %v94
  %v589 = vunpack.c.h.b16 %v94
  %v590 = vunpack.c.l.b16 %v95
  %v591 = vunpack.c.h.b16 %v95
  %v592 = vunpack.c.l.b16 %v96
  %v593 = vunpack.c.h.b16 %v96
  %v594 = vunpack.c.l.b16 %v97
  %v595 = vunpack.c.h.b16 %v97
  %v596 = vunpack.c.l.b16 %v98
  %v597 = vunpack.c.h.b16 %v98
  %v598 = vunpack.c.l.b16 %v99
  %v599 = vunpack.c.h.b16 %v99
  %v600 = vunpack.c.l.b16 %v100
  %v601 = vunpack.c.h.b16 %v100
  %v602 = vunpack.c.l.b16 %v101
  %v603 = vunpack.c.h.b16 %v101
  %v604 = vunpack.c.l.b16 %v102
  %v605 = vunpack.c.h.b16 %v102
  %v606 = vunpack.c.l.b16 %v103
  %v607 = vunpack.c.h.b16 %v103
  %v608 = vunpack.c.l.b16 %v104
  %v609 = vunpack.c.h.b16 %v104
  %v610 = vunpack.c.l.b16 %v105
  %v611 = vunpack.c.h.b16 %v105
  %v612 = vunpack.c.l.b16 %v106
  %v613 = vunpack.c.h.b16 %v106
  %v614 = vunpack.c.l.b16 %v107
  %v615 = vunpack.c.h.b16 %v107
  %v616 = vunpack.c.l.b16 %v108
  %v617 = vunpack.c.h.b16 %v108
  %v618 = vunpack.c.l.b16 %v109
  %v619 = vunpack.c.h.b16 %v109
  %v620 = vunpack.c.l.b16 %v110
  %v621 = vunpack.c.h.b16 %v110
  %v622 = vunpack.c.l.b16 %v111
  %v623 = vunpack.c.h.b16 %v111
  %v624 = vunpack.c.l.b16 %v112
  %v625 = vunpack.c.h.b16 %v112
  %v626 = vunpack.c.l.b16 %v113
  %v627 = vunpack.c.h.b16 %v113
  %v628 = vunpack.c.l.b16 %v114
  %v629 = vunpack.c.h.b16 %v114
  %v630 = vunpack.c.l.b16 %v115
  %v631 = vunpack.c.h.b16 %v115
  %v632 = vunpack.c.l.b16 %v116
  %v633 = vunpack.c.h.b16 %v116
  %v634 = vunpack.c.l.b16 %v117
  %v635 = vunpack.c.h.b16 %v117
  %v636 = vunpack.c.l.b16 %v118
  %v637 = vunpack.c.h.b16 %v118
  %v638 = vunpack.c.l.b16 %v119
  %v639 = vunpack.c.h.b16 %v119
  %v640 = vunpack.c.l.b16 %v120
  %v641 = vunpack.c.h.b16 %v120
  %v642 = vunpack.c.l.b16 %v121
  %v643 = vunpack.c.h.b16 %v121
  %v644 = vunpack.c.l.b16 %v122
  %v645 = vunpack.c.h.b16 %v122
  %v646 = vunpack.c.l.b16 %v123
  %v647 = vunpack.c.h.b16 %v123
  %v648 = vunpack.c.l.b16 %v124
  %v649 = vunpack.c.h.b16 %v124
  %v650 = vunpack.c.l.b16 %v125
  %v651 = vunpack.c.h.b16 %v125
  %v652 = vunpack.c.l.b16 %v126
  %v653 = vunpack.c.h.b16 %v126
  %v654 = vunpack.c.l.b16 %v127
  %v655 = vunpack.c.h.b16 %v127
  %v656 = vunpack.c.l.b16 %v128
  %v657 = vunpack.c.h.b16 %v128
  %v658 = vunpack.c.l.b16 %v129
  %v659 = vunpack.c.h.b16 %v129
  %v660 = vunpack.c.l.b16 %v130
  %v661 = vunpack.c.h.b16 %v130
  %v662 = vunpack.c.l.b16 %v131
  %v663 = vunpack.c.h.b16 %v131
  %v664 = vunpack.c.l.b16 %v132
  %v665 = vunpack.c.h.b16 %v132
  %v666 = vunpack.c.l.b16 %v133
  %v667 = vunpack.c.h.b16 %v133
  %v668 = vunpack.c.l.b16 %v134
  %v669 = vunpack.c.h.b16 %v134
  %v670 = vunpack.c.l.b16 %v135
  %v671 = vunpack.c.h.b16 %v135
  %v672 = vunpack.c.l.b16 %v136
  %v673 = vunpack.c.h.b16 %v136
  %v674 = vunpack.c.l.b16 %v137
  %v675 = vunpack.c.h.b16 %v137
  %v676 = vunpack.c.l.b16 %v138
  %v677 = vunpack.c.h.b16 %v138
  %v678 = vunpack.c.l.b16 %v139
  %v679 = vunpack.c.h.b16 %v139
  %v680 = vunpack.c.l.b16 %v140
  %v681 = vunpack.c.h.b16 %v140
  %v682 = vunpack.c.l.b16 %v141
  %v683 = vunpack.c.h.b16 %v141
  %v684 = vunpack.c.l.b16 %v142
  %v685 = vunpack.c.h.b16 %v142
  %v686 = vunpack.c.l.b16 %v143
  %v687 = vunpack.c.h.b16 %v143
  %v688 = vunpack.c.l.b16 %v144
  %v689 = vunpack.c.h.b16 %v144
  %v690 = vunpack.c.l.b16 %v145
  %v691 = vunpack.c.h.b16 %v145
  %v692 = vunpack.c.l.b16 %v146
  %v693 = vunpack.c.h.b16 %v146
  %v694 = vunpack.c.l.b16 %v147
  %v695 = vunpack.c.h.b16 %v147
  %v696 = vunpack.c.l.b16 %v148
  %v697 = vunpack.c.h.b16 %v148
  %v698 = vunpack.c.l.b16 %v149
  %v699 = vunpack.c.h.b16 %v149
  %v700 = vunpack.c.l.b16 %v150
  %v701 = vunpack.c.h.b16 %v150
  %v702 = vunpack.c.l.b16 %v151
  %v703 = vunpack.c.h.b16 %v151
  %v704 = vunpack.c.l.b16 %v152
  %v705 = vunpack.c.h.b16 %v152
  %v706 = vunpack.c.l.b16 %v153
  %v707 = vunpack.c.h.b16 %v153
  %v708 = vunpack.c.l.b16 %v154
  %v709 = vunpack.c.h.b16 %v154
  %v710 = vunpack.c.l.b16 %v155
  %v711 = vunpack.c.h.b16 %v155
  %v712 = vunpack.c.l.b16 %v156
  %v713 = vunpack.c.h.b16 %v156
  %v714 = vunpack.c.l.b16 %v157
  %v715 = vunpack.c.h.b16 %v157
  %v716 = vunpack.c.l.b16 %v158
  %v717 = vunpack.c.h.b16 %v158
  %v718 = vunpack.c.l.b16 %v159
  %v719 = vunpack.c.h.b16 %v159
  %v720 = vunpack.c.l.b16 %v160
  %v721 = vunpack.c.h.b16 %v160
  %v722 = vunpack.c.l.b16 %v161
  %v723 = vunpack.c.h.b16 %v161
  %v724 = vunpack.c.l.b16 %v162
  %v725 = vunpack.c.h.b16 %v162
  %v726 = vunpack.c.l.b16 %v163
  %v727 = vunpack.c.h.b16 %v163
  %v728 = vunpack.c.l.b16 %v164
  %v729 = vunpack.c.h.b16 %v164
  %v730 = vunpack.c.l.b16 %v165
  %v731 = vunpack.c.h.b16 %v165
  %v732 = vunpack.c.l.b16 %v166
  %v733 = vunpack.c.h.b16 %v166
  %v734 = vunpack.c.l.b16 %v167
  %v735 = vunpack.c.h.b16 %v167
  %v736 = vunpack.c.l.b16 %v168
  %v737 = vunpack.c.h.b16 %v168
  %v738 = vunpack.c.l.b16 %v169
  %v739 = vunpack.c.h.b16 %v169
  %v740 = vunpack.c.l.b16 %v170
  %v741 = vunpack.c.h.b16 %v170
  %v742 = vunpack.c.l.b16 %v171
  %v743 = vunpack.c.h.b16 %v171
  %v744 = vunpack.c.l.b16 %v172
  %v745 = vunpack.c.h.b16 %v172
  %v746 = vunpack.c.l.b16 %v173
  %v747 = vunpack.c.h.b16 %v173
  %v748 = vunpack.c.l.b16 %v174
  %v749 = vunpack.c.h.b16 %v174
  %v750 = vunpack.c.l.b16 %v175
  %v751 = vunpack.c.h.b16 %v175
  %v752 = vunpack.c.l.b16 %v176
  %v753 = vunpack.c.h.b16 %v176
  %v754 = vunpack.c.l.b16 %v177
  %v755 = vunpack.c.h.b16 %v177
  %v756 = vunpack.c.l.b16 %v178
  %v757 = vunpack.c.h.b16 %v178
  %v758 = vunpack.c.l.b16 %v179
  %v759 = vunpack.c.h.b16 %v179
  %v760 = vunpack.c.l.b16 %v180
  %v761 = vunpack.c.h.b16 %v180
  %v762 = vunpack.c.l.b16 %v181
  %v763 = vunpack.c.h.b16 %v181
  %v764 = vunpack.c.l.b16 %v182
  %v765 = vunpack.c.h.b16 %v182
  %v766 = vunpack.c.l.b16 %v183
  %v767 = vunpack.c.h.b16 %v183
  %v768 = vunpack.c.l.b16 %v184
  %v769 = vunpack.c.h.b16 %v184
  %v770 = vunpack.c.l.b16 %v185
  %v771 = vunpack.c.h.b16 %v185
  %v772 = vunpack.c.l.b16 %v186
  %v773 = vunpack.c.h.b16 %v186
  %v774 = vunpack.c.l.b16 %v187
  %v775 = vunpack.c.h.b16 %v187
  %v776 = vunpack.c.l.b16 %v188
  %v777 = vunpack.c.h.b16 %v188
  %v778 = vunpack.c.l.b16 %v189
  %v779 = vunpack.c.h.b16 %v189
  %v780 = vunpack.c.l.b16 %v190
  %v781 = vunpack.c.h.b16 %v190
  %v782 = vunpack.c.l.b16 %v191
  %v783 = vunpack.c.h.b16 %v191
  %v784 = vunpack.c.l.b16 %v192
  %v785 = vunpack.c.h.b16 %v192
  %v786 = vunpack.c.l.b16 %v193
  %v787 = vunpack.c.h.b16 %v193
  %v788 = vunpack.c.l.b16 %v194
  %v789 = vunpack.c.h.b16 %v194
  %v790 = vunpack.c.l.b16 %v195
  %v791 = vunpack.c.h.b16 %v195
  %v792 = vunpack.c.l.b16 %v196
  %v793 = vunpack.c.h.b16 %v196
  %v794 = vunpack.c.l.b16 %v197
  %v795 = vunpack.c.h.b16 %v197
  %v796 = vunpack.c.l.b16 %v198
  %v797 = vunpack.c.h.b16 %v198
  %v798 = vunpack.c.l.b16 %v199
  %v799 = vunpack.c.h.b16 %v199
  %v800 = vunpack.c.l.b16 %v200
  %v801 = vunpack.c.h.b16 %v200
  %v802 = vunpack.c.l.b16 %v201
  %v803 = vunpack.c.h.b16 %v201
  %v804 = vunpack.c.l.b16 %v202
  %v805 = vunpack.c.h.b16 %v202
  %v806 = vunpack.c.l.b16 %v203
  %v807 = vunpack.c.h.b16 %v203
  %v808 = vunpack.c.l.b16 %v204
  %v809 = vunpack.c.h.b16 %v204
  %v810 = vunpack.c.l.b16 %v205
  %v811 = vunpack.c.h.b16 %v205
  %v812 = vunpack.c.l.b16 %v206
  %v813 = vunpack.c.h.b16 %v206
  %v814 = vunpack.c.l.b16 %v207
  %v815 = vunpack.c.h.b16 %v207
  %v816 = vunpack.c.l.b16 %v208
  %v817 = vunpack.c.h.b16 %v208
  %v818 = vunpack.c.l.b16 %v209
  %v819 = vunpack.c.h.b16 %v209
  %v820 = vunpack.c.l.b16 %v210
  %v821 = vunpack.c.h.b16 %v210
  %v822 = vunpack.c.l.b16 %v211
  %v823 = vunpack.c.h.b16 %v211
  %v824 = vunpack.c.l.b16 %v212
  %v825 = vunpack.c.h.b16 %v212
  %v826 = vunpack.c.l.b16 %v213
  %v827 = vunpack.c.h.b16 %v213
  %v828 = vunpack.c.l.b16 %v214
  %v829 = vunpack.c.h.b16 %v214
  %v830 = vunpack.c.l.b16 %v215
  %v831 = vunpack.c.h.b16 %v215
  %v832 = vunpack.c.l.b16 %v216
  %v833 = vunpack.c.h.b16 %v216
  %v834 = vunpack.c.l.b16 %v217
  %v835 = vunpack.c.h.b16 %v217
  %v836 = vunpack.c.l.b16 %v218
  %v837 = vunpack.c.h.b16 %v218
  %v838 = vunpack.c.l.b16 %v219
  %v839 = vunpack.c.h.b16 %v219
  %v840 = vunpack.c.l.b16 %v220
  %v841 = vunpack.c.h.b16 %v220
  %v842 = vunpack.c.l.b16 %v221
  %v843 = vunpack.c.h.b16 %v221
  %v844 = vunpack.c.l.b16 %v222
  %v845 = vunpack.c.h.b16 %v222
  %v846 = vunpack.c.l.b16 %v223
  %v847 = vunpack.c.h.b16 %v223
  %v848 = vunpack.c.l.b16 %v224
  %v849 = vunpack.c.h.b16 %v224
  %v850 = vunpack.c.l.b16 %v225
  %v851 = vunpack.c.h.b16 %v225
  %v852 = vunpack.c.l.b16 %v226
  %v853 = vunpack.c.h.b16 %v226
  %v854 = vunpack.c.l.b16 %v227
  %v855 = vunpack.c.h.b16 %v227
  %v856 = vunpack.c.l.b16 %v228
  %v857 = vunpack.c.h.b16 %v228
  %v858 = vunpack.c.l.b16 %v229
  %v859 = vunpack.c.h.b16 %v229
  %v860 = vunpack.c.l.b16 %v230
  %v861 = vunpack.c.h.b16 %v230
  %v862 = vunpack.c.l.b16 %v231
  %v863 = vunpack.c.h.b16 %v231
  %v864 = vpack.c.b16 %v466, %v464
  %v865 = vpack.c.b16 %v467, %v465
  %v866 = vpack.c.b16 %v470, %v468
  %v867 = vpack.c.b16 %v471, %v469
  %v868 = vpack.c.b16 %v474, %v472
  %v869 = vpack.c.b16 %v475, %v473
  %v870 = vpack.c.b16 %v478, %v476
  %v871 = vpack.c.b16 %v479, %v477
  %v872 = vpack.c.b16 %v482, %v480
  %v873 = vpack.c.b16 %v483, %v481
  %v874 = vpack.c.b16 %v486, %v484
  %v875 = vpack.c.b16 %v487, %v485
  %v876 = vpack.c.b16 %v490, %v488
  %v877 = vpack.c.b16 %v491, %v489
  %v878 = vpack.c.b16 %v494, %v492
  %v879 = vpack.c.b16 %v495, %v493
  %v880 = vpack.c.b16 %v498, %v496
  %v881 = vpack.c.b16 %v499, %v497
  %v882 = vpack.c.b16 %v502, %v500
  %v883 = vpack.c.b16 %v503, %v501
  %v884 = vpack.c.b16 %v506, %v504
  %v885 = vpack.c.b16 %v507, %v505
  %v886 = vpack.c.b16 %v510, %v508
  %v887 = vpack.c.b16 %v511, %v509
  %v888 = vpack.c.b16 %v514, %v512
  %v889 = vpack.c.b16 %v515, %v513
  %v890 = vpack.c.b16 %v518, %v516
  %v891 = vpack.c.b16 %v519, %v517
  %v892 = vpack.c.b16 %v522, %v520
  %v893 = vpack.c.b16 %v523, %v521
  %v894 = vpack.c.b16 %v526, %v524
  %v895 = vpack.c.b16 %v527, %v525
  %v896 = vpack.c.b16 %v530, %v528
  %v897 = vpack.c.b16 %v531, %v529
  %v898 = vpack.c.b16 %v534, %v532
  %v899 = vpack.c.b16 %v535, %v533
  %v900 = vpack.c.b16 %v538, %v536
  %v901 = vpack.c.b16 %v539, %v537
  %v902 = vpack.c.b16 %v542, %v540
  %v903 = vpack.c.b16 %v543, %v541
  %v904 = vpack.c.b16 %v546, %v544
  %v905 = vpack.c.b16 %v547, %v545
  %v906 = vpack.c.b16 %v550, %v548
  %v907 = vpack.c.b16 %v551, %v549
  %v908 = vpack.c.b16 %v554, %v552
  %v909 = vpack.c.b16 %v555, %v553
  %v910 = vpack.c.b16 %v558, %v556
  %v911 = vpack.c.b16 %v559, %v557
  %v912 = vpack.c.b16 %v562, %v560
  %v913 = vpack.c.b16 %v563, %v561
  %v914 = vpack.c.b16 %v566, %v564
  %v915 = vpack.c.b16 %v567, %v565
  %v916 = vpack.c.b16 %v570, %v568
  %v917 = vpack.c.b16 %v571, %v569
  %v918 = vpack.c.b16 %v574, %v572
  %v919 = vpack.c.b16 %v575, %v573
  %v920 = vpack.c.b16 %v578, %v576
  %v921 = vpack.c.b16 %v579, %v577
  %v922 = vpack.c.b16 %v582, %v580
  %v923 = vpack.c.b16 %v583, %v581
  %v924 = vpack.c.b16 %v586, %v584
  %v925 = vpack.c.b16 %v587, %v585
  %v926 = vpack.c.b16 %v590, %v588
  %v927 = vpack.c.b16 %v591, %v589
  %v928 = vpack.c.b16 %v594, %v592
  %v929 = vpack.c.b16 %v595, %v593
  %v930 = vpack.c.b16 %v598, %v596
  %v931 = vpack.c.b16 %v599, %v597
  %v932 = vpack.c.b16 %v602, %v600
  %v933 = vpack.c.b16 %v603, %v601
  %v934 = vpack.c.b16 %v606, %v604
  %v935 = vpack.c.b16 %v607, %v605
  %v936 = vpack.c.b16 %v610, %v608
  %v937 = vpack.c.b16 %v611, %v609
  %v938 = vpack.c.b16 %v614, %v612
  %v939 = vpack.c.b16 %v615, %v613
  %v940 = vpack.c.b16 %v618, %v616
  %v941 = vpack.c.b16 %v619, %v617
  %v942 = vpack.c.b16 %v622, %v620
  %v943 = vpack.c.b16 %v623, %v621
  %v944 = vpack.c.b16 %v626, %v624
  %v945 = vpack.c.b16 %v627, %v625
  %v946 = vpack.c.b16 %v630, %v628
  %v947 = vpack.c.b16 %v631, %v629
  %v948 = vpack.c.b16 %v634, %v632
  %v949 = vpack.c.b16 %v635, %v633
  %v950 = vpack.c.b16 %v638, %v636
  %v951 = vpack.c.b16 %v639, %v637
  %v952 = vpack.c.b16 %v642, %v640
  %v953 = vpack.c.b16 %v643, %v641
  %v954 = vpack.c.b16 %v646, %v644
  %v955 = vpack.c.b16 %v647, %v645
  %v956 = vpack.c.b16 %v650, %v648
  %v957 = vpack.c.b16 %v651, %v649
  %v958 = vpack.c.b16 %v654, %v652
  %v959 = vpack.c.b16 %v655, %v653
  %v960 = vpack.c.b16 %v658, %v656
  %v961 = vpack.c.b16 %v659, %v657
  %v962 = vpack.c.b16 %v662, %v660
  %v963 = vpack.c.b16 %v663, %v661
  %v964 = vpack.c.b16 %v666, %v664
  %v965 = vpack.c.b16 %v667, %v665
  %v966 = vpack.c.b16 %v670, %v668
  %v967 = vpack.c.b16 %v671, %v669
  %v968 = vpack.c.b16 %v674, %v672
  %v969 = vpack.c.b16 %v675, %v673
  %v970 = vpack.c.b16 %v678, %v676
  %v971 = vpack.c.b16 %v679, %v677
  %v972 = vpack.c.b16 %v682, %v680
  %v973 = vpack.c.b16 %v683, %v681
  %v974 = vpack.c.b16 %v686, %v684
  %v975 = vpack.c.b16 %v687, %v685
  %v976 = vpack.c.b16 %v690, %v688
  %v977 = vpack.c.b16 %v691, %v689
  %v978 = vpack.c.b16 %v694, %v692
  %v979 = vpack.c.b16 %v695, %v693
  %v980 = vpack.c.b16 %v698, %v696
  %v981 = vpack.c.b16 %v699, %v697
  %v982 = vpack.c.b16 %v702, %v700
  %v983 = vpack.c.b16 %v703, %v701
  %v984 = vpack.c.b16 %v706, %v704
  %v985 = vpack.c.b16 %v707, %v705
  %v986 = vpack.c.b16 %v710, %v708
  %v987 = vpack.c.b16 %v711, %v709
  %v988 = vpack.c.b16 %v714, %v712
  %v989 = vpack.c.b16 %v715, %v713
  %v990 = vpack.c.b16 %v718, %v716
  %v991 = vpack.c.b16 %v719, %v717
  %v992 = vpack.c.b16 %v722, %v720
  %v993 = vpack.c.b16 %v723, %v721
  %v994 = vpack.c.b16 %v726, %v724
  %v995 = vpack.c.b16 %v727, %v725
  %v996 = vpack.c.b16 %v730, %v728
  %v997 = vpack.c.b16 %v731, %v729
  %v998 = vpack.c.b16 %v734, %v732
  %v999 = vpack.c.b16 %v735, %v733
  %v1000 = vpack.c.b16 %v738, %v736
  %v1001 = vpack.c.b16 %v739, %v737
  %v1002 = vpack.c.b16 %v742, %v740
  %v1003 = vpack.c.b16 %v743, %v741
  %v1004 = vpack.c.b16 %v746, %v744
  %v1005 = vpack.c.b16 %v747, %v745
  %v1006 = vpack.c.b16 %v750, %v748
  %v1007 = vpack.c.b16 %v751, %v749
  %v1008 = vpack.c.b16 %v754, %v752
  %v1009 = vpack.c.b16 %v755, %v753
  %v1010 = vpack.c.b16 %v758, %v756
  %v1011 = vpack.c.b16 %v759, %v757
  %v1012 = vpack.c.b16 %v762, %v760
  %v1013 = vpack.c.b16 %v763, %v761
  %v1014 = vpack.c.b16 %v766, %v764
  %v1015 = vpack.c.b16 %v767, %v765
  %v1016 = vpack.c.b16 %v770, %v768
  %v1017 = vpack.c.b16 %v771, %v769
  %v1018 = vpack.c.b16 %v774, %v772
  %v1019 = vpack.c.b16 %v775, %v773
  %v1020 = vpack.c.b16 %v778, %v776
  %v1021 = vpack.c.b16 %v779, %v777
  %v1022 = vpack.c.b16 %v782, %v780
  %v1023 = vpack.c.b16 %v783, %v781
  %v1024 = vpack.c.b16 %v786, %v784
  %v1025 = vpack.c.b16 %v787, %v785
  %v1026 = vpack.c.b16 %v790, %v788
  %v1027 = vpack.c.b16 %v791, %v789
  %v1028 = vpack.c.b16 %v794, %v792
  %v1029 = vpack.c.b16 %v795, %v793
  %v1030 = vpack.c.b16 %v798, %v796
  %v1031 = vpack.c.b16 %v799, %v797
  %v1032 = vpack.c.b16 %v802, %v800
  %v1033 = vpack.c.b16 %v803, %v801
  %v1034 = vpack.c.b16 %v806, %v804
  %v1035 = vpack.c.b16 %v807, %v805
  %v1036 = vpack.c.b16 %v810, %v808
  %v1037 = vpack.c.b16 %v811, %v809
  %v1038 = vpack.c.b16 %v814, %v812
  %v1039 = vpack.c.b16 %v815, %v813
  %v1040 = vpack.c.b16 %v818, %v816
  %v1041 = vpack.c.b16 %v819, %v817
  %v1042 = vpack.c.b16 %v822, %v820
  %v1043 = vpack.c.b16 %v823, %v821
  %v1044 = vpack.c.b16 %v826, %v824
  %v1045 = vpack.c.b16 %v827, %v825
  %v1046 = vpack.c.b16 %v830, %v828
  %v1047 = vpack.c.b16 %v831, %v829
  %v1048 = vpack.c.b16 %v834, %v832
  %v1049 = vpack.c.b16 %v835, %v833
  %v1050 = vpack.c.b16 %v838, %v836
  %v1051 = vpack.c.b16 %v839, %v837
  %v1052 = vpack.c.b16 %v842, %v840
  %v1053 = vpack.c.b16 %v843, %v841
  %v1054 = vpack.c.b16 %v846, %v844
  %v1055 = vpack.c.b16 %v847, %v845
  %v1056 = vpack.c.b16 %v850, %v848
  %v1057 = vpack.c.b16 %v851, %v849
  %v1058 = vpack.c.b16 %v854, %v852
  %v1059 = vpack.c.b16 %v855, %v853
  %v1060 = vpack.c.b16 %v858, %v856
  %v1061 = vpack.c.b16 %v859, %v857
  %v1062 = vpack.c.b16 %v862, %v860
  %v1063 = vpack.c.b16 %v863, %v861
  %v1296 = vunpack.c.l.b16 %v232
  %v1297 = vunpack.c.l.b16 %v233
  %v1298 = vunpack.c.l.b16 %v234
  %v1299 = vunpack.c.l.b16 %v235
  %v1300 = vunpack.c.l.b16 %v236
  %v1301 = vunpack.c.l.b16 %v237
  %v1302 = vunpack.c.l.b16 %v238
  %v1303 = vunpack.c.l.b16 %v239
  %v1304 = vunpack.c.l.b16 %v240
  %v1305 = vunpack.c.l.b16 %v241
  %v1306 = vunpack.c.l.b16 %v242
  %v1307 = vunpack.c.l.b16 %v243
  %v1308 = vunpack.c.l.b16 %v244
  %v1309 = vunpack.c.l.b16 %v245
  %v1310 = vunpack.c.l.b16 %v246
  %v1311 = vunpack.c.l.b16 %v247
  %v1312 = vunpack.c.l.b16 %v248
  %v1313 = vunpack.c.l.b16 %v249
  %v1314 = vunpack.c.l.b16 %v250
  %v1315 = vunpack.c.l.b16 %v251
  %v1316 = vunpack.c.l.b16 %v252
  %v1317 = vunpack.c.l.b16 %v253
  %v1318 = vunpack.c.l.b16 %v254
  %v1319 = vunpack.c.l.b16 %v255
  %v1320 = vunpack.c.l.b16 %v256
  %v1321 = vunpack.c.l.b16 %v257
  %v1322 = vunpack.c.l.b16 %v258
  %v1323 = vunpack.c.l.b16 %v259
  %v1324 = vunpack.c.l.b16 %v260
  %v1325 = vunpack.c.l.b16 %v261
  %v1326 = vunpack.c.l.b16 %v262
  %v1327 = vunpack.c.l.b16 %v263
  %v1328 = vpack.c.b16 %v1297, %v1296
  %v1329 = vpack.c.b16 %v1299, %v1298
  %v1330 = vpack.c.b16 %v1301, %v1300
  %v1331 = vpack.c.b16 %v1303, %v1302
  %v1332 = vpack.c.b16 %v1305, %v1304
  %v1333 = vpack.c.b16 %v1307, %v1306
  %v1334 = vpack.c.b16 %v1309, %v1308
  %v1335 = vpack.c.b16 %v1311, %v1310
  %v1336 = vpack.c.b16 %v1313, %v1312
  %v1337 = vpack.c.b16 %v1315, %v1314
  %v1338 = vpack.c.b16 %v1317, %v1316
  %v1339 = vpack.c.b16 %v1319, %v1318
  %v1340 = vpack.c.b16 %v1321, %v1320
  %v1341 = vpack.c.b16 %v1323, %v1322
  %v1342 = vpack.c.b16 %v1325, %v1324
  %v1343 = vpack.c.b16 %v1327, %v1326
  %1360 = vmatpush.bf16.msra.mxu0 %v1335
  %1361 = vmatpush.bf16.msra.mxu0 %v1334
  %1362 = vmatpush.bf16.msra.mxu0 %v1333
  %1363 = vmatpush.bf16.msra.mxu0 %v1332
  %1364 = vmatpush.bf16.msra.mxu0 %v1331
  %1365 = vmatpush.bf16.msra.mxu0 %v1330
  %1366 = vmatpush.bf16.msra.mxu0 %v1329
  %1367 = vmatpush.bf16.msra.mxu0 %v1328
  %1368 = vmatmul.bf16.gmra.mxu0 %v864
  %v1369 = vpop.f32.mrf.mxu0
  %v1370 = vadd.f32 0.0, %v1369
  %v1371 = vpop.f32.mrf.mxu0
  %v1372 = vadd.f32 0.0, %v1371
  %1373 = vmatmul.bf16.gmra.mxu0 %v866
  %v1374 = vpop.f32.mrf.mxu0
  %v1375 = vadd.f32 0.0, %v1374
  %v1376 = vpop.f32.mrf.mxu0
  %v1377 = vadd.f32 0.0, %v1376
  %1378 = vmatmul.bf16.gmra.mxu0 %v868
  %v1379 = vpop.f32.mrf.mxu0
  %v1380 = vadd.f32 0.0, %v1379
  %v1381 = vpop.f32.mrf.mxu0
  %v1382 = vadd.f32 0.0, %v1381
  %1383 = vmatmul.bf16.gmra.mxu0 %v870
  %v1384 = vpop.f32.mrf.mxu0
  %v1385 = vadd.f32 0.0, %v1384
  %v1386 = vpop.f32.mrf.mxu0
  %v1387 = vadd.f32 0.0, %v1386
  %1388 = vmatmul.bf16.gmra.mxu0 %v872
  %v1389 = vpop.f32.mrf.mxu0
  %v1390 = vadd.f32 0.0, %v1389
  %v1391 = vpop.f32.mrf.mxu0
  %v1392 = vadd.f32 0.0, %v1391
  %1393 = vmatmul.bf16.gmra.mxu0 %v874
  %v1394 = vpop.f32.mrf.mxu0
  %v1395 = vadd.f32 0.0, %v1394
  %v1396 = vpop.f32.mrf.mxu0
  %v1397 = vadd.f32 0.0, %v1396
  %1398 = vmatmul.bf16.gmra.mxu0 %v876
  %v1399 = vpop.f32.mrf.mxu0
  %v1400 = vadd.f32 0.0, %v1399
  %v1401 = vpop.f32.mrf.mxu0
  %v1402 = vadd.f32 0.0, %v1401
  %1403 = vmatmul.bf16.gmra.mxu0 %v878
  %v1404 = vpop.f32.mrf.mxu0
  %v1405 = vadd.f32 0.0, %v1404
  %v1406 = vpop.f32.mrf.mxu0
  %v1407 = vadd.f32 0.0, %v1406
  %1408 = vmatmul.bf16.gmra.mxu0 %v880
  %v1409 = vpop.f32.mrf.mxu0
  %v1410 = vadd.f32 0.0, %v1409
  %v1411 = vpop.f32.mrf.mxu0
  %v1412 = vadd.f32 0.0, %v1411
  %1413 = vmatmul.bf16.gmra.mxu0 %v882
  %v1414 = vpop.f32.mrf.mxu0
  %v1415 = vadd.f32 0.0, %v1414
  %v1416 = vpop.f32.mrf.mxu0
  %v1417 = vadd.f32 0.0, %v1416
  %1418 = vmatmul.bf16.gmra.mxu0 %v884
  %v1419 = vpop.f32.mrf.mxu0
  %v1420 = vadd.f32 0.0, %v1419
  %v1421 = vpop.f32.mrf.mxu0
  %v1422 = vadd.f32 0.0, %v1421
  %1423 = vmatmul.bf16.gmra.mxu0 %v886
  %v1424 = vpop.f32.mrf.mxu0
  %v1425 = vadd.f32 0.0, %v1424
  %v1426 = vpop.f32.mrf.mxu0
  %v1427 = vadd.f32 0.0, %v1426
  %1428 = vmatmul.bf16.gmra.mxu0 %v888
  %v1429 = vpop.f32.mrf.mxu0
  %v1430 = vadd.f32 0.0, %v1429
  %v1431 = vpop.f32.mrf.mxu0
  %v1432 = vadd.f32 0.0, %v1431
  %1433 = vmatmul.bf16.gmra.mxu0 %v890
  %v1434 = vpop.f32.mrf.mxu0
  %v1435 = vadd.f32 0.0, %v1434
  %v1436 = vpop.f32.mrf.mxu0
  %v1437 = vadd.f32 0.0, %v1436
  %1438 = vmatmul.bf16.gmra.mxu0 %v892
  %v1439 = vpop.f32.mrf.mxu0
  %v1440 = vadd.f32 0.0, %v1439
  %v1441 = vpop.f32.mrf.mxu0
  %v1442 = vadd.f32 0.0, %v1441
  %1443 = vmatmul.bf16.gmra.mxu0 %v894
  %v1444 = vpop.f32.mrf.mxu0
  %v1445 = vadd.f32 0.0, %v1444
  %v1446 = vpop.f32.mrf.mxu0
  %v1447 = vadd.f32 0.0, %v1446
  %1448 = vmatmul.bf16.gmra.mxu0 %v896
  %v1449 = vpop.f32.mrf.mxu0
  %v1450 = vadd.f32 0.0, %v1449
  %v1451 = vpop.f32.mrf.mxu0
  %v1452 = vadd.f32 0.0, %v1451
  %1453 = vmatmul.bf16.gmra.mxu0 %v898
  %v1454 = vpop.f32.mrf.mxu0
  %v1455 = vadd.f32 0.0, %v1454
  %v1456 = vpop.f32.mrf.mxu0
  %v1457 = vadd.f32 0.0, %v1456
  %1458 = vmatmul.bf16.gmra.mxu0 %v900
  %v1459 = vpop.f32.mrf.mxu0
  %v1460 = vadd.f32 0.0, %v1459
  %v1461 = vpop.f32.mrf.mxu0
  %v1462 = vadd.f32 0.0, %v1461
  %1463 = vmatmul.bf16.gmra.mxu0 %v902
  %v1464 = vpop.f32.mrf.mxu0
  %v1465 = vadd.f32 0.0, %v1464
  %v1466 = vpop.f32.mrf.mxu0
  %v1467 = vadd.f32 0.0, %v1466
  %1468 = vmatmul.bf16.gmra.mxu0 %v904
  %v1469 = vpop.f32.mrf.mxu0
  %v1470 = vadd.f32 0.0, %v1469
  %v1471 = vpop.f32.mrf.mxu0
  %v1472 = vadd.f32 0.0, %v1471
  %1473 = vmatmul.bf16.gmra.mxu0 %v906
  %v1474 = vpop.f32.mrf.mxu0
  %v1475 = vadd.f32 0.0, %v1474
  %v1476 = vpop.f32.mrf.mxu0
  %v1477 = vadd.f32 0.0, %v1476
  %1478 = vmatmul.bf16.gmra.mxu0 %v908
  %v1479 = vpop.f32.mrf.mxu0
  %v1480 = vadd.f32 0.0, %v1479
  %v1481 = vpop.f32.mrf.mxu0
  %v1482 = vadd.f32 0.0, %v1481
  %1483 = vmatmul.bf16.gmra.mxu0 %v910
  %v1484 = vpop.f32.mrf.mxu0
  %v1485 = vadd.f32 0.0, %v1484
  %v1486 = vpop.f32.mrf.mxu0
  %v1487 = vadd.f32 0.0, %v1486
  %1488 = vmatmul.bf16.gmra.mxu0 %v912
  %v1489 = vpop.f32.mrf.mxu0
  %v1490 = vadd.f32 0.0, %v1489
  %v1491 = vpop.f32.mrf.mxu0
  %v1492 = vadd.f32 0.0, %v1491
  %1493 = vmatmul.bf16.gmra.mxu0 %v914
  %v1494 = vpop.f32.mrf.mxu0
  %v1495 = vadd.f32 0.0, %v1494
  %v1496 = vpop.f32.mrf.mxu0
  %v1497 = vadd.f32 0.0, %v1496
  %1498 = vmatmul.bf16.gmra.mxu0 %v916
  %v1499 = vpop.f32.mrf.mxu0
  %v1500 = vadd.f32 0.0, %v1499
  %v1501 = vpop.f32.mrf.mxu0
  %v1502 = vadd.f32 0.0, %v1501
  %1503 = vmatmul.bf16.gmra.mxu0 %v918
  %v1504 = vpop.f32.mrf.mxu0
  %v1505 = vadd.f32 0.0, %v1504
  %v1506 = vpop.f32.mrf.mxu0
  %v1507 = vadd.f32 0.0, %v1506
  %1508 = vmatmul.bf16.gmra.mxu0 %v920
  %v1509 = vpop.f32.mrf.mxu0
  %v1510 = vadd.f32 0.0, %v1509
  %v1511 = vpop.f32.mrf.mxu0
  %v1512 = vadd.f32 0.0, %v1511
  %1513 = vmatmul.bf16.gmra.mxu0 %v922
  %v1514 = vpop.f32.mrf.mxu0
  %v1515 = vadd.f32 0.0, %v1514
  %v1516 = vpop.f32.mrf.mxu0
  %v1517 = vadd.f32 0.0, %v1516
  %1518 = vmatmul.bf16.gmra.mxu0 %v924
  %v1519 = vpop.f32.mrf.mxu0
  %v1520 = vadd.f32 0.0, %v1519
  %v1521 = vpop.f32.mrf.mxu0
  %v1522 = vadd.f32 0.0, %v1521
  %1523 = vmatmul.bf16.gmra.mxu0 %v926
  %v1524 = vpop.f32.mrf.mxu0
  %v1525 = vadd.f32 0.0, %v1524
  %v1526 = vpop.f32.mrf.mxu0
  %v1527 = vadd.f32 0.0, %v1526
  %1528 = vmatmul.bf16.gmra.mxu0 %v928
  %v1529 = vpop.f32.mrf.mxu0
  %v1530 = vadd.f32 0.0, %v1529
  %v1531 = vpop.f32.mrf.mxu0
  %v1532 = vadd.f32 0.0, %v1531
  %1533 = vmatmul.bf16.gmra.mxu0 %v930
  %v1534 = vpop.f32.mrf.mxu0
  %v1535 = vadd.f32 0.0, %v1534
  %v1536 = vpop.f32.mrf.mxu0
  %v1537 = vadd.f32 0.0, %v1536
  %1538 = vmatmul.bf16.gmra.mxu0 %v932
  %v1539 = vpop.f32.mrf.mxu0
  %v1540 = vadd.f32 0.0, %v1539
  %v1541 = vpop.f32.mrf.mxu0
  %v1542 = vadd.f32 0.0, %v1541
  %1543 = vmatmul.bf16.gmra.mxu0 %v934
  %v1544 = vpop.f32.mrf.mxu0
  %v1545 = vadd.f32 0.0, %v1544
  %v1546 = vpop.f32.mrf.mxu0
  %v1547 = vadd.f32 0.0, %v1546
  %1548 = vmatmul.bf16.gmra.mxu0 %v936
  %v1549 = vpop.f32.mrf.mxu0
  %v1550 = vadd.f32 0.0, %v1549
  %v1551 = vpop.f32.mrf.mxu0
  %v1552 = vadd.f32 0.0, %v1551
  %1553 = vmatmul.bf16.gmra.mxu0 %v938
  %v1554 = vpop.f32.mrf.mxu0
  %v1555 = vadd.f32 0.0, %v1554
  %v1556 = vpop.f32.mrf.mxu0
  %v1557 = vadd.f32 0.0, %v1556
  %1558 = vmatmul.bf16.gmra.mxu0 %v940
  %v1559 = vpop.f32.mrf.mxu0
  %v1560 = vadd.f32 0.0, %v1559
  %v1561 = vpop.f32.mrf.mxu0
  %v1562 = vadd.f32 0.0, %v1561
  %1563 = vmatmul.bf16.gmra.mxu0 %v942
  %v1564 = vpop.f32.mrf.mxu0
  %v1565 = vadd.f32 0.0, %v1564
  %v1566 = vpop.f32.mrf.mxu0
  %v1567 = vadd.f32 0.0, %v1566
  %1568 = vmatmul.bf16.gmra.mxu0 %v944
  %v1569 = vpop.f32.mrf.mxu0
  %v1570 = vadd.f32 0.0, %v1569
  %v1571 = vpop.f32.mrf.mxu0
  %v1572 = vadd.f32 0.0, %v1571
  %1573 = vmatmul.bf16.gmra.mxu0 %v946
  %v1574 = vpop.f32.mrf.mxu0
  %v1575 = vadd.f32 0.0, %v1574
  %v1576 = vpop.f32.mrf.mxu0
  %v1577 = vadd.f32 0.0, %v1576
  %1578 = vmatmul.bf16.gmra.mxu0 %v948
  %v1579 = vpop.f32.mrf.mxu0
  %v1580 = vadd.f32 0.0, %v1579
  %v1581 = vpop.f32.mrf.mxu0
  %v1582 = vadd.f32 0.0, %v1581
  %1583 = vmatmul.bf16.gmra.mxu0 %v950
  %v1584 = vpop.f32.mrf.mxu0
  %v1585 = vadd.f32 0.0, %v1584
  %v1586 = vpop.f32.mrf.mxu0
  %v1587 = vadd.f32 0.0, %v1586
  %1588 = vmatmul.bf16.gmra.mxu0 %v952
  %v1589 = vpop.f32.mrf.mxu0
  %v1590 = vadd.f32 0.0, %v1589
  %v1591 = vpop.f32.mrf.mxu0
  %v1592 = vadd.f32 0.0, %v1591
  %1593 = vmatmul.bf16.gmra.mxu0 %v954
  %v1594 = vpop.f32.mrf.mxu0
  %v1595 = vadd.f32 0.0, %v1594
  %v1596 = vpop.f32.mrf.mxu0
  %v1597 = vadd.f32 0.0, %v1596
  %1598 = vmatmul.bf16.gmra.mxu0 %v956
  %v1599 = vpop.f32.mrf.mxu0
  %v1600 = vadd.f32 0.0, %v1599
  %v1601 = vpop.f32.mrf.mxu0
  %v1602 = vadd.f32 0.0, %v1601
  %1603 = vmatmul.bf16.gmra.mxu0 %v958
  %v1604 = vpop.f32.mrf.mxu0
  %v1605 = vadd.f32 0.0, %v1604
  %v1606 = vpop.f32.mrf.mxu0
  %v1607 = vadd.f32 0.0, %v1606
  %1608 = vmatmul.bf16.gmra.mxu0 %v960
  %v1609 = vpop.f32.mrf.mxu0
  %v1610 = vadd.f32 0.0, %v1609
  %v1611 = vpop.f32.mrf.mxu0
  %v1612 = vadd.f32 0.0, %v1611
  %1613 = vmatmul.bf16.gmra.mxu0 %v962
  %v1614 = vpop.f32.mrf.mxu0
  %v1615 = vadd.f32 0.0, %v1614
  %v1616 = vpop.f32.mrf.mxu0
  %v1617 = vadd.f32 0.0, %v1616
  %1618 = vmatmul.bf16.gmra.mxu0 %v964
  %v1619 = vpop.f32.mrf.mxu0
  %v1620 = vadd.f32 0.0, %v1619
  %v1621 = vpop.f32.mrf.mxu0
  %v1622 = vadd.f32 0.0, %v1621
  %1623 = vmatmul.bf16.gmra.mxu0 %v966
  %v1624 = vpop.f32.mrf.mxu0
  %v1625 = vadd.f32 0.0, %v1624
  %v1626 = vpop.f32.mrf.mxu0
  %v1627 = vadd.f32 0.0, %v1626
  %1628 = vmatmul.bf16.gmra.mxu0 %v968
  %v1629 = vpop.f32.mrf.mxu0
  %v1630 = vadd.f32 0.0, %v1629
  %v1631 = vpop.f32.mrf.mxu0
  %v1632 = vadd.f32 0.0, %v1631
  %1633 = vmatmul.bf16.gmra.mxu0 %v970
  %v1634 = vpop.f32.mrf.mxu0
  %v1635 = vadd.f32 0.0, %v1634
  %v1636 = vpop.f32.mrf.mxu0
  %v1637 = vadd.f32 0.0, %v1636
  %1638 = vmatmul.bf16.gmra.mxu0 %v972
  %v1639 = vpop.f32.mrf.mxu0
  %v1640 = vadd.f32 0.0, %v1639
  %v1641 = vpop.f32.mrf.mxu0
  %v1642 = vadd.f32 0.0, %v1641
  %1643 = vmatmul.bf16.gmra.mxu0 %v974
  %v1644 = vpop.f32.mrf.mxu0
  %v1645 = vadd.f32 0.0, %v1644
  %v1646 = vpop.f32.mrf.mxu0
  %v1647 = vadd.f32 0.0, %v1646
  %1648 = vmatmul.bf16.gmra.mxu0 %v976
  %v1649 = vpop.f32.mrf.mxu0
  %v1650 = vadd.f32 0.0, %v1649
  %v1651 = vpop.f32.mrf.mxu0
  %v1652 = vadd.f32 0.0, %v1651
  %1653 = vmatmul.bf16.gmra.mxu0 %v978
  %v1654 = vpop.f32.mrf.mxu0
  %v1655 = vadd.f32 0.0, %v1654
  %v1656 = vpop.f32.mrf.mxu0
  %v1657 = vadd.f32 0.0, %v1656
  %1658 = vmatmul.bf16.gmra.mxu0 %v980
  %v1659 = vpop.f32.mrf.mxu0
  %v1660 = vadd.f32 0.0, %v1659
  %v1661 = vpop.f32.mrf.mxu0
  %v1662 = vadd.f32 0.0, %v1661
  %1663 = vmatmul.bf16.gmra.mxu0 %v982
  %v1664 = vpop.f32.mrf.mxu0
  %v1665 = vadd.f32 0.0, %v1664
  %v1666 = vpop.f32.mrf.mxu0
  %v1667 = vadd.f32 0.0, %v1666
  %1668 = vmatmul.bf16.gmra.mxu0 %v984
  %v1669 = vpop.f32.mrf.mxu0
  %v1670 = vadd.f32 0.0, %v1669
  %v1671 = vpop.f32.mrf.mxu0
  %v1672 = vadd.f32 0.0, %v1671
  %1673 = vmatmul.bf16.gmra.mxu0 %v986
  %v1674 = vpop.f32.mrf.mxu0
  %v1675 = vadd.f32 0.0, %v1674
  %v1676 = vpop.f32.mrf.mxu0
  %v1677 = vadd.f32 0.0, %v1676
  %1678 = vmatmul.bf16.gmra.mxu0 %v988
  %v1679 = vpop.f32.mrf.mxu0
  %v1680 = vadd.f32 0.0, %v1679
  %v1681 = vpop.f32.mrf.mxu0
  %v1682 = vadd.f32 0.0, %v1681
  %1683 = vmatmul.bf16.gmra.mxu0 %v990
  %v1684 = vpop.f32.mrf.mxu0
  %v1685 = vadd.f32 0.0, %v1684
  %v1686 = vpop.f32.mrf.mxu0
  %v1687 = vadd.f32 0.0, %v1686
  %1688 = vmatmul.bf16.gmra.mxu0 %v992
  %v1689 = vpop.f32.mrf.mxu0
  %v1690 = vadd.f32 0.0, %v1689
  %v1691 = vpop.f32.mrf.mxu0
  %v1692 = vadd.f32 0.0, %v1691
  %1693 = vmatmul.bf16.gmra.mxu0 %v994
  %v1694 = vpop.f32.mrf.mxu0
  %v1695 = vadd.f32 0.0, %v1694
  %v1696 = vpop.f32.mrf.mxu0
  %v1697 = vadd.f32 0.0, %v1696
  %1698 = vmatmul.bf16.gmra.mxu0 %v996
  %v1699 = vpop.f32.mrf.mxu0
  %v1700 = vadd.f32 0.0, %v1699
  %v1701 = vpop.f32.mrf.mxu0
  %v1702 = vadd.f32 0.0, %v1701
  %1703 = vmatmul.bf16.gmra.mxu0 %v998
  %v1704 = vpop.f32.mrf.mxu0
  %v1705 = vadd.f32 0.0, %v1704
  %v1706 = vpop.f32.mrf.mxu0
  %v1707 = vadd.f32 0.0, %v1706
  %1708 = vmatmul.bf16.gmra.mxu0 %v1000
  %v1709 = vpop.f32.mrf.mxu0
  %v1710 = vadd.f32 0.0, %v1709
  %v1711 = vpop.f32.mrf.mxu0
  %v1712 = vadd.f32 0.0, %v1711
  %1713 = vmatmul.bf16.gmra.mxu0 %v1002
  %v1714 = vpop.f32.mrf.mxu0
  %v1715 = vadd.f32 0.0, %v1714
  %v1716 = vpop.f32.mrf.mxu0
  %v1717 = vadd.f32 0.0, %v1716
  %1718 = vmatmul.bf16.gmra.mxu0 %v1004
  %v1719 = vpop.f32.mrf.mxu0
  %v1720 = vadd.f32 0.0, %v1719
  %v1721 = vpop.f32.mrf.mxu0
  %v1722 = vadd.f32 0.0, %v1721
  %1723 = vmatmul.bf16.gmra.mxu0 %v1006
  %v1724 = vpop.f32.mrf.mxu0
  %v1725 = vadd.f32 0.0, %v1724
  %v1726 = vpop.f32.mrf.mxu0
  %v1727 = vadd.f32 0.0, %v1726
  %1728 = vmatmul.bf16.gmra.mxu0 %v1008
  %v1729 = vpop.f32.mrf.mxu0
  %v1730 = vadd.f32 0.0, %v1729
  %v1731 = vpop.f32.mrf.mxu0
  %v1732 = vadd.f32 0.0, %v1731
  %1733 = vmatmul.bf16.gmra.mxu0 %v1010
  %v1734 = vpop.f32.mrf.mxu0
  %v1735 = vadd.f32 0.0, %v1734
  %v1736 = vpop.f32.mrf.mxu0
  %v1737 = vadd.f32 0.0, %v1736
  %1738 = vmatmul.bf16.gmra.mxu0 %v1012
  %v1739 = vpop.f32.mrf.mxu0
  %v1740 = vadd.f32 0.0, %v1739
  %v1741 = vpop.f32.mrf.mxu0
  %v1742 = vadd.f32 0.0, %v1741
  %1743 = vmatmul.bf16.gmra.mxu0 %v1014
  %v1744 = vpop.f32.mrf.mxu0
  %v1745 = vadd.f32 0.0, %v1744
  %v1746 = vpop.f32.mrf.mxu0
  %v1747 = vadd.f32 0.0, %v1746
  %1748 = vmatmul.bf16.gmra.mxu0 %v1016
  %v1749 = vpop.f32.mrf.mxu0
  %v1750 = vadd.f32 0.0, %v1749
  %v1751 = vpop.f32.mrf.mxu0
  %v1752 = vadd.f32 0.0, %v1751
  %1753 = vmatmul.bf16.gmra.mxu0 %v1018
  %v1754 = vpop.f32.mrf.mxu0
  %v1755 = vadd.f32 0.0, %v1754
  %v1756 = vpop.f32.mrf.mxu0
  %v1757 = vadd.f32 0.0, %v1756
  %1758 = vmatmul.bf16.gmra.mxu0 %v1020
  %v1759 = vpop.f32.mrf.mxu0
  %v1760 = vadd.f32 0.0, %v1759
  %v1761 = vpop.f32.mrf.mxu0
  %v1762 = vadd.f32 0.0, %v1761
  %1763 = vmatmul.bf16.gmra.mxu0 %v1022
  %v1764 = vpop.f32.mrf.mxu0
  %v1765 = vadd.f32 0.0, %v1764
  %v1766 = vpop.f32.mrf.mxu0
  %v1767 = vadd.f32 0.0, %v1766
  %1768 = vmatmul.bf16.gmra.mxu0 %v1024
  %v1769 = vpop.f32.mrf.mxu0
  %v1770 = vadd.f32 0.0, %v1769
  %v1771 = vpop.f32.mrf.mxu0
  %v1772 = vadd.f32 0.0, %v1771
  %1773 = vmatmul.bf16.gmra.mxu0 %v1026
  %v1774 = vpop.f32.mrf.mxu0
  %v1775 = vadd.f32 0.0, %v1774
  %v1776 = vpop.f32.mrf.mxu0
  %v1777 = vadd.f32 0.0, %v1776
  %1778 = vmatmul.bf16.gmra.mxu0 %v1028
  %v1779 = vpop.f32.mrf.mxu0
  %v1780 = vadd.f32 0.0, %v1779
  %v1781 = vpop.f32.mrf.mxu0
  %v1782 = vadd.f32 0.0, %v1781
  %1783 = vmatmul.bf16.gmra.mxu0 %v1030
  %v1784 = vpop.f32.mrf.mxu0
  %v1785 = vadd.f32 0.0, %v1784
  %v1786 = vpop.f32.mrf.mxu0
  %v1787 = vadd.f32 0.0, %v1786
  %1788 = vmatmul.bf16.gmra.mxu0 %v1032
  %v1789 = vpop.f32.mrf.mxu0
  %v1790 = vadd.f32 0.0, %v1789
  %v1791 = vpop.f32.mrf.mxu0
  %v1792 = vadd.f32 0.0, %v1791
  %1793 = vmatmul.bf16.gmra.mxu0 %v1034
  %v1794 = vpop.f32.mrf.mxu0
  %v1795 = vadd.f32 0.0, %v1794
  %v1796 = vpop.f32.mrf.mxu0
  %v1797 = vadd.f32 0.0, %v1796
  %1798 = vmatmul.bf16.gmra.mxu0 %v1036
  %v1799 = vpop.f32.mrf.mxu0
  %v1800 = vadd.f32 0.0, %v1799
  %v1801 = vpop.f32.mrf.mxu0
  %v1802 = vadd.f32 0.0, %v1801
  %1803 = vmatmul.bf16.gmra.mxu0 %v1038
  %v1804 = vpop.f32.mrf.mxu0
  %v1805 = vadd.f32 0.0, %v1804
  %v1806 = vpop.f32.mrf.mxu0
  %v1807 = vadd.f32 0.0, %v1806
  %1808 = vmatmul.bf16.gmra.mxu0 %v1040
  %v1809 = vpop.f32.mrf.mxu0
  %v1810 = vadd.f32 0.0, %v1809
  %v1811 = vpop.f32.mrf.mxu0
  %v1812 = vadd.f32 0.0, %v1811
  %1813 = vmatmul.bf16.gmra.mxu0 %v1042
  %v1814 = vpop.f32.mrf.mxu0
  %v1815 = vadd.f32 0.0, %v1814
  %v1816 = vpop.f32.mrf.mxu0
  %v1817 = vadd.f32 0.0, %v1816
  %1818 = vmatmul.bf16.gmra.mxu0 %v1044
  %v1819 = vpop.f32.mrf.mxu0
  %v1820 = vadd.f32 0.0, %v1819
  %v1821 = vpop.f32.mrf.mxu0
  %v1822 = vadd.f32 0.0, %v1821
  %1823 = vmatmul.bf16.gmra.mxu0 %v1046
  %v1824 = vpop.f32.mrf.mxu0
  %v1825 = vadd.f32 0.0, %v1824
  %v1826 = vpop.f32.mrf.mxu0
  %v1827 = vadd.f32 0.0, %v1826
  %1828 = vmatmul.bf16.gmra.mxu0 %v1048
  %v1829 = vpop.f32.mrf.mxu0
  %v1830 = vadd.f32 0.0, %v1829
  %v1831 = vpop.f32.mrf.mxu0
  %v1832 = vadd.f32 0.0, %v1831
  %1833 = vmatmul.bf16.gmra.mxu0 %v1050
  %v1834 = vpop.f32.mrf.mxu0
  %v1835 = vadd.f32 0.0, %v1834
  %v1836 = vpop.f32.mrf.mxu0
  %v1837 = vadd.f32 0.0, %v1836
  %1838 = vmatmul.bf16.gmra.mxu0 %v1052
  %v1839 = vpop.f32.mrf.mxu0
  %v1840 = vadd.f32 0.0, %v1839
  %v1841 = vpop.f32.mrf.mxu0
  %v1842 = vadd.f32 0.0, %v1841
  %1843 = vmatmul.bf16.gmra.mxu0 %v1054
  %v1844 = vpop.f32.mrf.mxu0
  %v1845 = vadd.f32 0.0, %v1844
  %v1846 = vpop.f32.mrf.mxu0
  %v1847 = vadd.f32 0.0, %v1846
  %1848 = vmatmul.bf16.gmra.mxu0 %v1056
  %v1849 = vpop.f32.mrf.mxu0
  %v1850 = vadd.f32 0.0, %v1849
  %v1851 = vpop.f32.mrf.mxu0
  %v1852 = vadd.f32 0.0, %v1851
  %1853 = vmatmul.bf16.gmra.mxu0 %v1058
  %v1854 = vpop.f32.mrf.mxu0
  %v1855 = vadd.f32 0.0, %v1854
  %v1856 = vpop.f32.mrf.mxu0
  %v1857 = vadd.f32 0.0, %v1856
  %1858 = vmatmul.bf16.gmra.mxu0 %v1060
  %v1859 = vpop.f32.mrf.mxu0
  %v1860 = vadd.f32 0.0, %v1859
  %v1861 = vpop.f32.mrf.mxu0
  %v1862 = vadd.f32 0.0, %v1861
  %1863 = vmatmul.bf16.gmra.mxu0 %v1062
  %v1864 = vpop.f32.mrf.mxu0
  %v1865 = vadd.f32 0.0, %v1864
  %v1866 = vpop.f32.mrf.mxu0
  %v1867 = vadd.f32 0.0, %v1866
  %1868 = vdwg.mxu0
  %1869 = vmatpush.bf16.msra.mxu0 %v1343
  %1870 = vmatpush.bf16.msra.mxu0 %v1342
  %1871 = vmatpush.bf16.msra.mxu0 %v1341
  %1872 = vmatpush.bf16.msra.mxu0 %v1340
  %1873 = vmatpush.bf16.msra.mxu0 %v1339
  %1874 = vmatpush.bf16.msra.mxu0 %v1338
  %1875 = vmatpush.bf16.msra.mxu0 %v1337
  %1876 = vmatpush.bf16.msra.mxu0 %v1336
  %1877 = vmatmul.bf16.gmra.mxu0 %v865
  %v1878 = vpop.f32.mrf.mxu0
  %v1879 = vadd.f32 %v1370, %v1878
  %v1880 = vpop.f32.mrf.mxu0
  %v1881 = vadd.f32 %v1372, %v1880
  %1882 = vmatmul.bf16.gmra.mxu0 %v867
  %v1883 = vpop.f32.mrf.mxu0
  %v1884 = vadd.f32 %v1375, %v1883
  %v1885 = vpop.f32.mrf.mxu0
  %v1886 = vadd.f32 %v1377, %v1885
  %1887 = vmatmul.bf16.gmra.mxu0 %v869
  %v1888 = vpop.f32.mrf.mxu0
  %v1889 = vadd.f32 %v1380, %v1888
  %v1890 = vpop.f32.mrf.mxu0
  %v1891 = vadd.f32 %v1382, %v1890
  %1892 = vmatmul.bf16.gmra.mxu0 %v871
  %v1893 = vpop.f32.mrf.mxu0
  %v1894 = vadd.f32 %v1385, %v1893
  %v1895 = vpop.f32.mrf.mxu0
  %v1896 = vadd.f32 %v1387, %v1895
  %1897 = vmatmul.bf16.gmra.mxu0 %v873
  %v1898 = vpop.f32.mrf.mxu0
  %v1899 = vadd.f32 %v1390, %v1898
  %v1900 = vpop.f32.mrf.mxu0
  %v1901 = vadd.f32 %v1392, %v1900
  %1902 = vmatmul.bf16.gmra.mxu0 %v875
  %v1903 = vpop.f32.mrf.mxu0
  %v1904 = vadd.f32 %v1395, %v1903
  %v1905 = vpop.f32.mrf.mxu0
  %v1906 = vadd.f32 %v1397, %v1905
  %1907 = vmatmul.bf16.gmra.mxu0 %v877
  %v1908 = vpop.f32.mrf.mxu0
  %v1909 = vadd.f32 %v1400, %v1908
  %v1910 = vpop.f32.mrf.mxu0
  %v1911 = vadd.f32 %v1402, %v1910
  %1912 = vmatmul.bf16.gmra.mxu0 %v879
  %v1913 = vpop.f32.mrf.mxu0
  %v1914 = vadd.f32 %v1405, %v1913
  %v1915 = vpop.f32.mrf.mxu0
  %v1916 = vadd.f32 %v1407, %v1915
  %1917 = vmatmul.bf16.gmra.mxu0 %v881
  %v1918 = vpop.f32.mrf.mxu0
  %v1919 = vadd.f32 %v1410, %v1918
  %v1920 = vpop.f32.mrf.mxu0
  %v1921 = vadd.f32 %v1412, %v1920
  %1922 = vmatmul.bf16.gmra.mxu0 %v883
  %v1923 = vpop.f32.mrf.mxu0
  %v1924 = vadd.f32 %v1415, %v1923
  %v1925 = vpop.f32.mrf.mxu0
  %v1926 = vadd.f32 %v1417, %v1925
  %1927 = vmatmul.bf16.gmra.mxu0 %v885
  %v1928 = vpop.f32.mrf.mxu0
  %v1929 = vadd.f32 %v1420, %v1928
  %v1930 = vpop.f32.mrf.mxu0
  %v1931 = vadd.f32 %v1422, %v1930
  %1932 = vmatmul.bf16.gmra.mxu0 %v887
  %v1933 = vpop.f32.mrf.mxu0
  %v1934 = vadd.f32 %v1425, %v1933
  %v1935 = vpop.f32.mrf.mxu0
  %v1936 = vadd.f32 %v1427, %v1935
  %1937 = vmatmul.bf16.gmra.mxu0 %v889
  %v1938 = vpop.f32.mrf.mxu0
  %v1939 = vadd.f32 %v1430, %v1938
  %v1940 = vpop.f32.mrf.mxu0
  %v1941 = vadd.f32 %v1432, %v1940
  %1942 = vmatmul.bf16.gmra.mxu0 %v891
  %v1943 = vpop.f32.mrf.mxu0
  %v1944 = vadd.f32 %v1435, %v1943
  %v1945 = vpop.f32.mrf.mxu0
  %v1946 = vadd.f32 %v1437, %v1945
  %1947 = vmatmul.bf16.gmra.mxu0 %v893
  %v1948 = vpop.f32.mrf.mxu0
  %v1949 = vadd.f32 %v1440, %v1948
  %v1950 = vpop.f32.mrf.mxu0
  %v1951 = vadd.f32 %v1442, %v1950
  %1952 = vmatmul.bf16.gmra.mxu0 %v895
  %v1953 = vpop.f32.mrf.mxu0
  %v1954 = vadd.f32 %v1445, %v1953
  %v1955 = vpop.f32.mrf.mxu0
  %v1956 = vadd.f32 %v1447, %v1955
  %1957 = vmatmul.bf16.gmra.mxu0 %v897
  %v1958 = vpop.f32.mrf.mxu0
  %v1959 = vadd.f32 %v1450, %v1958
  %v1960 = vpop.f32.mrf.mxu0
  %v1961 = vadd.f32 %v1452, %v1960
  %1962 = vmatmul.bf16.gmra.mxu0 %v899
  %v1963 = vpop.f32.mrf.mxu0
  %v1964 = vadd.f32 %v1455, %v1963
  %v1965 = vpop.f32.mrf.mxu0
  %v1966 = vadd.f32 %v1457, %v1965
  %1967 = vmatmul.bf16.gmra.mxu0 %v901
  %v1968 = vpop.f32.mrf.mxu0
  %v1969 = vadd.f32 %v1460, %v1968
  %v1970 = vpop.f32.mrf.mxu0
  %v1971 = vadd.f32 %v1462, %v1970
  %1972 = vmatmul.bf16.gmra.mxu0 %v903
  %v1973 = vpop.f32.mrf.mxu0
  %v1974 = vadd.f32 %v1465, %v1973
  %v1975 = vpop.f32.mrf.mxu0
  %v1976 = vadd.f32 %v1467, %v1975
  %1977 = vmatmul.bf16.gmra.mxu0 %v905
  %v1978 = vpop.f32.mrf.mxu0
  %v1979 = vadd.f32 %v1470, %v1978
  %v1980 = vpop.f32.mrf.mxu0
  %v1981 = vadd.f32 %v1472, %v1980
  %1982 = vmatmul.bf16.gmra.mxu0 %v907
  %v1983 = vpop.f32.mrf.mxu0
  %v1984 = vadd.f32 %v1475, %v1983
  %v1985 = vpop.f32.mrf.mxu0
  %v1986 = vadd.f32 %v1477, %v1985
  %1987 = vmatmul.bf16.gmra.mxu0 %v909
  %v1988 = vpop.f32.mrf.mxu0
  %v1989 = vadd.f32 %v1480, %v1988
  %v1990 = vpop.f32.mrf.mxu0
  %v1991 = vadd.f32 %v1482, %v1990
  %1992 = vmatmul.bf16.gmra.mxu0 %v911
  %v1993 = vpop.f32.mrf.mxu0
  %v1994 = vadd.f32 %v1485, %v1993
  %v1995 = vpop.f32.mrf.mxu0
  %v1996 = vadd.f32 %v1487, %v1995
  %1997 = vmatmul.bf16.gmra.mxu0 %v913
  %v1998 = vpop.f32.mrf.mxu0
  %v1999 = vadd.f32 %v1490, %v1998
  %v2000 = vpop.f32.mrf.mxu0
  %v2001 = vadd.f32 %v1492, %v2000
  %2002 = vmatmul.bf16.gmra.mxu0 %v915
  %v2003 = vpop.f32.mrf.mxu0
  %v2004 = vadd.f32 %v1495, %v2003
  %v2005 = vpop.f32.mrf.mxu0
  %v2006 = vadd.f32 %v1497, %v2005
  %2007 = vmatmul.bf16.gmra.mxu0 %v917
  %v2008 = vpop.f32.mrf.mxu0
  %v2009 = vadd.f32 %v1500, %v2008
  %v2010 = vpop.f32.mrf.mxu0
  %v2011 = vadd.f32 %v1502, %v2010
  %2012 = vmatmul.bf16.gmra.mxu0 %v919
  %v2013 = vpop.f32.mrf.mxu0
  %v2014 = vadd.f32 %v1505, %v2013
  %v2015 = vpop.f32.mrf.mxu0
  %v2016 = vadd.f32 %v1507, %v2015
  %2017 = vmatmul.bf16.gmra.mxu0 %v921
  %v2018 = vpop.f32.mrf.mxu0
  %v2019 = vadd.f32 %v1510, %v2018
  %v2020 = vpop.f32.mrf.mxu0
  %v2021 = vadd.f32 %v1512, %v2020
  %2022 = vmatmul.bf16.gmra.mxu0 %v923
  %v2023 = vpop.f32.mrf.mxu0
  %v2024 = vadd.f32 %v1515, %v2023
  %v2025 = vpop.f32.mrf.mxu0
  %v2026 = vadd.f32 %v1517, %v2025
  %2027 = vmatmul.bf16.gmra.mxu0 %v925
  %v2028 = vpop.f32.mrf.mxu0
  %v2029 = vadd.f32 %v1520, %v2028
  %v2030 = vpop.f32.mrf.mxu0
  %v2031 = vadd.f32 %v1522, %v2030
  %2032 = vmatmul.bf16.gmra.mxu0 %v927
  %v2033 = vpop.f32.mrf.mxu0
  %v2034 = vadd.f32 %v1525, %v2033
  %v2035 = vpop.f32.mrf.mxu0
  %v2036 = vadd.f32 %v1527, %v2035
  %2037 = vmatmul.bf16.gmra.mxu0 %v929
  %v2038 = vpop.f32.mrf.mxu0
  %v2039 = vadd.f32 %v1530, %v2038
  %v2040 = vpop.f32.mrf.mxu0
  %v2041 = vadd.f32 %v1532, %v2040
  %2042 = vmatmul.bf16.gmra.mxu0 %v931
  %v2043 = vpop.f32.mrf.mxu0
  %v2044 = vadd.f32 %v1535, %v2043
  %v2045 = vpop.f32.mrf.mxu0
  %v2046 = vadd.f32 %v1537, %v2045
  %2047 = vmatmul.bf16.gmra.mxu0 %v933
  %v2048 = vpop.f32.mrf.mxu0
  %v2049 = vadd.f32 %v1540, %v2048
  %v2050 = vpop.f32.mrf.mxu0
  %v2051 = vadd.f32 %v1542, %v2050
  %2052 = vmatmul.bf16.gmra.mxu0 %v935
  %v2053 = vpop.f32.mrf.mxu0
  %v2054 = vadd.f32 %v1545, %v2053
  %v2055 = vpop.f32.mrf.mxu0
  %v2056 = vadd.f32 %v1547, %v2055
  %2057 = vmatmul.bf16.gmra.mxu0 %v937
  %v2058 = vpop.f32.mrf.mxu0
  %v2059 = vadd.f32 %v1550, %v2058
  %v2060 = vpop.f32.mrf.mxu0
  %v2061 = vadd.f32 %v1552, %v2060
  %2062 = vmatmul.bf16.gmra.mxu0 %v939
  %v2063 = vpop.f32.mrf.mxu0
  %v2064 = vadd.f32 %v1555, %v2063
  %v2065 = vpop.f32.mrf.mxu0
  %v2066 = vadd.f32 %v1557, %v2065
  %2067 = vmatmul.bf16.gmra.mxu0 %v941
  %v2068 = vpop.f32.mrf.mxu0
  %v2069 = vadd.f32 %v1560, %v2068
  %v2070 = vpop.f32.mrf.mxu0
  %v2071 = vadd.f32 %v1562, %v2070
  %2072 = vmatmul.bf16.gmra.mxu0 %v943
  %v2073 = vpop.f32.mrf.mxu0
  %v2074 = vadd.f32 %v1565, %v2073
  %v2075 = vpop.f32.mrf.mxu0
  %v2076 = vadd.f32 %v1567, %v2075
  %2077 = vmatmul.bf16.gmra.mxu0 %v945
  %v2078 = vpop.f32.mrf.mxu0
  %v2079 = vadd.f32 %v1570, %v2078
  %v2080 = vpop.f32.mrf.mxu0
  %v2081 = vadd.f32 %v1572, %v2080
  %2082 = vmatmul.bf16.gmra.mxu0 %v947
  %v2083 = vpop.f32.mrf.mxu0
  %v2084 = vadd.f32 %v1575, %v2083
  %v2085 = vpop.f32.mrf.mxu0
  %v2086 = vadd.f32 %v1577, %v2085
  %2087 = vmatmul.bf16.gmra.mxu0 %v949
  %v2088 = vpop.f32.mrf.mxu0
  %v2089 = vadd.f32 %v1580, %v2088
  %v2090 = vpop.f32.mrf.mxu0
  %v2091 = vadd.f32 %v1582, %v2090
  %2092 = vmatmul.bf16.gmra.mxu0 %v951
  %v2093 = vpop.f32.mrf.mxu0
  %v2094 = vadd.f32 %v1585, %v2093
  %v2095 = vpop.f32.mrf.mxu0
  %v2096 = vadd.f32 %v1587, %v2095
  %2097 = vmatmul.bf16.gmra.mxu0 %v953
  %v2098 = vpop.f32.mrf.mxu0
  %v2099 = vadd.f32 %v1590, %v2098
  %v2100 = vpop.f32.mrf.mxu0
  %v2101 = vadd.f32 %v1592, %v2100
  %2102 = vmatmul.bf16.gmra.mxu0 %v955
  %v2103 = vpop.f32.mrf.mxu0
  %v2104 = vadd.f32 %v1595, %v2103
  %v2105 = vpop.f32.mrf.mxu0
  %v2106 = vadd.f32 %v1597, %v2105
  %2107 = vmatmul.bf16.gmra.mxu0 %v957
  %v2108 = vpop.f32.mrf.mxu0
  %v2109 = vadd.f32 %v1600, %v2108
  %v2110 = vpop.f32.mrf.mxu0
  %v2111 = vadd.f32 %v1602, %v2110
  %2112 = vmatmul.bf16.gmra.mxu0 %v959
  %v2113 = vpop.f32.mrf.mxu0
  %v2114 = vadd.f32 %v1605, %v2113
  %v2115 = vpop.f32.mrf.mxu0
  %v2116 = vadd.f32 %v1607, %v2115
  %2117 = vmatmul.bf16.gmra.mxu0 %v961
  %v2118 = vpop.f32.mrf.mxu0
  %v2119 = vadd.f32 %v1610, %v2118
  %v2120 = vpop.f32.mrf.mxu0
  %v2121 = vadd.f32 %v1612, %v2120
  %2122 = vmatmul.bf16.gmra.mxu0 %v963
  %v2123 = vpop.f32.mrf.mxu0
  %v2124 = vadd.f32 %v1615, %v2123
  %v2125 = vpop.f32.mrf.mxu0
  %v2126 = vadd.f32 %v1617, %v2125
  %2127 = vmatmul.bf16.gmra.mxu0 %v965
  %v2128 = vpop.f32.mrf.mxu0
  %v2129 = vadd.f32 %v1620, %v2128
  %v2130 = vpop.f32.mrf.mxu0
  %v2131 = vadd.f32 %v1622, %v2130
  %2132 = vmatmul.bf16.gmra.mxu0 %v967
  %v2133 = vpop.f32.mrf.mxu0
  %v2134 = vadd.f32 %v1625, %v2133
  %v2135 = vpop.f32.mrf.mxu0
  %v2136 = vadd.f32 %v1627, %v2135
  %2137 = vmatmul.bf16.gmra.mxu0 %v969
  %v2138 = vpop.f32.mrf.mxu0
  %v2139 = vadd.f32 %v1630, %v2138
  %v2140 = vpop.f32.mrf.mxu0
  %v2141 = vadd.f32 %v1632, %v2140
  %2142 = vmatmul.bf16.gmra.mxu0 %v971
  %v2143 = vpop.f32.mrf.mxu0
  %v2144 = vadd.f32 %v1635, %v2143
  %v2145 = vpop.f32.mrf.mxu0
  %v2146 = vadd.f32 %v1637, %v2145
  %2147 = vmatmul.bf16.gmra.mxu0 %v973
  %v2148 = vpop.f32.mrf.mxu0
  %v2149 = vadd.f32 %v1640, %v2148
  %v2150 = vpop.f32.mrf.mxu0
  %v2151 = vadd.f32 %v1642, %v2150
  %2152 = vmatmul.bf16.gmra.mxu0 %v975
  %v2153 = vpop.f32.mrf.mxu0
  %v2154 = vadd.f32 %v1645, %v2153
  %v2155 = vpop.f32.mrf.mxu0
  %v2156 = vadd.f32 %v1647, %v2155
  %2157 = vmatmul.bf16.gmra.mxu0 %v977
  %v2158 = vpop.f32.mrf.mxu0
  %v2159 = vadd.f32 %v1650, %v2158
  %v2160 = vpop.f32.mrf.mxu0
  %v2161 = vadd.f32 %v1652, %v2160
  %2162 = vmatmul.bf16.gmra.mxu0 %v979
  %v2163 = vpop.f32.mrf.mxu0
  %v2164 = vadd.f32 %v1655, %v2163
  %v2165 = vpop.f32.mrf.mxu0
  %v2166 = vadd.f32 %v1657, %v2165
  %2167 = vmatmul.bf16.gmra.mxu0 %v981
  %v2168 = vpop.f32.mrf.mxu0
  %v2169 = vadd.f32 %v1660, %v2168
  %v2170 = vpop.f32.mrf.mxu0
  %v2171 = vadd.f32 %v1662, %v2170
  %2172 = vmatmul.bf16.gmra.mxu0 %v983
  %v2173 = vpop.f32.mrf.mxu0
  %v2174 = vadd.f32 %v1665, %v2173
  %v2175 = vpop.f32.mrf.mxu0
  %v2176 = vadd.f32 %v1667, %v2175
  %2177 = vmatmul.bf16.gmra.mxu0 %v985
  %v2178 = vpop.f32.mrf.mxu0
  %v2179 = vadd.f32 %v1670, %v2178
  %v2180 = vpop.f32.mrf.mxu0
  %v2181 = vadd.f32 %v1672, %v2180
  %2182 = vmatmul.bf16.gmra.mxu0 %v987
  %v2183 = vpop.f32.mrf.mxu0
  %v2184 = vadd.f32 %v1675, %v2183
  %v2185 = vpop.f32.mrf.mxu0
  %v2186 = vadd.f32 %v1677, %v2185
  %2187 = vmatmul.bf16.gmra.mxu0 %v989
  %v2188 = vpop.f32.mrf.mxu0
  %v2189 = vadd.f32 %v1680, %v2188
  %v2190 = vpop.f32.mrf.mxu0
  %v2191 = vadd.f32 %v1682, %v2190
  %2192 = vmatmul.bf16.gmra.mxu0 %v991
  %v2193 = vpop.f32.mrf.mxu0
  %v2194 = vadd.f32 %v1685, %v2193
  %v2195 = vpop.f32.mrf.mxu0
  %v2196 = vadd.f32 %v1687, %v2195
  %2197 = vmatmul.bf16.gmra.mxu0 %v993
  %v2198 = vpop.f32.mrf.mxu0
  %v2199 = vadd.f32 %v1690, %v2198
  %v2200 = vpop.f32.mrf.mxu0
  %v2201 = vadd.f32 %v1692, %v2200
  %2202 = vmatmul.bf16.gmra.mxu0 %v995
  %v2203 = vpop.f32.mrf.mxu0
  %v2204 = vadd.f32 %v1695, %v2203
  %v2205 = vpop.f32.mrf.mxu0
  %v2206 = vadd.f32 %v1697, %v2205
  %2207 = vmatmul.bf16.gmra.mxu0 %v997
  %v2208 = vpop.f32.mrf.mxu0
  %v2209 = vadd.f32 %v1700, %v2208
  %v2210 = vpop.f32.mrf.mxu0
  %v2211 = vadd.f32 %v1702, %v2210
  %2212 = vmatmul.bf16.gmra.mxu0 %v999
  %v2213 = vpop.f32.mrf.mxu0
  %v2214 = vadd.f32 %v1705, %v2213
  %v2215 = vpop.f32.mrf.mxu0
  %v2216 = vadd.f32 %v1707, %v2215
  %2217 = vmatmul.bf16.gmra.mxu0 %v1001
  %v2218 = vpop.f32.mrf.mxu0
  %v2219 = vadd.f32 %v1710, %v2218
  %v2220 = vpop.f32.mrf.mxu0
  %v2221 = vadd.f32 %v1712, %v2220
  %2222 = vmatmul.bf16.gmra.mxu0 %v1003
  %v2223 = vpop.f32.mrf.mxu0
  %v2224 = vadd.f32 %v1715, %v2223
  %v2225 = vpop.f32.mrf.mxu0
  %v2226 = vadd.f32 %v1717, %v2225
  %2227 = vmatmul.bf16.gmra.mxu0 %v1005
  %v2228 = vpop.f32.mrf.mxu0
  %v2229 = vadd.f32 %v1720, %v2228
  %v2230 = vpop.f32.mrf.mxu0
  %v2231 = vadd.f32 %v1722, %v2230
  %2232 = vmatmul.bf16.gmra.mxu0 %v1007
  %v2233 = vpop.f32.mrf.mxu0
  %v2234 = vadd.f32 %v1725, %v2233
  %v2235 = vpop.f32.mrf.mxu0
  %v2236 = vadd.f32 %v1727, %v2235
  %2237 = vmatmul.bf16.gmra.mxu0 %v1009
  %v2238 = vpop.f32.mrf.mxu0
  %v2239 = vadd.f32 %v1730, %v2238
  %v2240 = vpop.f32.mrf.mxu0
  %v2241 = vadd.f32 %v1732, %v2240
  %2242 = vmatmul.bf16.gmra.mxu0 %v1011
  %v2243 = vpop.f32.mrf.mxu0
  %v2244 = vadd.f32 %v1735, %v2243
  %v2245 = vpop.f32.mrf.mxu0
  %v2246 = vadd.f32 %v1737, %v2245
  %2247 = vmatmul.bf16.gmra.mxu0 %v1013
  %v2248 = vpop.f32.mrf.mxu0
  %v2249 = vadd.f32 %v1740, %v2248
  %v2250 = vpop.f32.mrf.mxu0
  %v2251 = vadd.f32 %v1742, %v2250
  %2252 = vmatmul.bf16.gmra.mxu0 %v1015
  %v2253 = vpop.f32.mrf.mxu0
  %v2254 = vadd.f32 %v1745, %v2253
  %v2255 = vpop.f32.mrf.mxu0
  %v2256 = vadd.f32 %v1747, %v2255
  %2257 = vmatmul.bf16.gmra.mxu0 %v1017
  %v2258 = vpop.f32.mrf.mxu0
  %v2259 = vadd.f32 %v1750, %v2258
  %v2260 = vpop.f32.mrf.mxu0
  %v2261 = vadd.f32 %v1752, %v2260
  %2262 = vmatmul.bf16.gmra.mxu0 %v1019
  %v2263 = vpop.f32.mrf.mxu0
  %v2264 = vadd.f32 %v1755, %v2263
  %v2265 = vpop.f32.mrf.mxu0
  %v2266 = vadd.f32 %v1757, %v2265
  %2267 = vmatmul.bf16.gmra.mxu0 %v1021
  %v2268 = vpop.f32.mrf.mxu0
  %v2269 = vadd.f32 %v1760, %v2268
  %v2270 = vpop.f32.mrf.mxu0
  %v2271 = vadd.f32 %v1762, %v2270
  %2272 = vmatmul.bf16.gmra.mxu0 %v1023
  %v2273 = vpop.f32.mrf.mxu0
  %v2274 = vadd.f32 %v1765, %v2273
  %v2275 = vpop.f32.mrf.mxu0
  %v2276 = vadd.f32 %v1767, %v2275
  %2277 = vmatmul.bf16.gmra.mxu0 %v1025
  %v2278 = vpop.f32.mrf.mxu0
  %v2279 = vadd.f32 %v1770, %v2278
  %v2280 = vpop.f32.mrf.mxu0
  %v2281 = vadd.f32 %v1772, %v2280
  %2282 = vmatmul.bf16.gmra.mxu0 %v1027
  %v2283 = vpop.f32.mrf.mxu0
  %v2284 = vadd.f32 %v1775, %v2283
  %v2285 = vpop.f32.mrf.mxu0
  %v2286 = vadd.f32 %v1777, %v2285
  %2287 = vmatmul.bf16.gmra.mxu0 %v1029
  %v2288 = vpop.f32.mrf.mxu0
  %v2289 = vadd.f32 %v1780, %v2288
  %v2290 = vpop.f32.mrf.mxu0
  %v2291 = vadd.f32 %v1782, %v2290
  %2292 = vmatmul.bf16.gmra.mxu0 %v1031
  %v2293 = vpop.f32.mrf.mxu0
  %v2294 = vadd.f32 %v1785, %v2293
  %v2295 = vpop.f32.mrf.mxu0
  %v2296 = vadd.f32 %v1787, %v2295
  %2297 = vmatmul.bf16.gmra.mxu0 %v1033
  %v2298 = vpop.f32.mrf.mxu0
  %v2299 = vadd.f32 %v1790, %v2298
  %v2300 = vpop.f32.mrf.mxu0
  %v2301 = vadd.f32 %v1792, %v2300
  %2302 = vmatmul.bf16.gmra.mxu0 %v1035
  %v2303 = vpop.f32.mrf.mxu0
  %v2304 = vadd.f32 %v1795, %v2303
  %v2305 = vpop.f32.mrf.mxu0
  %v2306 = vadd.f32 %v1797, %v2305
  %2307 = vmatmul.bf16.gmra.mxu0 %v1037
  %v2308 = vpop.f32.mrf.mxu0
  %v2309 = vadd.f32 %v1800, %v2308
  %v2310 = vpop.f32.mrf.mxu0
  %v2311 = vadd.f32 %v1802, %v2310
  %2312 = vmatmul.bf16.gmra.mxu0 %v1039
  %v2313 = vpop.f32.mrf.mxu0
  %v2314 = vadd.f32 %v1805, %v2313
  %v2315 = vpop.f32.mrf.mxu0
  %v2316 = vadd.f32 %v1807, %v2315
  %2317 = vmatmul.bf16.gmra.mxu0 %v1041
  %v2318 = vpop.f32.mrf.mxu0
  %v2319 = vadd.f32 %v1810, %v2318
  %v2320 = vpop.f32.mrf.mxu0
  %v2321 = vadd.f32 %v1812, %v2320
  %2322 = vmatmul.bf16.gmra.mxu0 %v1043
  %v2323 = vpop.f32.mrf.mxu0
  %v2324 = vadd.f32 %v1815, %v2323
  %v2325 = vpop.f32.mrf.mxu0
  %v2326 = vadd.f32 %v1817, %v2325
  %2327 = vmatmul.bf16.gmra.mxu0 %v1045
  %v2328 = vpop.f32.mrf.mxu0
  %v2329 = vadd.f32 %v1820, %v2328
  %v2330 = vpop.f32.mrf.mxu0
  %v2331 = vadd.f32 %v1822, %v2330
  %2332 = vmatmul.bf16.gmra.mxu0 %v1047
  %v2333 = vpop.f32.mrf.mxu0
  %v2334 = vadd.f32 %v1825, %v2333
  %v2335 = vpop.f32.mrf.mxu0
  %v2336 = vadd.f32 %v1827, %v2335
  %2337 = vmatmul.bf16.gmra.mxu0 %v1049
  %v2338 = vpop.f32.mrf.mxu0
  %v2339 = vadd.f32 %v1830, %v2338
  %v2340 = vpop.f32.mrf.mxu0
  %v2341 = vadd.f32 %v1832, %v2340
  %2342 = vmatmul.bf16.gmra.mxu0 %v1051
  %v2343 = vpop.f32.mrf.mxu0
  %v2344 = vadd.f32 %v1835, %v2343
  %v2345 = vpop.f32.mrf.mxu0
  %v2346 = vadd.f32 %v1837, %v2345
  %2347 = vmatmul.bf16.gmra.mxu0 %v1053
  %v2348 = vpop.f32.mrf.mxu0
  %v2349 = vadd.f32 %v1840, %v2348
  %v2350 = vpop.f32.mrf.mxu0
  %v2351 = vadd.f32 %v1842, %v2350
  %2352 = vmatmul.bf16.gmra.mxu0 %v1055
  %v2353 = vpop.f32.mrf.mxu0
  %v2354 = vadd.f32 %v1845, %v2353
  %v2355 = vpop.f32.mrf.mxu0
  %v2356 = vadd.f32 %v1847, %v2355
  %2357 = vmatmul.bf16.gmra.mxu0 %v1057
  %v2358 = vpop.f32.mrf.mxu0
  %v2359 = vadd.f32 %v1850, %v2358
  %v2360 = vpop.f32.mrf.mxu0
  %v2361 = vadd.f32 %v1852, %v2360
  %2362 = vmatmul.bf16.gmra.mxu0 %v1059
  %v2363 = vpop.f32.mrf.mxu0
  %v2364 = vadd.f32 %v1855, %v2363
  %v2365 = vpop.f32.mrf.mxu0
  %v2366 = vadd.f32 %v1857, %v2365
  %2367 = vmatmul.bf16.gmra.mxu0 %v1061
  %v2368 = vpop.f32.mrf.mxu0
  %v2369 = vadd.f32 %v1860, %v2368
  %v2370 = vpop.f32.mrf.mxu0
  %v2371 = vadd.f32 %v1862, %v2370
  %2372 = vmatmul.bf16.gmra.mxu0 %v1063
  %v2373 = vpop.f32.mrf.mxu0
  %v2374 = vadd.f32 %v1865, %v2373
  %v2375 = vpop.f32.mrf.mxu0
  %v2376 = vadd.f32 %v1867, %v2375
  %2377 = vdwg.mxu0
  %v2378 = vmax.f32 %v1879, %v2004
  %v2379 = vmax.f32 %v1881, %v2006
  %v2380 = vmax.f32 %v1884, %v2009
  %v2381 = vmax.f32 %v1886, %v2011
  %v2382 = vmax.f32 %v1889, %v2014
  %v2383 = vmax.f32 %v1891, %v2016
  %v2384 = vmax.f32 %v1894, %v2019
  %v2385 = vmax.f32 %v1896, %v2021
  %v2386 = vmax.f32 %v1899, %v2024
  %v2387 = vmax.f32 %v1901, %v2026
  %v2388 = vmax.f32 %v1904, %v2029
  %v2389 = vmax.f32 %v1906, %v2031
  %v2390 = vmax.f32 %v1909, %v2034
  %v2391 = vmax.f32 %v1911, %v2036
  %v2392 = vmax.f32 %v1914, %v2039
  %v2393 = vmax.f32 %v1916, %v2041
  %v2394 = vmax.f32 %v1919, %v2044
  %v2395 = vmax.f32 %v1921, %v2046
  %v2396 = vmax.f32 %v1924, %v2049
  %v2397 = vmax.f32 %v1926, %v2051
  %v2398 = vmax.f32 %v1929, %v2054
  %v2399 = vmax.f32 %v1931, %v2056
  %v2400 = vmax.f32 %v1934, %v2059
  %v2401 = vmax.f32 %v1936, %v2061
  %v2402 = vmax.f32 %v1939, %v2064
  %v2403 = vmax.f32 %v1941, %v2066
  %v2404 = vmax.f32 %v1944, %v2069
  %v2405 = vmax.f32 %v1946, %v2071
  %v2406 = vmax.f32 %v1949, %v2074
  %v2407 = vmax.f32 %v1951, %v2076
  %v2408 = vmax.f32 %v1954, %v2079
  %v2409 = vmax.f32 %v1956, %v2081
  %v2410 = vmax.f32 %v1959, %v2084
  %v2411 = vmax.f32 %v1961, %v2086
  %v2412 = vmax.f32 %v1964, %v2089
  %v2413 = vmax.f32 %v1966, %v2091
  %v2414 = vmax.f32 %v1969, %v2094
  %v2415 = vmax.f32 %v1971, %v2096
  %v2416 = vmax.f32 %v1974, %v2099
  %v2417 = vmax.f32 %v1976, %v2101
  %v2418 = vmax.f32 %v1979, %v2104
  %v2419 = vmax.f32 %v1981, %v2106
  %v2420 = vmax.f32 %v1984, %v2109
  %v2421 = vmax.f32 %v1986, %v2111
  %v2422 = vmax.f32 %v1989, %v2114
  %v2423 = vmax.f32 %v1991, %v2116
  %v2424 = vmax.f32 %v1994, %v2119
  %v2425 = vmax.f32 %v1996, %v2121
  %v2426 = vmax.f32 %v1999, %v2124
  %v2427 = vmax.f32 %v2001, %v2126
  %v2428 = vmax.f32 %v2129, %v2254
  %v2429 = vmax.f32 %v2131, %v2256
  %v2430 = vmax.f32 %v2134, %v2259
  %v2431 = vmax.f32 %v2136, %v2261
  %v2432 = vmax.f32 %v2139, %v2264
  %v2433 = vmax.f32 %v2141, %v2266
  %v2434 = vmax.f32 %v2144, %v2269
  %v2435 = vmax.f32 %v2146, %v2271
  %v2436 = vmax.f32 %v2149, %v2274
  %v2437 = vmax.f32 %v2151, %v2276
  %v2438 = vmax.f32 %v2154, %v2279
  %v2439 = vmax.f32 %v2156, %v2281
  %v2440 = vmax.f32 %v2159, %v2284
  %v2441 = vmax.f32 %v2161, %v2286
  %v2442 = vmax.f32 %v2164, %v2289
  %v2443 = vmax.f32 %v2166, %v2291
  %v2444 = vmax.f32 %v2169, %v2294
  %v2445 = vmax.f32 %v2171, %v2296
  %v2446 = vmax.f32 %v2174, %v2299
  %v2447 = vmax.f32 %v2176, %v2301
  %v2448 = vmax.f32 %v2179, %v2304
  %v2449 = vmax.f32 %v2181, %v2306
  %v2450 = vmax.f32 %v2184, %v2309
  %v2451 = vmax.f32 %v2186, %v2311
  %v2452 = vmax.f32 %v2189, %v2314
  %v2453 = vmax.f32 %v2191, %v2316
  %v2454 = vmax.f32 %v2194, %v2319
  %v2455 = vmax.f32 %v2196, %v2321
  %v2456 = vmax.f32 %v2199, %v2324
  %v2457 = vmax.f32 %v2201, %v2326
  %v2458 = vmax.f32 %v2204, %v2329
  %v2459 = vmax.f32 %v2206, %v2331
  %v2460 = vmax.f32 %v2209, %v2334
  %v2461 = vmax.f32 %v2211, %v2336
  %v2462 = vmax.f32 %v2214, %v2339
  %v2463 = vmax.f32 %v2216, %v2341
  %v2464 = vmax.f32 %v2219, %v2344
  %v2465 = vmax.f32 %v2221, %v2346
  %v2466 = vmax.f32 %v2224, %v2349
  %v2467 = vmax.f32 %v2226, %v2351
  %v2468 = vmax.f32 %v2229, %v2354
  %v2469 = vmax.f32 %v2231, %v2356
  %v2470 = vmax.f32 %v2234, %v2359
  %v2471 = vmax.f32 %v2236, %v2361
  %v2472 = vmax.f32 %v2239, %v2364
  %v2473 = vmax.f32 %v2241, %v2366
  %v2474 = vmax.f32 %v2244, %v2369
  %v2475 = vmax.f32 %v2246, %v2371
  %v2476 = vmax.f32 %v2249, %v2374
  %v2477 = vmax.f32 %v2251, %v2376
  %v2478 = vmax.f32 %v2378, %v2428
  %v2479 = vmax.f32 %v2379, %v2429
  %v2480 = vmax.f32 %v2380, %v2430
  %v2481 = vmax.f32 %v2381, %v2431
  %v2482 = vmax.f32 %v2382, %v2432
  %v2483 = vmax.f32 %v2383, %v2433
  %v2484 = vmax.f32 %v2384, %v2434
  %v2485 = vmax.f32 %v2385, %v2435
  %v2486 = vmax.f32 %v2386, %v2436
  %v2487 = vmax.f32 %v2387, %v2437
  %v2488 = vmax.f32 %v2388, %v2438
  %v2489 = vmax.f32 %v2389, %v2439
  %v2490 = vmax.f32 %v2390, %v2440
  %v2491 = vmax.f32 %v2391, %v2441
  %v2492 = vmax.f32 %v2392, %v2442
  %v2493 = vmax.f32 %v2393, %v2443
  %v2494 = vmax.f32 %v2394, %v2444
  %v2495 = vmax.f32 %v2395, %v2445
  %v2496 = vmax.f32 %v2396, %v2446
  %v2497 = vmax.f32 %v2397, %v2447
  %v2498 = vmax.f32 %v2398, %v2448
  %v2499 = vmax.f32 %v2399, %v2449
  %v2500 = vmax.f32 %v2400, %v2450
  %v2501 = vmax.f32 %v2401, %v2451
  %v2502 = vmax.f32 %v2402, %v2452
  %v2503 = vmax.f32 %v2403, %v2453
  %v2504 = vmax.f32 %v2404, %v2454
  %v2505 = vmax.f32 %v2405, %v2455
  %v2506 = vmax.f32 %v2406, %v2456
  %v2507 = vmax.f32 %v2407, %v2457
  %v2508 = vmax.f32 %v2408, %v2458
  %v2509 = vmax.f32 %v2409, %v2459
  %v2510 = vmax.f32 %v2410, %v2460
  %v2511 = vmax.f32 %v2411, %v2461
  %v2512 = vmax.f32 %v2412, %v2462
  %v2513 = vmax.f32 %v2413, %v2463
  %v2514 = vmax.f32 %v2414, %v2464
  %v2515 = vmax.f32 %v2415, %v2465
  %v2516 = vmax.f32 %v2416, %v2466
  %v2517 = vmax.f32 %v2417, %v2467
  %v2518 = vmax.f32 %v2418, %v2468
  %v2519 = vmax.f32 %v2419, %v2469
  %v2520 = vmax.f32 %v2420, %v2470
  %v2521 = vmax.f32 %v2421, %v2471
  %v2522 = vmax.f32 %v2422, %v2472
  %v2523 = vmax.f32 %v2423, %v2473
  %v2524 = vmax.f32 %v2424, %v2474
  %v2525 = vmax.f32 %v2425, %v2475
  %v2526 = vmax.f32 %v2426, %v2476
  %v2527 = vmax.f32 %v2427, %v2477
  %v2528 = vld [vmem:[%s2] sm:$0x1]
  %v2530 = vperm.slane %v2528, 0
  %v2532 = vadd.f32 %v2478, %v2530
  %v2533 = vadd.f32 %v2479, %v2530
  %v2534 = vadd.f32 %v2480, %v2530
  %v2535 = vadd.f32 %v2481, %v2530
  %v2536 = vadd.f32 %v2482, %v2530
  %v2537 = vadd.f32 %v2483, %v2530
  %v2538 = vadd.f32 %v2484, %v2530
  %v2539 = vadd.f32 %v2485, %v2530
  %v2540 = vadd.f32 %v2486, %v2530
  %v2541 = vadd.f32 %v2487, %v2530
  %v2542 = vadd.f32 %v2488, %v2530
  %v2543 = vadd.f32 %v2489, %v2530
  %v2544 = vadd.f32 %v2490, %v2530
  %v2545 = vadd.f32 %v2491, %v2530
  %v2546 = vadd.f32 %v2492, %v2530
  %v2547 = vadd.f32 %v2493, %v2530
  %v2548 = vadd.f32 %v2494, %v2530
  %v2549 = vadd.f32 %v2495, %v2530
  %v2550 = vadd.f32 %v2496, %v2530
  %v2551 = vadd.f32 %v2497, %v2530
  %v2552 = vadd.f32 %v2498, %v2530
  %v2553 = vadd.f32 %v2499, %v2530
  %v2554 = vadd.f32 %v2500, %v2530
  %v2555 = vadd.f32 %v2501, %v2530
  %v2556 = vadd.f32 %v2502, %v2530
  %v2557 = vadd.f32 %v2503, %v2530
  %v2558 = vadd.f32 %v2504, %v2530
  %v2559 = vadd.f32 %v2505, %v2530
  %v2560 = vadd.f32 %v2506, %v2530
  %v2561 = vadd.f32 %v2507, %v2530
  %v2562 = vadd.f32 %v2508, %v2530
  %v2563 = vadd.f32 %v2509, %v2530
  %v2564 = vadd.f32 %v2510, %v2530
  %v2565 = vadd.f32 %v2511, %v2530
  %v2566 = vadd.f32 %v2512, %v2530
  %v2567 = vadd.f32 %v2513, %v2530
  %v2568 = vadd.f32 %v2514, %v2530
  %v2569 = vadd.f32 %v2515, %v2530
  %v2570 = vadd.f32 %v2516, %v2530
  %v2571 = vadd.f32 %v2517, %v2530
  %v2572 = vadd.f32 %v2518, %v2530
  %v2573 = vadd.f32 %v2519, %v2530
  %v2574 = vadd.f32 %v2520, %v2530
  %v2575 = vadd.f32 %v2521, %v2530
  %v2576 = vadd.f32 %v2522, %v2530
  %v2577 = vadd.f32 %v2523, %v2530
  %v2578 = vadd.f32 %v2524, %v2530
  %v2579 = vadd.f32 %v2525, %v2530
  %v2580 = vadd.f32 %v2526, %v2530
  %v2581 = vadd.f32 %v2527, %v2530
  %v2582 = vmax.f32 %v2532, 0.0
  %v2583 = vmax.f32 %v2533, 0.0
  %v2584 = vmax.f32 %v2534, 0.0
  %v2585 = vmax.f32 %v2535, 0.0
  %v2586 = vmax.f32 %v2536, 0.0
  %v2587 = vmax.f32 %v2537, 0.0
  %v2588 = vmax.f32 %v2538, 0.0
  %v2589 = vmax.f32 %v2539, 0.0
  %v2590 = vmax.f32 %v2540, 0.0
  %v2591 = vmax.f32 %v2541, 0.0
  %v2592 = vmax.f32 %v2542, 0.0
  %v2593 = vmax.f32 %v2543, 0.0
  %v2594 = vmax.f32 %v2544, 0.0
  %v2595 = vmax.f32 %v2545, 0.0
  %v2596 = vmax.f32 %v2546, 0.0
  %v2597 = vmax.f32 %v2547, 0.0
  %v2598 = vmax.f32 %v2548, 0.0
  %v2599 = vmax.f32 %v2549, 0.0
  %v2600 = vmax.f32 %v2550, 0.0
  %v2601 = vmax.f32 %v2551, 0.0
  %v2602 = vmax.f32 %v2552, 0.0
  %v2603 = vmax.f32 %v2553, 0.0
  %v2604 = vmax.f32 %v2554, 0.0
  %v2605 = vmax.f32 %v2555, 0.0
  %v2606 = vmax.f32 %v2556, 0.0
  %v2607 = vmax.f32 %v2557, 0.0
  %v2608 = vmax.f32 %v2558, 0.0
  %v2609 = vmax.f32 %v2559, 0.0
  %v2610 = vmax.f32 %v2560, 0.0
  %v2611 = vmax.f32 %v2561, 0.0
  %v2612 = vmax.f32 %v2562, 0.0
  %v2613 = vmax.f32 %v2563, 0.0
  %v2614 = vmax.f32 %v2564, 0.0
  %v2615 = vmax.f32 %v2565, 0.0
  %v2616 = vmax.f32 %v2566, 0.0
  %v2617 = vmax.f32 %v2567, 0.0
  %v2618 = vmax.f32 %v2568, 0.0
  %v2619 = vmax.f32 %v2569, 0.0
  %v2620 = vmax.f32 %v2570, 0.0
  %v2621 = vmax.f32 %v2571, 0.0
  %v2622 = vmax.f32 %v2572, 0.0
  %v2623 = vmax.f32 %v2573, 0.0
  %v2624 = vmax.f32 %v2574, 0.0
  %v2625 = vmax.f32 %v2575, 0.0
  %v2626 = vmax.f32 %v2576, 0.0
  %v2627 = vmax.f32 %v2577, 0.0
  %v2628 = vmax.f32 %v2578, 0.0
  %v2629 = vmax.f32 %v2579, 0.0
  %v2630 = vmax.f32 %v2580, 0.0
  %v2631 = vmax.f32 %v2581, 0.0
  %v2632 = vpack.c.bf16 %v2582, %v2582
  %v2633 = vpack.c.bf16 %v2583, %v2583
  %v2634 = vpack.c.bf16 %v2584, %v2584
  %v2635 = vpack.c.bf16 %v2585, %v2585
  %v2636 = vpack.c.bf16 %v2586, %v2586
  %v2637 = vpack.c.bf16 %v2587, %v2587
  %v2638 = vpack.c.bf16 %v2588, %v2588
  %v2639 = vpack.c.bf16 %v2589, %v2589
  %v2640 = vpack.c.bf16 %v2590, %v2590
  %v2641 = vpack.c.bf16 %v2591, %v2591
  %v2642 = vpack.c.bf16 %v2592, %v2592
  %v2643 = vpack.c.bf16 %v2593, %v2593
  %v2644 = vpack.c.bf16 %v2594, %v2594
  %v2645 = vpack.c.bf16 %v2595, %v2595
  %v2646 = vpack.c.bf16 %v2596, %v2596
  %v2647 = vpack.c.bf16 %v2597, %v2597
  %v2648 = vpack.c.bf16 %v2598, %v2598
  %v2649 = vpack.c.bf16 %v2599, %v2599
  %v2650 = vpack.c.bf16 %v2600, %v2600
  %v2651 = vpack.c.bf16 %v2601, %v2601
  %v2652 = vpack.c.bf16 %v2602, %v2602
  %v2653 = vpack.c.bf16 %v2603, %v2603
  %v2654 = vpack.c.bf16 %v2604, %v2604
  %v2655 = vpack.c.bf16 %v2605, %v2605
  %v2656 = vpack.c.bf16 %v2606, %v2606
  %v2657 = vpack.c.bf16 %v2607, %v2607
  %v2658 = vpack.c.bf16 %v2608, %v2608
  %v2659 = vpack.c.bf16 %v2609, %v2609
  %v2660 = vpack.c.bf16 %v2610, %v2610
  %v2661 = vpack.c.bf16 %v2611, %v2611
  %v2662 = vpack.c.bf16 %v2612, %v2612
  %v2663 = vpack.c.bf16 %v2613, %v2613
  %v2664 = vpack.c.bf16 %v2614, %v2614
  %v2665 = vpack.c.bf16 %v2615, %v2615
  %v2666 = vpack.c.bf16 %v2616, %v2616
  %v2667 = vpack.c.bf16 %v2617, %v2617
  %v2668 = vpack.c.bf16 %v2618, %v2618
  %v2669 = vpack.c.bf16 %v2619, %v2619
  %v2670 = vpack.c.bf16 %v2620, %v2620
  %v2671 = vpack.c.bf16 %v2621, %v2621
  %v2672 = vpack.c.bf16 %v2622, %v2622
  %v2673 = vpack.c.bf16 %v2623, %v2623
  %v2674 = vpack.c.bf16 %v2624, %v2624
  %v2675 = vpack.c.bf16 %v2625, %v2625
  %v2676 = vpack.c.bf16 %v2626, %v2626
  %v2677 = vpack.c.bf16 %v2627, %v2627
  %v2678 = vpack.c.bf16 %v2628, %v2628
  %v2679 = vpack.c.bf16 %v2629, %v2629
  %v2680 = vpack.c.bf16 %v2630, %v2630
  %v2681 = vpack.c.bf16 %v2631, %v2631
  %v2682 = vld [vmem:[%s3] sm:$0xf]
  %v2683 = vld [vmem:[%s3 + $0x4] sm:$0xf]
  %v2684 = vld [vmem:[%s3 + $0x8] sm:$0xf]
  %v2685 = vld [vmem:[%s3 + $0xc] sm:$0xf]
  %v2686 = vld [vmem:[%s3 + $0x10] sm:$0xf]
  %v2687 = vld [vmem:[%s3 + $0x14] sm:$0xf]
  %v2688 = vld [vmem:[%s3 + $0x18] sm:$0xf]
  %v2689 = vld [vmem:[%s3 + $0x1c] sm:$0xf]
  %v2690 = vld [vmem:[%s3 + $0x20] sm:$0xf]
  %v2691 = vld [vmem:[%s3 + $0x24] sm:$0xf]
  %v2692 = vld [vmem:[%s3 + $0x28] sm:$0xf]
  %v2693 = vld [vmem:[%s3 + $0x2c] sm:$0xf]
  %v2694 = vld [vmem:[%s3 + $0x30] sm:$0xf]
  %v2695 = vld [vmem:[%s3 + $0x34] sm:$0xf]
  %v2696 = vld [vmem:[%s3 + $0x38] sm:$0xf]
  %v2697 = vld [vmem:[%s3 + $0x3c] sm:$0xf]
  %s2698 = scalar_lea.vmem %s3, 64
  %v2699 = vld [vmem:[%s2698] sm:$0xf]
  %v2700 = vld [vmem:[%s2698 + $0x4] sm:$0xf]
  %v2701 = vld [vmem:[%s2698 + $0x8] sm:$0xf]
  %v2702 = vld [vmem:[%s2698 + $0xc] sm:$0xf]
  %v2703 = vld [vmem:[%s2698 + $0x10] sm:$0xf]
  %v2704 = vld [vmem:[%s2698 + $0x14] sm:$0xf]
  %v2705 = vld [vmem:[%s2698 + $0x18] sm:$0xf]
  %v2706 = vld [vmem:[%s2698 + $0x1c] sm:$0xf]
  %v2707 = vld [vmem:[%s2698 + $0x20] sm:$0xf]
  %v2708 = vld [vmem:[%s2698 + $0x24] sm:$0xf]
  %v2709 = vld [vmem:[%s2698 + $0x28] sm:$0xf]
  %v2710 = vld [vmem:[%s2698 + $0x2c] sm:$0xf]
  %v2711 = vld [vmem:[%s2698 + $0x30] sm:$0xf]
  %v2712 = vld [vmem:[%s2698 + $0x34] sm:$0xf]
  %v2713 = vld [vmem:[%s2698 + $0x38] sm:$0xf]
  %v2714 = vld [vmem:[%s2698 + $0x3c] sm:$0xf]
  %v2717 = vunpack.c.l.b16 %v2634
  %v2718 = vunpack.c.l.b16 %v2635
  %v2719 = vpack.c.b16 %v2718, %v2717
  %v2737 = vunpack.c.l.b16 %v2699
  %v2738 = vunpack.c.l.b16 %v2700
  %v2739 = vunpack.c.l.b16 %v2701
  %v2740 = vunpack.c.l.b16 %v2702
  %v2741 = vunpack.c.l.b16 %v2703
  %v2742 = vunpack.c.l.b16 %v2704
  %v2743 = vunpack.c.l.b16 %v2705
  %v2744 = vunpack.c.l.b16 %v2706
  %v2745 = vunpack.c.l.b16 %v2707
  %v2746 = vunpack.c.l.b16 %v2708
  %v2747 = vunpack.c.l.b16 %v2709
  %v2748 = vunpack.c.l.b16 %v2710
  %v2749 = vunpack.c.l.b16 %v2711
  %v2750 = vunpack.c.l.b16 %v2712
  %v2751 = vunpack.c.l.b16 %v2713
  %v2752 = vunpack.c.l.b16 %v2714
  %v2753 = vpack.c.b16 %v2738, %v2737
  %v2754 = vpack.c.b16 %v2740, %v2739
  %v2755 = vpack.c.b16 %v2742, %v2741
  %v2756 = vpack.c.b16 %v2744, %v2743
  %v2757 = vpack.c.b16 %v2746, %v2745
  %v2758 = vpack.c.b16 %v2748, %v2747
  %v2759 = vpack.c.b16 %v2750, %v2749
  %v2760 = vpack.c.b16 %v2752, %v2751
  %2769 = vmatpush.bf16.msra.mxu0 %v2760
  %2770 = vmatpush.bf16.msra.mxu0 %v2759
  %2771 = vmatpush.bf16.msra.mxu0 %v2758
  %2772 = vmatpush.bf16.msra.mxu0 %v2757
  %2773 = vmatpush.bf16.msra.mxu0 %v2756
  %2774 = vmatpush.bf16.msra.mxu0 %v2755
  %2775 = vmatpush.bf16.msra.mxu0 %v2754
  %2776 = vmatpush.bf16.msra.mxu0 %v2753
  %2777 = vmatmul.bf16.gmra.mxu0 %v2719
  %v2778 = vpop.f32.mrf.mxu0
  %v2779 = vadd.f32 0.0, %v2778
  %v2780 = vpop.f32.mrf.mxu0
  %v2781 = vadd.f32 0.0, %v2780
  %2782 = vdwg.mxu0
  %v2785 = vunpack.c.l.b16 %v2632
  %v2786 = vunpack.c.l.b16 %v2633
  %v2787 = vpack.c.b16 %v2786, %v2785
  %v2805 = vunpack.c.l.b16 %v2682
  %v2806 = vunpack.c.l.b16 %v2683
  %v2807 = vunpack.c.l.b16 %v2684
  %v2808 = vunpack.c.l.b16 %v2685
  %v2809 = vunpack.c.l.b16 %v2686
  %v2810 = vunpack.c.l.b16 %v2687
  %v2811 = vunpack.c.l.b16 %v2688
  %v2812 = vunpack.c.l.b16 %v2689
  %v2813 = vunpack.c.l.b16 %v2690
  %v2814 = vunpack.c.l.b16 %v2691
  %v2815 = vunpack.c.l.b16 %v2692
  %v2816 = vunpack.c.l.b16 %v2693
  %v2817 = vunpack.c.l.b16 %v2694
  %v2818 = vunpack.c.l.b16 %v2695
  %v2819 = vunpack.c.l.b16 %v2696
  %v2820 = vunpack.c.l.b16 %v2697
  %v2821 = vpack.c.b16 %v2806, %v2805
  %v2822 = vpack.c.b16 %v2808, %v2807
  %v2823 = vpack.c.b16 %v2810, %v2809
  %v2824 = vpack.c.b16 %v2812, %v2811
  %v2825 = vpack.c.b16 %v2814, %v2813
  %v2826 = vpack.c.b16 %v2816, %v2815
  %v2827 = vpack.c.b16 %v2818, %v2817
  %v2828 = vpack.c.b16 %v2820, %v2819
  %2837 = vmatpush.bf16.msra.mxu0 %v2828
  %2838 = vmatpush.bf16.msra.mxu0 %v2827
  %2839 = vmatpush.bf16.msra.mxu0 %v2826
  %2840 = vmatpush.bf16.msra.mxu0 %v2825
  %2841 = vmatpush.bf16.msra.mxu0 %v2824
  %2842 = vmatpush.bf16.msra.mxu0 %v2823
  %2843 = vmatpush.bf16.msra.mxu0 %v2822
  %2844 = vmatpush.bf16.msra.mxu0 %v2821
  %2845 = vmatmul.bf16.gmra.mxu0 %v2787
  %v2846 = vpop.f32.mrf.mxu0
  %v2847 = vadd.f32 %v2779, %v2846
  %v2848 = vpop.f32.mrf.mxu0
  %v2849 = vadd.f32 %v2781, %v2848
  %2850 = vdwg.mxu0
  %s2851 = scalar_lea.vmem %s3, 128
  %v2852 = vld [vmem:[%s2851] sm:$0xf]
  %v2853 = vld [vmem:[%s2851 + $0x4] sm:$0xf]
  %v2854 = vld [vmem:[%s2851 + $0x8] sm:$0xf]
  %v2855 = vld [vmem:[%s2851 + $0xc] sm:$0xf]
  %v2856 = vld [vmem:[%s2851 + $0x10] sm:$0xf]
  %v2857 = vld [vmem:[%s2851 + $0x14] sm:$0xf]
  %v2858 = vld [vmem:[%s2851 + $0x18] sm:$0xf]
  %v2859 = vld [vmem:[%s2851 + $0x1c] sm:$0xf]
  %v2860 = vld [vmem:[%s2851 + $0x20] sm:$0xf]
  %v2861 = vld [vmem:[%s2851 + $0x24] sm:$0xf]
  %v2862 = vld [vmem:[%s2851 + $0x28] sm:$0xf]
  %v2863 = vld [vmem:[%s2851 + $0x2c] sm:$0xf]
  %v2864 = vld [vmem:[%s2851 + $0x30] sm:$0xf]
  %v2865 = vld [vmem:[%s2851 + $0x34] sm:$0xf]
  %v2866 = vld [vmem:[%s2851 + $0x38] sm:$0xf]
  %v2867 = vld [vmem:[%s2851 + $0x3c] sm:$0xf]
  %v2870 = vunpack.c.l.b16 %v2636
  %v2871 = vunpack.c.l.b16 %v2637
  %v2872 = vpack.c.b16 %v2871, %v2870
  %v2890 = vunpack.c.l.b16 %v2852
  %v2891 = vunpack.c.l.b16 %v2853
  %v2892 = vunpack.c.l.b16 %v2854
  %v2893 = vunpack.c.l.b16 %v2855
  %v2894 = vunpack.c.l.b16 %v2856
  %v2895 = vunpack.c.l.b16 %v2857
  %v2896 = vunpack.c.l.b16 %v2858
  %v2897 = vunpack.c.l.b16 %v2859
  %v2898 = vunpack.c.l.b16 %v2860
  %v2899 = vunpack.c.l.b16 %v2861
  %v2900 = vunpack.c.l.b16 %v2862
  %v2901 = vunpack.c.l.b16 %v2863
  %v2902 = vunpack.c.l.b16 %v2864
  %v2903 = vunpack.c.l.b16 %v2865
  %v2904 = vunpack.c.l.b16 %v2866
  %v2905 = vunpack.c.l.b16 %v2867
  %v2906 = vpack.c.b16 %v2891, %v2890
  %v2907 = vpack.c.b16 %v2893, %v2892
  %v2908 = vpack.c.b16 %v2895, %v2894
  %v2909 = vpack.c.b16 %v2897, %v2896
  %v2910 = vpack.c.b16 %v2899, %v2898
  %v2911 = vpack.c.b16 %v2901, %v2900
  %v2912 = vpack.c.b16 %v2903, %v2902
  %v2913 = vpack.c.b16 %v2905, %v2904
  %2922 = vmatpush.bf16.msra.mxu0 %v2913
  %2923 = vmatpush.bf16.msra.mxu0 %v2912
  %2924 = vmatpush.bf16.msra.mxu0 %v2911
  %2925 = vmatpush.bf16.msra.mxu0 %v2910
  %2926 = vmatpush.bf16.msra.mxu0 %v2909
  %2927 = vmatpush.bf16.msra.mxu0 %v2908
  %2928 = vmatpush.bf16.msra.mxu0 %v2907
  %2929 = vmatpush.bf16.msra.mxu0 %v2906
  %2930 = vmatmul.bf16.gmra.mxu0 %v2872
  %v2931 = vpop.f32.mrf.mxu0
  %v2932 = vadd.f32 0.0, %v2931
  %v2933 = vpop.f32.mrf.mxu0
  %v2934 = vadd.f32 0.0, %v2933
  %2935 = vdwg.mxu0
  %v2936 = vadd.f32 %v2847, %v2932
  %v2937 = vadd.f32 %v2849, %v2934
  %s2938 = scalar_lea.vmem %s3, 192
  %v2939 = vld [vmem:[%s2938] sm:$0xf]
  %v2940 = vld [vmem:[%s2938 + $0x4] sm:$0xf]
  %v2941 = vld [vmem:[%s2938 + $0x8] sm:$0xf]
  %v2942 = vld [vmem:[%s2938 + $0xc] sm:$0xf]
  %v2943 = vld [vmem:[%s2938 + $0x10] sm:$0xf]
  %v2944 = vld [vmem:[%s2938 + $0x14] sm:$0xf]
  %v2945 = vld [vmem:[%s2938 + $0x18] sm:$0xf]
  %v2946 = vld [vmem:[%s2938 + $0x1c] sm:$0xf]
  %v2947 = vld [vmem:[%s2938 + $0x20] sm:$0xf]
  %v2948 = vld [vmem:[%s2938 + $0x24] sm:$0xf]
  %v2949 = vld [vmem:[%s2938 + $0x28] sm:$0xf]
  %v2950 = vld [vmem:[%s2938 + $0x2c] sm:$0xf]
  %v2951 = vld [vmem:[%s2938 + $0x30] sm:$0xf]
  %v2952 = vld [vmem:[%s2938 + $0x34] sm:$0xf]
  %v2953 = vld [vmem:[%s2938 + $0x38] sm:$0xf]
  %v2954 = vld [vmem:[%s2938 + $0x3c] sm:$0xf]
  %v2957 = vunpack.c.l.b16 %v2638
  %v2958 = vunpack.c.l.b16 %v2639
  %v2959 = vpack.c.b16 %v2958, %v2957
  %v2977 = vunpack.c.l.b16 %v2939
  %v2978 = vunpack.c.l.b16 %v2940
  %v2979 = vunpack.c.l.b16 %v2941
  %v2980 = vunpack.c.l.b16 %v2942
  %v2981 = vunpack.c.l.b16 %v2943
  %v2982 = vunpack.c.l.b16 %v2944
  %v2983 = vunpack.c.l.b16 %v2945
  %v2984 = vunpack.c.l.b16 %v2946
  %v2985 = vunpack.c.l.b16 %v2947
  %v2986 = vunpack.c.l.b16 %v2948
  %v2987 = vunpack.c.l.b16 %v2949
  %v2988 = vunpack.c.l.b16 %v2950
  %v2989 = vunpack.c.l.b16 %v2951
  %v2990 = vunpack.c.l.b16 %v2952
  %v2991 = vunpack.c.l.b16 %v2953
  %v2992 = vunpack.c.l.b16 %v2954
  %v2993 = vpack.c.b16 %v2978, %v2977
  %v2994 = vpack.c.b16 %v2980, %v2979
  %v2995 = vpack.c.b16 %v2982, %v2981
  %v2996 = vpack.c.b16 %v2984, %v2983
  %v2997 = vpack.c.b16 %v2986, %v2985
  %v2998 = vpack.c.b16 %v2988, %v2987
  %v2999 = vpack.c.b16 %v2990, %v2989
  %v3000 = vpack.c.b16 %v2992, %v2991
  %3009 = vmatpush.bf16.msra.mxu0 %v3000
  %3010 = vmatpush.bf16.msra.mxu0 %v2999
  %3011 = vmatpush.bf16.msra.mxu0 %v2998
  %3012 = vmatpush.bf16.msra.mxu0 %v2997
  %3013 = vmatpush.bf16.msra.mxu0 %v2996
  %3014 = vmatpush.bf16.msra.mxu0 %v2995
  %3015 = vmatpush.bf16.msra.mxu0 %v2994
  %3016 = vmatpush.bf16.msra.mxu0 %v2993
  %3017 = vmatmul.bf16.gmra.mxu0 %v2959
  %v3018 = vpop.f32.mrf.mxu0
  %v3019 = vadd.f32 0.0, %v3018
  %v3020 = vpop.f32.mrf.mxu0
  %v3021 = vadd.f32 0.0, %v3020
  %3022 = vdwg.mxu0
  %v3023 = vadd.f32 %v2936, %v3019
  %v3024 = vadd.f32 %v2937, %v3021
  %s3025 = scalar_lea.vmem %s3, 256
  %v3026 = vld [vmem:[%s3025] sm:$0xf]
  %v3027 = vld [vmem:[%s3025 + $0x4] sm:$0xf]
  %v3028 = vld [vmem:[%s3025 + $0x8] sm:$0xf]
  %v3029 = vld [vmem:[%s3025 + $0xc] sm:$0xf]
  %v3030 = vld [vmem:[%s3025 + $0x10] sm:$0xf]
  %v3031 = vld [vmem:[%s3025 + $0x14] sm:$0xf]
  %v3032 = vld [vmem:[%s3025 + $0x18] sm:$0xf]
  %v3033 = vld [vmem:[%s3025 + $0x1c] sm:$0xf]
  %v3034 = vld [vmem:[%s3025 + $0x20] sm:$0xf]
  %v3035 = vld [vmem:[%s3025 + $0x24] sm:$0xf]
  %v3036 = vld [vmem:[%s3025 + $0x28] sm:$0xf]
  %v3037 = vld [vmem:[%s3025 + $0x2c] sm:$0xf]
  %v3038 = vld [vmem:[%s3025 + $0x30] sm:$0xf]
  %v3039 = vld [vmem:[%s3025 + $0x34] sm:$0xf]
  %v3040 = vld [vmem:[%s3025 + $0x38] sm:$0xf]
  %v3041 = vld [vmem:[%s3025 + $0x3c] sm:$0xf]
  %v3044 = vunpack.c.l.b16 %v2640
  %v3045 = vunpack.c.l.b16 %v2641
  %v3046 = vpack.c.b16 %v3045, %v3044
  %v3064 = vunpack.c.l.b16 %v3026
  %v3065 = vunpack.c.l.b16 %v3027
  %v3066 = vunpack.c.l.b16 %v3028
  %v3067 = vunpack.c.l.b16 %v3029
  %v3068 = vunpack.c.l.b16 %v3030
  %v3069 = vunpack.c.l.b16 %v3031
  %v3070 = vunpack.c.l.b16 %v3032
  %v3071 = vunpack.c.l.b16 %v3033
  %v3072 = vunpack.c.l.b16 %v3034
  %v3073 = vunpack.c.l.b16 %v3035
  %v3074 = vunpack.c.l.b16 %v3036
  %v3075 = vunpack.c.l.b16 %v3037
  %v3076 = vunpack.c.l.b16 %v3038
  %v3077 = vunpack.c.l.b16 %v3039
  %v3078 = vunpack.c.l.b16 %v3040
  %v3079 = vunpack.c.l.b16 %v3041
  %v3080 = vpack.c.b16 %v3065, %v3064
  %v3081 = vpack.c.b16 %v3067, %v3066
  %v3082 = vpack.c.b16 %v3069, %v3068
  %v3083 = vpack.c.b16 %v3071, %v3070
  %v3084 = vpack.c.b16 %v3073, %v3072
  %v3085 = vpack.c.b16 %v3075, %v3074
  %v3086 = vpack.c.b16 %v3077, %v3076
  %v3087 = vpack.c.b16 %v3079, %v3078
  %3096 = vmatpush.bf16.msra.mxu0 %v3087
  %3097 = vmatpush.bf16.msra.mxu0 %v3086
  %3098 = vmatpush.bf16.msra.mxu0 %v3085
  %3099 = vmatpush.bf16.msra.mxu0 %v3084
  %3100 = vmatpush.bf16.msra.mxu0 %v3083
  %3101 = vmatpush.bf16.msra.mxu0 %v3082
  %3102 = vmatpush.bf16.msra.mxu0 %v3081
  %3103 = vmatpush.bf16.msra.mxu0 %v3080
  %3104 = vmatmul.bf16.gmra.mxu0 %v3046
  %v3105 = vpop.f32.mrf.mxu0
  %v3106 = vadd.f32 0.0, %v3105
  %v3107 = vpop.f32.mrf.mxu0
  %v3108 = vadd.f32 0.0, %v3107
  %3109 = vdwg.mxu0
  %v3110 = vadd.f32 %v3023, %v3106
  %v3111 = vadd.f32 %v3024, %v3108
  %s3112 = scalar_lea.vmem %s3, 320
  %v3113 = vld [vmem:[%s3112] sm:$0xf]
  %v3114 = vld [vmem:[%s3112 + $0x4] sm:$0xf]
  %v3115 = vld [vmem:[%s3112 + $0x8] sm:$0xf]
  %v3116 = vld [vmem:[%s3112 + $0xc] sm:$0xf]
  %v3117 = vld [vmem:[%s3112 + $0x10] sm:$0xf]
  %v3118 = vld [vmem:[%s3112 + $0x14] sm:$0xf]
  %v3119 = vld [vmem:[%s3112 + $0x18] sm:$0xf]
  %v3120 = vld [vmem:[%s3112 + $0x1c] sm:$0xf]
  %v3121 = vld [vmem:[%s3112 + $0x20] sm:$0xf]
  %v3122 = vld [vmem:[%s3112 + $0x24] sm:$0xf]
  %v3123 = vld [vmem:[%s3112 + $0x28] sm:$0xf]
  %v3124 = vld [vmem:[%s3112 + $0x2c] sm:$0xf]
  %v3125 = vld [vmem:[%s3112 + $0x30] sm:$0xf]
  %v3126 = vld [vmem:[%s3112 + $0x34] sm:$0xf]
  %v3127 = vld [vmem:[%s3112 + $0x38] sm:$0xf]
  %v3128 = vld [vmem:[%s3112 + $0x3c] sm:$0xf]
  %v3131 = vunpack.c.l.b16 %v2642
  %v3132 = vunpack.c.l.b16 %v2643
  %v3133 = vpack.c.b16 %v3132, %v3131
  %v3151 = vunpack.c.l.b16 %v3113
  %v3152 = vunpack.c.l.b16 %v3114
  %v3153 = vunpack.c.l.b16 %v3115
  %v3154 = vunpack.c.l.b16 %v3116
  %v3155 = vunpack.c.l.b16 %v3117
  %v3156 = vunpack.c.l.b16 %v3118
  %v3157 = vunpack.c.l.b16 %v3119
  %v3158 = vunpack.c.l.b16 %v3120
  %v3159 = vunpack.c.l.b16 %v3121
  %v3160 = vunpack.c.l.b16 %v3122
  %v3161 = vunpack.c.l.b16 %v3123
  %v3162 = vunpack.c.l.b16 %v3124
  %v3163 = vunpack.c.l.b16 %v3125
  %v3164 = vunpack.c.l.b16 %v3126
  %v3165 = vunpack.c.l.b16 %v3127
  %v3166 = vunpack.c.l.b16 %v3128
  %v3167 = vpack.c.b16 %v3152, %v3151
  %v3168 = vpack.c.b16 %v3154, %v3153
  %v3169 = vpack.c.b16 %v3156, %v3155
  %v3170 = vpack.c.b16 %v3158, %v3157
  %v3171 = vpack.c.b16 %v3160, %v3159
  %v3172 = vpack.c.b16 %v3162, %v3161
  %v3173 = vpack.c.b16 %v3164, %v3163
  %v3174 = vpack.c.b16 %v3166, %v3165
  %3183 = vmatpush.bf16.msra.mxu0 %v3174
  %3184 = vmatpush.bf16.msra.mxu0 %v3173
  %3185 = vmatpush.bf16.msra.mxu0 %v3172
  %3186 = vmatpush.bf16.msra.mxu0 %v3171
  %3187 = vmatpush.bf16.msra.mxu0 %v3170
  %3188 = vmatpush.bf16.msra.mxu0 %v3169
  %3189 = vmatpush.bf16.msra.mxu0 %v3168
  %3190 = vmatpush.bf16.msra.mxu0 %v3167
  %3191 = vmatmul.bf16.gmra.mxu0 %v3133
  %v3192 = vpop.f32.mrf.mxu0
  %v3193 = vadd.f32 0.0, %v3192
  %v3194 = vpop.f32.mrf.mxu0
  %v3195 = vadd.f32 0.0, %v3194
  %3196 = vdwg.mxu0
  %v3197 = vadd.f32 %v3110, %v3193
  %v3198 = vadd.f32 %v3111, %v3195
  %s3199 = scalar_lea.vmem %s3, 384
  %v3200 = vld [vmem:[%s3199] sm:$0xf]
  %v3201 = vld [vmem:[%s3199 + $0x4] sm:$0xf]
  %v3202 = vld [vmem:[%s3199 + $0x8] sm:$0xf]
  %v3203 = vld [vmem:[%s3199 + $0xc] sm:$0xf]
  %v3204 = vld [vmem:[%s3199 + $0x10] sm:$0xf]
  %v3205 = vld [vmem:[%s3199 + $0x14] sm:$0xf]
  %v3206 = vld [vmem:[%s3199 + $0x18] sm:$0xf]
  %v3207 = vld [vmem:[%s3199 + $0x1c] sm:$0xf]
  %v3208 = vld [vmem:[%s3199 + $0x20] sm:$0xf]
  %v3209 = vld [vmem:[%s3199 + $0x24] sm:$0xf]
  %v3210 = vld [vmem:[%s3199 + $0x28] sm:$0xf]
  %v3211 = vld [vmem:[%s3199 + $0x2c] sm:$0xf]
  %v3212 = vld [vmem:[%s3199 + $0x30] sm:$0xf]
  %v3213 = vld [vmem:[%s3199 + $0x34] sm:$0xf]
  %v3214 = vld [vmem:[%s3199 + $0x38] sm:$0xf]
  %v3215 = vld [vmem:[%s3199 + $0x3c] sm:$0xf]
  %v3218 = vunpack.c.l.b16 %v2644
  %v3219 = vunpack.c.l.b16 %v2645
  %v3220 = vpack.c.b16 %v3219, %v3218
  %v3238 = vunpack.c.l.b16 %v3200
  %v3239 = vunpack.c.l.b16 %v3201
  %v3240 = vunpack.c.l.b16 %v3202
  %v3241 = vunpack.c.l.b16 %v3203
  %v3242 = vunpack.c.l.b16 %v3204
  %v3243 = vunpack.c.l.b16 %v3205
  %v3244 = vunpack.c.l.b16 %v3206
  %v3245 = vunpack.c.l.b16 %v3207
  %v3246 = vunpack.c.l.b16 %v3208
  %v3247 = vunpack.c.l.b16 %v3209
  %v3248 = vunpack.c.l.b16 %v3210
  %v3249 = vunpack.c.l.b16 %v3211
  %v3250 = vunpack.c.l.b16 %v3212
  %v3251 = vunpack.c.l.b16 %v3213
  %v3252 = vunpack.c.l.b16 %v3214
  %v3253 = vunpack.c.l.b16 %v3215
  %v3254 = vpack.c.b16 %v3239, %v3238
  %v3255 = vpack.c.b16 %v3241, %v3240
  %v3256 = vpack.c.b16 %v3243, %v3242
  %v3257 = vpack.c.b16 %v3245, %v3244
  %v3258 = vpack.c.b16 %v3247, %v3246
  %v3259 = vpack.c.b16 %v3249, %v3248
  %v3260 = vpack.c.b16 %v3251, %v3250
  %v3261 = vpack.c.b16 %v3253, %v3252
  %3270 = vmatpush.bf16.msra.mxu0 %v3261
  %3271 = vmatpush.bf16.msra.mxu0 %v3260
  %3272 = vmatpush.bf16.msra.mxu0 %v3259
  %3273 = vmatpush.bf16.msra.mxu0 %v3258
  %3274 = vmatpush.bf16.msra.mxu0 %v3257
  %3275 = vmatpush.bf16.msra.mxu0 %v3256
  %3276 = vmatpush.bf16.msra.mxu0 %v3255
  %3277 = vmatpush.bf16.msra.mxu0 %v3254
  %3278 = vmatmul.bf16.gmra.mxu0 %v3220
  %v3279 = vpop.f32.mrf.mxu0
  %v3280 = vadd.f32 0.0, %v3279
  %v3281 = vpop.f32.mrf.mxu0
  %v3282 = vadd.f32 0.0, %v3281
  %3283 = vdwg.mxu0
  %v3284 = vadd.f32 %v3197, %v3280
  %v3285 = vadd.f32 %v3198, %v3282
  %s3286 = scalar_lea.vmem %s3, 448
  %v3287 = vld [vmem:[%s3286] sm:$0xf]
  %v3288 = vld [vmem:[%s3286 + $0x4] sm:$0xf]
  %v3289 = vld [vmem:[%s3286 + $0x8] sm:$0xf]
  %v3290 = vld [vmem:[%s3286 + $0xc] sm:$0xf]
  %v3291 = vld [vmem:[%s3286 + $0x10] sm:$0xf]
  %v3292 = vld [vmem:[%s3286 + $0x14] sm:$0xf]
  %v3293 = vld [vmem:[%s3286 + $0x18] sm:$0xf]
  %v3294 = vld [vmem:[%s3286 + $0x1c] sm:$0xf]
  %v3295 = vld [vmem:[%s3286 + $0x20] sm:$0xf]
  %v3296 = vld [vmem:[%s3286 + $0x24] sm:$0xf]
  %v3297 = vld [vmem:[%s3286 + $0x28] sm:$0xf]
  %v3298 = vld [vmem:[%s3286 + $0x2c] sm:$0xf]
  %v3299 = vld [vmem:[%s3286 + $0x30] sm:$0xf]
  %v3300 = vld [vmem:[%s3286 + $0x34] sm:$0xf]
  %v3301 = vld [vmem:[%s3286 + $0x38] sm:$0xf]
  %v3302 = vld [vmem:[%s3286 + $0x3c] sm:$0xf]
  %v3305 = vunpack.c.l.b16 %v2646
  %v3306 = vunpack.c.l.b16 %v2647
  %v3307 = vpack.c.b16 %v3306, %v3305
  %v3325 = vunpack.c.l.b16 %v3287
  %v3326 = vunpack.c.l.b16 %v3288
  %v3327 = vunpack.c.l.b16 %v3289
  %v3328 = vunpack.c.l.b16 %v3290
  %v3329 = vunpack.c.l.b16 %v3291
  %v3330 = vunpack.c.l.b16 %v3292
  %v3331 = vunpack.c.l.b16 %v3293
  %v3332 = vunpack.c.l.b16 %v3294
  %v3333 = vunpack.c.l.b16 %v3295
  %v3334 = vunpack.c.l.b16 %v3296
  %v3335 = vunpack.c.l.b16 %v3297
  %v3336 = vunpack.c.l.b16 %v3298
  %v3337 = vunpack.c.l.b16 %v3299
  %v3338 = vunpack.c.l.b16 %v3300
  %v3339 = vunpack.c.l.b16 %v3301
  %v3340 = vunpack.c.l.b16 %v3302
  %v3341 = vpack.c.b16 %v3326, %v3325
  %v3342 = vpack.c.b16 %v3328, %v3327
  %v3343 = vpack.c.b16 %v3330, %v3329
  %v3344 = vpack.c.b16 %v3332, %v3331
  %v3345 = vpack.c.b16 %v3334, %v3333
  %v3346 = vpack.c.b16 %v3336, %v3335
  %v3347 = vpack.c.b16 %v3338, %v3337
  %v3348 = vpack.c.b16 %v3340, %v3339
  %3357 = vmatpush.bf16.msra.mxu0 %v3348
  %3358 = vmatpush.bf16.msra.mxu0 %v3347
  %3359 = vmatpush.bf16.msra.mxu0 %v3346
  %3360 = vmatpush.bf16.msra.mxu0 %v3345
  %3361 = vmatpush.bf16.msra.mxu0 %v3344
  %3362 = vmatpush.bf16.msra.mxu0 %v3343
  %3363 = vmatpush.bf16.msra.mxu0 %v3342
  %3364 = vmatpush.bf16.msra.mxu0 %v3341
  %3365 = vmatmul.bf16.gmra.mxu0 %v3307
  %v3366 = vpop.f32.mrf.mxu0
  %v3367 = vadd.f32 0.0, %v3366
  %v3368 = vpop.f32.mrf.mxu0
  %v3369 = vadd.f32 0.0, %v3368
  %3370 = vdwg.mxu0
  %v3371 = vadd.f32 %v3284, %v3367
  %v3372 = vadd.f32 %v3285, %v3369
  %s3373 = scalar_lea.vmem %s3, 512
  %v3374 = vld [vmem:[%s3373] sm:$0xf]
  %v3375 = vld [vmem:[%s3373 + $0x4] sm:$0xf]
  %v3376 = vld [vmem:[%s3373 + $0x8] sm:$0xf]
  %v3377 = vld [vmem:[%s3373 + $0xc] sm:$0xf]
  %v3378 = vld [vmem:[%s3373 + $0x10] sm:$0xf]
  %v3379 = vld [vmem:[%s3373 + $0x14] sm:$0xf]
  %v3380 = vld [vmem:[%s3373 + $0x18] sm:$0xf]
  %v3381 = vld [vmem:[%s3373 + $0x1c] sm:$0xf]
  %v3382 = vld [vmem:[%s3373 + $0x20] sm:$0xf]
  %v3383 = vld [vmem:[%s3373 + $0x24] sm:$0xf]
  %v3384 = vld [vmem:[%s3373 + $0x28] sm:$0xf]
  %v3385 = vld [vmem:[%s3373 + $0x2c] sm:$0xf]
  %v3386 = vld [vmem:[%s3373 + $0x30] sm:$0xf]
  %v3387 = vld [vmem:[%s3373 + $0x34] sm:$0xf]
  %v3388 = vld [vmem:[%s3373 + $0x38] sm:$0xf]
  %v3389 = vld [vmem:[%s3373 + $0x3c] sm:$0xf]
  %v3392 = vunpack.c.l.b16 %v2648
  %v3393 = vunpack.c.l.b16 %v2649
  %v3394 = vpack.c.b16 %v3393, %v3392
  %v3412 = vunpack.c.l.b16 %v3374
  %v3413 = vunpack.c.l.b16 %v3375
  %v3414 = vunpack.c.l.b16 %v3376
  %v3415 = vunpack.c.l.b16 %v3377
  %v3416 = vunpack.c.l.b16 %v3378
  %v3417 = vunpack.c.l.b16 %v3379
  %v3418 = vunpack.c.l.b16 %v3380
  %v3419 = vunpack.c.l.b16 %v3381
  %v3420 = vunpack.c.l.b16 %v3382
  %v3421 = vunpack.c.l.b16 %v3383
  %v3422 = vunpack.c.l.b16 %v3384
  %v3423 = vunpack.c.l.b16 %v3385
  %v3424 = vunpack.c.l.b16 %v3386
  %v3425 = vunpack.c.l.b16 %v3387
  %v3426 = vunpack.c.l.b16 %v3388
  %v3427 = vunpack.c.l.b16 %v3389
  %v3428 = vpack.c.b16 %v3413, %v3412
  %v3429 = vpack.c.b16 %v3415, %v3414
  %v3430 = vpack.c.b16 %v3417, %v3416
  %v3431 = vpack.c.b16 %v3419, %v3418
  %v3432 = vpack.c.b16 %v3421, %v3420
  %v3433 = vpack.c.b16 %v3423, %v3422
  %v3434 = vpack.c.b16 %v3425, %v3424
  %v3435 = vpack.c.b16 %v3427, %v3426
  %3444 = vmatpush.bf16.msra.mxu0 %v3435
  %3445 = vmatpush.bf16.msra.mxu0 %v3434
  %3446 = vmatpush.bf16.msra.mxu0 %v3433
  %3447 = vmatpush.bf16.msra.mxu0 %v3432
  %3448 = vmatpush.bf16.msra.mxu0 %v3431
  %3449 = vmatpush.bf16.msra.mxu0 %v3430
  %3450 = vmatpush.bf16.msra.mxu0 %v3429
  %3451 = vmatpush.bf16.msra.mxu0 %v3428
  %3452 = vmatmul.bf16.gmra.mxu0 %v3394
  %v3453 = vpop.f32.mrf.mxu0
  %v3454 = vadd.f32 0.0, %v3453
  %v3455 = vpop.f32.mrf.mxu0
  %v3456 = vadd.f32 0.0, %v3455
  %3457 = vdwg.mxu0
  %v3458 = vadd.f32 %v3371, %v3454
  %v3459 = vadd.f32 %v3372, %v3456
  %s3460 = scalar_lea.vmem %s3, 576
  %v3461 = vld [vmem:[%s3460] sm:$0xf]
  %v3462 = vld [vmem:[%s3460 + $0x4] sm:$0xf]
  %v3463 = vld [vmem:[%s3460 + $0x8] sm:$0xf]
  %v3464 = vld [vmem:[%s3460 + $0xc] sm:$0xf]
  %v3465 = vld [vmem:[%s3460 + $0x10] sm:$0xf]
  %v3466 = vld [vmem:[%s3460 + $0x14] sm:$0xf]
  %v3467 = vld [vmem:[%s3460 + $0x18] sm:$0xf]
  %v3468 = vld [vmem:[%s3460 + $0x1c] sm:$0xf]
  %v3469 = vld [vmem:[%s3460 + $0x20] sm:$0xf]
  %v3470 = vld [vmem:[%s3460 + $0x24] sm:$0xf]
  %v3471 = vld [vmem:[%s3460 + $0x28] sm:$0xf]
  %v3472 = vld [vmem:[%s3460 + $0x2c] sm:$0xf]
  %v3473 = vld [vmem:[%s3460 + $0x30] sm:$0xf]
  %v3474 = vld [vmem:[%s3460 + $0x34] sm:$0xf]
  %v3475 = vld [vmem:[%s3460 + $0x38] sm:$0xf]
  %v3476 = vld [vmem:[%s3460 + $0x3c] sm:$0xf]
  %v3479 = vunpack.c.l.b16 %v2650
  %v3480 = vunpack.c.l.b16 %v2651
  %v3481 = vpack.c.b16 %v3480, %v3479
  %v3499 = vunpack.c.l.b16 %v3461
  %v3500 = vunpack.c.l.b16 %v3462
  %v3501 = vunpack.c.l.b16 %v3463
  %v3502 = vunpack.c.l.b16 %v3464
  %v3503 = vunpack.c.l.b16 %v3465
  %v3504 = vunpack.c.l.b16 %v3466
  %v3505 = vunpack.c.l.b16 %v3467
  %v3506 = vunpack.c.l.b16 %v3468
  %v3507 = vunpack.c.l.b16 %v3469
  %v3508 = vunpack.c.l.b16 %v3470
  %v3509 = vunpack.c.l.b16 %v3471
  %v3510 = vunpack.c.l.b16 %v3472
  %v3511 = vunpack.c.l.b16 %v3473
  %v3512 = vunpack.c.l.b16 %v3474
  %v3513 = vunpack.c.l.b16 %v3475
  %v3514 = vunpack.c.l.b16 %v3476
  %v3515 = vpack.c.b16 %v3500, %v3499
  %v3516 = vpack.c.b16 %v3502, %v3501
  %v3517 = vpack.c.b16 %v3504, %v3503
  %v3518 = vpack.c.b16 %v3506, %v3505
  %v3519 = vpack.c.b16 %v3508, %v3507
  %v3520 = vpack.c.b16 %v3510, %v3509
  %v3521 = vpack.c.b16 %v3512, %v3511
  %v3522 = vpack.c.b16 %v3514, %v3513
  %3531 = vmatpush.bf16.msra.mxu0 %v3522
  %3532 = vmatpush.bf16.msra.mxu0 %v3521
  %3533 = vmatpush.bf16.msra.mxu0 %v3520
  %3534 = vmatpush.bf16.msra.mxu0 %v3519
  %3535 = vmatpush.bf16.msra.mxu0 %v3518
  %3536 = vmatpush.bf16.msra.mxu0 %v3517
  %3537 = vmatpush.bf16.msra.mxu0 %v3516
  %3538 = vmatpush.bf16.msra.mxu0 %v3515
  %3539 = vmatmul.bf16.gmra.mxu0 %v3481
  %v3540 = vpop.f32.mrf.mxu0
  %v3541 = vadd.f32 0.0, %v3540
  %v3542 = vpop.f32.mrf.mxu0
  %v3543 = vadd.f32 0.0, %v3542
  %3544 = vdwg.mxu0
  %v3545 = vadd.f32 %v3458, %v3541
  %v3546 = vadd.f32 %v3459, %v3543
  %s3547 = scalar_lea.vmem %s3, 640
  %v3548 = vld [vmem:[%s3547] sm:$0xf]
  %v3549 = vld [vmem:[%s3547 + $0x4] sm:$0xf]
  %v3550 = vld [vmem:[%s3547 + $0x8] sm:$0xf]
  %v3551 = vld [vmem:[%s3547 + $0xc] sm:$0xf]
  %v3552 = vld [vmem:[%s3547 + $0x10] sm:$0xf]
  %v3553 = vld [vmem:[%s3547 + $0x14] sm:$0xf]
  %v3554 = vld [vmem:[%s3547 + $0x18] sm:$0xf]
  %v3555 = vld [vmem:[%s3547 + $0x1c] sm:$0xf]
  %v3556 = vld [vmem:[%s3547 + $0x20] sm:$0xf]
  %v3557 = vld [vmem:[%s3547 + $0x24] sm:$0xf]
  %v3558 = vld [vmem:[%s3547 + $0x28] sm:$0xf]
  %v3559 = vld [vmem:[%s3547 + $0x2c] sm:$0xf]
  %v3560 = vld [vmem:[%s3547 + $0x30] sm:$0xf]
  %v3561 = vld [vmem:[%s3547 + $0x34] sm:$0xf]
  %v3562 = vld [vmem:[%s3547 + $0x38] sm:$0xf]
  %v3563 = vld [vmem:[%s3547 + $0x3c] sm:$0xf]
  %v3566 = vunpack.c.l.b16 %v2652
  %v3567 = vunpack.c.l.b16 %v2653
  %v3568 = vpack.c.b16 %v3567, %v3566
  %v3586 = vunpack.c.l.b16 %v3548
  %v3587 = vunpack.c.l.b16 %v3549
  %v3588 = vunpack.c.l.b16 %v3550
  %v3589 = vunpack.c.l.b16 %v3551
  %v3590 = vunpack.c.l.b16 %v3552
  %v3591 = vunpack.c.l.b16 %v3553
  %v3592 = vunpack.c.l.b16 %v3554
  %v3593 = vunpack.c.l.b16 %v3555
  %v3594 = vunpack.c.l.b16 %v3556
  %v3595 = vunpack.c.l.b16 %v3557
  %v3596 = vunpack.c.l.b16 %v3558
  %v3597 = vunpack.c.l.b16 %v3559
  %v3598 = vunpack.c.l.b16 %v3560
  %v3599 = vunpack.c.l.b16 %v3561
  %v3600 = vunpack.c.l.b16 %v3562
  %v3601 = vunpack.c.l.b16 %v3563
  %v3602 = vpack.c.b16 %v3587, %v3586
  %v3603 = vpack.c.b16 %v3589, %v3588
  %v3604 = vpack.c.b16 %v3591, %v3590
  %v3605 = vpack.c.b16 %v3593, %v3592
  %v3606 = vpack.c.b16 %v3595, %v3594
  %v3607 = vpack.c.b16 %v3597, %v3596
  %v3608 = vpack.c.b16 %v3599, %v3598
  %v3609 = vpack.c.b16 %v3601, %v3600
  %3618 = vmatpush.bf16.msra.mxu0 %v3609
  %3619 = vmatpush.bf16.msra.mxu0 %v3608
  %3620 = vmatpush.bf16.msra.mxu0 %v3607
  %3621 = vmatpush.bf16.msra.mxu0 %v3606
  %3622 = vmatpush.bf16.msra.mxu0 %v3605
  %3623 = vmatpush.bf16.msra.mxu0 %v3604
  %3624 = vmatpush.bf16.msra.mxu0 %v3603
  %3625 = vmatpush.bf16.msra.mxu0 %v3602
  %3626 = vmatmul.bf16.gmra.mxu0 %v3568
  %v3627 = vpop.f32.mrf.mxu0
  %v3628 = vadd.f32 0.0, %v3627
  %v3629 = vpop.f32.mrf.mxu0
  %v3630 = vadd.f32 0.0, %v3629
  %3631 = vdwg.mxu0
  %v3632 = vadd.f32 %v3545, %v3628
  %v3633 = vadd.f32 %v3546, %v3630
  %s3634 = scalar_lea.vmem %s3, 704
  %v3635 = vld [vmem:[%s3634] sm:$0xf]
  %v3636 = vld [vmem:[%s3634 + $0x4] sm:$0xf]
  %v3637 = vld [vmem:[%s3634 + $0x8] sm:$0xf]
  %v3638 = vld [vmem:[%s3634 + $0xc] sm:$0xf]
  %v3639 = vld [vmem:[%s3634 + $0x10] sm:$0xf]
  %v3640 = vld [vmem:[%s3634 + $0x14] sm:$0xf]
  %v3641 = vld [vmem:[%s3634 + $0x18] sm:$0xf]
  %v3642 = vld [vmem:[%s3634 + $0x1c] sm:$0xf]
  %v3643 = vld [vmem:[%s3634 + $0x20] sm:$0xf]
  %v3644 = vld [vmem:[%s3634 + $0x24] sm:$0xf]
  %v3645 = vld [vmem:[%s3634 + $0x28] sm:$0xf]
  %v3646 = vld [vmem:[%s3634 + $0x2c] sm:$0xf]
  %v3647 = vld [vmem:[%s3634 + $0x30] sm:$0xf]
  %v3648 = vld [vmem:[%s3634 + $0x34] sm:$0xf]
  %v3649 = vld [vmem:[%s3634 + $0x38] sm:$0xf]
  %v3650 = vld [vmem:[%s3634 + $0x3c] sm:$0xf]
  %v3653 = vunpack.c.l.b16 %v2654
  %v3654 = vunpack.c.l.b16 %v2655
  %v3655 = vpack.c.b16 %v3654, %v3653
  %v3673 = vunpack.c.l.b16 %v3635
  %v3674 = vunpack.c.l.b16 %v3636
  %v3675 = vunpack.c.l.b16 %v3637
  %v3676 = vunpack.c.l.b16 %v3638
  %v3677 = vunpack.c.l.b16 %v3639
  %v3678 = vunpack.c.l.b16 %v3640
  %v3679 = vunpack.c.l.b16 %v3641
  %v3680 = vunpack.c.l.b16 %v3642
  %v3681 = vunpack.c.l.b16 %v3643
  %v3682 = vunpack.c.l.b16 %v3644
  %v3683 = vunpack.c.l.b16 %v3645
  %v3684 = vunpack.c.l.b16 %v3646
  %v3685 = vunpack.c.l.b16 %v3647
  %v3686 = vunpack.c.l.b16 %v3648
  %v3687 = vunpack.c.l.b16 %v3649
  %v3688 = vunpack.c.l.b16 %v3650
  %v3689 = vpack.c.b16 %v3674, %v3673
  %v3690 = vpack.c.b16 %v3676, %v3675
  %v3691 = vpack.c.b16 %v3678, %v3677
  %v3692 = vpack.c.b16 %v3680, %v3679
  %v3693 = vpack.c.b16 %v3682, %v3681
  %v3694 = vpack.c.b16 %v3684, %v3683
  %v3695 = vpack.c.b16 %v3686, %v3685
  %v3696 = vpack.c.b16 %v3688, %v3687
  %3705 = vmatpush.bf16.msra.mxu0 %v3696
  %3706 = vmatpush.bf16.msra.mxu0 %v3695
  %3707 = vmatpush.bf16.msra.mxu0 %v3694
  %3708 = vmatpush.bf16.msra.mxu0 %v3693
  %3709 = vmatpush.bf16.msra.mxu0 %v3692
  %3710 = vmatpush.bf16.msra.mxu0 %v3691
  %3711 = vmatpush.bf16.msra.mxu0 %v3690
  %3712 = vmatpush.bf16.msra.mxu0 %v3689
  %3713 = vmatmul.bf16.gmra.mxu0 %v3655
  %v3714 = vpop.f32.mrf.mxu0
  %v3715 = vadd.f32 0.0, %v3714
  %v3716 = vpop.f32.mrf.mxu0
  %v3717 = vadd.f32 0.0, %v3716
  %3718 = vdwg.mxu0
  %v3719 = vadd.f32 %v3632, %v3715
  %v3720 = vadd.f32 %v3633, %v3717
  %s3721 = scalar_lea.vmem %s3, 768
  %v3722 = vld [vmem:[%s3721] sm:$0xf]
  %v3723 = vld [vmem:[%s3721 + $0x4] sm:$0xf]
  %v3724 = vld [vmem:[%s3721 + $0x8] sm:$0xf]
  %v3725 = vld [vmem:[%s3721 + $0xc] sm:$0xf]
  %v3726 = vld [vmem:[%s3721 + $0x10] sm:$0xf]
  %v3727 = vld [vmem:[%s3721 + $0x14] sm:$0xf]
  %v3728 = vld [vmem:[%s3721 + $0x18] sm:$0xf]
  %v3729 = vld [vmem:[%s3721 + $0x1c] sm:$0xf]
  %v3730 = vld [vmem:[%s3721 + $0x20] sm:$0xf]
  %v3731 = vld [vmem:[%s3721 + $0x24] sm:$0xf]
  %v3732 = vld [vmem:[%s3721 + $0x28] sm:$0xf]
  %v3733 = vld [vmem:[%s3721 + $0x2c] sm:$0xf]
  %v3734 = vld [vmem:[%s3721 + $0x30] sm:$0xf]
  %v3735 = vld [vmem:[%s3721 + $0x34] sm:$0xf]
  %v3736 = vld [vmem:[%s3721 + $0x38] sm:$0xf]
  %v3737 = vld [vmem:[%s3721 + $0x3c] sm:$0xf]
  %v3740 = vunpack.c.l.b16 %v2656
  %v3741 = vunpack.c.l.b16 %v2657
  %v3742 = vpack.c.b16 %v3741, %v3740
  %v3760 = vunpack.c.l.b16 %v3722
  %v3761 = vunpack.c.l.b16 %v3723
  %v3762 = vunpack.c.l.b16 %v3724
  %v3763 = vunpack.c.l.b16 %v3725
  %v3764 = vunpack.c.l.b16 %v3726
  %v3765 = vunpack.c.l.b16 %v3727
  %v3766 = vunpack.c.l.b16 %v3728
  %v3767 = vunpack.c.l.b16 %v3729
  %v3768 = vunpack.c.l.b16 %v3730
  %v3769 = vunpack.c.l.b16 %v3731
  %v3770 = vunpack.c.l.b16 %v3732
  %v3771 = vunpack.c.l.b16 %v3733
  %v3772 = vunpack.c.l.b16 %v3734
  %v3773 = vunpack.c.l.b16 %v3735
  %v3774 = vunpack.c.l.b16 %v3736
  %v3775 = vunpack.c.l.b16 %v3737
  %v3776 = vpack.c.b16 %v3761, %v3760
  %v3777 = vpack.c.b16 %v3763, %v3762
  %v3778 = vpack.c.b16 %v3765, %v3764
  %v3779 = vpack.c.b16 %v3767, %v3766
  %v3780 = vpack.c.b16 %v3769, %v3768
  %v3781 = vpack.c.b16 %v3771, %v3770
  %v3782 = vpack.c.b16 %v3773, %v3772
  %v3783 = vpack.c.b16 %v3775, %v3774
  %3792 = vmatpush.bf16.msra.mxu0 %v3783
  %3793 = vmatpush.bf16.msra.mxu0 %v3782
  %3794 = vmatpush.bf16.msra.mxu0 %v3781
  %3795 = vmatpush.bf16.msra.mxu0 %v3780
  %3796 = vmatpush.bf16.msra.mxu0 %v3779
  %3797 = vmatpush.bf16.msra.mxu0 %v3778
  %3798 = vmatpush.bf16.msra.mxu0 %v3777
  %3799 = vmatpush.bf16.msra.mxu0 %v3776
  %3800 = vmatmul.bf16.gmra.mxu0 %v3742
  %v3801 = vpop.f32.mrf.mxu0
  %v3802 = vadd.f32 0.0, %v3801
  %v3803 = vpop.f32.mrf.mxu0
  %v3804 = vadd.f32 0.0, %v3803
  %3805 = vdwg.mxu0
  %v3806 = vadd.f32 %v3719, %v3802
  %v3807 = vadd.f32 %v3720, %v3804
  %s3808 = scalar_lea.vmem %s3, 832
  %v3809 = vld [vmem:[%s3808] sm:$0xf]
  %v3810 = vld [vmem:[%s3808 + $0x4] sm:$0xf]
  %v3811 = vld [vmem:[%s3808 + $0x8] sm:$0xf]
  %v3812 = vld [vmem:[%s3808 + $0xc] sm:$0xf]
  %v3813 = vld [vmem:[%s3808 + $0x10] sm:$0xf]
  %v3814 = vld [vmem:[%s3808 + $0x14] sm:$0xf]
  %v3815 = vld [vmem:[%s3808 + $0x18] sm:$0xf]
  %v3816 = vld [vmem:[%s3808 + $0x1c] sm:$0xf]
  %v3817 = vld [vmem:[%s3808 + $0x20] sm:$0xf]
  %v3818 = vld [vmem:[%s3808 + $0x24] sm:$0xf]
  %v3819 = vld [vmem:[%s3808 + $0x28] sm:$0xf]
  %v3820 = vld [vmem:[%s3808 + $0x2c] sm:$0xf]
  %v3821 = vld [vmem:[%s3808 + $0x30] sm:$0xf]
  %v3822 = vld [vmem:[%s3808 + $0x34] sm:$0xf]
  %v3823 = vld [vmem:[%s3808 + $0x38] sm:$0xf]
  %v3824 = vld [vmem:[%s3808 + $0x3c] sm:$0xf]
  %v3827 = vunpack.c.l.b16 %v2658
  %v3828 = vunpack.c.l.b16 %v2659
  %v3829 = vpack.c.b16 %v3828, %v3827
  %v3847 = vunpack.c.l.b16 %v3809
  %v3848 = vunpack.c.l.b16 %v3810
  %v3849 = vunpack.c.l.b16 %v3811
  %v3850 = vunpack.c.l.b16 %v3812
  %v3851 = vunpack.c.l.b16 %v3813
  %v3852 = vunpack.c.l.b16 %v3814
  %v3853 = vunpack.c.l.b16 %v3815
  %v3854 = vunpack.c.l.b16 %v3816
  %v3855 = vunpack.c.l.b16 %v3817
  %v3856 = vunpack.c.l.b16 %v3818
  %v3857 = vunpack.c.l.b16 %v3819
  %v3858 = vunpack.c.l.b16 %v3820
  %v3859 = vunpack.c.l.b16 %v3821
  %v3860 = vunpack.c.l.b16 %v3822
  %v3861 = vunpack.c.l.b16 %v3823
  %v3862 = vunpack.c.l.b16 %v3824
  %v3863 = vpack.c.b16 %v3848, %v3847
  %v3864 = vpack.c.b16 %v3850, %v3849
  %v3865 = vpack.c.b16 %v3852, %v3851
  %v3866 = vpack.c.b16 %v3854, %v3853
  %v3867 = vpack.c.b16 %v3856, %v3855
  %v3868 = vpack.c.b16 %v3858, %v3857
  %v3869 = vpack.c.b16 %v3860, %v3859
  %v3870 = vpack.c.b16 %v3862, %v3861
  %3879 = vmatpush.bf16.msra.mxu0 %v3870
  %3880 = vmatpush.bf16.msra.mxu0 %v3869
  %3881 = vmatpush.bf16.msra.mxu0 %v3868
  %3882 = vmatpush.bf16.msra.mxu0 %v3867
  %3883 = vmatpush.bf16.msra.mxu0 %v3866
  %3884 = vmatpush.bf16.msra.mxu0 %v3865
  %3885 = vmatpush.bf16.msra.mxu0 %v3864
  %3886 = vmatpush.bf16.msra.mxu0 %v3863
  %3887 = vmatmul.bf16.gmra.mxu0 %v3829
  %v3888 = vpop.f32.mrf.mxu0
  %v3889 = vadd.f32 0.0, %v3888
  %v3890 = vpop.f32.mrf.mxu0
  %v3891 = vadd.f32 0.0, %v3890
  %3892 = vdwg.mxu0
  %v3893 = vadd.f32 %v3806, %v3889
  %v3894 = vadd.f32 %v3807, %v3891
  %s3895 = scalar_lea.vmem %s3, 896
  %v3896 = vld [vmem:[%s3895] sm:$0xf]
  %v3897 = vld [vmem:[%s3895 + $0x4] sm:$0xf]
  %v3898 = vld [vmem:[%s3895 + $0x8] sm:$0xf]
  %v3899 = vld [vmem:[%s3895 + $0xc] sm:$0xf]
  %v3900 = vld [vmem:[%s3895 + $0x10] sm:$0xf]
  %v3901 = vld [vmem:[%s3895 + $0x14] sm:$0xf]
  %v3902 = vld [vmem:[%s3895 + $0x18] sm:$0xf]
  %v3903 = vld [vmem:[%s3895 + $0x1c] sm:$0xf]
  %v3904 = vld [vmem:[%s3895 + $0x20] sm:$0xf]
  %v3905 = vld [vmem:[%s3895 + $0x24] sm:$0xf]
  %v3906 = vld [vmem:[%s3895 + $0x28] sm:$0xf]
  %v3907 = vld [vmem:[%s3895 + $0x2c] sm:$0xf]
  %v3908 = vld [vmem:[%s3895 + $0x30] sm:$0xf]
  %v3909 = vld [vmem:[%s3895 + $0x34] sm:$0xf]
  %v3910 = vld [vmem:[%s3895 + $0x38] sm:$0xf]
  %v3911 = vld [vmem:[%s3895 + $0x3c] sm:$0xf]
  %v3914 = vunpack.c.l.b16 %v2660
  %v3915 = vunpack.c.l.b16 %v2661
  %v3916 = vpack.c.b16 %v3915, %v3914
  %v3934 = vunpack.c.l.b16 %v3896
  %v3935 = vunpack.c.l.b16 %v3897
  %v3936 = vunpack.c.l.b16 %v3898
  %v3937 = vunpack.c.l.b16 %v3899
  %v3938 = vunpack.c.l.b16 %v3900
  %v3939 = vunpack.c.l.b16 %v3901
  %v3940 = vunpack.c.l.b16 %v3902
  %v3941 = vunpack.c.l.b16 %v3903
  %v3942 = vunpack.c.l.b16 %v3904
  %v3943 = vunpack.c.l.b16 %v3905
  %v3944 = vunpack.c.l.b16 %v3906
  %v3945 = vunpack.c.l.b16 %v3907
  %v3946 = vunpack.c.l.b16 %v3908
  %v3947 = vunpack.c.l.b16 %v3909
  %v3948 = vunpack.c.l.b16 %v3910
  %v3949 = vunpack.c.l.b16 %v3911
  %v3950 = vpack.c.b16 %v3935, %v3934
  %v3951 = vpack.c.b16 %v3937, %v3936
  %v3952 = vpack.c.b16 %v3939, %v3938
  %v3953 = vpack.c.b16 %v3941, %v3940
  %v3954 = vpack.c.b16 %v3943, %v3942
  %v3955 = vpack.c.b16 %v3945, %v3944
  %v3956 = vpack.c.b16 %v3947, %v3946
  %v3957 = vpack.c.b16 %v3949, %v3948
  %3966 = vmatpush.bf16.msra.mxu0 %v3957
  %3967 = vmatpush.bf16.msra.mxu0 %v3956
  %3968 = vmatpush.bf16.msra.mxu0 %v3955
  %3969 = vmatpush.bf16.msra.mxu0 %v3954
  %3970 = vmatpush.bf16.msra.mxu0 %v3953
  %3971 = vmatpush.bf16.msra.mxu0 %v3952
  %3972 = vmatpush.bf16.msra.mxu0 %v3951
  %3973 = vmatpush.bf16.msra.mxu0 %v3950
  %3974 = vmatmul.bf16.gmra.mxu0 %v3916
  %v3975 = vpop.f32.mrf.mxu0
  %v3976 = vadd.f32 0.0, %v3975
  %v3977 = vpop.f32.mrf.mxu0
  %v3978 = vadd.f32 0.0, %v3977
  %3979 = vdwg.mxu0
  %v3980 = vadd.f32 %v3893, %v3976
  %v3981 = vadd.f32 %v3894, %v3978
  %s3982 = scalar_lea.vmem %s3, 960
  %v3983 = vld [vmem:[%s3982] sm:$0xf]
  %v3984 = vld [vmem:[%s3982 + $0x4] sm:$0xf]
  %v3985 = vld [vmem:[%s3982 + $0x8] sm:$0xf]
  %v3986 = vld [vmem:[%s3982 + $0xc] sm:$0xf]
  %v3987 = vld [vmem:[%s3982 + $0x10] sm:$0xf]
  %v3988 = vld [vmem:[%s3982 + $0x14] sm:$0xf]
  %v3989 = vld [vmem:[%s3982 + $0x18] sm:$0xf]
  %v3990 = vld [vmem:[%s3982 + $0x1c] sm:$0xf]
  %v3991 = vld [vmem:[%s3982 + $0x20] sm:$0xf]
  %v3992 = vld [vmem:[%s3982 + $0x24] sm:$0xf]
  %v3993 = vld [vmem:[%s3982 + $0x28] sm:$0xf]
  %v3994 = vld [vmem:[%s3982 + $0x2c] sm:$0xf]
  %v3995 = vld [vmem:[%s3982 + $0x30] sm:$0xf]
  %v3996 = vld [vmem:[%s3982 + $0x34] sm:$0xf]
  %v3997 = vld [vmem:[%s3982 + $0x38] sm:$0xf]
  %v3998 = vld [vmem:[%s3982 + $0x3c] sm:$0xf]
  %v4001 = vunpack.c.l.b16 %v2662
  %v4002 = vunpack.c.l.b16 %v2663
  %v4003 = vpack.c.b16 %v4002, %v4001
  %v4021 = vunpack.c.l.b16 %v3983
  %v4022 = vunpack.c.l.b16 %v3984
  %v4023 = vunpack.c.l.b16 %v3985
  %v4024 = vunpack.c.l.b16 %v3986
  %v4025 = vunpack.c.l.b16 %v3987
  %v4026 = vunpack.c.l.b16 %v3988
  %v4027 = vunpack.c.l.b16 %v3989
  %v4028 = vunpack.c.l.b16 %v3990
  %v4029 = vunpack.c.l.b16 %v3991
  %v4030 = vunpack.c.l.b16 %v3992
  %v4031 = vunpack.c.l.b16 %v3993
  %v4032 = vunpack.c.l.b16 %v3994
  %v4033 = vunpack.c.l.b16 %v3995
  %v4034 = vunpack.c.l.b16 %v3996
  %v4035 = vunpack.c.l.b16 %v3997
  %v4036 = vunpack.c.l.b16 %v3998
  %v4037 = vpack.c.b16 %v4022, %v4021
  %v4038 = vpack.c.b16 %v4024, %v4023
  %v4039 = vpack.c.b16 %v4026, %v4025
  %v4040 = vpack.c.b16 %v4028, %v4027
  %v4041 = vpack.c.b16 %v4030, %v4029
  %v4042 = vpack.c.b16 %v4032, %v4031
  %v4043 = vpack.c.b16 %v4034, %v4033
  %v4044 = vpack.c.b16 %v4036, %v4035
  %4053 = vmatpush.bf16.msra.mxu0 %v4044
  %4054 = vmatpush.bf16.msra.mxu0 %v4043
  %4055 = vmatpush.bf16.msra.mxu0 %v4042
  %4056 = vmatpush.bf16.msra.mxu0 %v4041
  %4057 = vmatpush.bf16.msra.mxu0 %v4040
  %4058 = vmatpush.bf16.msra.mxu0 %v4039
  %4059 = vmatpush.bf16.msra.mxu0 %v4038
  %4060 = vmatpush.bf16.msra.mxu0 %v4037
  %4061 = vmatmul.bf16.gmra.mxu0 %v4003
  %v4062 = vpop.f32.mrf.mxu0
  %v4063 = vadd.f32 0.0, %v4062
  %v4064 = vpop.f32.mrf.mxu0
  %v4065 = vadd.f32 0.0, %v4064
  %4066 = vdwg.mxu0
  %v4067 = vadd.f32 %v3980, %v4063
  %v4068 = vadd.f32 %v3981, %v4065
  %s4069 = scalar_lea.vmem %s3, 1024
  %v4070 = vld [vmem:[%s4069] sm:$0xf]
  %v4071 = vld [vmem:[%s4069 + $0x4] sm:$0xf]
  %v4072 = vld [vmem:[%s4069 + $0x8] sm:$0xf]
  %v4073 = vld [vmem:[%s4069 + $0xc] sm:$0xf]
  %v4074 = vld [vmem:[%s4069 + $0x10] sm:$0xf]
  %v4075 = vld [vmem:[%s4069 + $0x14] sm:$0xf]
  %v4076 = vld [vmem:[%s4069 + $0x18] sm:$0xf]
  %v4077 = vld [vmem:[%s4069 + $0x1c] sm:$0xf]
  %v4078 = vld [vmem:[%s4069 + $0x20] sm:$0xf]
  %v4079 = vld [vmem:[%s4069 + $0x24] sm:$0xf]
  %v4080 = vld [vmem:[%s4069 + $0x28] sm:$0xf]
  %v4081 = vld [vmem:[%s4069 + $0x2c] sm:$0xf]
  %v4082 = vld [vmem:[%s4069 + $0x30] sm:$0xf]
  %v4083 = vld [vmem:[%s4069 + $0x34] sm:$0xf]
  %v4084 = vld [vmem:[%s4069 + $0x38] sm:$0xf]
  %v4085 = vld [vmem:[%s4069 + $0x3c] sm:$0xf]
  %v4088 = vunpack.c.l.b16 %v2664
  %v4089 = vunpack.c.l.b16 %v2665
  %v4090 = vpack.c.b16 %v4089, %v4088
  %v4108 = vunpack.c.l.b16 %v4070
  %v4109 = vunpack.c.l.b16 %v4071
  %v4110 = vunpack.c.l.b16 %v4072
  %v4111 = vunpack.c.l.b16 %v4073
  %v4112 = vunpack.c.l.b16 %v4074
  %v4113 = vunpack.c.l.b16 %v4075
  %v4114 = vunpack.c.l.b16 %v4076
  %v4115 = vunpack.c.l.b16 %v4077
  %v4116 = vunpack.c.l.b16 %v4078
  %v4117 = vunpack.c.l.b16 %v4079
  %v4118 = vunpack.c.l.b16 %v4080
  %v4119 = vunpack.c.l.b16 %v4081
  %v4120 = vunpack.c.l.b16 %v4082
  %v4121 = vunpack.c.l.b16 %v4083
  %v4122 = vunpack.c.l.b16 %v4084
  %v4123 = vunpack.c.l.b16 %v4085
  %v4124 = vpack.c.b16 %v4109, %v4108
  %v4125 = vpack.c.b16 %v4111, %v4110
  %v4126 = vpack.c.b16 %v4113, %v4112
  %v4127 = vpack.c.b16 %v4115, %v4114
  %v4128 = vpack.c.b16 %v4117, %v4116
  %v4129 = vpack.c.b16 %v4119, %v4118
  %v4130 = vpack.c.b16 %v4121, %v4120
  %v4131 = vpack.c.b16 %v4123, %v4122
  %4140 = vmatpush.bf16.msra.mxu0 %v4131
  %4141 = vmatpush.bf16.msra.mxu0 %v4130
  %4142 = vmatpush.bf16.msra.mxu0 %v4129
  %4143 = vmatpush.bf16.msra.mxu0 %v4128
  %4144 = vmatpush.bf16.msra.mxu0 %v4127
  %4145 = vmatpush.bf16.msra.mxu0 %v4126
  %4146 = vmatpush.bf16.msra.mxu0 %v4125
  %4147 = vmatpush.bf16.msra.mxu0 %v4124
  %4148 = vmatmul.bf16.gmra.mxu0 %v4090
  %v4149 = vpop.f32.mrf.mxu0
  %v4150 = vadd.f32 0.0, %v4149
  %v4151 = vpop.f32.mrf.mxu0
  %v4152 = vadd.f32 0.0, %v4151
  %4153 = vdwg.mxu0
  %v4154 = vadd.f32 %v4067, %v4150
  %v4155 = vadd.f32 %v4068, %v4152
  %s4156 = scalar_lea.vmem %s3, 1088
  %v4157 = vld [vmem:[%s4156] sm:$0xf]
  %v4158 = vld [vmem:[%s4156 + $0x4] sm:$0xf]
  %v4159 = vld [vmem:[%s4156 + $0x8] sm:$0xf]
  %v4160 = vld [vmem:[%s4156 + $0xc] sm:$0xf]
  %v4161 = vld [vmem:[%s4156 + $0x10] sm:$0xf]
  %v4162 = vld [vmem:[%s4156 + $0x14] sm:$0xf]
  %v4163 = vld [vmem:[%s4156 + $0x18] sm:$0xf]
  %v4164 = vld [vmem:[%s4156 + $0x1c] sm:$0xf]
  %v4165 = vld [vmem:[%s4156 + $0x20] sm:$0xf]
  %v4166 = vld [vmem:[%s4156 + $0x24] sm:$0xf]
  %v4167 = vld [vmem:[%s4156 + $0x28] sm:$0xf]
  %v4168 = vld [vmem:[%s4156 + $0x2c] sm:$0xf]
  %v4169 = vld [vmem:[%s4156 + $0x30] sm:$0xf]
  %v4170 = vld [vmem:[%s4156 + $0x34] sm:$0xf]
  %v4171 = vld [vmem:[%s4156 + $0x38] sm:$0xf]
  %v4172 = vld [vmem:[%s4156 + $0x3c] sm:$0xf]
  %v4175 = vunpack.c.l.b16 %v2666
  %v4176 = vunpack.c.l.b16 %v2667
  %v4177 = vpack.c.b16 %v4176, %v4175
  %v4195 = vunpack.c.l.b16 %v4157
  %v4196 = vunpack.c.l.b16 %v4158
  %v4197 = vunpack.c.l.b16 %v4159
  %v4198 = vunpack.c.l.b16 %v4160
  %v4199 = vunpack.c.l.b16 %v4161
  %v4200 = vunpack.c.l.b16 %v4162
  %v4201 = vunpack.c.l.b16 %v4163
  %v4202 = vunpack.c.l.b16 %v4164
  %v4203 = vunpack.c.l.b16 %v4165
  %v4204 = vunpack.c.l.b16 %v4166
  %v4205 = vunpack.c.l.b16 %v4167
  %v4206 = vunpack.c.l.b16 %v4168
  %v4207 = vunpack.c.l.b16 %v4169
  %v4208 = vunpack.c.l.b16 %v4170
  %v4209 = vunpack.c.l.b16 %v4171
  %v4210 = vunpack.c.l.b16 %v4172
  %v4211 = vpack.c.b16 %v4196, %v4195
  %v4212 = vpack.c.b16 %v4198, %v4197
  %v4213 = vpack.c.b16 %v4200, %v4199
  %v4214 = vpack.c.b16 %v4202, %v4201
  %v4215 = vpack.c.b16 %v4204, %v4203
  %v4216 = vpack.c.b16 %v4206, %v4205
  %v4217 = vpack.c.b16 %v4208, %v4207
  %v4218 = vpack.c.b16 %v4210, %v4209
  %4227 = vmatpush.bf16.msra.mxu0 %v4218
  %4228 = vmatpush.bf16.msra.mxu0 %v4217
  %4229 = vmatpush.bf16.msra.mxu0 %v4216
  %4230 = vmatpush.bf16.msra.mxu0 %v4215
  %4231 = vmatpush.bf16.msra.mxu0 %v4214
  %4232 = vmatpush.bf16.msra.mxu0 %v4213
  %4233 = vmatpush.bf16.msra.mxu0 %v4212
  %4234 = vmatpush.bf16.msra.mxu0 %v4211
  %4235 = vmatmul.bf16.gmra.mxu0 %v4177
  %v4236 = vpop.f32.mrf.mxu0
  %v4237 = vadd.f32 0.0, %v4236
  %v4238 = vpop.f32.mrf.mxu0
  %v4239 = vadd.f32 0.0, %v4238
  %4240 = vdwg.mxu0
  %v4241 = vadd.f32 %v4154, %v4237
  %v4242 = vadd.f32 %v4155, %v4239
  %s4243 = scalar_lea.vmem %s3, 1152
  %v4244 = vld [vmem:[%s4243] sm:$0xf]
  %v4245 = vld [vmem:[%s4243 + $0x4] sm:$0xf]
  %v4246 = vld [vmem:[%s4243 + $0x8] sm:$0xf]
  %v4247 = vld [vmem:[%s4243 + $0xc] sm:$0xf]
  %v4248 = vld [vmem:[%s4243 + $0x10] sm:$0xf]
  %v4249 = vld [vmem:[%s4243 + $0x14] sm:$0xf]
  %v4250 = vld [vmem:[%s4243 + $0x18] sm:$0xf]
  %v4251 = vld [vmem:[%s4243 + $0x1c] sm:$0xf]
  %v4252 = vld [vmem:[%s4243 + $0x20] sm:$0xf]
  %v4253 = vld [vmem:[%s4243 + $0x24] sm:$0xf]
  %v4254 = vld [vmem:[%s4243 + $0x28] sm:$0xf]
  %v4255 = vld [vmem:[%s4243 + $0x2c] sm:$0xf]
  %v4256 = vld [vmem:[%s4243 + $0x30] sm:$0xf]
  %v4257 = vld [vmem:[%s4243 + $0x34] sm:$0xf]
  %v4258 = vld [vmem:[%s4243 + $0x38] sm:$0xf]
  %v4259 = vld [vmem:[%s4243 + $0x3c] sm:$0xf]
  %v4262 = vunpack.c.l.b16 %v2668
  %v4263 = vunpack.c.l.b16 %v2669
  %v4264 = vpack.c.b16 %v4263, %v4262
  %v4282 = vunpack.c.l.b16 %v4244
  %v4283 = vunpack.c.l.b16 %v4245
  %v4284 = vunpack.c.l.b16 %v4246
  %v4285 = vunpack.c.l.b16 %v4247
  %v4286 = vunpack.c.l.b16 %v4248
  %v4287 = vunpack.c.l.b16 %v4249
  %v4288 = vunpack.c.l.b16 %v4250
  %v4289 = vunpack.c.l.b16 %v4251
  %v4290 = vunpack.c.l.b16 %v4252
  %v4291 = vunpack.c.l.b16 %v4253
  %v4292 = vunpack.c.l.b16 %v4254
  %v4293 = vunpack.c.l.b16 %v4255
  %v4294 = vunpack.c.l.b16 %v4256
  %v4295 = vunpack.c.l.b16 %v4257
  %v4296 = vunpack.c.l.b16 %v4258
  %v4297 = vunpack.c.l.b16 %v4259
  %v4298 = vpack.c.b16 %v4283, %v4282
  %v4299 = vpack.c.b16 %v4285, %v4284
  %v4300 = vpack.c.b16 %v4287, %v4286
  %v4301 = vpack.c.b16 %v4289, %v4288
  %v4302 = vpack.c.b16 %v4291, %v4290
  %v4303 = vpack.c.b16 %v4293, %v4292
  %v4304 = vpack.c.b16 %v4295, %v4294
  %v4305 = vpack.c.b16 %v4297, %v4296
  %4314 = vmatpush.bf16.msra.mxu0 %v4305
  %4315 = vmatpush.bf16.msra.mxu0 %v4304
  %4316 = vmatpush.bf16.msra.mxu0 %v4303
  %4317 = vmatpush.bf16.msra.mxu0 %v4302
  %4318 = vmatpush.bf16.msra.mxu0 %v4301
  %4319 = vmatpush.bf16.msra.mxu0 %v4300
  %4320 = vmatpush.bf16.msra.mxu0 %v4299
  %4321 = vmatpush.bf16.msra.mxu0 %v4298
  %4322 = vmatmul.bf16.gmra.mxu0 %v4264
  %v4323 = vpop.f32.mrf.mxu0
  %v4324 = vadd.f32 0.0, %v4323
  %v4325 = vpop.f32.mrf.mxu0
  %v4326 = vadd.f32 0.0, %v4325
  %4327 = vdwg.mxu0
  %v4328 = vadd.f32 %v4241, %v4324
  %v4329 = vadd.f32 %v4242, %v4326
  %s4330 = scalar_lea.vmem %s3, 1216
  %v4331 = vld [vmem:[%s4330] sm:$0xf]
  %v4332 = vld [vmem:[%s4330 + $0x4] sm:$0xf]
  %v4333 = vld [vmem:[%s4330 + $0x8] sm:$0xf]
  %v4334 = vld [vmem:[%s4330 + $0xc] sm:$0xf]
  %v4335 = vld [vmem:[%s4330 + $0x10] sm:$0xf]
  %v4336 = vld [vmem:[%s4330 + $0x14] sm:$0xf]
  %v4337 = vld [vmem:[%s4330 + $0x18] sm:$0xf]
  %v4338 = vld [vmem:[%s4330 + $0x1c] sm:$0xf]
  %v4339 = vld [vmem:[%s4330 + $0x20] sm:$0xf]
  %v4340 = vld [vmem:[%s4330 + $0x24] sm:$0xf]
  %v4341 = vld [vmem:[%s4330 + $0x28] sm:$0xf]
  %v4342 = vld [vmem:[%s4330 + $0x2c] sm:$0xf]
  %v4343 = vld [vmem:[%s4330 + $0x30] sm:$0xf]
  %v4344 = vld [vmem:[%s4330 + $0x34] sm:$0xf]
  %v4345 = vld [vmem:[%s4330 + $0x38] sm:$0xf]
  %v4346 = vld [vmem:[%s4330 + $0x3c] sm:$0xf]
  %v4349 = vunpack.c.l.b16 %v2670
  %v4350 = vunpack.c.l.b16 %v2671
  %v4351 = vpack.c.b16 %v4350, %v4349
  %v4369 = vunpack.c.l.b16 %v4331
  %v4370 = vunpack.c.l.b16 %v4332
  %v4371 = vunpack.c.l.b16 %v4333
  %v4372 = vunpack.c.l.b16 %v4334
  %v4373 = vunpack.c.l.b16 %v4335
  %v4374 = vunpack.c.l.b16 %v4336
  %v4375 = vunpack.c.l.b16 %v4337
  %v4376 = vunpack.c.l.b16 %v4338
  %v4377 = vunpack.c.l.b16 %v4339
  %v4378 = vunpack.c.l.b16 %v4340
  %v4379 = vunpack.c.l.b16 %v4341
  %v4380 = vunpack.c.l.b16 %v4342
  %v4381 = vunpack.c.l.b16 %v4343
  %v4382 = vunpack.c.l.b16 %v4344
  %v4383 = vunpack.c.l.b16 %v4345
  %v4384 = vunpack.c.l.b16 %v4346
  %v4385 = vpack.c.b16 %v4370, %v4369
  %v4386 = vpack.c.b16 %v4372, %v4371
  %v4387 = vpack.c.b16 %v4374, %v4373
  %v4388 = vpack.c.b16 %v4376, %v4375
  %v4389 = vpack.c.b16 %v4378, %v4377
  %v4390 = vpack.c.b16 %v4380, %v4379
  %v4391 = vpack.c.b16 %v4382, %v4381
  %v4392 = vpack.c.b16 %v4384, %v4383
  %4401 = vmatpush.bf16.msra.mxu0 %v4392
  %4402 = vmatpush.bf16.msra.mxu0 %v4391
  %4403 = vmatpush.bf16.msra.mxu0 %v4390
  %4404 = vmatpush.bf16.msra.mxu0 %v4389
  %4405 = vmatpush.bf16.msra.mxu0 %v4388
  %4406 = vmatpush.bf16.msra.mxu0 %v4387
  %4407 = vmatpush.bf16.msra.mxu0 %v4386
  %4408 = vmatpush.bf16.msra.mxu0 %v4385
  %4409 = vmatmul.bf16.gmra.mxu0 %v4351
  %v4410 = vpop.f32.mrf.mxu0
  %v4411 = vadd.f32 0.0, %v4410
  %v4412 = vpop.f32.mrf.mxu0
  %v4413 = vadd.f32 0.0, %v4412
  %4414 = vdwg.mxu0
  %v4415 = vadd.f32 %v4328, %v4411
  %v4416 = vadd.f32 %v4329, %v4413
  %s4417 = scalar_lea.vmem %s3, 1280
  %v4418 = vld [vmem:[%s4417] sm:$0xf]
  %v4419 = vld [vmem:[%s4417 + $0x4] sm:$0xf]
  %v4420 = vld [vmem:[%s4417 + $0x8] sm:$0xf]
  %v4421 = vld [vmem:[%s4417 + $0xc] sm:$0xf]
  %v4422 = vld [vmem:[%s4417 + $0x10] sm:$0xf]
  %v4423 = vld [vmem:[%s4417 + $0x14] sm:$0xf]
  %v4424 = vld [vmem:[%s4417 + $0x18] sm:$0xf]
  %v4425 = vld [vmem:[%s4417 + $0x1c] sm:$0xf]
  %v4426 = vld [vmem:[%s4417 + $0x20] sm:$0xf]
  %v4427 = vld [vmem:[%s4417 + $0x24] sm:$0xf]
  %v4428 = vld [vmem:[%s4417 + $0x28] sm:$0xf]
  %v4429 = vld [vmem:[%s4417 + $0x2c] sm:$0xf]
  %v4430 = vld [vmem:[%s4417 + $0x30] sm:$0xf]
  %v4431 = vld [vmem:[%s4417 + $0x34] sm:$0xf]
  %v4432 = vld [vmem:[%s4417 + $0x38] sm:$0xf]
  %v4433 = vld [vmem:[%s4417 + $0x3c] sm:$0xf]
  %v4436 = vunpack.c.l.b16 %v2672
  %v4437 = vunpack.c.l.b16 %v2673
  %v4438 = vpack.c.b16 %v4437, %v4436
  %v4456 = vunpack.c.l.b16 %v4418
  %v4457 = vunpack.c.l.b16 %v4419
  %v4458 = vunpack.c.l.b16 %v4420
  %v4459 = vunpack.c.l.b16 %v4421
  %v4460 = vunpack.c.l.b16 %v4422
  %v4461 = vunpack.c.l.b16 %v4423
  %v4462 = vunpack.c.l.b16 %v4424
  %v4463 = vunpack.c.l.b16 %v4425
  %v4464 = vunpack.c.l.b16 %v4426
  %v4465 = vunpack.c.l.b16 %v4427
  %v4466 = vunpack.c.l.b16 %v4428
  %v4467 = vunpack.c.l.b16 %v4429
  %v4468 = vunpack.c.l.b16 %v4430
  %v4469 = vunpack.c.l.b16 %v4431
  %v4470 = vunpack.c.l.b16 %v4432
  %v4471 = vunpack.c.l.b16 %v4433
  %v4472 = vpack.c.b16 %v4457, %v4456
  %v4473 = vpack.c.b16 %v4459, %v4458
  %v4474 = vpack.c.b16 %v4461, %v4460
  %v4475 = vpack.c.b16 %v4463, %v4462
  %v4476 = vpack.c.b16 %v4465, %v4464
  %v4477 = vpack.c.b16 %v4467, %v4466
  %v4478 = vpack.c.b16 %v4469, %v4468
  %v4479 = vpack.c.b16 %v4471, %v4470
  %4488 = vmatpush.bf16.msra.mxu0 %v4479
  %4489 = vmatpush.bf16.msra.mxu0 %v4478
  %4490 = vmatpush.bf16.msra.mxu0 %v4477
  %4491 = vmatpush.bf16.msra.mxu0 %v4476
  %4492 = vmatpush.bf16.msra.mxu0 %v4475
  %4493 = vmatpush.bf16.msra.mxu0 %v4474
  %4494 = vmatpush.bf16.msra.mxu0 %v4473
  %4495 = vmatpush.bf16.msra.mxu0 %v4472
  %4496 = vmatmul.bf16.gmra.mxu0 %v4438
  %v4497 = vpop.f32.mrf.mxu0
  %v4498 = vadd.f32 0.0, %v4497
  %v4499 = vpop.f32.mrf.mxu0
  %v4500 = vadd.f32 0.0, %v4499
  %4501 = vdwg.mxu0
  %v4502 = vadd.f32 %v4415, %v4498
  %v4503 = vadd.f32 %v4416, %v4500
  %s4504 = scalar_lea.vmem %s3, 1344
  %v4505 = vld [vmem:[%s4504] sm:$0xf]
  %v4506 = vld [vmem:[%s4504 + $0x4] sm:$0xf]
  %v4507 = vld [vmem:[%s4504 + $0x8] sm:$0xf]
  %v4508 = vld [vmem:[%s4504 + $0xc] sm:$0xf]
  %v4509 = vld [vmem:[%s4504 + $0x10] sm:$0xf]
  %v4510 = vld [vmem:[%s4504 + $0x14] sm:$0xf]
  %v4511 = vld [vmem:[%s4504 + $0x18] sm:$0xf]
  %v4512 = vld [vmem:[%s4504 + $0x1c] sm:$0xf]
  %v4513 = vld [vmem:[%s4504 + $0x20] sm:$0xf]
  %v4514 = vld [vmem:[%s4504 + $0x24] sm:$0xf]
  %v4515 = vld [vmem:[%s4504 + $0x28] sm:$0xf]
  %v4516 = vld [vmem:[%s4504 + $0x2c] sm:$0xf]
  %v4517 = vld [vmem:[%s4504 + $0x30] sm:$0xf]
  %v4518 = vld [vmem:[%s4504 + $0x34] sm:$0xf]
  %v4519 = vld [vmem:[%s4504 + $0x38] sm:$0xf]
  %v4520 = vld [vmem:[%s4504 + $0x3c] sm:$0xf]
  %v4523 = vunpack.c.l.b16 %v2674
  %v4524 = vunpack.c.l.b16 %v2675
  %v4525 = vpack.c.b16 %v4524, %v4523
  %v4543 = vunpack.c.l.b16 %v4505
  %v4544 = vunpack.c.l.b16 %v4506
  %v4545 = vunpack.c.l.b16 %v4507
  %v4546 = vunpack.c.l.b16 %v4508
  %v4547 = vunpack.c.l.b16 %v4509
  %v4548 = vunpack.c.l.b16 %v4510
  %v4549 = vunpack.c.l.b16 %v4511
  %v4550 = vunpack.c.l.b16 %v4512
  %v4551 = vunpack.c.l.b16 %v4513
  %v4552 = vunpack.c.l.b16 %v4514
  %v4553 = vunpack.c.l.b16 %v4515
  %v4554 = vunpack.c.l.b16 %v4516
  %v4555 = vunpack.c.l.b16 %v4517
  %v4556 = vunpack.c.l.b16 %v4518
  %v4557 = vunpack.c.l.b16 %v4519
  %v4558 = vunpack.c.l.b16 %v4520
  %v4559 = vpack.c.b16 %v4544, %v4543
  %v4560 = vpack.c.b16 %v4546, %v4545
  %v4561 = vpack.c.b16 %v4548, %v4547
  %v4562 = vpack.c.b16 %v4550, %v4549
  %v4563 = vpack.c.b16 %v4552, %v4551
  %v4564 = vpack.c.b16 %v4554, %v4553
  %v4565 = vpack.c.b16 %v4556, %v4555
  %v4566 = vpack.c.b16 %v4558, %v4557
  %4575 = vmatpush.bf16.msra.mxu0 %v4566
  %4576 = vmatpush.bf16.msra.mxu0 %v4565
  %4577 = vmatpush.bf16.msra.mxu0 %v4564
  %4578 = vmatpush.bf16.msra.mxu0 %v4563
  %4579 = vmatpush.bf16.msra.mxu0 %v4562
  %4580 = vmatpush.bf16.msra.mxu0 %v4561
  %4581 = vmatpush.bf16.msra.mxu0 %v4560
  %4582 = vmatpush.bf16.msra.mxu0 %v4559
  %4583 = vmatmul.bf16.gmra.mxu0 %v4525
  %v4584 = vpop.f32.mrf.mxu0
  %v4585 = vadd.f32 0.0, %v4584
  %v4586 = vpop.f32.mrf.mxu0
  %v4587 = vadd.f32 0.0, %v4586
  %4588 = vdwg.mxu0
  %v4589 = vadd.f32 %v4502, %v4585
  %v4590 = vadd.f32 %v4503, %v4587
  %s4591 = scalar_lea.vmem %s3, 1408
  %v4592 = vld [vmem:[%s4591] sm:$0xf]
  %v4593 = vld [vmem:[%s4591 + $0x4] sm:$0xf]
  %v4594 = vld [vmem:[%s4591 + $0x8] sm:$0xf]
  %v4595 = vld [vmem:[%s4591 + $0xc] sm:$0xf]
  %v4596 = vld [vmem:[%s4591 + $0x10] sm:$0xf]
  %v4597 = vld [vmem:[%s4591 + $0x14] sm:$0xf]
  %v4598 = vld [vmem:[%s4591 + $0x18] sm:$0xf]
  %v4599 = vld [vmem:[%s4591 + $0x1c] sm:$0xf]
  %v4600 = vld [vmem:[%s4591 + $0x20] sm:$0xf]
  %v4601 = vld [vmem:[%s4591 + $0x24] sm:$0xf]
  %v4602 = vld [vmem:[%s4591 + $0x28] sm:$0xf]
  %v4603 = vld [vmem:[%s4591 + $0x2c] sm:$0xf]
  %v4604 = vld [vmem:[%s4591 + $0x30] sm:$0xf]
  %v4605 = vld [vmem:[%s4591 + $0x34] sm:$0xf]
  %v4606 = vld [vmem:[%s4591 + $0x38] sm:$0xf]
  %v4607 = vld [vmem:[%s4591 + $0x3c] sm:$0xf]
  %v4610 = vunpack.c.l.b16 %v2676
  %v4611 = vunpack.c.l.b16 %v2677
  %v4612 = vpack.c.b16 %v4611, %v4610
  %v4630 = vunpack.c.l.b16 %v4592
  %v4631 = vunpack.c.l.b16 %v4593
  %v4632 = vunpack.c.l.b16 %v4594
  %v4633 = vunpack.c.l.b16 %v4595
  %v4634 = vunpack.c.l.b16 %v4596
  %v4635 = vunpack.c.l.b16 %v4597
  %v4636 = vunpack.c.l.b16 %v4598
  %v4637 = vunpack.c.l.b16 %v4599
  %v4638 = vunpack.c.l.b16 %v4600
  %v4639 = vunpack.c.l.b16 %v4601
  %v4640 = vunpack.c.l.b16 %v4602
  %v4641 = vunpack.c.l.b16 %v4603
  %v4642 = vunpack.c.l.b16 %v4604
  %v4643 = vunpack.c.l.b16 %v4605
  %v4644 = vunpack.c.l.b16 %v4606
  %v4645 = vunpack.c.l.b16 %v4607
  %v4646 = vpack.c.b16 %v4631, %v4630
  %v4647 = vpack.c.b16 %v4633, %v4632
  %v4648 = vpack.c.b16 %v4635, %v4634
  %v4649 = vpack.c.b16 %v4637, %v4636
  %v4650 = vpack.c.b16 %v4639, %v4638
  %v4651 = vpack.c.b16 %v4641, %v4640
  %v4652 = vpack.c.b16 %v4643, %v4642
  %v4653 = vpack.c.b16 %v4645, %v4644
  %4662 = vmatpush.bf16.msra.mxu0 %v4653
  %4663 = vmatpush.bf16.msra.mxu0 %v4652
  %4664 = vmatpush.bf16.msra.mxu0 %v4651
  %4665 = vmatpush.bf16.msra.mxu0 %v4650
  %4666 = vmatpush.bf16.msra.mxu0 %v4649
  %4667 = vmatpush.bf16.msra.mxu0 %v4648
  %4668 = vmatpush.bf16.msra.mxu0 %v4647
  %4669 = vmatpush.bf16.msra.mxu0 %v4646
  %4670 = vmatmul.bf16.gmra.mxu0 %v4612
  %v4671 = vpop.f32.mrf.mxu0
  %v4672 = vadd.f32 0.0, %v4671
  %v4673 = vpop.f32.mrf.mxu0
  %v4674 = vadd.f32 0.0, %v4673
  %4675 = vdwg.mxu0
  %v4676 = vadd.f32 %v4589, %v4672
  %v4677 = vadd.f32 %v4590, %v4674
  %s4678 = scalar_lea.vmem %s3, 1472
  %v4679 = vld [vmem:[%s4678] sm:$0xf]
  %v4680 = vld [vmem:[%s4678 + $0x4] sm:$0xf]
  %v4681 = vld [vmem:[%s4678 + $0x8] sm:$0xf]
  %v4682 = vld [vmem:[%s4678 + $0xc] sm:$0xf]
  %v4683 = vld [vmem:[%s4678 + $0x10] sm:$0xf]
  %v4684 = vld [vmem:[%s4678 + $0x14] sm:$0xf]
  %v4685 = vld [vmem:[%s4678 + $0x18] sm:$0xf]
  %v4686 = vld [vmem:[%s4678 + $0x1c] sm:$0xf]
  %v4687 = vld [vmem:[%s4678 + $0x20] sm:$0xf]
  %v4688 = vld [vmem:[%s4678 + $0x24] sm:$0xf]
  %v4689 = vld [vmem:[%s4678 + $0x28] sm:$0xf]
  %v4690 = vld [vmem:[%s4678 + $0x2c] sm:$0xf]
  %v4691 = vld [vmem:[%s4678 + $0x30] sm:$0xf]
  %v4692 = vld [vmem:[%s4678 + $0x34] sm:$0xf]
  %v4693 = vld [vmem:[%s4678 + $0x38] sm:$0xf]
  %v4694 = vld [vmem:[%s4678 + $0x3c] sm:$0xf]
  %v4697 = vunpack.c.l.b16 %v2678
  %v4698 = vunpack.c.l.b16 %v2679
  %v4699 = vpack.c.b16 %v4698, %v4697
  %v4717 = vunpack.c.l.b16 %v4679
  %v4718 = vunpack.c.l.b16 %v4680
  %v4719 = vunpack.c.l.b16 %v4681
  %v4720 = vunpack.c.l.b16 %v4682
  %v4721 = vunpack.c.l.b16 %v4683
  %v4722 = vunpack.c.l.b16 %v4684
  %v4723 = vunpack.c.l.b16 %v4685
  %v4724 = vunpack.c.l.b16 %v4686
  %v4725 = vunpack.c.l.b16 %v4687
  %v4726 = vunpack.c.l.b16 %v4688
  %v4727 = vunpack.c.l.b16 %v4689
  %v4728 = vunpack.c.l.b16 %v4690
  %v4729 = vunpack.c.l.b16 %v4691
  %v4730 = vunpack.c.l.b16 %v4692
  %v4731 = vunpack.c.l.b16 %v4693
  %v4732 = vunpack.c.l.b16 %v4694
  %v4733 = vpack.c.b16 %v4718, %v4717
  %v4734 = vpack.c.b16 %v4720, %v4719
  %v4735 = vpack.c.b16 %v4722, %v4721
  %v4736 = vpack.c.b16 %v4724, %v4723
  %v4737 = vpack.c.b16 %v4726, %v4725
  %v4738 = vpack.c.b16 %v4728, %v4727
  %v4739 = vpack.c.b16 %v4730, %v4729
  %v4740 = vpack.c.b16 %v4732, %v4731
  %4749 = vmatpush.bf16.msra.mxu0 %v4740
  %4750 = vmatpush.bf16.msra.mxu0 %v4739
  %4751 = vmatpush.bf16.msra.mxu0 %v4738
  %4752 = vmatpush.bf16.msra.mxu0 %v4737
  %4753 = vmatpush.bf16.msra.mxu0 %v4736
  %4754 = vmatpush.bf16.msra.mxu0 %v4735
  %4755 = vmatpush.bf16.msra.mxu0 %v4734
  %4756 = vmatpush.bf16.msra.mxu0 %v4733
  %4757 = vmatmul.bf16.gmra.mxu0 %v4699
  %v4758 = vpop.f32.mrf.mxu0
  %v4759 = vadd.f32 0.0, %v4758
  %v4760 = vpop.f32.mrf.mxu0
  %v4761 = vadd.f32 0.0, %v4760
  %4762 = vdwg.mxu0
  %v4763 = vadd.f32 %v4676, %v4759
  %v4764 = vadd.f32 %v4677, %v4761
  %s4765 = scalar_lea.vmem %s3, 1536
  %v4766 = vld [vmem:[%s4765] sm:$0xf]
  %v4767 = vld [vmem:[%s4765 + $0x4] sm:$0xf]
  %v4768 = vld [vmem:[%s4765 + $0x8] sm:$0xf]
  %v4769 = vld [vmem:[%s4765 + $0xc] sm:$0xf]
  %v4770 = vld [vmem:[%s4765 + $0x10] sm:$0xf]
  %v4771 = vld [vmem:[%s4765 + $0x14] sm:$0xf]
  %v4772 = vld [vmem:[%s4765 + $0x18] sm:$0xf]
  %v4773 = vld [vmem:[%s4765 + $0x1c] sm:$0xf]
  %v4774 = vld [vmem:[%s4765 + $0x20] sm:$0xf]
  %v4775 = vld [vmem:[%s4765 + $0x24] sm:$0xf]
  %v4776 = vld [vmem:[%s4765 + $0x28] sm:$0xf]
  %v4777 = vld [vmem:[%s4765 + $0x2c] sm:$0xf]
  %v4778 = vld [vmem:[%s4765 + $0x30] sm:$0xf]
  %v4779 = vld [vmem:[%s4765 + $0x34] sm:$0xf]
  %v4780 = vld [vmem:[%s4765 + $0x38] sm:$0xf]
  %v4781 = vld [vmem:[%s4765 + $0x3c] sm:$0xf]
  %v4784 = vunpack.c.l.b16 %v2680
  %v4785 = vunpack.c.l.b16 %v2681
  %v4786 = vpack.c.b16 %v4785, %v4784
  %v4804 = vunpack.c.l.b16 %v4766
  %v4805 = vunpack.c.l.b16 %v4767
  %v4806 = vunpack.c.l.b16 %v4768
  %v4807 = vunpack.c.l.b16 %v4769
  %v4808 = vunpack.c.l.b16 %v4770
  %v4809 = vunpack.c.l.b16 %v4771
  %v4810 = vunpack.c.l.b16 %v4772
  %v4811 = vunpack.c.l.b16 %v4773
  %v4812 = vunpack.c.l.b16 %v4774
  %v4813 = vunpack.c.l.b16 %v4775
  %v4814 = vunpack.c.l.b16 %v4776
  %v4815 = vunpack.c.l.b16 %v4777
  %v4816 = vunpack.c.l.b16 %v4778
  %v4817 = vunpack.c.l.b16 %v4779
  %v4818 = vunpack.c.l.b16 %v4780
  %v4819 = vunpack.c.l.b16 %v4781
  %v4820 = vpack.c.b16 %v4805, %v4804
  %v4821 = vpack.c.b16 %v4807, %v4806
  %v4822 = vpack.c.b16 %v4809, %v4808
  %v4823 = vpack.c.b16 %v4811, %v4810
  %v4824 = vpack.c.b16 %v4813, %v4812
  %v4825 = vpack.c.b16 %v4815, %v4814
  %v4826 = vpack.c.b16 %v4817, %v4816
  %v4827 = vpack.c.b16 %v4819, %v4818
  %4836 = vmatpush.bf16.msra.mxu0 %v4827
  %4837 = vmatpush.bf16.msra.mxu0 %v4826
  %4838 = vmatpush.bf16.msra.mxu0 %v4825
  %4839 = vmatpush.bf16.msra.mxu0 %v4824
  %4840 = vmatpush.bf16.msra.mxu0 %v4823
  %4841 = vmatpush.bf16.msra.mxu0 %v4822
  %4842 = vmatpush.bf16.msra.mxu0 %v4821
  %4843 = vmatpush.bf16.msra.mxu0 %v4820
  %4844 = vmatmul.bf16.gmra.mxu0 %v4786
  %v4845 = vpop.f32.mrf.mxu0
  %v4846 = vadd.f32 0.0, %v4845
  %v4847 = vpop.f32.mrf.mxu0
  %v4848 = vadd.f32 0.0, %v4847
  %4849 = vdwg.mxu0
  %v4850 = vadd.f32 %v4763, %v4846
  %v4851 = vadd.f32 %v4764, %v4848
  %v4852 = vld [vmem:[%s4] sm:$0x1]
  %v4854 = vperm.slane %v4852, 0
  %v4856 = vadd.f32 %v4850, %v4854
  %v4857 = vadd.f32 %v4851, %v4854
  %v4858 = vmax.f32 %v4856, 0.0
  %v4859 = vmax.f32 %v4857, 0.0
  %v4860 = vpack.c.bf16 %v4859, %v4858
  %v4861 = vld [vmem:[%s5] sm:$0xf]
  %v4862 = vld [vmem:[%s5 + $0x4] sm:$0xf]
  %v4863 = vld [vmem:[%s5 + $0x8] sm:$0xf]
  %v4864 = vld [vmem:[%s5 + $0xc] sm:$0xf]
  %v4865 = vld [vmem:[%s5 + $0x10] sm:$0xf]
  %v4866 = vld [vmem:[%s5 + $0x14] sm:$0xf]
  %v4867 = vld [vmem:[%s5 + $0x18] sm:$0xf]
  %v4868 = vld [vmem:[%s5 + $0x1c] sm:$0xf]
  %v4869 = vld [vmem:[%s5 + $0x20] sm:$0xf]
  %v4870 = vld [vmem:[%s5 + $0x24] sm:$0xf]
  %v4871 = vld [vmem:[%s5 + $0x28] sm:$0xf]
  %v4872 = vld [vmem:[%s5 + $0x2c] sm:$0xf]
  %v4873 = vld [vmem:[%s5 + $0x30] sm:$0xf]
  %v4874 = vld [vmem:[%s5 + $0x34] sm:$0xf]
  %v4875 = vld [vmem:[%s5 + $0x38] sm:$0xf]
  %v4876 = vld [vmem:[%s5 + $0x3c] sm:$0xf]
  %v4877 = vld [vmem:[%s6] sm:$0x1]
  %v4879 = vperm.slane %v4877, 0
  %v4897 = vunpack.c.l.b16 %v4861
  %v4898 = vunpack.c.l.b16 %v4862
  %v4899 = vunpack.c.l.b16 %v4863
  %v4900 = vunpack.c.l.b16 %v4864
  %v4901 = vunpack.c.l.b16 %v4865
  %v4902 = vunpack.c.l.b16 %v4866
  %v4903 = vunpack.c.l.b16 %v4867
  %v4904 = vunpack.c.l.b16 %v4868
  %v4905 = vunpack.c.l.b16 %v4869
  %v4906 = vunpack.c.l.b16 %v4870
  %v4907 = vunpack.c.l.b16 %v4871
  %v4908 = vunpack.c.l.b16 %v4872
  %v4909 = vunpack.c.l.b16 %v4873
  %v4910 = vunpack.c.l.b16 %v4874
  %v4911 = vunpack.c.l.b16 %v4875
  %v4912 = vunpack.c.l.b16 %v4876
  %v4913 = vpack.c.b16 %v4898, %v4897
  %v4914 = vpack.c.b16 %v4900, %v4899
  %v4915 = vpack.c.b16 %v4902, %v4901
  %v4916 = vpack.c.b16 %v4904, %v4903
  %v4917 = vpack.c.b16 %v4906, %v4905
  %v4918 = vpack.c.b16 %v4908, %v4907
  %v4919 = vpack.c.b16 %v4910, %v4909
  %v4920 = vpack.c.b16 %v4912, %v4911
  %4929 = vmatpush.bf16.msra.mxu0 %v4920
  %4930 = vmatpush.bf16.msra.mxu0 %v4919
  %4931 = vmatpush.bf16.msra.mxu0 %v4918
  %4932 = vmatpush.bf16.msra.mxu0 %v4917
  %4933 = vmatpush.bf16.msra.mxu0 %v4916
  %4934 = vmatpush.bf16.msra.mxu0 %v4915
  %4935 = vmatpush.bf16.msra.mxu0 %v4914
  %4936 = vmatpush.bf16.msra.mxu0 %v4913
  %4937 = vmatmul.bf16.gmra.mxu0 %v4860
  %v4938 = vpop.f32.mrf.mxu0
  %v4939 = vadd.f32 %v4879, %v4938
  %v4940 = vpop.f32.mrf.mxu0
  %v4941 = vadd.f32 %v4879, %v4940
  %4942 = vdwg.mxu0
  %v4943 = vmax.f32 %v4939, 0.0
  %v4944 = vmax.f32 %v4941, 0.0
  %v4945 = vpack.c.bf16 %v4944, %v4943
  %v4946 = vld [vmem:[%s7] sm:$0xf]
  %v4947 = vld [vmem:[%s7 + $0x4] sm:$0xf]
  %v4948 = vld [vmem:[%s7 + $0x8] sm:$0xf]
  %v4949 = vld [vmem:[%s7 + $0xc] sm:$0xf]
  %v4950 = vld [vmem:[%s7 + $0x10] sm:$0xf]
  %v4951 = vld [vmem:[%s7 + $0x14] sm:$0xf]
  %v4952 = vld [vmem:[%s7 + $0x18] sm:$0xf]
  %v4953 = vld [vmem:[%s7 + $0x1c] sm:$0xf]
  %v4954 = vld [vmem:[%s7 + $0x20] sm:$0xf]
  %v4955 = vld [vmem:[%s7 + $0x24] sm:$0xf]
  %v4956 = vld [vmem:[%s7 + $0x28] sm:$0xf]
  %v4957 = vld [vmem:[%s7 + $0x2c] sm:$0xf]
  %v4958 = vld [vmem:[%s7 + $0x30] sm:$0xf]
  %v4959 = vld [vmem:[%s7 + $0x34] sm:$0xf]
  %v4960 = vld [vmem:[%s7 + $0x38] sm:$0xf]
  %v4961 = vld [vmem:[%s7 + $0x3c] sm:$0xf]
  %v4962 = vld [vmem:[%s8] sm:$0x1]
  %v4964 = vperm.slane %v4962, 0
  %v4982 = vunpack.c.l.b16 %v4946
  %v4983 = vunpack.c.l.b16 %v4947
  %v4984 = vunpack.c.l.b16 %v4948
  %v4985 = vunpack.c.l.b16 %v4949
  %v4986 = vunpack.c.l.b16 %v4950
  %v4987 = vunpack.c.l.b16 %v4951
  %v4988 = vunpack.c.l.b16 %v4952
  %v4989 = vunpack.c.l.b16 %v4953
  %v4990 = vunpack.c.l.b16 %v4954
  %v4991 = vunpack.c.l.b16 %v4955
  %v4992 = vunpack.c.l.b16 %v4956
  %v4993 = vunpack.c.l.b16 %v4957
  %v4994 = vunpack.c.l.b16 %v4958
  %v4995 = vunpack.c.l.b16 %v4959
  %v4996 = vunpack.c.l.b16 %v4960
  %v4997 = vunpack.c.l.b16 %v4961
  %v4998 = vpack.c.b16 %v4983, %v4982
  %v4999 = vpack.c.b16 %v4985, %v4984
  %v5000 = vpack.c.b16 %v4987, %v4986
  %v5001 = vpack.c.b16 %v4989, %v4988
  %v5002 = vpack.c.b16 %v4991, %v4990
  %v5003 = vpack.c.b16 %v4993, %v4992
  %v5004 = vpack.c.b16 %v4995, %v4994
  %v5005 = vpack.c.b16 %v4997, %v4996
  %5014 = vmatpush.bf16.msra.mxu0 %v5005
  %5015 = vmatpush.bf16.msra.mxu0 %v5004
  %5016 = vmatpush.bf16.msra.mxu0 %v5003
  %5017 = vmatpush.bf16.msra.mxu0 %v5002
  %5018 = vmatpush.bf16.msra.mxu0 %v5001
  %5019 = vmatpush.bf16.msra.mxu0 %v5000
  %5020 = vmatpush.bf16.msra.mxu0 %v4999
  %5021 = vmatpush.bf16.msra.mxu0 %v4998
  %5022 = vmatmul.bf16.gmra.mxu0 %v4945
  %v5023 = vpop.f32.mrf.mxu0
  %v5024 = vadd.f32 %v4964, %v5023
  %v5025 = vpop.f32.mrf.mxu0
  %v5026 = vadd.f32 %v4964, %v5025
  %5027 = vdwg.mxu0
  %5028 = vst [vmem:[%s9] sm:$0xff] %v5024
  %5029 = vst [vmem:[%s9 + $0x8] sm:$0xff] %v5026
  // Predicated region
  $region38: #{net_forward.3} parent=0 // pred_check
    _
  $region39: #{net_forward.3} parent=0 // pred_check_branch
    %5031 = sbr.rel (0) target = $region41
  $region40: #{net_forward.3} parent=0 // pred_region
    _
  $region41: #{net_forward.3} parent=0 // pred_fallthru
    _
  // Predicated region
  $region42: #{net_forward.3} parent=0 // pred_check
    _
  $region43: #{net_forward.3} parent=0 // pred_check_branch
    %5033 = sbr.rel (0) target = $region45
  $region44: #{net_forward.3} parent=0 // pred_region
    _
  $region45: #{net_forward.3} parent=0 // pred_fallthru
    _

</llo_original>
